<compile_context>
chip_gen: v7x
topology: tpu7x:2x2x1
jax: 0.10.0
libtpu: 0.0.40
codegen_flags: <defaults>
</compile_context>

<pallas_src>
import functools

import jax
import jax.numpy as jnp
from jax import lax
from jax.experimental import pallas as pl
from jax.experimental.pallas import tpu as pltpu

# ----------------------------- synthetic config -----------------------------
PAD_ID, CLS_ID, SEP_ID, MASK_ID = 0, 1, 2, 3
VOCAB = 128
HIDDEN = 32
HEADS = 2
HEAD_DIM = HIDDEN // HEADS
LAYERS = 2
INTER = 64
MAX_LEN = 16
TEMPERATURE = 0.05
LN_EPS = 1e-12

VMEM_SPEC = pl.BlockSpec(memory_space=pltpu.MemorySpace.VMEM)
SMEM_SPEC = pl.BlockSpec(memory_space=pltpu.MemorySpace.SMEM)


# --------------------------- static blob layouts -----------------------------
def _wlayout():
    lay, r = {}, 0

    def add(name, rows, cols):
        nonlocal r
        lay[name] = (r, rows, cols)
        r += rows

    add("word_emb", VOCAB, HIDDEN)
    for l in range(LAYERS):
        for h in range(HEADS):
            add(f"wq_{l}_{h}", HIDDEN, HEAD_DIM)
            add(f"wk_{l}_{h}", HIDDEN, HEAD_DIM)
            add(f"wv_{l}_{h}", HIDDEN, HEAD_DIM)
        for h in range(HEADS):
            add(f"wo_{l}_{h}", HEAD_DIM, HIDDEN)
        add(f"wi_{l}", HIDDEN, INTER)
        add(f"wo2_{l}", INTER, HIDDEN)
    add("mlm_wt", HIDDEN, HIDDEN)
    add("dec_w", HIDDEN, VOCAB)
    return lay, r


def _flayout():
    lay, r = {}, 0

    def add(name, rows, cols):
        nonlocal r
        lay[name] = (r, rows, cols)
        r += rows

    add("pos_type", MAX_LEN, HIDDEN)
    add("emb_ln_g", 1, HIDDEN)
    add("emb_ln_b", 1, HIDDEN)
    for l in range(LAYERS):
        for h in range(HEADS):
            add(f"bq_{l}_{h}", 1, HEAD_DIM)
            add(f"bk_{l}_{h}", 1, HEAD_DIM)
            add(f"bv_{l}_{h}", 1, HEAD_DIM)
        add(f"bo_{l}", 1, HIDDEN)
        add(f"ln1_g_{l}", 1, HIDDEN)
        add(f"ln1_b_{l}", 1, HIDDEN)
        add(f"bi_{l}", 1, INTER)
        add(f"bo2_{l}", 1, HIDDEN)
        add(f"ln2_g_{l}", 1, HIDDEN)
        add(f"ln2_b_{l}", 1, HIDDEN)
    add("mlm_bt", 1, HIDDEN)
    add("mlm_ln_g", 1, HIDDEN)
    add("mlm_ln_b", 1, HIDDEN)
    add("dec_b", 1, VOCAB)
    return lay, r


W_LAYOUT, W_ROWS = _wlayout()   # 832 rows x 128 lanes, bf16  (~208 KiB)
F_LAYOUT, F_ROWS = _flayout()   #  48 rows x 128 lanes, f32   (~24 KiB)


# ------------------------------ fused kernel --------------------------------
def cp_fused_kernel(wref, fref, bias_ref, iblob_ref, lblc_ref, lblr_ref, pos_ref,
                    loss_ref, x_scr, *, batch, seq, temperature):
    B, S, H, nh, dh = batch, seq, HIDDEN, HEADS, HEAD_DIM
    BS = B * S
    scale = 1.0 / (dh ** 0.5)

    def W(name):                                   # static row/col slice of the bf16 blob
        r, nr, nc = W_LAYOUT[name]
        return wref[r:r + nr, 0:nc]

    def F(name):                                   # static row/col slice of the f32 blob
        r, nr, nc = F_LAYOUT[name]
        return fref[r:r + nr, 0:nc]

    def gelu(y):
        # tanh-approximation GELU (BERT's exact-erf gelu differs by <1e-3 numerically)
        return 0.5 * y * (1.0 + jnp.tanh(0.7978845608028654 * (y + 0.044715 * y * y * y)))

    def dense(x, wname, bname, act=None):
        y = jnp.dot(x.astype(jnp.bfloat16), W(wname),
                    preferred_element_type=jnp.float32) + F(bname)
        return gelu(y) if act == "gelu" else y

    def layer_norm(x, gname, bname):
        mu = jnp.mean(x, axis=-1, keepdims=True)
        xc = x - mu
        var = jnp.mean(xc * xc, axis=-1, keepdims=True)
        return xc * lax.rsqrt(var + LN_EPS) * F(gname) + F(bname)

    # ---- embedding: one-hot token lookup on the (otherwise idle) MXU + pos/type + LN ----
    tok = iblob_ref[:, 0:1]                                                  # (BS, 1) int32
    vocab_iota = lax.broadcasted_iota(jnp.int32, (BS, VOCAB), 1)
    onehot = jnp.where(vocab_iota == tok, 1.0, 0.0).astype(jnp.bfloat16)     # (BS, VOCAB)
    emb = jnp.dot(onehot, W("word_emb"), preferred_element_type=jnp.float32)  # (BS, H)
    emb = (emb.reshape(B, S, H) + F("pos_type")[None]).reshape(BS, H)
    x = layer_norm(emb, "emb_ln_g", "emb_ln_b")

    # ---- attention bias broadcast ONCE for all layers / heads ----
    bias_b = jnp.broadcast_to(bias_ref[...][:, None, :], (B, S, S))          # (B, S, S)
    bias_full = jnp.concatenate([bias_b] * nh, axis=0)                       # (nh*B, S, S)

    # ---- encoder layers (statically unrolled; activations never leave VMEM) ----
    for l in range(LAYERS):
        xb16 = x.astype(jnp.bfloat16)

        def proj(kind, h):
            y = (jnp.dot(xb16, W(f"w{kind}_{l}_{h}"),
                         preferred_element_type=jnp.float32)
                 + F(f"b{kind}_{l}_{h}"))
            return y.reshape(B, S, dh)                                       # (B, S, dh)

        # heads land on the LEADING axis -> no activation lane slices / concats
        q = jnp.concatenate([proj("q", h) for h in range(nh)], axis=0)       # (nh*B, S, dh)
        k = jnp.concatenate([proj("k", h) for h in range(nh)], axis=0)
        v = jnp.concatenate([proj("v", h) for h in range(nh)], axis=0)

        s = jnp.einsum("bqd,bkd->bqk",
                       q.astype(jnp.bfloat16), k.astype(jnp.bfloat16),
                       preferred_element_type=jnp.float32) * scale + bias_full
        m = jnp.max(s, axis=-1, keepdims=True)
        p = jnp.exp(s - m)
        p = p * pl.reciprocal(jnp.sum(p, axis=-1, keepdims=True), approx=True)
        ctx = jnp.einsum("bqk,bkd->bqd",
                         p.astype(jnp.bfloat16), v.astype(jnp.bfloat16),
                         preferred_element_type=jnp.float32)                 # (nh*B, S, dh)

        # output projection as a per-head (BS,dh)@(dh,H) sum -> no lane concat needed
        attn = F(f"bo_{l}")
        for h in range(nh):
            ctx_h = ctx[h * B:(h + 1) * B].reshape(BS, dh)
            attn = attn + jnp.dot(ctx_h.astype(jnp.bfloat16), W(f"wo_{l}_{h}"),
                                  preferred_element_type=jnp.float32)

        x = layer_norm(x + attn, f"ln1_g_{l}", f"ln1_b_{l}")                 # residual + LN
        ffn = dense(dense(x, f"wi_{l}", f"bi_{l}", act="gelu"), f"wo2_{l}", f"bo2_{l}")
        x = layer_norm(x + ffn, f"ln2_g_{l}", f"ln2_b_{l}")                  # residual + LN

    # ---- MLM head + cross-entropy (logits stay in VMEM; lane-dense VOCAB=128) ----
    hh = layer_norm(dense(x, "mlm_wt", "mlm_bt", act="gelu"), "mlm_ln_g", "mlm_ln_b")
    logits = dense(hh, "dec_w", "dec_b")                                     # (BS, VOCAB)
    lbl = iblob_ref[:, 1:2]                                                  # (BS, 1) int32
    m = jnp.max(logits, axis=-1, keepdims=True)
    lse = jnp.log(jnp.sum(jnp.exp(logits - m), axis=-1, keepdims=True)) + m
    col = lax.broadcasted_iota(jnp.int32, logits.shape, 1)
    picked = jnp.sum(jnp.where(col == lbl, logits, 0.0), axis=-1, keepdims=True)
    valid = (lbl != -100).astype(jnp.float32)
    per_tok = (lse - picked) * valid
    # TODO(synk): torch CrossEntropyLoss yields NaN when zero tokens are masked; denominator
    # clamped to 1 to stay finite on tiny synthetic batches.
    m_loss = jnp.sum(per_tok) / jnp.maximum(jnp.sum(valid), 1.0)

    # ---- entity-state gather: SMEM positions drive dynamic row loads from scratch ----
    x_scr[...] = x
    h_state = jnp.concatenate(
        [x_scr[pl.ds(b * S + pos_ref[b], 1), :] for b in range(B)], axis=0)        # (B, H)
    t_state = jnp.concatenate(
        [x_scr[pl.ds(b * S + pos_ref[B + b], 1), :] for b in range(B)], axis=0)    # (B, H)

    # ---- NTXent contrastive loss on [h;t] states (joint norm; no lane concat) ----
    sq = jnp.sum(h_state * h_state + t_state * t_state, axis=-1, keepdims=True)    # (B, 1)
    inv_norm = 1.0 / jnp.maximum(jnp.sqrt(sq), 1e-12)
    hn = h_state * inv_norm
    tn = t_state * inv_norm
    dims = (((1,), (1,)), ((), ()))
    sim = (lax.dot_general(hn, hn, dims, preferred_element_type=jnp.float32)
           + lax.dot_general(tn, tn, dims, preferred_element_type=jnp.float32)) / temperature
    lc = lblc_ref[...]                                                       # (B, 1)
    lr = lblr_ref[...]                                                       # (1, B)
    same = lc == lr
    eye = (lax.broadcasted_iota(jnp.int32, (B, B), 0)
           == lax.broadcasted_iota(jnp.int32, (B, B), 1))
    pos_mask = jnp.logical_and(same, jnp.logical_not(eye)).astype(jnp.float32)
    neg_mask = jnp.logical_not(same).astype(jnp.float32)
    NEG = -1e30
    neg_sim = jnp.where(neg_mask > 0, sim, NEG)
    neg_max = jnp.max(neg_sim, axis=-1, keepdims=True)                       # (B, 1)
    neg_sumexp = jnp.sum(jnp.where(neg_mask > 0, jnp.exp(neg_sim - neg_max), 0.0),
                         axis=-1, keepdims=True)
    # TODO(synk): the reference casts the negative max to fp16 (.half()); kept fp32 here.
    max_val = jnp.maximum(sim, neg_max)
    numer = jnp.exp(sim - max_val)
    denom = jnp.exp(neg_max - max_val) * neg_sumexp + numer
    log_exp = jnp.log(numer / denom + 1e-20)
    n_pos = jnp.sum(pos_mask)
    r_loss = jnp.sum(-log_exp * pos_mask) / jnp.maximum(n_pos, 1.0)

    # single merged (1, 2) output -> one writeback
    loss_ref[...] = jnp.concatenate([m_loss.reshape(1, 1), r_loss.reshape(1, 1)], axis=1)


# ------------------------------ model (glue) -------------------------------
def mask_tokens_jax(key, inputs, not_mask_pos):
    """JAX version of mask_tokens (80% MASK / 10% random / 10% original)."""
    special = (inputs == CLS_ID) | (inputs == SEP_ID)
    pad = (inputs == PAD_ID)
    prob = jnp.where(special | pad, 0.0, 0.15)
    k1, k2, k3, k4 = jax.random.split(key, 4)
    masked = (jax.random.uniform(k1, inputs.shape) < prob) & (not_mask_pos == 0)
    labels = jnp.where(masked, inputs, -100)
    replaced = (jax.random.uniform(k2, inputs.shape) < 0.8) & masked
    out = jnp.where(replaced, MASK_ID, inputs)
    rand_idx = (jax.random.uniform(k3, inputs.shape) < 0.5) & masked & (~replaced)
    random_words = jax.random.randint(k4, inputs.shape, 0, VOCAB)
    out = jnp.where(rand_idx, random_words, out)
    return out, labels


def cp_forward(packed, inp, mask, label, h_pos, t_pos, key, *, max_length, temperature):
    inp = inp.reshape(-1, max_length)
    mask = mask.reshape(-1, max_length)
    label = label.reshape(-1)
    h_pos = h_pos.reshape(-1)
    t_pos = t_pos.reshape(-1)
    B, S = inp.shape
    idx = jnp.arange(B)
    not_mask_pos = jnp.zeros((B, S), jnp.int32).at[idx, h_pos].set(1).at[idx, t_pos].set(1)

    m_input, m_labels = mask_tokens_jax(key, inp, not_mask_pos)

    # small per-call operands (weights are pre-packed once into 2 blobs)
    iblob = jnp.stack([m_input.reshape(-1), m_labels.reshape(-1)], axis=1).astype(jnp.int32)
    attn_bias = (1.0 - mask.astype(jnp.float32)) * -10000.0                 # (B, S)
    pos_smem = jnp.concatenate([h_pos, t_pos]).astype(jnp.int32)            # (2B,) -> SMEM

    operands = (packed["wblob"], packed["fblob"], attn_bias, iblob,
                label.reshape(B, 1).astype(jnp.int32),
                label.reshape(1, B).astype(jnp.int32),
                pos_smem)

    kernel = functools.partial(cp_fused_kernel, batch=B, seq=S, temperature=temperature)
    # Single gridless launch; everything (weights + activations < 1 MiB) is VMEM-resident.
    # TODO(synk): add a leading "parallel" batch grid axis for v7x's 2 TensorCores once the
    # batch is large enough to amortize the split.
    losses = pl.pallas_call(
        kernel,
        out_shape=jax.ShapeDtypeStruct((1, 2), jnp.float32),
        in_specs=[VMEM_SPEC] * 6 + [SMEM_SPEC],
        out_specs=VMEM_SPEC,
        scratch_shapes=[pltpu.VMEM((B * S, HIDDEN), jnp.float32)],
    )(*operands)
    return losses[0, 0], losses[0, 1]


# ------------------------- deterministic params + packing -------------------------
def init_params(key):
    ks = iter(jax.random.split(key, 64))

    def w(shape):
        return (0.02 * jax.random.normal(next(ks), shape)).astype(jnp.float32)

    def wl(shape):  # f32 masters; cast to bf16 only at pack time
        return jnp.stack([w(shape) for _ in range(LAYERS)])

    zeros = lambda s: jnp.zeros(s, jnp.float32)
    ones = lambda s: jnp.ones(s, jnp.float32)

    return dict(
        word_emb=w((VOCAB, HIDDEN)),
        pos_emb=w((MAX_LEN, HIDDEN)),
        type_emb=w((2, HIDDEN)),
        emb_ln_g=ones((HIDDEN,)), emb_ln_b=zeros((HIDDEN,)),
        wqkv=wl((HIDDEN, 3 * HIDDEN)), bqkv=zeros((LAYERS, 3 * HIDDEN)),
        wo=wl((HIDDEN, HIDDEN)), bo=zeros((LAYERS, HIDDEN)),
        ln1_g=ones((LAYERS, HIDDEN)), ln1_b=zeros((LAYERS, HIDDEN)),
        wi=wl((HIDDEN, INTER)), bi=zeros((LAYERS, INTER)),
        wo2=wl((INTER, HIDDEN)), bo2=zeros((LAYERS, HIDDEN)),
        ln2_g=ones((LAYERS, HIDDEN)), ln2_b=zeros((LAYERS, HIDDEN)),
        mlm_wt=w((HIDDEN, HIDDEN)), mlm_bt=zeros((HIDDEN,)),
        mlm_ln_g=ones((HIDDEN,)), mlm_ln_b=zeros((HIDDEN,)),
        decoder_w=w((HIDDEN, VOCAB)), decoder_b=zeros((VOCAB,)),
    )


def pack_params(params):
    """Pack all weights into one bf16 blob and one f32 blob (done once, outside jit)."""
    H, dh = HIDDEN, HEAD_DIM
    wb = jnp.zeros((W_ROWS, 128), jnp.float32)
    fb = jnp.zeros((F_ROWS, 128), jnp.float32)

    def put(blob, layout, name, arr):
        r, nr, nc = layout[name]
        return blob.at[r:r + nr, :nc].set(jnp.asarray(arr, jnp.float32).reshape(nr, nc))

    wb = put(wb, W_LAYOUT, "word_emb", params["word_emb"])
    for l in range(LAYERS):
        wqkv = params["wqkv"][l]
        bqkv = params["bqkv"][l].reshape(3 * H)
        for h in range(HEADS):
            for gi, kind in enumerate(("q", "k", "v")):
                cols = slice(gi * H + h * dh, gi * H + (h + 1) * dh)
                wb = put(wb, W_LAYOUT, f"w{kind}_{l}_{h}", wqkv[:, cols])
                fb = put(fb, F_LAYOUT, f"b{kind}_{l}_{h}", bqkv[cols])
            wb = put(wb, W_LAYOUT, f"wo_{l}_{h}", params["wo"][l][h * dh:(h + 1) * dh, :])
        fb = put(fb, F_LAYOUT, f"bo_{l}", params["bo"][l])
        fb = put(fb, F_LAYOUT, f"ln1_g_{l}", params["ln1_g"][l])
        fb = put(fb, F_LAYOUT, f"ln1_b_{l}", params["ln1_b"][l])
        wb = put(wb, W_LAYOUT, f"wi_{l}", params["wi"][l])
        fb = put(fb, F_LAYOUT, f"bi_{l}", params["bi"][l])
        wb = put(wb, W_LAYOUT, f"wo2_{l}", params["wo2"][l])
        fb = put(fb, F_LAYOUT, f"bo2_{l}", params["bo2"][l])
        fb = put(fb, F_LAYOUT, f"ln2_g_{l}", params["ln2_g"][l])
        fb = put(fb, F_LAYOUT, f"ln2_b_{l}", params["ln2_b"][l])
    wb = put(wb, W_LAYOUT, "mlm_wt", params["mlm_wt"])
    wb = put(wb, W_LAYOUT, "dec_w", params["decoder_w"])

    fb = put(fb, F_LAYOUT, "pos_type", params["pos_emb"] + params["type_emb"][0][None])
    fb = put(fb, F_LAYOUT, "emb_ln_g", params["emb_ln_g"])
    fb = put(fb, F_LAYOUT, "emb_ln_b", params["emb_ln_b"])
    fb = put(fb, F_LAYOUT, "mlm_bt", params["mlm_bt"])
    fb = put(fb, F_LAYOUT, "mlm_ln_g", params["mlm_ln_g"])
    fb = put(fb, F_LAYOUT, "mlm_ln_b", params["mlm_ln_b"])
    fb = put(fb, F_LAYOUT, "dec_b", params["decoder_b"])

    return dict(wblob=wb.astype(jnp.bfloat16), fblob=fb)


# ----------------------------------- main -----------------------------------
if __name__ == "__main__":
    key = jax.random.PRNGKey(0)
    kp, kt, kh, ktp, km = jax.random.split(key, 5)
    params = init_params(kp)
    packed = pack_params(params)

    # (batch, 2 sentences per relation instance, max_length) — matches input.view(-1, max_length)
    Bp, P = 4, 2                      # B = 8 sequences, BS = 128 tokens per launch
    input_ids = jax.random.randint(kt, (Bp, P, MAX_LEN), 4, VOCAB).astype(jnp.int32)
    input_ids = input_ids.at[:, :, 0].set(CLS_ID).at[:, :, MAX_LEN - 1].set(SEP_ID)
    mask = jnp.ones((Bp, P, MAX_LEN), jnp.int32)
    input_ids = input_ids.at[-1, -1, MAX_LEN - 4:].set(PAD_ID).at[-1, -1, MAX_LEN - 5].set(SEP_ID)
    mask = mask.at[-1, -1, MAX_LEN - 4:].set(0)
    label = jnp.repeat(jnp.arange(Bp, dtype=jnp.int32), P).reshape(Bp, P)   # relation labels
    h_pos = jax.random.randint(kh, (Bp, P), 1, MAX_LEN - 6).astype(jnp.int32)
    t_pos = jax.random.randint(ktp, (Bp, P), 1, MAX_LEN - 6).astype(jnp.int32)

    fwd = jax.jit(functools.partial(cp_forward, max_length=MAX_LEN, temperature=TEMPERATURE))
    m_loss, r_loss = fwd(packed, input_ids, mask, label, h_pos, t_pos, km)
    jax.block_until_ready((m_loss, r_loss))
    assert bool(jnp.isfinite(m_loss)) and bool(jnp.isfinite(r_loss))
    print("KERNEL_OK")
</pallas_src>

<mosaic_0001>
module attributes {stable_mosaic.version = 11 : i64} {
  func.func @cp_fused_kernel(%arg0: memref<832x128xbf16, #tpu.memory_space<vmem>>, %arg1: memref<48x128xf32, #tpu.memory_space<vmem>>, %arg2: memref<8x16xf32, #tpu.memory_space<vmem>>, %arg3: memref<128x2xi32, #tpu.memory_space<vmem>>, %arg4: memref<8x1xi32, #tpu.memory_space<vmem>>, %arg5: memref<1x8xi32, #tpu.memory_space<vmem>>, %arg6: memref<16xi32, #tpu.memory_space<smem>>, %arg7: memref<1x2xf32, #tpu.memory_space<vmem>>, %arg8: memref<128x32xf32, #tpu.memory_space<vmem>>) attributes {dimension_semantics = [], scalar_prefetch = 0 : i64, scratch_operands = 1 : i64, tpu.core_type = #tpu.core_type<tc>} {
    %c0 = arith.constant 0 : index
    %c0_0 = arith.constant 0 : index
    %0 = vector.load %arg3[%c0, %c0_0] : memref<128x2xi32, #tpu.memory_space<vmem>>, vector<128x1xi32>
    %1 = tpu.iota {dimensions = array<i32: 1>} : vector<128x128xi32>
    %2 = vector.broadcast %0 : vector<128x1xi32> to vector<128x128xi32>
    %3 = arith.cmpi eq, %1, %2 : vector<128x128xi32>
    %cst = arith.constant 1.000000e+00 : f32
    %cst_1 = arith.constant 0.000000e+00 : f32
    %4 = vector.broadcast %cst : f32 to vector<128x128xf32>
    %5 = vector.broadcast %cst_1 : f32 to vector<128x128xf32>
    %6 = arith.select %3, %4, %5 : vector<128x128xi1>, vector<128x128xf32>
    %7 = arith.truncf %6 : vector<128x128xf32> to vector<128x128xbf16>
    %c0_2 = arith.constant 0 : index
    %c0_3 = arith.constant 0 : index
    %8 = vector.load %arg0[%c0_2, %c0_3] : memref<832x128xbf16, #tpu.memory_space<vmem>>, vector<128x32xbf16>
    %cst_4 = arith.constant dense<0.000000e+00> : vector<128x32xf32>
    %9 = tpu.matmul %7, %8, %cst_4 {dimension_numbers = #tpu.dot_dimension_numbers<[1], [0], [0], [1], [0, 0, 1, 1], [], []>} : vector<128x128xbf16>, vector<128x32xbf16>, vector<128x32xf32> -> vector<128x32xf32>
    %10 = vector.shape_cast %9 : vector<128x32xf32> to vector<8x16x32xf32>
    %c0_5 = arith.constant 0 : index
    %c0_6 = arith.constant 0 : index
    %11 = vector.load %arg1[%c0_5, %c0_6] : memref<48x128xf32, #tpu.memory_space<vmem>>, vector<16x32xf32>
    %12 = vector.shape_cast %11 : vector<16x32xf32> to vector<1x16x32xf32>
    %13 = vector.broadcast %12 : vector<1x16x32xf32> to vector<8x16x32xf32>
    %14 = arith.addf %10, %13 : vector<8x16x32xf32>
    %15 = vector.shape_cast %14 : vector<8x16x32xf32> to vector<128x32xf32>
    %cst_7 = arith.constant dense<0.000000e+00> : vector<128xf32>
    %16 = vector.multi_reduction <add>, %15, %cst_7 [1] : vector<128x32xf32> to vector<128xf32>
    %17 = vector.shape_cast %16 : vector<128xf32> to vector<128x1xf32>
    %cst_8 = arith.constant 3.200000e+01 : f32
    %18 = vector.broadcast %cst_8 : f32 to vector<128x1xf32>
    %19 = arith.divf %17, %18 : vector<128x1xf32>
    %20 = vector.broadcast %19 : vector<128x1xf32> to vector<128x32xf32>
    %21 = arith.subf %15, %20 : vector<128x32xf32>
    %22 = arith.mulf %21, %21 : vector<128x32xf32>
    %cst_9 = arith.constant dense<0.000000e+00> : vector<128xf32>
    %23 = vector.multi_reduction <add>, %22, %cst_9 [1] : vector<128x32xf32> to vector<128xf32>
    %24 = vector.shape_cast %23 : vector<128xf32> to vector<128x1xf32>
    %cst_10 = arith.constant 3.200000e+01 : f32
    %25 = vector.broadcast %cst_10 : f32 to vector<128x1xf32>
    %26 = arith.divf %24, %25 : vector<128x1xf32>
    %cst_11 = arith.constant 9.99999996E-13 : f32
    %27 = vector.broadcast %cst_11 : f32 to vector<128x1xf32>
    %28 = arith.addf %26, %27 : vector<128x1xf32>
    %29 = math.rsqrt %28 : vector<128x1xf32>
    %30 = vector.broadcast %29 : vector<128x1xf32> to vector<128x32xf32>
    %31 = arith.mulf %21, %30 : vector<128x32xf32>
    %c16 = arith.constant 16 : index
    %c0_12 = arith.constant 0 : index
    %32 = vector.load %arg1[%c16, %c0_12] : memref<48x128xf32, #tpu.memory_space<vmem>>, vector<1x32xf32>
    %33 = vector.broadcast %32 : vector<1x32xf32> to vector<128x32xf32>
    %34 = arith.mulf %31, %33 : vector<128x32xf32>
    %c17 = arith.constant 17 : index
    %c0_13 = arith.constant 0 : index
    %35 = vector.load %arg1[%c17, %c0_13] : memref<48x128xf32, #tpu.memory_space<vmem>>, vector<1x32xf32>
    %36 = vector.broadcast %35 : vector<1x32xf32> to vector<128x32xf32>
    %37 = arith.addf %34, %36 : vector<128x32xf32>
    %c0_14 = arith.constant 0 : index
    %c0_15 = arith.constant 0 : index
    %38 = vector.load %arg2[%c0_14, %c0_15] : memref<8x16xf32, #tpu.memory_space<vmem>>, vector<8x16xf32>
    %39 = vector.shape_cast %38 : vector<8x16xf32> to vector<8x1x16xf32>
    %40 = vector.shape_cast %39 : vector<8x1x16xf32> to vector<8x1x16xf32>
    %41 = vector.broadcast %40 : vector<8x1x16xf32> to vector<8x16x16xf32>
    %42 = tpu.concatenate %41, %41 in 0 : vector<8x16x16xf32>, vector<8x16x16xf32> -> vector<16x16x16xf32>
    %43 = arith.truncf %37 : vector<128x32xf32> to vector<128x32xbf16>
    %c128 = arith.constant 128 : index
    %c0_16 = arith.constant 0 : index
    %44 = vector.load %arg0[%c128, %c0_16] : memref<832x128xbf16, #tpu.memory_space<vmem>>, vector<32x16xbf16>
    %cst_17 = arith.constant dense<0.000000e+00> : vector<128x16xf32>
    %45 = tpu.matmul %43, %44, %cst_17 {dimension_numbers = #tpu.dot_dimension_numbers<[1], [0], [0], [1], [0, 0, 1, 1], [], []>} : vector<128x32xbf16>, vector<32x16xbf16>, vector<128x16xf32> -> vector<128x16xf32>
    %c18 = arith.constant 18 : index
    %c0_18 = arith.constant 0 : index
    %46 = vector.load %arg1[%c18, %c0_18] : memref<48x128xf32, #tpu.memory_space<vmem>>, vector<1x16xf32>
    %47 = vector.broadcast %46 : vector<1x16xf32> to vector<128x16xf32>
    %48 = arith.addf %45, %47 : vector<128x16xf32>
    %49 = vector.shape_cast %48 : vector<128x16xf32> to vector<8x16x16xf32>
    %c224 = arith.constant 224 : index
    %c0_19 = arith.constant 0 : index
    %50 = vector.load %arg0[%c224, %c0_19] : memref<832x128xbf16, #tpu.memory_space<vmem>>, vector<32x16xbf16>
    %cst_20 = arith.constant dense<0.000000e+00> : vector<128x16xf32>
    %51 = tpu.matmul %43, %50, %cst_20 {dimension_numbers = #tpu.dot_dimension_numbers<[1], [0], [0], [1], [0, 0, 1, 1], [], []>} : vector<128x32xbf16>, vector<32x16xbf16>, vector<128x16xf32> -> vector<128x16xf32>
    %c21 = arith.constant 21 : index
    %c0_21 = arith.constant 0 : index
    %52 = vector.load %arg1[%c21, %c0_21] : memref<48x128xf32, #tpu.memory_space<vmem>>, vector<1x16xf32>
    %53 = vector.broadcast %52 : vector<1x16xf32> to vector<128x16xf32>
    %54 = arith.addf %51, %53 : vector<128x16xf32>
    %55 = vector.shape_cast %54 : vector<128x16xf32> to vector<8x16x16xf32>
    %56 = tpu.concatenate %49, %55 in 0 : vector<8x16x16xf32>, vector<8x16x16xf32> -> vector<16x16x16xf32>
    %c160 = arith.constant 160 : index
    %c0_22 = arith.constant 0 : index
    %57 = vector.load %arg0[%c160, %c0_22] : memref<832x128xbf16, #tpu.memory_space<vmem>>, vector<32x16xbf16>
    %cst_23 = arith.constant dense<0.000000e+00> : vector<128x16xf32>
    %58 = tpu.matmul %43, %57, %cst_23 {dimension_numbers = #tpu.dot_dimension_numbers<[1], [0], [0], [1], [0, 0, 1, 1], [], []>} : vector<128x32xbf16>, vector<32x16xbf16>, vector<128x16xf32> -> vector<128x16xf32>
    %c19 = arith.constant 19 : index
    %c0_24 = arith.constant 0 : index
    %59 = vector.load %arg1[%c19, %c0_24] : memref<48x128xf32, #tpu.memory_space<vmem>>, vector<1x16xf32>
    %60 = vector.broadcast %59 : vector<1x16xf32> to vector<128x16xf32>
    %61 = arith.addf %58, %60 : vector<128x16xf32>
    %62 = vector.shape_cast %61 : vector<128x16xf32> to vector<8x16x16xf32>
    %c256 = arith.constant 256 : index
    %c0_25 = arith.constant 0 : index
    %63 = vector.load %arg0[%c256, %c0_25] : memref<832x128xbf16, #tpu.memory_space<vmem>>, vector<32x16xbf16>
    %cst_26 = arith.constant dense<0.000000e+00> : vector<128x16xf32>
    %64 = tpu.matmul %43, %63, %cst_26 {dimension_numbers = #tpu.dot_dimension_numbers<[1], [0], [0], [1], [0, 0, 1, 1], [], []>} : vector<128x32xbf16>, vector<32x16xbf16>, vector<128x16xf32> -> vector<128x16xf32>
    %c22 = arith.constant 22 : index
    %c0_27 = arith.constant 0 : index
    %65 = vector.load %arg1[%c22, %c0_27] : memref<48x128xf32, #tpu.memory_space<vmem>>, vector<1x16xf32>
    %66 = vector.broadcast %65 : vector<1x16xf32> to vector<128x16xf32>
    %67 = arith.addf %64, %66 : vector<128x16xf32>
    %68 = vector.shape_cast %67 : vector<128x16xf32> to vector<8x16x16xf32>
    %69 = tpu.concatenate %62, %68 in 0 : vector<8x16x16xf32>, vector<8x16x16xf32> -> vector<16x16x16xf32>
    %c192 = arith.constant 192 : index
    %c0_28 = arith.constant 0 : index
    %70 = vector.load %arg0[%c192, %c0_28] : memref<832x128xbf16, #tpu.memory_space<vmem>>, vector<32x16xbf16>
    %cst_29 = arith.constant dense<0.000000e+00> : vector<128x16xf32>
    %71 = tpu.matmul %43, %70, %cst_29 {dimension_numbers = #tpu.dot_dimension_numbers<[1], [0], [0], [1], [0, 0, 1, 1], [], []>} : vector<128x32xbf16>, vector<32x16xbf16>, vector<128x16xf32> -> vector<128x16xf32>
    %c20 = arith.constant 20 : index
    %c0_30 = arith.constant 0 : index
    %72 = vector.load %arg1[%c20, %c0_30] : memref<48x128xf32, #tpu.memory_space<vmem>>, vector<1x16xf32>
    %73 = vector.broadcast %72 : vector<1x16xf32> to vector<128x16xf32>
    %74 = arith.addf %71, %73 : vector<128x16xf32>
    %75 = vector.shape_cast %74 : vector<128x16xf32> to vector<8x16x16xf32>
    %c288 = arith.constant 288 : index
    %c0_31 = arith.constant 0 : index
    %76 = vector.load %arg0[%c288, %c0_31] : memref<832x128xbf16, #tpu.memory_space<vmem>>, vector<32x16xbf16>
    %cst_32 = arith.constant dense<0.000000e+00> : vector<128x16xf32>
    %77 = tpu.matmul %43, %76, %cst_32 {dimension_numbers = #tpu.dot_dimension_numbers<[1], [0], [0], [1], [0, 0, 1, 1], [], []>} : vector<128x32xbf16>, vector<32x16xbf16>, vector<128x16xf32> -> vector<128x16xf32>
    %c23 = arith.constant 23 : index
    %c0_33 = arith.constant 0 : index
    %78 = vector.load %arg1[%c23, %c0_33] : memref<48x128xf32, #tpu.memory_space<vmem>>, vector<1x16xf32>
    %79 = vector.broadcast %78 : vector<1x16xf32> to vector<128x16xf32>
    %80 = arith.addf %77, %79 : vector<128x16xf32>
    %81 = vector.shape_cast %80 : vector<128x16xf32> to vector<8x16x16xf32>
    %82 = tpu.concatenate %75, %81 in 0 : vector<8x16x16xf32>, vector<8x16x16xf32> -> vector<16x16x16xf32>
    %83 = arith.truncf %56 : vector<16x16x16xf32> to vector<16x16x16xbf16>
    %84 = arith.truncf %69 : vector<16x16x16xf32> to vector<16x16x16xbf16>
    "tpu.trace_start"() <{level = 10 : i32, message = "bqd,bkd->bqk"}> : () -> ()
    %cst_34 = arith.constant dense<0.000000e+00> : vector<16x16x16xf32>
    %85 = tpu.matmul %83, %84, %cst_34 {dimension_numbers = #tpu.dot_dimension_numbers<[2], [2], [1], [1], [0, 0, 0, 1, 1, 1], [0], [0]>} : vector<16x16x16xbf16>, vector<16x16x16xbf16>, vector<16x16x16xf32> -> vector<16x16x16xf32>
    "tpu.trace_stop"() : () -> ()
    %cst_35 = arith.constant 2.500000e-01 : f32
    %86 = vector.broadcast %cst_35 : f32 to vector<16x16x16xf32>
    %87 = arith.mulf %85, %86 : vector<16x16x16xf32>
    %88 = arith.addf %87, %42 : vector<16x16x16xf32>
    %cst_36 = arith.constant dense<0xFF800000> : vector<16x16xf32>
    %89 = vector.multi_reduction <maximumf>, %88, %cst_36 [2] : vector<16x16x16xf32> to vector<16x16xf32>
    %90 = vector.shape_cast %89 : vector<16x16xf32> to vector<16x16x1xf32>
    %91 = vector.broadcast %90 : vector<16x16x1xf32> to vector<16x16x16xf32>
    %92 = arith.subf %88, %91 : vector<16x16x16xf32>
    %93 = math.exp %92 : vector<16x16x16xf32>
    %cst_37 = arith.constant dense<0.000000e+00> : vector<16x16xf32>
    %94 = vector.multi_reduction <add>, %93, %cst_37 [2] : vector<16x16x16xf32> to vector<16x16xf32>
    %95 = vector.shape_cast %94 : vector<16x16xf32> to vector<16x16x1xf32>
    %96 = tpu.reciprocal %95 {approx = true} : vector<16x16x1xf32> -> vector<16x16x1xf32>
    %97 = vector.broadcast %96 : vector<16x16x1xf32> to vector<16x16x16xf32>
    %98 = arith.mulf %93, %97 : vector<16x16x16xf32>
    %99 = arith.truncf %98 : vector<16x16x16xf32> to vector<16x16x16xbf16>
    %100 = arith.truncf %82 : vector<16x16x16xf32> to vector<16x16x16xbf16>
    "tpu.trace_start"() <{level = 10 : i32, message = "bqk,bkd->bqd"}> : () -> ()
    %cst_38 = arith.constant dense<0.000000e+00> : vector<16x16x16xf32>
    %101 = tpu.matmul %99, %100, %cst_38 {dimension_numbers = #tpu.dot_dimension_numbers<[2], [1], [1], [2], [0, 0, 0, 1, 1, 2], [0], [0]>} : vector<16x16x16xbf16>, vector<16x16x16xbf16>, vector<16x16x16xf32> -> vector<16x16x16xf32>
    "tpu.trace_stop"() : () -> ()
    %c24 = arith.constant 24 : index
    %c0_39 = arith.constant 0 : index
    %102 = vector.load %arg1[%c24, %c0_39] : memref<48x128xf32, #tpu.memory_space<vmem>>, vector<1x32xf32>
    %103 = vector.extract_strided_slice %101 {offsets = [0, 0, 0], sizes = [8, 16, 16], strides = [1, 1, 1]} : vector<16x16x16xf32> to vector<8x16x16xf32>
    %104 = vector.shape_cast %103 : vector<8x16x16xf32> to vector<128x16xf32>
    %105 = arith.truncf %104 : vector<128x16xf32> to vector<128x16xbf16>
    %c320 = arith.constant 320 : index
    %c0_40 = arith.constant 0 : index
    %106 = vector.load %arg0[%c320, %c0_40] : memref<832x128xbf16, #tpu.memory_space<vmem>>, vector<16x32xbf16>
    %cst_41 = arith.constant dense<0.000000e+00> : vector<128x32xf32>
    %107 = tpu.matmul %105, %106, %cst_41 {dimension_numbers = #tpu.dot_dimension_numbers<[1], [0], [0], [1], [0, 0, 1, 1], [], []>} : vector<128x16xbf16>, vector<16x32xbf16>, vector<128x32xf32> -> vector<128x32xf32>
    %108 = vector.broadcast %102 : vector<1x32xf32> to vector<128x32xf32>
    %109 = arith.addf %108, %107 : vector<128x32xf32>
    %110 = vector.extract_strided_slice %101 {offsets = [8, 0, 0], sizes = [8, 16, 16], strides = [1, 1, 1]} : vector<16x16x16xf32> to vector<8x16x16xf32>
    %111 = vector.shape_cast %110 : vector<8x16x16xf32> to vector<128x16xf32>
    %112 = arith.truncf %111 : vector<128x16xf32> to vector<128x16xbf16>
    %c336 = arith.constant 336 : index
    %c0_42 = arith.constant 0 : index
    %113 = vector.load %arg0[%c336, %c0_42] : memref<832x128xbf16, #tpu.memory_space<vmem>>, vector<16x32xbf16>
    %cst_43 = arith.constant dense<0.000000e+00> : vector<128x32xf32>
    %114 = tpu.matmul %112, %113, %cst_43 {dimension_numbers = #tpu.dot_dimension_numbers<[1], [0], [0], [1], [0, 0, 1, 1], [], []>} : vector<128x16xbf16>, vector<16x32xbf16>, vector<128x32xf32> -> vector<128x32xf32>
    %115 = arith.addf %109, %114 : vector<128x32xf32>
    %116 = arith.addf %37, %115 : vector<128x32xf32>
    %cst_44 = arith.constant dense<0.000000e+00> : vector<128xf32>
    %117 = vector.multi_reduction <add>, %116, %cst_44 [1] : vector<128x32xf32> to vector<128xf32>
    %118 = vector.shape_cast %117 : vector<128xf32> to vector<128x1xf32>
    %cst_45 = arith.constant 3.200000e+01 : f32
    %119 = vector.broadcast %cst_45 : f32 to vector<128x1xf32>
    %120 = arith.divf %118, %119 : vector<128x1xf32>
    %121 = vector.broadcast %120 : vector<128x1xf32> to vector<128x32xf32>
    %122 = arith.subf %116, %121 : vector<128x32xf32>
    %123 = arith.mulf %122, %122 : vector<128x32xf32>
    %cst_46 = arith.constant dense<0.000000e+00> : vector<128xf32>
    %124 = vector.multi_reduction <add>, %123, %cst_46 [1] : vector<128x32xf32> to vector<128xf32>
    %125 = vector.shape_cast %124 : vector<128xf32> to vector<128x1xf32>
    %cst_47 = arith.constant 3.200000e+01 : f32
    %126 = vector.broadcast %cst_47 : f32 to vector<128x1xf32>
    %127 = arith.divf %125, %126 : vector<128x1xf32>
    %cst_48 = arith.constant 9.99999996E-13 : f32
    %128 = vector.broadcast %cst_48 : f32 to vector<128x1xf32>
    %129 = arith.addf %127, %128 : vector<128x1xf32>
    %130 = math.rsqrt %129 : vector<128x1xf32>
    %131 = vector.broadcast %130 : vector<128x1xf32> to vector<128x32xf32>
    %132 = arith.mulf %122, %131 : vector<128x32xf32>
    %c25 = arith.constant 25 : index
    %c0_49 = arith.constant 0 : index
    %133 = vector.load %arg1[%c25, %c0_49] : memref<48x128xf32, #tpu.memory_space<vmem>>, vector<1x32xf32>
    %134 = vector.broadcast %133 : vector<1x32xf32> to vector<128x32xf32>
    %135 = arith.mulf %132, %134 : vector<128x32xf32>
    %c26 = arith.constant 26 : index
    %c0_50 = arith.constant 0 : index
    %136 = vector.load %arg1[%c26, %c0_50] : memref<48x128xf32, #tpu.memory_space<vmem>>, vector<1x32xf32>
    %137 = vector.broadcast %136 : vector<1x32xf32> to vector<128x32xf32>
    %138 = arith.addf %135, %137 : vector<128x32xf32>
    %139 = arith.truncf %138 : vector<128x32xf32> to vector<128x32xbf16>
    %c352 = arith.constant 352 : index
    %c0_51 = arith.constant 0 : index
    %140 = vector.load %arg0[%c352, %c0_51] : memref<832x128xbf16, #tpu.memory_space<vmem>>, vector<32x64xbf16>
    %cst_52 = arith.constant dense<0.000000e+00> : vector<128x64xf32>
    %141 = tpu.matmul %139, %140, %cst_52 {dimension_numbers = #tpu.dot_dimension_numbers<[1], [0], [0], [1], [0, 0, 1, 1], [], []>} : vector<128x32xbf16>, vector<32x64xbf16>, vector<128x64xf32> -> vector<128x64xf32>
    %c27 = arith.constant 27 : index
    %c0_53 = arith.constant 0 : index
    %142 = vector.load %arg1[%c27, %c0_53] : memref<48x128xf32, #tpu.memory_space<vmem>>, vector<1x64xf32>
    %143 = vector.broadcast %142 : vector<1x64xf32> to vector<128x64xf32>
    %144 = arith.addf %141, %143 : vector<128x64xf32>
    %cst_54 = arith.constant 5.000000e-01 : f32
    %145 = vector.broadcast %cst_54 : f32 to vector<128x64xf32>
    %146 = arith.mulf %145, %144 : vector<128x64xf32>
    %cst_55 = arith.constant 4.471500e-02 : f32
    %147 = vector.broadcast %cst_55 : f32 to vector<128x64xf32>
    %148 = arith.mulf %147, %144 : vector<128x64xf32>
    %149 = arith.mulf %148, %144 : vector<128x64xf32>
    %150 = arith.mulf %149, %144 : vector<128x64xf32>
    %151 = arith.addf %144, %150 : vector<128x64xf32>
    %cst_56 = arith.constant 0.797884583 : f32
    %152 = vector.broadcast %cst_56 : f32 to vector<128x64xf32>
    %153 = arith.mulf %152, %151 : vector<128x64xf32>
    %154 = math.tanh %153 : vector<128x64xf32>
    %cst_57 = arith.constant 1.000000e+00 : f32
    %155 = vector.broadcast %cst_57 : f32 to vector<128x64xf32>
    %156 = arith.addf %155, %154 : vector<128x64xf32>
    %157 = arith.mulf %146, %156 : vector<128x64xf32>
    %158 = arith.truncf %157 : vector<128x64xf32> to vector<128x64xbf16>
    %c384 = arith.constant 384 : index
    %c0_58 = arith.constant 0 : index
    %159 = vector.load %arg0[%c384, %c0_58] : memref<832x128xbf16, #tpu.memory_space<vmem>>, vector<64x32xbf16>
    %cst_59 = arith.constant dense<0.000000e+00> : vector<128x32xf32>
    %160 = tpu.matmul %158, %159, %cst_59 {dimension_numbers = #tpu.dot_dimension_numbers<[1], [0], [0], [1], [0, 0, 1, 1], [], []>} : vector<128x64xbf16>, vector<64x32xbf16>, vector<128x32xf32> -> vector<128x32xf32>
    %c28 = arith.constant 28 : index
    %c0_60 = arith.constant 0 : index
    %161 = vector.load %arg1[%c28, %c0_60] : memref<48x128xf32, #tpu.memory_space<vmem>>, vector<1x32xf32>
    %162 = vector.broadcast %161 : vector<1x32xf32> to vector<128x32xf32>
    %163 = arith.addf %160, %162 : vector<128x32xf32>
    %164 = arith.addf %138, %163 : vector<128x32xf32>
    %cst_61 = arith.constant dense<0.000000e+00> : vector<128xf32>
    %165 = vector.multi_reduction <add>, %164, %cst_61 [1] : vector<128x32xf32> to vector<128xf32>
    %166 = vector.shape_cast %165 : vector<128xf32> to vector<128x1xf32>
    %cst_62 = arith.constant 3.200000e+01 : f32
    %167 = vector.broadcast %cst_62 : f32 to vector<128x1xf32>
    %168 = arith.divf %166, %167 : vector<128x1xf32>
    %169 = vector.broadcast %168 : vector<128x1xf32> to vector<128x32xf32>
    %170 = arith.subf %164, %169 : vector<128x32xf32>
    %171 = arith.mulf %170, %170 : vector<128x32xf32>
    %cst_63 = arith.constant dense<0.000000e+00> : vector<128xf32>
    %172 = vector.multi_reduction <add>, %171, %cst_63 [1] : vector<128x32xf32> to vector<128xf32>
    %173 = vector.shape_cast %172 : vector<128xf32> to vector<128x1xf32>
    %cst_64 = arith.constant 3.200000e+01 : f32
    %174 = vector.broadcast %cst_64 : f32 to vector<128x1xf32>
    %175 = arith.divf %173, %174 : vector<128x1xf32>
    %cst_65 = arith.constant 9.99999996E-13 : f32
    %176 = vector.broadcast %cst_65 : f32 to vector<128x1xf32>
    %177 = arith.addf %175, %176 : vector<128x1xf32>
    %178 = math.rsqrt %177 : vector<128x1xf32>
    %179 = vector.broadcast %178 : vector<128x1xf32> to vector<128x32xf32>
    %180 = arith.mulf %170, %179 : vector<128x32xf32>
    %c29 = arith.constant 29 : index
    %c0_66 = arith.constant 0 : index
    %181 = vector.load %arg1[%c29, %c0_66] : memref<48x128xf32, #tpu.memory_space<vmem>>, vector<1x32xf32>
    %182 = vector.broadcast %181 : vector<1x32xf32> to vector<128x32xf32>
    %183 = arith.mulf %180, %182 : vector<128x32xf32>
    %c30 = arith.constant 30 : index
    %c0_67 = arith.constant 0 : index
    %184 = vector.load %arg1[%c30, %c0_67] : memref<48x128xf32, #tpu.memory_space<vmem>>, vector<1x32xf32>
    %185 = vector.broadcast %184 : vector<1x32xf32> to vector<128x32xf32>
    %186 = arith.addf %183, %185 : vector<128x32xf32>
    %187 = arith.truncf %186 : vector<128x32xf32> to vector<128x32xbf16>
    %c448 = arith.constant 448 : index
    %c0_68 = arith.constant 0 : index
    %188 = vector.load %arg0[%c448, %c0_68] : memref<832x128xbf16, #tpu.memory_space<vmem>>, vector<32x16xbf16>
    %cst_69 = arith.constant dense<0.000000e+00> : vector<128x16xf32>
    %189 = tpu.matmul %187, %188, %cst_69 {dimension_numbers = #tpu.dot_dimension_numbers<[1], [0], [0], [1], [0, 0, 1, 1], [], []>} : vector<128x32xbf16>, vector<32x16xbf16>, vector<128x16xf32> -> vector<128x16xf32>
    %c31 = arith.constant 31 : index
    %c0_70 = arith.constant 0 : index
    %190 = vector.load %arg1[%c31, %c0_70] : memref<48x128xf32, #tpu.memory_space<vmem>>, vector<1x16xf32>
    %191 = vector.broadcast %190 : vector<1x16xf32> to vector<128x16xf32>
    %192 = arith.addf %189, %191 : vector<128x16xf32>
    %193 = vector.shape_cast %192 : vector<128x16xf32> to vector<8x16x16xf32>
    %c544 = arith.constant 544 : index
    %c0_71 = arith.constant 0 : index
    %194 = vector.load %arg0[%c544, %c0_71] : memref<832x128xbf16, #tpu.memory_space<vmem>>, vector<32x16xbf16>
    %cst_72 = arith.constant dense<0.000000e+00> : vector<128x16xf32>
    %195 = tpu.matmul %187, %194, %cst_72 {dimension_numbers = #tpu.dot_dimension_numbers<[1], [0], [0], [1], [0, 0, 1, 1], [], []>} : vector<128x32xbf16>, vector<32x16xbf16>, vector<128x16xf32> -> vector<128x16xf32>
    %c34 = arith.constant 34 : index
    %c0_73 = arith.constant 0 : index
    %196 = vector.load %arg1[%c34, %c0_73] : memref<48x128xf32, #tpu.memory_space<vmem>>, vector<1x16xf32>
    %197 = vector.broadcast %196 : vector<1x16xf32> to vector<128x16xf32>
    %198 = arith.addf %195, %197 : vector<128x16xf32>
    %199 = vector.shape_cast %198 : vector<128x16xf32> to vector<8x16x16xf32>
    %200 = tpu.concatenate %193, %199 in 0 : vector<8x16x16xf32>, vector<8x16x16xf32> -> vector<16x16x16xf32>
    %c480 = arith.constant 480 : index
    %c0_74 = arith.constant 0 : index
    %201 = vector.load %arg0[%c480, %c0_74] : memref<832x128xbf16, #tpu.memory_space<vmem>>, vector<32x16xbf16>
    %cst_75 = arith.constant dense<0.000000e+00> : vector<128x16xf32>
    %202 = tpu.matmul %187, %201, %cst_75 {dimension_numbers = #tpu.dot_dimension_numbers<[1], [0], [0], [1], [0, 0, 1, 1], [], []>} : vector<128x32xbf16>, vector<32x16xbf16>, vector<128x16xf32> -> vector<128x16xf32>
    %c32 = arith.constant 32 : index
    %c0_76 = arith.constant 0 : index
    %203 = vector.load %arg1[%c32, %c0_76] : memref<48x128xf32, #tpu.memory_space<vmem>>, vector<1x16xf32>
    %204 = vector.broadcast %203 : vector<1x16xf32> to vector<128x16xf32>
    %205 = arith.addf %202, %204 : vector<128x16xf32>
    %206 = vector.shape_cast %205 : vector<128x16xf32> to vector<8x16x16xf32>
    %c576 = arith.constant 576 : index
    %c0_77 = arith.constant 0 : index
    %207 = vector.load %arg0[%c576, %c0_77] : memref<832x128xbf16, #tpu.memory_space<vmem>>, vector<32x16xbf16>
    %cst_78 = arith.constant dense<0.000000e+00> : vector<128x16xf32>
    %208 = tpu.matmul %187, %207, %cst_78 {dimension_numbers = #tpu.dot_dimension_numbers<[1], [0], [0], [1], [0, 0, 1, 1], [], []>} : vector<128x32xbf16>, vector<32x16xbf16>, vector<128x16xf32> -> vector<128x16xf32>
    %c35 = arith.constant 35 : index
    %c0_79 = arith.constant 0 : index
    %209 = vector.load %arg1[%c35, %c0_79] : memref<48x128xf32, #tpu.memory_space<vmem>>, vector<1x16xf32>
    %210 = vector.broadcast %209 : vector<1x16xf32> to vector<128x16xf32>
    %211 = arith.addf %208, %210 : vector<128x16xf32>
    %212 = vector.shape_cast %211 : vector<128x16xf32> to vector<8x16x16xf32>
    %213 = tpu.concatenate %206, %212 in 0 : vector<8x16x16xf32>, vector<8x16x16xf32> -> vector<16x16x16xf32>
    %c512 = arith.constant 512 : index
    %c0_80 = arith.constant 0 : index
    %214 = vector.load %arg0[%c512, %c0_80] : memref<832x128xbf16, #tpu.memory_space<vmem>>, vector<32x16xbf16>
    %cst_81 = arith.constant dense<0.000000e+00> : vector<128x16xf32>
    %215 = tpu.matmul %187, %214, %cst_81 {dimension_numbers = #tpu.dot_dimension_numbers<[1], [0], [0], [1], [0, 0, 1, 1], [], []>} : vector<128x32xbf16>, vector<32x16xbf16>, vector<128x16xf32> -> vector<128x16xf32>
    %c33 = arith.constant 33 : index
    %c0_82 = arith.constant 0 : index
    %216 = vector.load %arg1[%c33, %c0_82] : memref<48x128xf32, #tpu.memory_space<vmem>>, vector<1x16xf32>
    %217 = vector.broadcast %216 : vector<1x16xf32> to vector<128x16xf32>
    %218 = arith.addf %215, %217 : vector<128x16xf32>
    %219 = vector.shape_cast %218 : vector<128x16xf32> to vector<8x16x16xf32>
    %c608 = arith.constant 608 : index
    %c0_83 = arith.constant 0 : index
    %220 = vector.load %arg0[%c608, %c0_83] : memref<832x128xbf16, #tpu.memory_space<vmem>>, vector<32x16xbf16>
    %cst_84 = arith.constant dense<0.000000e+00> : vector<128x16xf32>
    %221 = tpu.matmul %187, %220, %cst_84 {dimension_numbers = #tpu.dot_dimension_numbers<[1], [0], [0], [1], [0, 0, 1, 1], [], []>} : vector<128x32xbf16>, vector<32x16xbf16>, vector<128x16xf32> -> vector<128x16xf32>
    %c36 = arith.constant 36 : index
    %c0_85 = arith.constant 0 : index
    %222 = vector.load %arg1[%c36, %c0_85] : memref<48x128xf32, #tpu.memory_space<vmem>>, vector<1x16xf32>
    %223 = vector.broadcast %222 : vector<1x16xf32> to vector<128x16xf32>
    %224 = arith.addf %221, %223 : vector<128x16xf32>
    %225 = vector.shape_cast %224 : vector<128x16xf32> to vector<8x16x16xf32>
    %226 = tpu.concatenate %219, %225 in 0 : vector<8x16x16xf32>, vector<8x16x16xf32> -> vector<16x16x16xf32>
    %227 = arith.truncf %200 : vector<16x16x16xf32> to vector<16x16x16xbf16>
    %228 = arith.truncf %213 : vector<16x16x16xf32> to vector<16x16x16xbf16>
    "tpu.trace_start"() <{level = 10 : i32, message = "bqd,bkd->bqk"}> : () -> ()
    %cst_86 = arith.constant dense<0.000000e+00> : vector<16x16x16xf32>
    %229 = tpu.matmul %227, %228, %cst_86 {dimension_numbers = #tpu.dot_dimension_numbers<[2], [2], [1], [1], [0, 0, 0, 1, 1, 1], [0], [0]>} : vector<16x16x16xbf16>, vector<16x16x16xbf16>, vector<16x16x16xf32> -> vector<16x16x16xf32>
    "tpu.trace_stop"() : () -> ()
    %cst_87 = arith.constant 2.500000e-01 : f32
    %230 = vector.broadcast %cst_87 : f32 to vector<16x16x16xf32>
    %231 = arith.mulf %229, %230 : vector<16x16x16xf32>
    %232 = arith.addf %231, %42 : vector<16x16x16xf32>
    %cst_88 = arith.constant dense<0xFF800000> : vector<16x16xf32>
    %233 = vector.multi_reduction <maximumf>, %232, %cst_88 [2] : vector<16x16x16xf32> to vector<16x16xf32>
    %234 = vector.shape_cast %233 : vector<16x16xf32> to vector<16x16x1xf32>
    %235 = vector.broadcast %234 : vector<16x16x1xf32> to vector<16x16x16xf32>
    %236 = arith.subf %232, %235 : vector<16x16x16xf32>
    %237 = math.exp %236 : vector<16x16x16xf32>
    %cst_89 = arith.constant dense<0.000000e+00> : vector<16x16xf32>
    %238 = vector.multi_reduction <add>, %237, %cst_89 [2] : vector<16x16x16xf32> to vector<16x16xf32>
    %239 = vector.shape_cast %238 : vector<16x16xf32> to vector<16x16x1xf32>
    %240 = tpu.reciprocal %239 {approx = true} : vector<16x16x1xf32> -> vector<16x16x1xf32>
    %241 = vector.broadcast %240 : vector<16x16x1xf32> to vector<16x16x16xf32>
    %242 = arith.mulf %237, %241 : vector<16x16x16xf32>
    %243 = arith.truncf %242 : vector<16x16x16xf32> to vector<16x16x16xbf16>
    %244 = arith.truncf %226 : vector<16x16x16xf32> to vector<16x16x16xbf16>
    "tpu.trace_start"() <{level = 10 : i32, message = "bqk,bkd->bqd"}> : () -> ()
    %cst_90 = arith.constant dense<0.000000e+00> : vector<16x16x16xf32>
    %245 = tpu.matmul %243, %244, %cst_90 {dimension_numbers = #tpu.dot_dimension_numbers<[2], [1], [1], [2], [0, 0, 0, 1, 1, 2], [0], [0]>} : vector<16x16x16xbf16>, vector<16x16x16xbf16>, vector<16x16x16xf32> -> vector<16x16x16xf32>
    "tpu.trace_stop"() : () -> ()
    %c37 = arith.constant 37 : index
    %c0_91 = arith.constant 0 : index
    %246 = vector.load %arg1[%c37, %c0_91] : memref<48x128xf32, #tpu.memory_space<vmem>>, vector<1x32xf32>
    %247 = vector.extract_strided_slice %245 {offsets = [0, 0, 0], sizes = [8, 16, 16], strides = [1, 1, 1]} : vector<16x16x16xf32> to vector<8x16x16xf32>
    %248 = vector.shape_cast %247 : vector<8x16x16xf32> to vector<128x16xf32>
    %249 = arith.truncf %248 : vector<128x16xf32> to vector<128x16xbf16>
    %c640 = arith.constant 640 : index
    %c0_92 = arith.constant 0 : index
    %250 = vector.load %arg0[%c640, %c0_92] : memref<832x128xbf16, #tpu.memory_space<vmem>>, vector<16x32xbf16>
    %cst_93 = arith.constant dense<0.000000e+00> : vector<128x32xf32>
    %251 = tpu.matmul %249, %250, %cst_93 {dimension_numbers = #tpu.dot_dimension_numbers<[1], [0], [0], [1], [0, 0, 1, 1], [], []>} : vector<128x16xbf16>, vector<16x32xbf16>, vector<128x32xf32> -> vector<128x32xf32>
    %252 = vector.broadcast %246 : vector<1x32xf32> to vector<128x32xf32>
    %253 = arith.addf %252, %251 : vector<128x32xf32>
    %254 = vector.extract_strided_slice %245 {offsets = [8, 0, 0], sizes = [8, 16, 16], strides = [1, 1, 1]} : vector<16x16x16xf32> to vector<8x16x16xf32>
    %255 = vector.shape_cast %254 : vector<8x16x16xf32> to vector<128x16xf32>
    %256 = arith.truncf %255 : vector<128x16xf32> to vector<128x16xbf16>
    %c656 = arith.constant 656 : index
    %c0_94 = arith.constant 0 : index
    %257 = vector.load %arg0[%c656, %c0_94] : memref<832x128xbf16, #tpu.memory_space<vmem>>, vector<16x32xbf16>
    %cst_95 = arith.constant dense<0.000000e+00> : vector<128x32xf32>
    %258 = tpu.matmul %256, %257, %cst_95 {dimension_numbers = #tpu.dot_dimension_numbers<[1], [0], [0], [1], [0, 0, 1, 1], [], []>} : vector<128x16xbf16>, vector<16x32xbf16>, vector<128x32xf32> -> vector<128x32xf32>
    %259 = arith.addf %253, %258 : vector<128x32xf32>
    %260 = arith.addf %186, %259 : vector<128x32xf32>
    %cst_96 = arith.constant dense<0.000000e+00> : vector<128xf32>
    %261 = vector.multi_reduction <add>, %260, %cst_96 [1] : vector<128x32xf32> to vector<128xf32>
    %262 = vector.shape_cast %261 : vector<128xf32> to vector<128x1xf32>
    %cst_97 = arith.constant 3.200000e+01 : f32
    %263 = vector.broadcast %cst_97 : f32 to vector<128x1xf32>
    %264 = arith.divf %262, %263 : vector<128x1xf32>
    %265 = vector.broadcast %264 : vector<128x1xf32> to vector<128x32xf32>
    %266 = arith.subf %260, %265 : vector<128x32xf32>
    %267 = arith.mulf %266, %266 : vector<128x32xf32>
    %cst_98 = arith.constant dense<0.000000e+00> : vector<128xf32>
    %268 = vector.multi_reduction <add>, %267, %cst_98 [1] : vector<128x32xf32> to vector<128xf32>
    %269 = vector.shape_cast %268 : vector<128xf32> to vector<128x1xf32>
    %cst_99 = arith.constant 3.200000e+01 : f32
    %270 = vector.broadcast %cst_99 : f32 to vector<128x1xf32>
    %271 = arith.divf %269, %270 : vector<128x1xf32>
    %cst_100 = arith.constant 9.99999996E-13 : f32
    %272 = vector.broadcast %cst_100 : f32 to vector<128x1xf32>
    %273 = arith.addf %271, %272 : vector<128x1xf32>
    %274 = math.rsqrt %273 : vector<128x1xf32>
    %275 = vector.broadcast %274 : vector<128x1xf32> to vector<128x32xf32>
    %276 = arith.mulf %266, %275 : vector<128x32xf32>
    %c38 = arith.constant 38 : index
    %c0_101 = arith.constant 0 : index
    %277 = vector.load %arg1[%c38, %c0_101] : memref<48x128xf32, #tpu.memory_space<vmem>>, vector<1x32xf32>
    %278 = vector.broadcast %277 : vector<1x32xf32> to vector<128x32xf32>
    %279 = arith.mulf %276, %278 : vector<128x32xf32>
    %c39 = arith.constant 39 : index
    %c0_102 = arith.constant 0 : index
    %280 = vector.load %arg1[%c39, %c0_102] : memref<48x128xf32, #tpu.memory_space<vmem>>, vector<1x32xf32>
    %281 = vector.broadcast %280 : vector<1x32xf32> to vector<128x32xf32>
    %282 = arith.addf %279, %281 : vector<128x32xf32>
    %283 = arith.truncf %282 : vector<128x32xf32> to vector<128x32xbf16>
    %c672 = arith.constant 672 : index
    %c0_103 = arith.constant 0 : index
    %284 = vector.load %arg0[%c672, %c0_103] : memref<832x128xbf16, #tpu.memory_space<vmem>>, vector<32x64xbf16>
    %cst_104 = arith.constant dense<0.000000e+00> : vector<128x64xf32>
    %285 = tpu.matmul %283, %284, %cst_104 {dimension_numbers = #tpu.dot_dimension_numbers<[1], [0], [0], [1], [0, 0, 1, 1], [], []>} : vector<128x32xbf16>, vector<32x64xbf16>, vector<128x64xf32> -> vector<128x64xf32>
    %c40 = arith.constant 40 : index
    %c0_105 = arith.constant 0 : index
    %286 = vector.load %arg1[%c40, %c0_105] : memref<48x128xf32, #tpu.memory_space<vmem>>, vector<1x64xf32>
    %287 = vector.broadcast %286 : vector<1x64xf32> to vector<128x64xf32>
    %288 = arith.addf %285, %287 : vector<128x64xf32>
    %cst_106 = arith.constant 5.000000e-01 : f32
    %289 = vector.broadcast %cst_106 : f32 to vector<128x64xf32>
    %290 = arith.mulf %289, %288 : vector<128x64xf32>
    %cst_107 = arith.constant 4.471500e-02 : f32
    %291 = vector.broadcast %cst_107 : f32 to vector<128x64xf32>
    %292 = arith.mulf %291, %288 : vector<128x64xf32>
    %293 = arith.mulf %292, %288 : vector<128x64xf32>
    %294 = arith.mulf %293, %288 : vector<128x64xf32>
    %295 = arith.addf %288, %294 : vector<128x64xf32>
    %cst_108 = arith.constant 0.797884583 : f32
    %296 = vector.broadcast %cst_108 : f32 to vector<128x64xf32>
    %297 = arith.mulf %296, %295 : vector<128x64xf32>
    %298 = math.tanh %297 : vector<128x64xf32>
    %cst_109 = arith.constant 1.000000e+00 : f32
    %299 = vector.broadcast %cst_109 : f32 to vector<128x64xf32>
    %300 = arith.addf %299, %298 : vector<128x64xf32>
    %301 = arith.mulf %290, %300 : vector<128x64xf32>
    %302 = arith.truncf %301 : vector<128x64xf32> to vector<128x64xbf16>
    %c704 = arith.constant 704 : index
    %c0_110 = arith.constant 0 : index
    %303 = vector.load %arg0[%c704, %c0_110] : memref<832x128xbf16, #tpu.memory_space<vmem>>, vector<64x32xbf16>
    %cst_111 = arith.constant dense<0.000000e+00> : vector<128x32xf32>
    %304 = tpu.matmul %302, %303, %cst_111 {dimension_numbers = #tpu.dot_dimension_numbers<[1], [0], [0], [1], [0, 0, 1, 1], [], []>} : vector<128x64xbf16>, vector<64x32xbf16>, vector<128x32xf32> -> vector<128x32xf32>
    %c41 = arith.constant 41 : index
    %c0_112 = arith.constant 0 : index
    %305 = vector.load %arg1[%c41, %c0_112] : memref<48x128xf32, #tpu.memory_space<vmem>>, vector<1x32xf32>
    %306 = vector.broadcast %305 : vector<1x32xf32> to vector<128x32xf32>
    %307 = arith.addf %304, %306 : vector<128x32xf32>
    %308 = arith.addf %282, %307 : vector<128x32xf32>
    %cst_113 = arith.constant dense<0.000000e+00> : vector<128xf32>
    %309 = vector.multi_reduction <add>, %308, %cst_113 [1] : vector<128x32xf32> to vector<128xf32>
    %310 = vector.shape_cast %309 : vector<128xf32> to vector<128x1xf32>
    %cst_114 = arith.constant 3.200000e+01 : f32
    %311 = vector.broadcast %cst_114 : f32 to vector<128x1xf32>
    %312 = arith.divf %310, %311 : vector<128x1xf32>
    %313 = vector.broadcast %312 : vector<128x1xf32> to vector<128x32xf32>
    %314 = arith.subf %308, %313 : vector<128x32xf32>
    %315 = arith.mulf %314, %314 : vector<128x32xf32>
    %cst_115 = arith.constant dense<0.000000e+00> : vector<128xf32>
    %316 = vector.multi_reduction <add>, %315, %cst_115 [1] : vector<128x32xf32> to vector<128xf32>
    %317 = vector.shape_cast %316 : vector<128xf32> to vector<128x1xf32>
    %cst_116 = arith.constant 3.200000e+01 : f32
    %318 = vector.broadcast %cst_116 : f32 to vector<128x1xf32>
    %319 = arith.divf %317, %318 : vector<128x1xf32>
    %cst_117 = arith.constant 9.99999996E-13 : f32
    %320 = vector.broadcast %cst_117 : f32 to vector<128x1xf32>
    %321 = arith.addf %319, %320 : vector<128x1xf32>
    %322 = math.rsqrt %321 : vector<128x1xf32>
    %323 = vector.broadcast %322 : vector<128x1xf32> to vector<128x32xf32>
    %324 = arith.mulf %314, %323 : vector<128x32xf32>
    %c42 = arith.constant 42 : index
    %c0_118 = arith.constant 0 : index
    %325 = vector.load %arg1[%c42, %c0_118] : memref<48x128xf32, #tpu.memory_space<vmem>>, vector<1x32xf32>
    %326 = vector.broadcast %325 : vector<1x32xf32> to vector<128x32xf32>
    %327 = arith.mulf %324, %326 : vector<128x32xf32>
    %c43 = arith.constant 43 : index
    %c0_119 = arith.constant 0 : index
    %328 = vector.load %arg1[%c43, %c0_119] : memref<48x128xf32, #tpu.memory_space<vmem>>, vector<1x32xf32>
    %329 = vector.broadcast %328 : vector<1x32xf32> to vector<128x32xf32>
    %330 = arith.addf %327, %329 : vector<128x32xf32>
    %331 = arith.truncf %330 : vector<128x32xf32> to vector<128x32xbf16>
    %c768 = arith.constant 768 : index
    %c0_120 = arith.constant 0 : index
    %332 = vector.load %arg0[%c768, %c0_120] : memref<832x128xbf16, #tpu.memory_space<vmem>>, vector<32x32xbf16>
    %cst_121 = arith.constant dense<0.000000e+00> : vector<128x32xf32>
    %333 = tpu.matmul %331, %332, %cst_121 {dimension_numbers = #tpu.dot_dimension_numbers<[1], [0], [0], [1], [0, 0, 1, 1], [], []>} : vector<128x32xbf16>, vector<32x32xbf16>, vector<128x32xf32> -> vector<128x32xf32>
    %c44 = arith.constant 44 : index
    %c0_122 = arith.constant 0 : index
    %334 = vector.load %arg1[%c44, %c0_122] : memref<48x128xf32, #tpu.memory_space<vmem>>, vector<1x32xf32>
    %335 = vector.broadcast %334 : vector<1x32xf32> to vector<128x32xf32>
    %336 = arith.addf %333, %335 : vector<128x32xf32>
    %cst_123 = arith.constant 5.000000e-01 : f32
    %337 = vector.broadcast %cst_123 : f32 to vector<128x32xf32>
    %338 = arith.mulf %337, %336 : vector<128x32xf32>
    %cst_124 = arith.constant 4.471500e-02 : f32
    %339 = vector.broadcast %cst_124 : f32 to vector<128x32xf32>
    %340 = arith.mulf %339, %336 : vector<128x32xf32>
    %341 = arith.mulf %340, %336 : vector<128x32xf32>
    %342 = arith.mulf %341, %336 : vector<128x32xf32>
    %343 = arith.addf %336, %342 : vector<128x32xf32>
    %cst_125 = arith.constant 0.797884583 : f32
    %344 = vector.broadcast %cst_125 : f32 to vector<128x32xf32>
    %345 = arith.mulf %344, %343 : vector<128x32xf32>
    %346 = math.tanh %345 : vector<128x32xf32>
    %cst_126 = arith.constant 1.000000e+00 : f32
    %347 = vector.broadcast %cst_126 : f32 to vector<128x32xf32>
    %348 = arith.addf %347, %346 : vector<128x32xf32>
    %349 = arith.mulf %338, %348 : vector<128x32xf32>
    %cst_127 = arith.constant dense<0.000000e+00> : vector<128xf32>
    %350 = vector.multi_reduction <add>, %349, %cst_127 [1] : vector<128x32xf32> to vector<128xf32>
    %351 = vector.shape_cast %350 : vector<128xf32> to vector<128x1xf32>
    %cst_128 = arith.constant 3.200000e+01 : f32
    %352 = vector.broadcast %cst_128 : f32 to vector<128x1xf32>
    %353 = arith.divf %351, %352 : vector<128x1xf32>
    %354 = vector.broadcast %353 : vector<128x1xf32> to vector<128x32xf32>
    %355 = arith.subf %349, %354 : vector<128x32xf32>
    %356 = arith.mulf %355, %355 : vector<128x32xf32>
    %cst_129 = arith.constant dense<0.000000e+00> : vector<128xf32>
    %357 = vector.multi_reduction <add>, %356, %cst_129 [1] : vector<128x32xf32> to vector<128xf32>
    %358 = vector.shape_cast %357 : vector<128xf32> to vector<128x1xf32>
    %cst_130 = arith.constant 3.200000e+01 : f32
    %359 = vector.broadcast %cst_130 : f32 to vector<128x1xf32>
    %360 = arith.divf %358, %359 : vector<128x1xf32>
    %cst_131 = arith.constant 9.99999996E-13 : f32
    %361 = vector.broadcast %cst_131 : f32 to vector<128x1xf32>
    %362 = arith.addf %360, %361 : vector<128x1xf32>
    %363 = math.rsqrt %362 : vector<128x1xf32>
    %364 = vector.broadcast %363 : vector<128x1xf32> to vector<128x32xf32>
    %365 = arith.mulf %355, %364 : vector<128x32xf32>
    %c45 = arith.constant 45 : index
    %c0_132 = arith.constant 0 : index
    %366 = vector.load %arg1[%c45, %c0_132] : memref<48x128xf32, #tpu.memory_space<vmem>>, vector<1x32xf32>
    %367 = vector.broadcast %366 : vector<1x32xf32> to vector<128x32xf32>
    %368 = arith.mulf %365, %367 : vector<128x32xf32>
    %c46 = arith.constant 46 : index
    %c0_133 = arith.constant 0 : index
    %369 = vector.load %arg1[%c46, %c0_133] : memref<48x128xf32, #tpu.memory_space<vmem>>, vector<1x32xf32>
    %370 = vector.broadcast %369 : vector<1x32xf32> to vector<128x32xf32>
    %371 = arith.addf %368, %370 : vector<128x32xf32>
    %372 = arith.truncf %371 : vector<128x32xf32> to vector<128x32xbf16>
    %c800 = arith.constant 800 : index
    %c0_134 = arith.constant 0 : index
    %373 = vector.load %arg0[%c800, %c0_134] : memref<832x128xbf16, #tpu.memory_space<vmem>>, vector<32x128xbf16>
    %cst_135 = arith.constant dense<0.000000e+00> : vector<128x128xf32>
    %374 = tpu.matmul %372, %373, %cst_135 {dimension_numbers = #tpu.dot_dimension_numbers<[1], [0], [0], [1], [0, 0, 1, 1], [], []>} : vector<128x32xbf16>, vector<32x128xbf16>, vector<128x128xf32> -> vector<128x128xf32>
    %c47 = arith.constant 47 : index
    %c0_136 = arith.constant 0 : index
    %375 = vector.load %arg1[%c47, %c0_136] : memref<48x128xf32, #tpu.memory_space<vmem>>, vector<1x128xf32>
    %376 = vector.broadcast %375 : vector<1x128xf32> to vector<128x128xf32>
    %377 = arith.addf %374, %376 : vector<128x128xf32>
    %c0_137 = arith.constant 0 : index
    %c1 = arith.constant 1 : index
    %378 = vector.load %arg3[%c0_137, %c1] : memref<128x2xi32, #tpu.memory_space<vmem>>, vector<128x1xi32>
    %cst_138 = arith.constant dense<0xFF800000> : vector<128xf32>
    %379 = vector.multi_reduction <maximumf>, %377, %cst_138 [1] : vector<128x128xf32> to vector<128xf32>
    %380 = vector.shape_cast %379 : vector<128xf32> to vector<128x1xf32>
    %381 = vector.broadcast %380 : vector<128x1xf32> to vector<128x128xf32>
    %382 = arith.subf %377, %381 : vector<128x128xf32>
    %383 = math.exp %382 : vector<128x128xf32>
    %cst_139 = arith.constant dense<0.000000e+00> : vector<128xf32>
    %384 = vector.multi_reduction <add>, %383, %cst_139 [1] : vector<128x128xf32> to vector<128xf32>
    %385 = vector.shape_cast %384 : vector<128xf32> to vector<128x1xf32>
    %386 = math.log %385 : vector<128x1xf32>
    %387 = arith.addf %386, %380 : vector<128x1xf32>
    %388 = tpu.iota {dimensions = array<i32: 1>} : vector<128x128xi32>
    %389 = vector.broadcast %378 : vector<128x1xi32> to vector<128x128xi32>
    %390 = arith.cmpi eq, %388, %389 : vector<128x128xi32>
    %cst_140 = arith.constant 0.000000e+00 : f32
    %391 = vector.broadcast %cst_140 : f32 to vector<128x128xf32>
    %392 = arith.select %390, %377, %391 : vector<128x128xi1>, vector<128x128xf32>
    %cst_141 = arith.constant dense<0.000000e+00> : vector<128xf32>
    %393 = vector.multi_reduction <add>, %392, %cst_141 [1] : vector<128x128xf32> to vector<128xf32>
    %394 = vector.shape_cast %393 : vector<128xf32> to vector<128x1xf32>
    %c-100_i32 = arith.constant -100 : i32
    %395 = vector.broadcast %c-100_i32 : i32 to vector<128x1xi32>
    %396 = arith.cmpi ne, %378, %395 : vector<128x1xi32>
    %397 = arith.extui %396 : vector<128x1xi1> to vector<128x1xi32>
    %398 = arith.sitofp %397 : vector<128x1xi32> to vector<128x1xf32>
    %399 = arith.subf %387, %394 : vector<128x1xf32>
    %400 = arith.mulf %399, %398 : vector<128x1xf32>
    %401 = vector.shape_cast %400 : vector<128x1xf32> to vector<1x128x1xf32>
    %cst_142 = arith.constant dense<0.000000e+00> : vector<1xf32>
    %402 = vector.multi_reduction <add>, %401, %cst_142 [1, 2] : vector<1x128x1xf32> to vector<1xf32>
    %403 = vector.shape_cast %402 : vector<1xf32> to vector<1x1x1xf32>
    %404 = vector.extract %403[0, 0, 0] : f32 from vector<1x1x1xf32>
    %405 = vector.shape_cast %398 : vector<128x1xf32> to vector<1x128x1xf32>
    %cst_143 = arith.constant dense<0.000000e+00> : vector<1xf32>
    %406 = vector.multi_reduction <add>, %405, %cst_143 [1, 2] : vector<1x128x1xf32> to vector<1xf32>
    %407 = vector.shape_cast %406 : vector<1xf32> to vector<1x1x1xf32>
    %408 = vector.extract %407[0, 0, 0] : f32 from vector<1x1x1xf32>
    %cst_144 = arith.constant 1.000000e+00 : f32
    %409 = arith.maximumf %408, %cst_144 : f32
    %410 = arith.divf %404, %409 : f32
    %c0_145 = arith.constant 0 : index
    %c0_146 = arith.constant 0 : index
    %411 = vector.load %arg8[%c0_145, %c0_146] : memref<128x32xf32, #tpu.memory_space<vmem>>, vector<128x32xf32>
    tpu.vector_store %arg8[%c0_145, %c0_146], %330 {strides = array<i32>} : memref<128x32xf32, #tpu.memory_space<vmem>>, vector<128x32xf32>,
    %c0_147 = arith.constant 0 : index
    %412 = memref.load %arg6[%c0_147] : memref<16xi32, #tpu.memory_space<smem>>
    %c0_i32 = arith.constant 0 : i32
    %413 = arith.addi %c0_i32, %412 : i32
    %414 = arith.index_cast %413 : i32 to index
    %c0_148 = arith.constant 0 : index
    %415 = vector.load %arg8[%414, %c0_148] : memref<128x32xf32, #tpu.memory_space<vmem>>, vector<1x32xf32>
    %c1_149 = arith.constant 1 : index
    %416 = memref.load %arg6[%c1_149] : memref<16xi32, #tpu.memory_space<smem>>
    %c16_i32 = arith.constant 16 : i32
    %417 = arith.addi %c16_i32, %416 : i32
    %418 = arith.index_cast %417 : i32 to index
    %c0_150 = arith.constant 0 : index
    %419 = vector.load %arg8[%418, %c0_150] : memref<128x32xf32, #tpu.memory_space<vmem>>, vector<1x32xf32>
    %c2 = arith.constant 2 : index
    %420 = memref.load %arg6[%c2] : memref<16xi32, #tpu.memory_space<smem>>
    %c32_i32 = arith.constant 32 : i32
    %421 = arith.addi %c32_i32, %420 : i32
    %422 = arith.index_cast %421 : i32 to index
    %c0_151 = arith.constant 0 : index
    %423 = vector.load %arg8[%422, %c0_151] : memref<128x32xf32, #tpu.memory_space<vmem>>, vector<1x32xf32>
    %c3 = arith.constant 3 : index
    %424 = memref.load %arg6[%c3] : memref<16xi32, #tpu.memory_space<smem>>
    %c48_i32 = arith.constant 48 : i32
    %425 = arith.addi %c48_i32, %424 : i32
    %426 = arith.index_cast %425 : i32 to index
    %c0_152 = arith.constant 0 : index
    %427 = vector.load %arg8[%426, %c0_152] : memref<128x32xf32, #tpu.memory_space<vmem>>, vector<1x32xf32>
    %c4 = arith.constant 4 : index
    %428 = memref.load %arg6[%c4] : memref<16xi32, #tpu.memory_space<smem>>
    %c64_i32 = arith.constant 64 : i32
    %429 = arith.addi %c64_i32, %428 : i32
    %430 = arith.index_cast %429 : i32 to index
    %c0_153 = arith.constant 0 : index
    %431 = vector.load %arg8[%430, %c0_153] : memref<128x32xf32, #tpu.memory_space<vmem>>, vector<1x32xf32>
    %c5 = arith.constant 5 : index
    %432 = memref.load %arg6[%c5] : memref<16xi32, #tpu.memory_space<smem>>
    %c80_i32 = arith.constant 80 : i32
    %433 = arith.addi %c80_i32, %432 : i32
    %434 = arith.index_cast %433 : i32 to index
    %c0_154 = arith.constant 0 : index
    %435 = vector.load %arg8[%434, %c0_154] : memref<128x32xf32, #tpu.memory_space<vmem>>, vector<1x32xf32>
    %c6 = arith.constant 6 : index
    %436 = memref.load %arg6[%c6] : memref<16xi32, #tpu.memory_space<smem>>
    %c96_i32 = arith.constant 96 : i32
    %437 = arith.addi %c96_i32, %436 : i32
    %438 = arith.index_cast %437 : i32 to index
    %c0_155 = arith.constant 0 : index
    %439 = vector.load %arg8[%438, %c0_155] : memref<128x32xf32, #tpu.memory_space<vmem>>, vector<1x32xf32>
    %c7 = arith.constant 7 : index
    %440 = memref.load %arg6[%c7] : memref<16xi32, #tpu.memory_space<smem>>
    %c112_i32 = arith.constant 112 : i32
    %441 = arith.addi %c112_i32, %440 : i32
    %442 = arith.index_cast %441 : i32 to index
    %c0_156 = arith.constant 0 : index
    %443 = vector.load %arg8[%442, %c0_156] : memref<128x32xf32, #tpu.memory_space<vmem>>, vector<1x32xf32>
    %444 = tpu.concatenate %415, %419, %423, %427, %431, %435, %439, %443 in 0 : vector<1x32xf32>, vector<1x32xf32>, vector<1x32xf32>, vector<1x32xf32>, vector<1x32xf32>, vector<1x32xf32>, vector<1x32xf32>, vector<1x32xf32> -> vector<8x32xf32>
    %c8 = arith.constant 8 : index
    %445 = memref.load %arg6[%c8] : memref<16xi32, #tpu.memory_space<smem>>
    %c0_i32_157 = arith.constant 0 : i32
    %446 = arith.addi %c0_i32_157, %445 : i32
    %447 = arith.index_cast %446 : i32 to index
    %c0_158 = arith.constant 0 : index
    %448 = vector.load %arg8[%447, %c0_158] : memref<128x32xf32, #tpu.memory_space<vmem>>, vector<1x32xf32>
    %c9 = arith.constant 9 : index
    %449 = memref.load %arg6[%c9] : memref<16xi32, #tpu.memory_space<smem>>
    %c16_i32_159 = arith.constant 16 : i32
    %450 = arith.addi %c16_i32_159, %449 : i32
    %451 = arith.index_cast %450 : i32 to index
    %c0_160 = arith.constant 0 : index
    %452 = vector.load %arg8[%451, %c0_160] : memref<128x32xf32, #tpu.memory_space<vmem>>, vector<1x32xf32>
    %c10 = arith.constant 10 : index
    %453 = memref.load %arg6[%c10] : memref<16xi32, #tpu.memory_space<smem>>
    %c32_i32_161 = arith.constant 32 : i32
    %454 = arith.addi %c32_i32_161, %453 : i32
    %455 = arith.index_cast %454 : i32 to index
    %c0_162 = arith.constant 0 : index
    %456 = vector.load %arg8[%455, %c0_162] : memref<128x32xf32, #tpu.memory_space<vmem>>, vector<1x32xf32>
    %c11 = arith.constant 11 : index
    %457 = memref.load %arg6[%c11] : memref<16xi32, #tpu.memory_space<smem>>
    %c48_i32_163 = arith.constant 48 : i32
    %458 = arith.addi %c48_i32_163, %457 : i32
    %459 = arith.index_cast %458 : i32 to index
    %c0_164 = arith.constant 0 : index
    %460 = vector.load %arg8[%459, %c0_164] : memref<128x32xf32, #tpu.memory_space<vmem>>, vector<1x32xf32>
    %c12 = arith.constant 12 : index
    %461 = memref.load %arg6[%c12] : memref<16xi32, #tpu.memory_space<smem>>
    %c64_i32_165 = arith.constant 64 : i32
    %462 = arith.addi %c64_i32_165, %461 : i32
    %463 = arith.index_cast %462 : i32 to index
    %c0_166 = arith.constant 0 : index
    %464 = vector.load %arg8[%463, %c0_166] : memref<128x32xf32, #tpu.memory_space<vmem>>, vector<1x32xf32>
    %c13 = arith.constant 13 : index
    %465 = memref.load %arg6[%c13] : memref<16xi32, #tpu.memory_space<smem>>
    %c80_i32_167 = arith.constant 80 : i32
    %466 = arith.addi %c80_i32_167, %465 : i32
    %467 = arith.index_cast %466 : i32 to index
    %c0_168 = arith.constant 0 : index
    %468 = vector.load %arg8[%467, %c0_168] : memref<128x32xf32, #tpu.memory_space<vmem>>, vector<1x32xf32>
    %c14 = arith.constant 14 : index
    %469 = memref.load %arg6[%c14] : memref<16xi32, #tpu.memory_space<smem>>
    %c96_i32_169 = arith.constant 96 : i32
    %470 = arith.addi %c96_i32_169, %469 : i32
    %471 = arith.index_cast %470 : i32 to index
    %c0_170 = arith.constant 0 : index
    %472 = vector.load %arg8[%471, %c0_170] : memref<128x32xf32, #tpu.memory_space<vmem>>, vector<1x32xf32>
    %c15 = arith.constant 15 : index
    %473 = memref.load %arg6[%c15] : memref<16xi32, #tpu.memory_space<smem>>
    %c112_i32_171 = arith.constant 112 : i32
    %474 = arith.addi %c112_i32_171, %473 : i32
    %475 = arith.index_cast %474 : i32 to index
    %c0_172 = arith.constant 0 : index
    %476 = vector.load %arg8[%475, %c0_172] : memref<128x32xf32, #tpu.memory_space<vmem>>, vector<1x32xf32>
    %477 = tpu.concatenate %448, %452, %456, %460, %464, %468, %472, %476 in 0 : vector<1x32xf32>, vector<1x32xf32>, vector<1x32xf32>, vector<1x32xf32>, vector<1x32xf32>, vector<1x32xf32>, vector<1x32xf32>, vector<1x32xf32> -> vector<8x32xf32>
    %478 = arith.mulf %444, %444 : vector<8x32xf32>
    %479 = arith.mulf %477, %477 : vector<8x32xf32>
    %480 = arith.addf %478, %479 : vector<8x32xf32>
    %cst_173 = arith.constant dense<0.000000e+00> : vector<8xf32>
    %481 = vector.multi_reduction <add>, %480, %cst_173 [1] : vector<8x32xf32> to vector<8xf32>
    %482 = vector.shape_cast %481 : vector<8xf32> to vector<8x1xf32>
    %483 = math.sqrt %482 : vector<8x1xf32>
    %cst_174 = arith.constant 9.99999996E-13 : f32
    %484 = vector.broadcast %cst_174 : f32 to vector<8x1xf32>
    %485 = arith.maximumf %483, %484 : vector<8x1xf32>
    %cst_175 = arith.constant 1.000000e+00 : f32
    %486 = vector.broadcast %cst_175 : f32 to vector<8x1xf32>
    %487 = arith.divf %486, %485 : vector<8x1xf32>
    %488 = vector.broadcast %487 : vector<8x1xf32> to vector<8x32xf32>
    %489 = arith.mulf %444, %488 : vector<8x32xf32>
    %490 = vector.broadcast %487 : vector<8x1xf32> to vector<8x32xf32>
    %491 = arith.mulf %477, %490 : vector<8x32xf32>
    %cst_176 = arith.constant dense<0.000000e+00> : vector<8x8xf32>
    %492 = tpu.matmul %489, %489, %cst_176 {dimension_numbers = #tpu.dot_dimension_numbers<[1], [1], [0], [0], [0, 0, 1, 0], [], []>} : vector<8x32xf32>, vector<8x32xf32>, vector<8x8xf32> -> vector<8x8xf32>
    %cst_177 = arith.constant dense<0.000000e+00> : vector<8x8xf32>
    %493 = tpu.matmul %491, %491, %cst_177 {dimension_numbers = #tpu.dot_dimension_numbers<[1], [1], [0], [0], [0, 0, 1, 0], [], []>} : vector<8x32xf32>, vector<8x32xf32>, vector<8x8xf32> -> vector<8x8xf32>
    %494 = arith.addf %492, %493 : vector<8x8xf32>
    %cst_178 = arith.constant 5.000000e-02 : f32
    %495 = vector.broadcast %cst_178 : f32 to vector<8x8xf32>
    %496 = arith.divf %494, %495 : vector<8x8xf32>
    %c0_179 = arith.constant 0 : index
    %c0_180 = arith.constant 0 : index
    %497 = vector.load %arg4[%c0_179, %c0_180] : memref<8x1xi32, #tpu.memory_space<vmem>>, vector<8x1xi32>
    %c0_181 = arith.constant 0 : index
    %c0_182 = arith.constant 0 : index
    %498 = vector.load %arg5[%c0_181, %c0_182] : memref<1x8xi32, #tpu.memory_space<vmem>>, vector<1x8xi32>
    %499 = vector.broadcast %497 : vector<8x1xi32> to vector<8x8xi32>
    %500 = vector.broadcast %498 : vector<1x8xi32> to vector<8x8xi32>
    %501 = arith.cmpi eq, %499, %500 : vector<8x8xi32>
    %502 = tpu.iota {dimensions = array<i32: 0>} : vector<8x8xi32>
    %503 = tpu.iota {dimensions = array<i32: 1>} : vector<8x8xi32>
    %504 = arith.cmpi eq, %502, %503 : vector<8x8xi32>
    %cst_183 = arith.constant dense<true> : vector<8x8xi1>
    %505 = arith.xori %504, %cst_183 : vector<8x8xi1>
    %506 = arith.andi %501, %505 : vector<8x8xi1>
    %507 = arith.extui %506 : vector<8x8xi1> to vector<8x8xi32>
    %508 = arith.sitofp %507 : vector<8x8xi32> to vector<8x8xf32>
    %cst_184 = arith.constant dense<true> : vector<8x8xi1>
    %509 = arith.xori %501, %cst_184 : vector<8x8xi1>
    %510 = arith.extui %509 : vector<8x8xi1> to vector<8x8xi32>
    %511 = arith.sitofp %510 : vector<8x8xi32> to vector<8x8xf32>
    %cst_185 = arith.constant 0.000000e+00 : f32
    %512 = vector.broadcast %cst_185 : f32 to vector<8x8xf32>
    %513 = arith.cmpf ogt, %511, %512 : vector<8x8xf32>
    %cst_186 = arith.constant -1.000000e+30 : f32
    %514 = vector.broadcast %cst_186 : f32 to vector<8x8xf32>
    %515 = arith.select %513, %496, %514 : vector<8x8xi1>, vector<8x8xf32>
    %cst_187 = arith.constant dense<0xFF800000> : vector<8xf32>
    %516 = vector.multi_reduction <maximumf>, %515, %cst_187 [1] : vector<8x8xf32> to vector<8xf32>
    %517 = vector.shape_cast %516 : vector<8xf32> to vector<8x1xf32>
    %cst_188 = arith.constant 0.000000e+00 : f32
    %518 = vector.broadcast %cst_188 : f32 to vector<8x8xf32>
    %519 = arith.cmpf ogt, %511, %518 : vector<8x8xf32>
    %520 = vector.broadcast %517 : vector<8x1xf32> to vector<8x8xf32>
    %521 = arith.subf %515, %520 : vector<8x8xf32>
    %522 = math.exp %521 : vector<8x8xf32>
    %cst_189 = arith.constant 0.000000e+00 : f32
    %523 = vector.broadcast %cst_189 : f32 to vector<8x8xf32>
    %524 = arith.select %519, %522, %523 : vector<8x8xi1>, vector<8x8xf32>
    %cst_190 = arith.constant dense<0.000000e+00> : vector<8xf32>
    %525 = vector.multi_reduction <add>, %524, %cst_190 [1] : vector<8x8xf32> to vector<8xf32>
    %526 = vector.shape_cast %525 : vector<8xf32> to vector<8x1xf32>
    %527 = vector.broadcast %517 : vector<8x1xf32> to vector<8x8xf32>
    %528 = arith.maximumf %496, %527 : vector<8x8xf32>
    %529 = arith.subf %496, %528 : vector<8x8xf32>
    %530 = math.exp %529 : vector<8x8xf32>
    %531 = vector.broadcast %517 : vector<8x1xf32> to vector<8x8xf32>
    %532 = arith.subf %531, %528 : vector<8x8xf32>
    %533 = math.exp %532 : vector<8x8xf32>
    %534 = vector.broadcast %526 : vector<8x1xf32> to vector<8x8xf32>
    %535 = arith.mulf %533, %534 : vector<8x8xf32>
    %536 = arith.addf %535, %530 : vector<8x8xf32>
    %537 = arith.divf %530, %536 : vector<8x8xf32>
    %cst_191 = arith.constant 9.99999968E-21 : f32
    %538 = vector.broadcast %cst_191 : f32 to vector<8x8xf32>
    %539 = arith.addf %537, %538 : vector<8x8xf32>
    %540 = math.log %539 : vector<8x8xf32>
    %541 = vector.shape_cast %508 : vector<8x8xf32> to vector<1x8x8xf32>
    %cst_192 = arith.constant dense<0.000000e+00> : vector<1xf32>
    %542 = vector.multi_reduction <add>, %541, %cst_192 [1, 2] : vector<1x8x8xf32> to vector<1xf32>
    %543 = vector.shape_cast %542 : vector<1xf32> to vector<1x1x1xf32>
    %544 = vector.extract %543[0, 0, 0] : f32 from vector<1x1x1xf32>
    %cst_193 = arith.constant 0.000000e+00 : f32
    %545 = vector.broadcast %cst_193 : f32 to vector<8x8xf32>
    %546 = arith.subf %545, %540 : vector<8x8xf32>
    %547 = arith.mulf %546, %508 : vector<8x8xf32>
    %548 = vector.shape_cast %547 : vector<8x8xf32> to vector<1x8x8xf32>
    %cst_194 = arith.constant dense<0.000000e+00> : vector<1xf32>
    %549 = vector.multi_reduction <add>, %548, %cst_194 [1, 2] : vector<1x8x8xf32> to vector<1xf32>
    %550 = vector.shape_cast %549 : vector<1xf32> to vector<1x1x1xf32>
    %551 = vector.extract %550[0, 0, 0] : f32 from vector<1x1x1xf32>
    %cst_195 = arith.constant 1.000000e+00 : f32
    %552 = arith.maximumf %544, %cst_195 : f32
    %553 = arith.divf %551, %552 : f32
    %554 = vector.broadcast %410 : f32 to vector<1x1xf32>
    %555 = vector.broadcast %553 : f32 to vector<1x1xf32>
    %556 = tpu.concatenate %554, %555 in 1 : vector<1x1xf32>, vector<1x1xf32> -> vector<1x2xf32>
    %c0_196 = arith.constant 0 : index
    %c0_197 = arith.constant 0 : index
    %557 = vector.load %arg7[%c0_196, %c0_197] : memref<1x2xf32, #tpu.memory_space<vmem>>, vector<1x2xf32>
    tpu.vector_store %arg7[%c0_196, %c0_197], %556 {strides = array<i32>} : memref<1x2xf32, #tpu.memory_space<vmem>>, vector<1x2xf32>,
    return
  }
}

</mosaic_0001>

<llo_original>
// kernel: cp_forward.1
$region0: #{cp_forward.1}
  #allocation0 [shape = 'u32[]', space=smem, size = 0x4, offset = 0x4, fixed_abs, tag = 'smem constant byte address 0x4 - core index']
  #allocation1 [shape = 'u32[144,128]{1,0:T(1,128)}', space=vmem, size = 0x12000, scoped, tag = 'internal scratch']
  #allocation2 [shape = 'f32[128,32]{1,0:T(8,128)}', space=vmem, size = 0x10000, scoped, tag = 'scratch operand']
  %s0 = inlined_call_operand.vmem [shape: bf16[832,128], index: 0, kind: input, shape index: {}]
  %s1 = inlined_call_operand.vmem [shape: f32[48,128], index: 1, kind: input, shape index: {}]
  %s2 = inlined_call_operand.vmem [shape: f32[8,16], index: 2, kind: input, shape index: {}]
  %s3 = inlined_call_operand.vmem [shape: s32[128,2], index: 3, kind: input, shape index: {}]
  %s4 = inlined_call_operand.vmem [shape: s32[8,1], index: 4, kind: input, shape index: {}]
  %s5 = inlined_call_operand.vmem [shape: s32[1,8], index: 5, kind: input, shape index: {}]
  %s6 = inlined_call_operand.vmem [shape: s32[16], index: 6, kind: input, shape index: {}]
  %s7 = inlined_call_operand.vmem [shape: f32[1,2], index: 7, kind: output, shape index: {}]
  %s8 = sld [smem:[#allocation0]]
  $region42: #{cp_forward.1} parent=0
    _
  %s10 = ssub.s32 1, %s8
  %s11 = scalar_select 0, %s10, %s8
  $region1: #{cp_forward.1} parent=0
    #allocation3 [shape = 'u8[512]{0}', space=smem, size = 0x200, scoped, tag = 'input window, operand 6, single buffered']
    #allocation4 [shape = 's32[1]{0}', space=sflag, size = 0x4, scoped, tag = 'scoped memory for cp_forward.1']
    %12 = vsyncpa [#allocation4], 0
    // Predicated region
    $region2: #{cp_forward.1} parent=1 // pred_check
      _
    $region3: #{cp_forward.1} parent=1 // pred_check_branch
      %14 = sbr.rel (0) target = $region5
    $region4: #{cp_forward.1} parent=1 // pred_region
      _
    $region5: #{cp_forward.1} parent=1 // pred_fallthru
      _
    // Predicated region
    $region6: #{cp_forward.1} parent=1 // pred_check
      _
    $region7: #{cp_forward.1} parent=1 // pred_check_branch
      %16 = sbr.rel (0) target = $region9
    $region8: #{cp_forward.1} parent=1 // pred_region
      _
    $region9: #{cp_forward.1} parent=1 // pred_fallthru
      _
    // Predicated region
    $region10: #{cp_forward.1} parent=1 // pred_check
      _
    $region11: #{cp_forward.1} parent=1 // pred_check_branch
      %18 = sbr.rel (0) target = $region13
    $region12: #{cp_forward.1} parent=1 // pred_region
      _
    $region13: #{cp_forward.1} parent=1 // pred_fallthru
      _
    // Predicated region
    $region14: #{cp_forward.1} parent=1 // pred_check
      _
    $region15: #{cp_forward.1} parent=1 // pred_check_branch
      %20 = sbr.rel (0) target = $region17
    $region16: #{cp_forward.1} parent=1 // pred_region
      _
    $region17: #{cp_forward.1} parent=1 // pred_fallthru
      _
    // Predicated region
    $region18: #{cp_forward.1} parent=1 // pred_check
      _
    $region19: #{cp_forward.1} parent=1 // pred_check_branch
      %22 = sbr.rel (0) target = $region21
    $region20: #{cp_forward.1} parent=1 // pred_region
      _
    $region21: #{cp_forward.1} parent=1 // pred_fallthru
      _
    // Predicated region
    $region22: #{cp_forward.1} parent=1 // pred_check
      _
    $region23: #{cp_forward.1} parent=1 // pred_check_branch
      %24 = sbr.rel (0) target = $region25
    $region24: #{cp_forward.1} parent=1 // pred_region
      _
    $region25: #{cp_forward.1} parent=1 // pred_fallthru
      _
    // Predicated region
    $region26: #{cp_forward.1} parent=1 // pred_check
      _
    $region27: #{cp_forward.1} parent=1 // pred_check_branch
      %26 = sbr.rel (0) target = $region29
    $region28: #{cp_forward.1} parent=1 // pred_region
      %s28 = ssub.s32 16, 16
      %29 = vsyncadd [#allocation4], %s28
      %s31 = sshll.u32 %s6, 4
      %s32 = int_to_ptr.vmem [resolvable:$true] %s31
      %34 = dma.vmem_to_smem %s32, 16, [#allocation3], [#allocation4]
    $region29: #{cp_forward.1} parent=1 // pred_fallthru
      _
    // Predicated region
    $region30: #{cp_forward.1} parent=1 // pred_check
      _
    $region31: #{cp_forward.1} parent=1 // pred_check_branch
      %36 = sbr.rel (0) target = $region33
    $region32: #{cp_forward.1} parent=1 // pred_region
      %37 = dma.done [#allocation4], 16
    $region33: #{cp_forward.1} parent=1 // pred_fallthru
      _
    %38 = sfence
    %v40 = vld [vmem:[%s3] sm:$0xff]
    %v41 = vld [vmem:[%s3 + $0x8] sm:$0xff]
    %v42 = vld [vmem:[%s3 + $0x10] sm:$0xff]
    %v43 = vld [vmem:[%s3 + $0x18] sm:$0xff]
    %v44 = vld [vmem:[%s3 + $0x20] sm:$0xff]
    %v45 = vld [vmem:[%s3 + $0x28] sm:$0xff]
    %v46 = vld [vmem:[%s3 + $0x30] sm:$0xff]
    %v47 = vld [vmem:[%s3 + $0x38] sm:$0xff]
    %v48 = vld [vmem:[%s3 + $0x40] sm:$0xff]
    %v49 = vld [vmem:[%s3 + $0x48] sm:$0xff]
    %v50 = vld [vmem:[%s3 + $0x50] sm:$0xff]
    %v51 = vld [vmem:[%s3 + $0x58] sm:$0xff]
    %v52 = vld [vmem:[%s3 + $0x60] sm:$0xff]
    %v53 = vld [vmem:[%s3 + $0x68] sm:$0xff]
    %v54 = vld [vmem:[%s3 + $0x70] sm:$0xff]
    %v55 = vld [vmem:[%s3 + $0x78] sm:$0xff]
    %v56 = vlaneseq
    %v57 = vand.u32 %v56, 127
    %58 = vset.pattern.permute.xlu0 0
    %59 = vperm.xlu0 %58, %v40
    %v60 = vpop.permute.xlu0 %59
    %61 = vset.pattern.permute.xlu0 0
    %62 = vperm.xlu0 %61, %v41
    %v63 = vpop.permute.xlu0 %62
    %64 = vset.pattern.permute.xlu0 0
    %65 = vperm.xlu0 %64, %v42
    %v66 = vpop.permute.xlu0 %65
    %67 = vset.pattern.permute.xlu0 0
    %68 = vperm.xlu0 %67, %v43
    %v69 = vpop.permute.xlu0 %68
    %70 = vset.pattern.permute.xlu0 0
    %71 = vperm.xlu0 %70, %v44
    %v72 = vpop.permute.xlu0 %71
    %73 = vset.pattern.permute.xlu0 0
    %74 = vperm.xlu0 %73, %v45
    %v75 = vpop.permute.xlu0 %74
    %76 = vset.pattern.permute.xlu0 0
    %77 = vperm.xlu0 %76, %v46
    %v78 = vpop.permute.xlu0 %77
    %79 = vset.pattern.permute.xlu0 0
    %80 = vperm.xlu0 %79, %v47
    %v81 = vpop.permute.xlu0 %80
    %82 = vset.pattern.permute.xlu0 0
    %83 = vperm.xlu0 %82, %v48
    %v84 = vpop.permute.xlu0 %83
    %85 = vset.pattern.permute.xlu0 0
    %86 = vperm.xlu0 %85, %v49
    %v87 = vpop.permute.xlu0 %86
    %88 = vset.pattern.permute.xlu0 0
    %89 = vperm.xlu0 %88, %v50
    %v90 = vpop.permute.xlu0 %89
    %91 = vset.pattern.permute.xlu0 0
    %92 = vperm.xlu0 %91, %v51
    %v93 = vpop.permute.xlu0 %92
    %94 = vset.pattern.permute.xlu0 0
    %95 = vperm.xlu0 %94, %v52
    %v96 = vpop.permute.xlu0 %95
    %97 = vset.pattern.permute.xlu0 0
    %98 = vperm.xlu0 %97, %v53
    %v99 = vpop.permute.xlu0 %98
    %100 = vset.pattern.permute.xlu0 0
    %101 = vperm.xlu0 %100, %v54
    %v102 = vpop.permute.xlu0 %101
    %103 = vset.pattern.permute.xlu0 0
    %104 = vperm.xlu0 %103, %v55
    %v105 = vpop.permute.xlu0 %104
    %vm106 = vcmp.eq.s32.totalorder %v57, %v60
    %vm107 = vcmp.eq.s32.totalorder %v57, %v63
    %vm108 = vcmp.eq.s32.totalorder %v57, %v66
    %vm109 = vcmp.eq.s32.totalorder %v57, %v69
    %vm110 = vcmp.eq.s32.totalorder %v57, %v72
    %vm111 = vcmp.eq.s32.totalorder %v57, %v75
    %vm112 = vcmp.eq.s32.totalorder %v57, %v78
    %vm113 = vcmp.eq.s32.totalorder %v57, %v81
    %vm114 = vcmp.eq.s32.totalorder %v57, %v84
    %vm115 = vcmp.eq.s32.totalorder %v57, %v87
    %vm116 = vcmp.eq.s32.totalorder %v57, %v90
    %vm117 = vcmp.eq.s32.totalorder %v57, %v93
    %vm118 = vcmp.eq.s32.totalorder %v57, %v96
    %vm119 = vcmp.eq.s32.totalorder %v57, %v99
    %vm120 = vcmp.eq.s32.totalorder %v57, %v102
    %vm121 = vcmp.eq.s32.totalorder %v57, %v105
    %v122 = vsel %vm106, 1.0, 0.0
    %v123 = vsel %vm107, 1.0, 0.0
    %v124 = vsel %vm108, 1.0, 0.0
    %v125 = vsel %vm109, 1.0, 0.0
    %v126 = vsel %vm110, 1.0, 0.0
    %v127 = vsel %vm111, 1.0, 0.0
    %v128 = vsel %vm112, 1.0, 0.0
    %v129 = vsel %vm113, 1.0, 0.0
    %v130 = vsel %vm114, 1.0, 0.0
    %v131 = vsel %vm115, 1.0, 0.0
    %v132 = vsel %vm116, 1.0, 0.0
    %v133 = vsel %vm117, 1.0, 0.0
    %v134 = vsel %vm118, 1.0, 0.0
    %v135 = vsel %vm119, 1.0, 0.0
    %v136 = vsel %vm120, 1.0, 0.0
    %v137 = vsel %vm121, 1.0, 0.0
    %v138 = vpack.c.bf16 %v123, %v122
    %v139 = vpack.c.bf16 %v125, %v124
    %v140 = vpack.c.bf16 %v127, %v126
    %v141 = vpack.c.bf16 %v129, %v128
    %v142 = vpack.c.bf16 %v131, %v130
    %v143 = vpack.c.bf16 %v133, %v132
    %v144 = vpack.c.bf16 %v135, %v134
    %v145 = vpack.c.bf16 %v137, %v136
    %v146 = vld [vmem:[%s0] sm:$0xf]
    %v147 = vld [vmem:[%s0 + $0x4] sm:$0xf]
    %v148 = vld [vmem:[%s0 + $0x8] sm:$0xf]
    %v149 = vld [vmem:[%s0 + $0xc] sm:$0xf]
    %v150 = vld [vmem:[%s0 + $0x10] sm:$0xf]
    %v151 = vld [vmem:[%s0 + $0x14] sm:$0xf]
    %v152 = vld [vmem:[%s0 + $0x18] sm:$0xf]
    %v153 = vld [vmem:[%s0 + $0x1c] sm:$0xf]
    %v154 = vld [vmem:[%s0 + $0x20] sm:$0xf]
    %v155 = vld [vmem:[%s0 + $0x24] sm:$0xf]
    %v156 = vld [vmem:[%s0 + $0x28] sm:$0xf]
    %v157 = vld [vmem:[%s0 + $0x2c] sm:$0xf]
    %v158 = vld [vmem:[%s0 + $0x30] sm:$0xf]
    %v159 = vld [vmem:[%s0 + $0x34] sm:$0xf]
    %v160 = vld [vmem:[%s0 + $0x38] sm:$0xf]
    %v161 = vld [vmem:[%s0 + $0x3c] sm:$0xf]
    %v178 = vunpack.c.l.b16 %v146
    %v179 = vunpack.c.l.b16 %v147
    %v180 = vunpack.c.l.b16 %v148
    %v181 = vunpack.c.l.b16 %v149
    %v182 = vunpack.c.l.b16 %v150
    %v183 = vunpack.c.l.b16 %v151
    %v184 = vunpack.c.l.b16 %v152
    %v185 = vunpack.c.l.b16 %v153
    %v186 = vunpack.c.l.b16 %v154
    %v187 = vunpack.c.l.b16 %v155
    %v188 = vunpack.c.l.b16 %v156
    %v189 = vunpack.c.l.b16 %v157
    %v190 = vunpack.c.l.b16 %v158
    %v191 = vunpack.c.l.b16 %v159
    %v192 = vunpack.c.l.b16 %v160
    %v193 = vunpack.c.l.b16 %v161
    %v194 = vpack.c.b16 %v179, %v178
    %v195 = vpack.c.b16 %v181, %v180
    %v196 = vpack.c.b16 %v183, %v182
    %v197 = vpack.c.b16 %v185, %v184
    %v198 = vpack.c.b16 %v187, %v186
    %v199 = vpack.c.b16 %v189, %v188
    %v200 = vpack.c.b16 %v191, %v190
    %v201 = vpack.c.b16 %v193, %v192
    %210 = vmatprep.subr.bf16.mxu0 0
    %211 = vmatpush1.bf16.msra.mxu0 %v194
    %212 = vmatprep.subr.bf16.mxu0 0
    %213 = vmatpush1.bf16.msra.mxu0 %v195
    %214 = vmatprep.subr.bf16.mxu0 0
    %215 = vmatpush1.bf16.msra.mxu0 %v196
    %216 = vmatprep.subr.bf16.mxu0 0
    %217 = vmatpush1.bf16.msra.mxu0 %v197
    %218 = vmatprep.subr.bf16.mxu0 0
    %219 = vmatpush1.bf16.msra.mxu0 %v198
    %220 = vmatprep.subr.bf16.mxu0 0
    %221 = vmatpush1.bf16.msra.mxu0 %v199
    %222 = vmatprep.subr.bf16.mxu0 0
    %223 = vmatpush1.bf16.msra.mxu0 %v200
    %224 = vmatprep.subr.bf16.mxu0 0
    %225 = vmatpush1.bf16.msra.mxu0 %v201
    %226 = vmatprep.subr.bf16.mxu0 0
    %227 = vmatpush1.bf16.msra.mxu0 0
    %228 = vmatprep.subr.bf16.mxu0 0
    %229 = vmatpush1.bf16.msra.mxu0 0
    %230 = vmatprep.subr.bf16.mxu0 0
    %231 = vmatpush1.bf16.msra.mxu0 0
    %232 = vmatprep.subr.bf16.mxu0 0
    %233 = vmatpush1.bf16.msra.mxu0 0
    %234 = vmatprep.subr.bf16.mxu0 0
    %235 = vmatpush1.bf16.msra.mxu0 0
    %236 = vmatprep.subr.bf16.mxu0 0
    %237 = vmatpush1.bf16.msra.mxu0 0
    %238 = vmatprep.subr.bf16.mxu0 0
    %239 = vmatpush1.bf16.msra.mxu0 0
    %240 = vmatprep.subr.bf16.mxu0 0
    %241 = vmatpush1.bf16.msra.mxu0 0
    %242 = vmatprep.mubr.bf16.mxu0 0
    %243 = vmatmul.mubr.bf16.gmra.mrb[0].mxu0 %v138
    %v244 = vpop.f32.mrb[0].mxu0
    %v245 = vadd.f32 0.0, %v244
    %v246 = vpop.f32.mrb[0].mxu0
    %v247 = vpop.f32.mrb[0].mxu0
    %v248 = vadd.f32 0.0, %v247
    %v249 = vpop.f32.mrb[0].mxu0
    %250 = vmatprep.mubr.bf16.mxu0 0
    %251 = vmatmul.mubr.bf16.gmra.mrb[0].mxu0 %v139
    %v252 = vpop.f32.mrb[0].mxu0
    %v253 = vadd.f32 0.0, %v252
    %v254 = vpop.f32.mrb[0].mxu0
    %v255 = vpop.f32.mrb[0].mxu0
    %v256 = vadd.f32 0.0, %v255
    %v257 = vpop.f32.mrb[0].mxu0
    %258 = vmatprep.mubr.bf16.mxu0 0
    %259 = vmatmul.mubr.bf16.gmra.mrb[0].mxu0 %v140
    %v260 = vpop.f32.mrb[0].mxu0
    %v261 = vadd.f32 0.0, %v260
    %v262 = vpop.f32.mrb[0].mxu0
    %v263 = vpop.f32.mrb[0].mxu0
    %v264 = vadd.f32 0.0, %v263
    %v265 = vpop.f32.mrb[0].mxu0
    %266 = vmatprep.mubr.bf16.mxu0 0
    %267 = vmatmul.mubr.bf16.gmra.mrb[0].mxu0 %v141
    %v268 = vpop.f32.mrb[0].mxu0
    %v269 = vadd.f32 0.0, %v268
    %v270 = vpop.f32.mrb[0].mxu0
    %v271 = vpop.f32.mrb[0].mxu0
    %v272 = vadd.f32 0.0, %v271
    %v273 = vpop.f32.mrb[0].mxu0
    %274 = vmatprep.mubr.bf16.mxu0 0
    %275 = vmatmul.mubr.bf16.gmra.mrb[0].mxu0 %v142
    %v276 = vpop.f32.mrb[0].mxu0
    %v277 = vadd.f32 0.0, %v276
    %v278 = vpop.f32.mrb[0].mxu0
    %v279 = vpop.f32.mrb[0].mxu0
    %v280 = vadd.f32 0.0, %v279
    %v281 = vpop.f32.mrb[0].mxu0
    %282 = vmatprep.mubr.bf16.mxu0 0
    %283 = vmatmul.mubr.bf16.gmra.mrb[0].mxu0 %v143
    %v284 = vpop.f32.mrb[0].mxu0
    %v285 = vadd.f32 0.0, %v284
    %v286 = vpop.f32.mrb[0].mxu0
    %v287 = vpop.f32.mrb[0].mxu0
    %v288 = vadd.f32 0.0, %v287
    %v289 = vpop.f32.mrb[0].mxu0
    %290 = vmatprep.mubr.bf16.mxu0 0
    %291 = vmatmul.mubr.bf16.gmra.mrb[0].mxu0 %v144
    %v292 = vpop.f32.mrb[0].mxu0
    %v293 = vadd.f32 0.0, %v292
    %v294 = vpop.f32.mrb[0].mxu0
    %v295 = vpop.f32.mrb[0].mxu0
    %v296 = vadd.f32 0.0, %v295
    %v297 = vpop.f32.mrb[0].mxu0
    %298 = vmatprep.mubr.bf16.mxu0 0
    %299 = vmatmul.mubr.bf16.gmra.mrb[0].mxu0 %v145
    %v300 = vpop.f32.mrb[0].mxu0
    %v301 = vadd.f32 0.0, %v300
    %v302 = vpop.f32.mrb[0].mxu0
    %v303 = vpop.f32.mrb[0].mxu0
    %v304 = vadd.f32 0.0, %v303
    %v305 = vpop.f32.mrb[0].mxu0
    %306 = vdwg.mxu0
    %v307 = vld [vmem:[%s1] sm:$0xff]
    %v308 = vld [vmem:[%s1 + $0x8] sm:$0xff]
    %v309 = vadd.f32 %v245, %v307
    %v310 = vadd.f32 %v248, %v308
    %v311 = vadd.f32 %v253, %v307
    %v312 = vadd.f32 %v256, %v308
    %v313 = vadd.f32 %v261, %v307
    %v314 = vadd.f32 %v264, %v308
    %v315 = vadd.f32 %v269, %v307
    %v316 = vadd.f32 %v272, %v308
    %v317 = vadd.f32 %v277, %v307
    %v318 = vadd.f32 %v280, %v308
    %v319 = vadd.f32 %v285, %v307
    %v320 = vadd.f32 %v288, %v308
    %v321 = vadd.f32 %v293, %v307
    %v322 = vadd.f32 %v296, %v308
    %v323 = vadd.f32 %v301, %v307
    %v324 = vadd.f32 %v304, %v308
    %vm325 = vcmask 261120
    %v326 = vsel %vm325, %v309, 0.0
    %327 = vadd.xlane.f32.xlu0 %v326
    %v328 = vpop.xlane.xlu0 %327
    %v329 = vsel %vm325, %v310, 0.0
    %330 = vadd.xlane.f32.xlu0 %v329
    %v331 = vpop.xlane.xlu0 %330
    %v332 = vsel %vm325, %v311, 0.0
    %333 = vadd.xlane.f32.xlu0 %v332
    %v334 = vpop.xlane.xlu0 %333
    %v335 = vsel %vm325, %v312, 0.0
    %336 = vadd.xlane.f32.xlu0 %v335
    %v337 = vpop.xlane.xlu0 %336
    %v338 = vsel %vm325, %v313, 0.0
    %339 = vadd.xlane.f32.xlu0 %v338
    %v340 = vpop.xlane.xlu0 %339
    %v341 = vsel %vm325, %v314, 0.0
    %342 = vadd.xlane.f32.xlu0 %v341
    %v343 = vpop.xlane.xlu0 %342
    %v344 = vsel %vm325, %v315, 0.0
    %345 = vadd.xlane.f32.xlu0 %v344
    %v346 = vpop.xlane.xlu0 %345
    %v347 = vsel %vm325, %v316, 0.0
    %348 = vadd.xlane.f32.xlu0 %v347
    %v349 = vpop.xlane.xlu0 %348
    %v350 = vsel %vm325, %v317, 0.0
    %351 = vadd.xlane.f32.xlu0 %v350
    %v352 = vpop.xlane.xlu0 %351
    %v353 = vsel %vm325, %v318, 0.0
    %354 = vadd.xlane.f32.xlu0 %v353
    %v355 = vpop.xlane.xlu0 %354
    %v356 = vsel %vm325, %v319, 0.0
    %357 = vadd.xlane.f32.xlu0 %v356
    %v358 = vpop.xlane.xlu0 %357
    %v359 = vsel %vm325, %v320, 0.0
    %360 = vadd.xlane.f32.xlu0 %v359
    %v361 = vpop.xlane.xlu0 %360
    %v362 = vsel %vm325, %v321, 0.0
    %363 = vadd.xlane.f32.xlu0 %v362
    %v364 = vpop.xlane.xlu0 %363
    %v365 = vsel %vm325, %v322, 0.0
    %366 = vadd.xlane.f32.xlu0 %v365
    %v367 = vpop.xlane.xlu0 %366
    %v368 = vsel %vm325, %v323, 0.0
    %369 = vadd.xlane.f32.xlu0 %v368
    %v370 = vpop.xlane.xlu0 %369
    %v371 = vsel %vm325, %v324, 0.0
    %372 = vadd.xlane.f32.xlu0 %v371
    %v373 = vpop.xlane.xlu0 %372
    %v374 = vrcp.pop 32.0
    %v375 = vmul.f32 %v328, %v374
    %v376 = vmul.f32 %v331, %v374
    %v377 = vmul.f32 %v334, %v374
    %v378 = vmul.f32 %v337, %v374
    %v379 = vmul.f32 %v340, %v374
    %v380 = vmul.f32 %v343, %v374
    %v381 = vmul.f32 %v346, %v374
    %v382 = vmul.f32 %v349, %v374
    %v383 = vmul.f32 %v352, %v374
    %v384 = vmul.f32 %v355, %v374
    %v385 = vmul.f32 %v358, %v374
    %v386 = vmul.f32 %v361, %v374
    %v387 = vmul.f32 %v364, %v374
    %v388 = vmul.f32 %v367, %v374
    %v389 = vmul.f32 %v370, %v374
    %v390 = vmul.f32 %v373, %v374
    %v391 = vsub.f32 %v309, %v375
    %v392 = vsub.f32 %v310, %v376
    %v393 = vsub.f32 %v311, %v377
    %v394 = vsub.f32 %v312, %v378
    %v395 = vsub.f32 %v313, %v379
    %v396 = vsub.f32 %v314, %v380
    %v397 = vsub.f32 %v315, %v381
    %v398 = vsub.f32 %v316, %v382
    %v399 = vsub.f32 %v317, %v383
    %v400 = vsub.f32 %v318, %v384
    %v401 = vsub.f32 %v319, %v385
    %v402 = vsub.f32 %v320, %v386
    %v403 = vsub.f32 %v321, %v387
    %v404 = vsub.f32 %v322, %v388
    %v405 = vsub.f32 %v323, %v389
    %v406 = vsub.f32 %v324, %v390
    %v407 = vmul.f32 %v391, %v391
    %v408 = vmul.f32 %v392, %v392
    %v409 = vmul.f32 %v393, %v393
    %v410 = vmul.f32 %v394, %v394
    %v411 = vmul.f32 %v395, %v395
    %v412 = vmul.f32 %v396, %v396
    %v413 = vmul.f32 %v397, %v397
    %v414 = vmul.f32 %v398, %v398
    %v415 = vmul.f32 %v399, %v399
    %v416 = vmul.f32 %v400, %v400
    %v417 = vmul.f32 %v401, %v401
    %v418 = vmul.f32 %v402, %v402
    %v419 = vmul.f32 %v403, %v403
    %v420 = vmul.f32 %v404, %v404
    %v421 = vmul.f32 %v405, %v405
    %v422 = vmul.f32 %v406, %v406
    %v423 = vsel %vm325, %v407, 0.0
    %424 = vadd.xlane.f32.xlu0 %v423
    %v425 = vpop.xlane.xlu0 %424
    %v426 = vsel %vm325, %v408, 0.0
    %427 = vadd.xlane.f32.xlu0 %v426
    %v428 = vpop.xlane.xlu0 %427
    %v429 = vsel %vm325, %v409, 0.0
    %430 = vadd.xlane.f32.xlu0 %v429
    %v431 = vpop.xlane.xlu0 %430
    %v432 = vsel %vm325, %v410, 0.0
    %433 = vadd.xlane.f32.xlu0 %v432
    %v434 = vpop.xlane.xlu0 %433
    %v435 = vsel %vm325, %v411, 0.0
    %436 = vadd.xlane.f32.xlu0 %v435
    %v437 = vpop.xlane.xlu0 %436
    %v438 = vsel %vm325, %v412, 0.0
    %439 = vadd.xlane.f32.xlu0 %v438
    %v440 = vpop.xlane.xlu0 %439
    %v441 = vsel %vm325, %v413, 0.0
    %442 = vadd.xlane.f32.xlu0 %v441
    %v443 = vpop.xlane.xlu0 %442
    %v444 = vsel %vm325, %v414, 0.0
    %445 = vadd.xlane.f32.xlu0 %v444
    %v446 = vpop.xlane.xlu0 %445
    %v447 = vsel %vm325, %v415, 0.0
    %448 = vadd.xlane.f32.xlu0 %v447
    %v449 = vpop.xlane.xlu0 %448
    %v450 = vsel %vm325, %v416, 0.0
    %451 = vadd.xlane.f32.xlu0 %v450
    %v452 = vpop.xlane.xlu0 %451
    %v453 = vsel %vm325, %v417, 0.0
    %454 = vadd.xlane.f32.xlu0 %v453
    %v455 = vpop.xlane.xlu0 %454
    %v456 = vsel %vm325, %v418, 0.0
    %457 = vadd.xlane.f32.xlu0 %v456
    %v458 = vpop.xlane.xlu0 %457
    %v459 = vsel %vm325, %v419, 0.0
    %460 = vadd.xlane.f32.xlu0 %v459
    %v461 = vpop.xlane.xlu0 %460
    %v462 = vsel %vm325, %v420, 0.0
    %463 = vadd.xlane.f32.xlu0 %v462
    %v464 = vpop.xlane.xlu0 %463
    %v465 = vsel %vm325, %v421, 0.0
    %466 = vadd.xlane.f32.xlu0 %v465
    %v467 = vpop.xlane.xlu0 %466
    %v468 = vsel %vm325, %v422, 0.0
    %469 = vadd.xlane.f32.xlu0 %v468
    %v470 = vpop.xlane.xlu0 %469
    %v471 = vmul.f32 %v425, %v374
    %v472 = vmul.f32 %v428, %v374
    %v473 = vmul.f32 %v431, %v374
    %v474 = vmul.f32 %v434, %v374
    %v475 = vmul.f32 %v437, %v374
    %v476 = vmul.f32 %v440, %v374
    %v477 = vmul.f32 %v443, %v374
    %v478 = vmul.f32 %v446, %v374
    %v479 = vmul.f32 %v449, %v374
    %v480 = vmul.f32 %v452, %v374
    %v481 = vmul.f32 %v455, %v374
    %v482 = vmul.f32 %v458, %v374
    %v483 = vmul.f32 %v461, %v374
    %v484 = vmul.f32 %v464, %v374
    %v485 = vmul.f32 %v467, %v374
    %v486 = vmul.f32 %v470, %v374
    %v487 = vadd.f32 %v471, 1e-12
    %v488 = vadd.f32 %v472, 1e-12
    %v489 = vadd.f32 %v473, 1e-12
    %v490 = vadd.f32 %v474, 1e-12
    %v491 = vadd.f32 %v475, 1e-12
    %v492 = vadd.f32 %v476, 1e-12
    %v493 = vadd.f32 %v477, 1e-12
    %v494 = vadd.f32 %v478, 1e-12
    %v495 = vadd.f32 %v479, 1e-12
    %v496 = vadd.f32 %v480, 1e-12
    %v497 = vadd.f32 %v481, 1e-12
    %v498 = vadd.f32 %v482, 1e-12
    %v499 = vadd.f32 %v483, 1e-12
    %v500 = vadd.f32 %v484, 1e-12
    %v501 = vadd.f32 %v485, 1e-12
    %v502 = vadd.f32 %v486, 1e-12
    %v503 = vrsqrt.pop %v487
    %v504 = vrsqrt.pop %v488
    %v505 = vrsqrt.pop %v489
    %v506 = vrsqrt.pop %v490
    %v507 = vrsqrt.pop %v491
    %v508 = vrsqrt.pop %v492
    %v509 = vrsqrt.pop %v493
    %v510 = vrsqrt.pop %v494
    %v511 = vrsqrt.pop %v495
    %v512 = vrsqrt.pop %v496
    %v513 = vrsqrt.pop %v497
    %v514 = vrsqrt.pop %v498
    %v515 = vrsqrt.pop %v499
    %v516 = vrsqrt.pop %v500
    %v517 = vrsqrt.pop %v501
    %v518 = vrsqrt.pop %v502
    %v519 = vmul.f32 %v391, %v503
    %v520 = vmul.f32 %v392, %v504
    %v521 = vmul.f32 %v393, %v505
    %v522 = vmul.f32 %v394, %v506
    %v523 = vmul.f32 %v395, %v507
    %v524 = vmul.f32 %v396, %v508
    %v525 = vmul.f32 %v397, %v509
    %v526 = vmul.f32 %v398, %v510
    %v527 = vmul.f32 %v399, %v511
    %v528 = vmul.f32 %v400, %v512
    %v529 = vmul.f32 %v401, %v513
    %v530 = vmul.f32 %v402, %v514
    %v531 = vmul.f32 %v403, %v515
    %v532 = vmul.f32 %v404, %v516
    %v533 = vmul.f32 %v405, %v517
    %v534 = vmul.f32 %v406, %v518
    %v535 = vld [vmem:[%s1 + $0x10] sm:$0x1]
    %v536 = vlaneseq
    %v537 = vshrl.u32 %v536, 7
    %v538 = vsub.s32 0, %v537
    %v539 = vrot.slane %v535, %v538
    %v540 = vmul.f32 %v519, %v539
    %v541 = vmul.f32 %v520, %v539
    %v542 = vmul.f32 %v521, %v539
    %v543 = vmul.f32 %v522, %v539
    %v544 = vmul.f32 %v523, %v539
    %v545 = vmul.f32 %v524, %v539
    %v546 = vmul.f32 %v525, %v539
    %v547 = vmul.f32 %v526, %v539
    %v548 = vmul.f32 %v527, %v539
    %v549 = vmul.f32 %v528, %v539
    %v550 = vmul.f32 %v529, %v539
    %v551 = vmul.f32 %v530, %v539
    %v552 = vmul.f32 %v531, %v539
    %v553 = vmul.f32 %v532, %v539
    %v554 = vmul.f32 %v533, %v539
    %v555 = vmul.f32 %v534, %v539
    %v556 = vld [vmem:[%s1 + $0x11] sm:$0x1]
    %v557 = vlaneseq
    %v558 = vshrl.u32 %v557, 7
    %v559 = vsub.s32 0, %v558
    %v560 = vrot.slane %v556, %v559
    %v561 = vadd.f32 %v540, %v560
    %v562 = vadd.f32 %v541, %v560
    %v563 = vadd.f32 %v542, %v560
    %v564 = vadd.f32 %v543, %v560
    %v565 = vadd.f32 %v544, %v560
    %v566 = vadd.f32 %v545, %v560
    %v567 = vadd.f32 %v546, %v560
    %v568 = vadd.f32 %v547, %v560
    %v569 = vadd.f32 %v548, %v560
    %v570 = vadd.f32 %v549, %v560
    %v571 = vadd.f32 %v550, %v560
    %v572 = vadd.f32 %v551, %v560
    %v573 = vadd.f32 %v552, %v560
    %v574 = vadd.f32 %v553, %v560
    %v575 = vadd.f32 %v554, %v560
    %v576 = vadd.f32 %v555, %v560
    %v577 = vld [vmem:[%s2] sm:$0xff]
    %v579 = vcombine.high %v577, %v577
    %v581 = vunpack.c.l.s4 1966171168
    %v582 = vunpack.c.0.s8 %v581
    %v583 = vlaneseq
    %v584 = vshrl.u32 %v583, 7
    %v585 = vsub.s32 %v582, %v584
    %v586 = vrot.slane %v577, %v585
    %v588 = vunpack.c.l.s4 1966171168
    %v589 = vunpack.c.0.s8 %v588
    %v590 = vlaneseq
    %v591 = vshrl.u32 %v590, 7
    %v592 = vsub.s32 %v589, %v591
    %v593 = vrot.slane %v579, %v592
    %v594 = vcombine.high %v586, %v586
    %v595 = vcombine.high %v593, %v593
    %v597 = vunpack.c.l.s4 1966171168
    %v598 = vunpack.c.0.s8 %v597
    %v599 = vlaneseq
    %v600 = vshrl.u32 %v599, 7
    %v601 = vsub.s32 %v598, %v600
    %v602 = vrot.slane %v586, %v601
    %v604 = vunpack.c.l.s4 1966171168
    %v605 = vunpack.c.0.s8 %v604
    %v606 = vlaneseq
    %v607 = vshrl.u32 %v606, 7
    %v608 = vsub.s32 %v605, %v607
    %v609 = vrot.slane %v593, %v608
    %v611 = vunpack.c.l.s4 1966171168
    %v612 = vunpack.c.0.s8 %v611
    %v613 = vlaneseq
    %v614 = vshrl.u32 %v613, 7
    %v615 = vsub.s32 %v612, %v614
    %v616 = vrot.slane %v594, %v615
    %v618 = vunpack.c.l.s4 1966171168
    %v619 = vunpack.c.0.s8 %v618
    %v620 = vlaneseq
    %v621 = vshrl.u32 %v620, 7
    %v622 = vsub.s32 %v619, %v621
    %v623 = vrot.slane %v595, %v622
    %v624 = vcombine.high %v602, %v602
    %v625 = vcombine.high %v609, %v609
    %v626 = vcombine.high %v616, %v616
    %v627 = vcombine.high %v623, %v623
    %v628 = vlaneseq
    %v629 = vshrl.u32 %v628, 7
    %v630 = vsub.s32 0, %v629
    %v631 = vrot.slane %v602, %v630
    %v632 = vlaneseq
    %v633 = vshrl.u32 %v632, 7
    %v634 = vsub.s32 0, %v633
    %v635 = vrot.slane %v616, %v634
    %v636 = vlaneseq
    %v637 = vshrl.u32 %v636, 7
    %v638 = vsub.s32 0, %v637
    %v639 = vrot.slane %v624, %v638
    %v640 = vlaneseq
    %v641 = vshrl.u32 %v640, 7
    %v642 = vsub.s32 0, %v641
    %v643 = vrot.slane %v626, %v642
    %v644 = vlaneseq
    %v645 = vshrl.u32 %v644, 7
    %v646 = vsub.s32 0, %v645
    %v647 = vrot.slane %v609, %v646
    %v648 = vlaneseq
    %v649 = vshrl.u32 %v648, 7
    %v650 = vsub.s32 0, %v649
    %v651 = vrot.slane %v623, %v650
    %v652 = vlaneseq
    %v653 = vshrl.u32 %v652, 7
    %v654 = vsub.s32 0, %v653
    %v655 = vrot.slane %v625, %v654
    %v656 = vlaneseq
    %v657 = vshrl.u32 %v656, 7
    %v658 = vsub.s32 0, %v657
    %v659 = vrot.slane %v627, %v658
    %v668 = vpack.c.bf16 %v562, %v561
    %v669 = vpack.c.bf16 %v564, %v563
    %v670 = vpack.c.bf16 %v566, %v565
    %v671 = vpack.c.bf16 %v568, %v567
    %v672 = vpack.c.bf16 %v570, %v569
    %v673 = vpack.c.bf16 %v572, %v571
    %v674 = vpack.c.bf16 %v574, %v573
    %v675 = vpack.c.bf16 %v576, %v575
    %v676 = vld [vmem:[%s0 + $0x40] sm:$0xf]
    %v677 = vld [vmem:[%s0 + $0x44] sm:$0xf]
    %v678 = vld [vmem:[%s0 + $0x48] sm:$0xf]
    %v679 = vld [vmem:[%s0 + $0x4c] sm:$0xf]
    %v680 = vld [vmem:[%s1 + $0x12] sm:$0x1]
    %v681 = vlaneseq
    %v682 = vshrl.u32 %v681, 7
    %v683 = vsub.s32 0, %v682
    %v684 = vrot.slane %v680, %v683
    %v689 = vunpack.c.l.b16 %v676
    %v690 = vunpack.c.l.b16 %v677
    %v691 = vunpack.c.l.b16 %v678
    %v692 = vunpack.c.l.b16 %v679
    %v693 = vpack.c.b16 %v690, %v689
    %v694 = vpack.c.b16 %v692, %v691
    %v698 = vsel %vm325, %v668, 0
    %v701 = vsel %vm325, %v669, 0
    %v704 = vsel %vm325, %v670, 0
    %v707 = vsel %vm325, %v671, 0
    %v710 = vsel %vm325, %v672, 0
    %v713 = vsel %vm325, %v673, 0
    %v716 = vsel %vm325, %v674, 0
    %v719 = vsel %vm325, %v675, 0
    %721 = vmatprep.subr.bf16.mxu0 0
    %722 = vmatpush1.bf16.msra.mxu0 %v693
    %723 = vmatprep.subr.bf16.mxu0 0
    %724 = vmatpush1.bf16.msra.mxu0 %v694
    %725 = vmatprep.subr.bf16.mxu0 0
    %726 = vmatpush1.bf16.msra.mxu0 0
    %727 = vmatprep.subr.bf16.mxu0 0
    %728 = vmatpush1.bf16.msra.mxu0 0
    %729 = vmatprep.subr.bf16.mxu0 0
    %730 = vmatpush1.bf16.msra.mxu0 0
    %731 = vmatprep.subr.bf16.mxu0 0
    %732 = vmatpush1.bf16.msra.mxu0 0
    %733 = vmatprep.subr.bf16.mxu0 0
    %734 = vmatpush1.bf16.msra.mxu0 0
    %735 = vmatprep.subr.bf16.mxu0 0
    %736 = vmatpush1.bf16.msra.mxu0 0
    %737 = vmatprep.subr.bf16.mxu0 0
    %738 = vmatpush1.bf16.msra.mxu0 0
    %739 = vmatprep.subr.bf16.mxu0 0
    %740 = vmatpush1.bf16.msra.mxu0 0
    %741 = vmatprep.subr.bf16.mxu0 0
    %742 = vmatpush1.bf16.msra.mxu0 0
    %743 = vmatprep.subr.bf16.mxu0 0
    %744 = vmatpush1.bf16.msra.mxu0 0
    %745 = vmatprep.subr.bf16.mxu0 0
    %746 = vmatpush1.bf16.msra.mxu0 0
    %747 = vmatprep.subr.bf16.mxu0 0
    %748 = vmatpush1.bf16.msra.mxu0 0
    %749 = vmatprep.subr.bf16.mxu0 0
    %750 = vmatpush1.bf16.msra.mxu0 0
    %751 = vmatprep.subr.bf16.mxu0 0
    %752 = vmatpush1.bf16.msra.mxu0 0
    %753 = vmatprep.mubr.bf16.mxu0 0
    %754 = vmatmul.mubr.bf16.gmra.mrb[0].mxu0 %v698
    %v755 = vpop.f32.mrb[0].mxu0
    %v756 = vadd.f32 %v684, %v755
    %v757 = vpop.f32.mrb[0].mxu0
    %v758 = vpop.f32.mrb[0].mxu0
    %v759 = vadd.f32 %v684, %v758
    %v760 = vpop.f32.mrb[0].mxu0
    %761 = vmatprep.mubr.bf16.mxu0 0
    %762 = vmatmul.mubr.bf16.gmra.mrb[0].mxu0 %v701
    %v763 = vpop.f32.mrb[0].mxu0
    %v764 = vadd.f32 %v684, %v763
    %v765 = vpop.f32.mrb[0].mxu0
    %v766 = vpop.f32.mrb[0].mxu0
    %v767 = vadd.f32 %v684, %v766
    %v768 = vpop.f32.mrb[0].mxu0
    %769 = vmatprep.mubr.bf16.mxu0 0
    %770 = vmatmul.mubr.bf16.gmra.mrb[0].mxu0 %v704
    %v771 = vpop.f32.mrb[0].mxu0
    %v772 = vadd.f32 %v684, %v771
    %v773 = vpop.f32.mrb[0].mxu0
    %v774 = vpop.f32.mrb[0].mxu0
    %v775 = vadd.f32 %v684, %v774
    %v776 = vpop.f32.mrb[0].mxu0
    %777 = vmatprep.mubr.bf16.mxu0 0
    %778 = vmatmul.mubr.bf16.gmra.mrb[0].mxu0 %v707
    %v779 = vpop.f32.mrb[0].mxu0
    %v780 = vadd.f32 %v684, %v779
    %v781 = vpop.f32.mrb[0].mxu0
    %v782 = vpop.f32.mrb[0].mxu0
    %v783 = vadd.f32 %v684, %v782
    %v784 = vpop.f32.mrb[0].mxu0
    %785 = vmatprep.mubr.bf16.mxu0 0
    %786 = vmatmul.mubr.bf16.gmra.mrb[0].mxu0 %v710
    %v787 = vpop.f32.mrb[0].mxu0
    %v788 = vadd.f32 %v684, %v787
    %v789 = vpop.f32.mrb[0].mxu0
    %v790 = vpop.f32.mrb[0].mxu0
    %v791 = vadd.f32 %v684, %v790
    %v792 = vpop.f32.mrb[0].mxu0
    %793 = vmatprep.mubr.bf16.mxu0 0
    %794 = vmatmul.mubr.bf16.gmra.mrb[0].mxu0 %v713
    %v795 = vpop.f32.mrb[0].mxu0
    %v796 = vadd.f32 %v684, %v795
    %v797 = vpop.f32.mrb[0].mxu0
    %v798 = vpop.f32.mrb[0].mxu0
    %v799 = vadd.f32 %v684, %v798
    %v800 = vpop.f32.mrb[0].mxu0
    %801 = vmatprep.mubr.bf16.mxu0 0
    %802 = vmatmul.mubr.bf16.gmra.mrb[0].mxu0 %v716
    %v803 = vpop.f32.mrb[0].mxu0
    %v804 = vadd.f32 %v684, %v803
    %v805 = vpop.f32.mrb[0].mxu0
    %v806 = vpop.f32.mrb[0].mxu0
    %v807 = vadd.f32 %v684, %v806
    %v808 = vpop.f32.mrb[0].mxu0
    %809 = vmatprep.mubr.bf16.mxu0 0
    %810 = vmatmul.mubr.bf16.gmra.mrb[0].mxu0 %v719
    %v811 = vpop.f32.mrb[0].mxu0
    %v812 = vadd.f32 %v684, %v811
    %v813 = vpop.f32.mrb[0].mxu0
    %v814 = vpop.f32.mrb[0].mxu0
    %v815 = vadd.f32 %v684, %v814
    %v816 = vpop.f32.mrb[0].mxu0
    %817 = vdwg.mxu0
    %v818 = vld [vmem:[%s0 + $0x70] sm:$0xf]
    %v819 = vld [vmem:[%s0 + $0x74] sm:$0xf]
    %v820 = vld [vmem:[%s0 + $0x78] sm:$0xf]
    %v821 = vld [vmem:[%s0 + $0x7c] sm:$0xf]
    %v822 = vld [vmem:[%s1 + $0x15] sm:$0x1]
    %v823 = vlaneseq
    %v824 = vshrl.u32 %v823, 7
    %v825 = vsub.s32 0, %v824
    %v826 = vrot.slane %v822, %v825
    %v831 = vunpack.c.l.b16 %v818
    %v832 = vunpack.c.l.b16 %v819
    %v833 = vunpack.c.l.b16 %v820
    %v834 = vunpack.c.l.b16 %v821
    %v835 = vpack.c.b16 %v832, %v831
    %v836 = vpack.c.b16 %v834, %v833
    %839 = vmatprep.subr.bf16.mxu0 0
    %840 = vmatpush1.bf16.msra.mxu0 %v835
    %841 = vmatprep.subr.bf16.mxu0 0
    %842 = vmatpush1.bf16.msra.mxu0 %v836
    %843 = vmatprep.subr.bf16.mxu0 0
    %844 = vmatpush1.bf16.msra.mxu0 0
    %845 = vmatprep.subr.bf16.mxu0 0
    %846 = vmatpush1.bf16.msra.mxu0 0
    %847 = vmatprep.subr.bf16.mxu0 0
    %848 = vmatpush1.bf16.msra.mxu0 0
    %849 = vmatprep.subr.bf16.mxu0 0
    %850 = vmatpush1.bf16.msra.mxu0 0
    %851 = vmatprep.subr.bf16.mxu0 0
    %852 = vmatpush1.bf16.msra.mxu0 0
    %853 = vmatprep.subr.bf16.mxu0 0
    %854 = vmatpush1.bf16.msra.mxu0 0
    %855 = vmatprep.subr.bf16.mxu0 0
    %856 = vmatpush1.bf16.msra.mxu0 0
    %857 = vmatprep.subr.bf16.mxu0 0
    %858 = vmatpush1.bf16.msra.mxu0 0
    %859 = vmatprep.subr.bf16.mxu0 0
    %860 = vmatpush1.bf16.msra.mxu0 0
    %861 = vmatprep.subr.bf16.mxu0 0
    %862 = vmatpush1.bf16.msra.mxu0 0
    %863 = vmatprep.subr.bf16.mxu0 0
    %864 = vmatpush1.bf16.msra.mxu0 0
    %865 = vmatprep.subr.bf16.mxu0 0
    %866 = vmatpush1.bf16.msra.mxu0 0
    %867 = vmatprep.subr.bf16.mxu0 0
    %868 = vmatpush1.bf16.msra.mxu0 0
    %869 = vmatprep.subr.bf16.mxu0 0
    %870 = vmatpush1.bf16.msra.mxu0 0
    %871 = vmatprep.mubr.bf16.mxu0 0
    %872 = vmatmul.mubr.bf16.gmra.mrb[0].mxu0 %v698
    %v873 = vpop.f32.mrb[0].mxu0
    %v874 = vadd.f32 %v826, %v873
    %v875 = vpop.f32.mrb[0].mxu0
    %v876 = vpop.f32.mrb[0].mxu0
    %v877 = vadd.f32 %v826, %v876
    %v878 = vpop.f32.mrb[0].mxu0
    %879 = vmatprep.mubr.bf16.mxu0 0
    %880 = vmatmul.mubr.bf16.gmra.mrb[0].mxu0 %v701
    %v881 = vpop.f32.mrb[0].mxu0
    %v882 = vadd.f32 %v826, %v881
    %v883 = vpop.f32.mrb[0].mxu0
    %v884 = vpop.f32.mrb[0].mxu0
    %v885 = vadd.f32 %v826, %v884
    %v886 = vpop.f32.mrb[0].mxu0
    %887 = vmatprep.mubr.bf16.mxu0 0
    %888 = vmatmul.mubr.bf16.gmra.mrb[0].mxu0 %v704
    %v889 = vpop.f32.mrb[0].mxu0
    %v890 = vadd.f32 %v826, %v889
    %v891 = vpop.f32.mrb[0].mxu0
    %v892 = vpop.f32.mrb[0].mxu0
    %v893 = vadd.f32 %v826, %v892
    %v894 = vpop.f32.mrb[0].mxu0
    %895 = vmatprep.mubr.bf16.mxu0 0
    %896 = vmatmul.mubr.bf16.gmra.mrb[0].mxu0 %v707
    %v897 = vpop.f32.mrb[0].mxu0
    %v898 = vadd.f32 %v826, %v897
    %v899 = vpop.f32.mrb[0].mxu0
    %v900 = vpop.f32.mrb[0].mxu0
    %v901 = vadd.f32 %v826, %v900
    %v902 = vpop.f32.mrb[0].mxu0
    %903 = vmatprep.mubr.bf16.mxu0 0
    %904 = vmatmul.mubr.bf16.gmra.mrb[0].mxu0 %v710
    %v905 = vpop.f32.mrb[0].mxu0
    %v906 = vadd.f32 %v826, %v905
    %v907 = vpop.f32.mrb[0].mxu0
    %v908 = vpop.f32.mrb[0].mxu0
    %v909 = vadd.f32 %v826, %v908
    %v910 = vpop.f32.mrb[0].mxu0
    %911 = vmatprep.mubr.bf16.mxu0 0
    %912 = vmatmul.mubr.bf16.gmra.mrb[0].mxu0 %v713
    %v913 = vpop.f32.mrb[0].mxu0
    %v914 = vadd.f32 %v826, %v913
    %v915 = vpop.f32.mrb[0].mxu0
    %v916 = vpop.f32.mrb[0].mxu0
    %v917 = vadd.f32 %v826, %v916
    %v918 = vpop.f32.mrb[0].mxu0
    %919 = vmatprep.mubr.bf16.mxu0 0
    %920 = vmatmul.mubr.bf16.gmra.mrb[0].mxu0 %v716
    %v921 = vpop.f32.mrb[0].mxu0
    %v922 = vadd.f32 %v826, %v921
    %v923 = vpop.f32.mrb[0].mxu0
    %v924 = vpop.f32.mrb[0].mxu0
    %v925 = vadd.f32 %v826, %v924
    %v926 = vpop.f32.mrb[0].mxu0
    %927 = vmatprep.mubr.bf16.mxu0 0
    %928 = vmatmul.mubr.bf16.gmra.mrb[0].mxu0 %v719
    %v929 = vpop.f32.mrb[0].mxu0
    %v930 = vadd.f32 %v826, %v929
    %v931 = vpop.f32.mrb[0].mxu0
    %v932 = vpop.f32.mrb[0].mxu0
    %v933 = vadd.f32 %v826, %v932
    %v934 = vpop.f32.mrb[0].mxu0
    %935 = vdwg.mxu0
    %v936 = vld [vmem:[%s0 + $0x50] sm:$0xf]
    %v937 = vld [vmem:[%s0 + $0x54] sm:$0xf]
    %v938 = vld [vmem:[%s0 + $0x58] sm:$0xf]
    %v939 = vld [vmem:[%s0 + $0x5c] sm:$0xf]
    %v940 = vld [vmem:[%s1 + $0x13] sm:$0x1]
    %v941 = vlaneseq
    %v942 = vshrl.u32 %v941, 7
    %v943 = vsub.s32 0, %v942
    %v944 = vrot.slane %v940, %v943
    %v949 = vunpack.c.l.b16 %v936
    %v950 = vunpack.c.l.b16 %v937
    %v951 = vunpack.c.l.b16 %v938
    %v952 = vunpack.c.l.b16 %v939
    %v953 = vpack.c.b16 %v950, %v949
    %v954 = vpack.c.b16 %v952, %v951
    %957 = vmatprep.subr.bf16.mxu0 0
    %958 = vmatpush1.bf16.msra.mxu0 %v953
    %959 = vmatprep.subr.bf16.mxu0 0
    %960 = vmatpush1.bf16.msra.mxu0 %v954
    %961 = vmatprep.subr.bf16.mxu0 0
    %962 = vmatpush1.bf16.msra.mxu0 0
    %963 = vmatprep.subr.bf16.mxu0 0
    %964 = vmatpush1.bf16.msra.mxu0 0
    %965 = vmatprep.subr.bf16.mxu0 0
    %966 = vmatpush1.bf16.msra.mxu0 0
    %967 = vmatprep.subr.bf16.mxu0 0
    %968 = vmatpush1.bf16.msra.mxu0 0
    %969 = vmatprep.subr.bf16.mxu0 0
    %970 = vmatpush1.bf16.msra.mxu0 0
    %971 = vmatprep.subr.bf16.mxu0 0
    %972 = vmatpush1.bf16.msra.mxu0 0
    %973 = vmatprep.subr.bf16.mxu0 0
    %974 = vmatpush1.bf16.msra.mxu0 0
    %975 = vmatprep.subr.bf16.mxu0 0
    %976 = vmatpush1.bf16.msra.mxu0 0
    %977 = vmatprep.subr.bf16.mxu0 0
    %978 = vmatpush1.bf16.msra.mxu0 0
    %979 = vmatprep.subr.bf16.mxu0 0
    %980 = vmatpush1.bf16.msra.mxu0 0
    %981 = vmatprep.subr.bf16.mxu0 0
    %982 = vmatpush1.bf16.msra.mxu0 0
    %983 = vmatprep.subr.bf16.mxu0 0
    %984 = vmatpush1.bf16.msra.mxu0 0
    %985 = vmatprep.subr.bf16.mxu0 0
    %986 = vmatpush1.bf16.msra.mxu0 0
    %987 = vmatprep.subr.bf16.mxu0 0
    %988 = vmatpush1.bf16.msra.mxu0 0
    %989 = vmatprep.mubr.bf16.mxu0 0
    %990 = vmatmul.mubr.bf16.gmra.mrb[0].mxu0 %v698
    %v991 = vpop.f32.mrb[0].mxu0
    %v992 = vadd.f32 %v944, %v991
    %v993 = vpop.f32.mrb[0].mxu0
    %v994 = vpop.f32.mrb[0].mxu0
    %v995 = vadd.f32 %v944, %v994
    %v996 = vpop.f32.mrb[0].mxu0
    %997 = vmatprep.mubr.bf16.mxu0 0
    %998 = vmatmul.mubr.bf16.gmra.mrb[0].mxu0 %v701
    %v999 = vpop.f32.mrb[0].mxu0
    %v1000 = vadd.f32 %v944, %v999
    %v1001 = vpop.f32.mrb[0].mxu0
    %v1002 = vpop.f32.mrb[0].mxu0
    %v1003 = vadd.f32 %v944, %v1002
    %v1004 = vpop.f32.mrb[0].mxu0
    %1005 = vmatprep.mubr.bf16.mxu0 0
    %1006 = vmatmul.mubr.bf16.gmra.mrb[0].mxu0 %v704
    %v1007 = vpop.f32.mrb[0].mxu0
    %v1008 = vadd.f32 %v944, %v1007
    %v1009 = vpop.f32.mrb[0].mxu0
    %v1010 = vpop.f32.mrb[0].mxu0
    %v1011 = vadd.f32 %v944, %v1010
    %v1012 = vpop.f32.mrb[0].mxu0
    %1013 = vmatprep.mubr.bf16.mxu0 0
    %1014 = vmatmul.mubr.bf16.gmra.mrb[0].mxu0 %v707
    %v1015 = vpop.f32.mrb[0].mxu0
    %v1016 = vadd.f32 %v944, %v1015
    %v1017 = vpop.f32.mrb[0].mxu0
    %v1018 = vpop.f32.mrb[0].mxu0
    %v1019 = vadd.f32 %v944, %v1018
    %v1020 = vpop.f32.mrb[0].mxu0
    %1021 = vmatprep.mubr.bf16.mxu0 0
    %1022 = vmatmul.mubr.bf16.gmra.mrb[0].mxu0 %v710
    %v1023 = vpop.f32.mrb[0].mxu0
    %v1024 = vadd.f32 %v944, %v1023
    %v1025 = vpop.f32.mrb[0].mxu0
    %v1026 = vpop.f32.mrb[0].mxu0
    %v1027 = vadd.f32 %v944, %v1026
    %v1028 = vpop.f32.mrb[0].mxu0
    %1029 = vmatprep.mubr.bf16.mxu0 0
    %1030 = vmatmul.mubr.bf16.gmra.mrb[0].mxu0 %v713
    %v1031 = vpop.f32.mrb[0].mxu0
    %v1032 = vadd.f32 %v944, %v1031
    %v1033 = vpop.f32.mrb[0].mxu0
    %v1034 = vpop.f32.mrb[0].mxu0
    %v1035 = vadd.f32 %v944, %v1034
    %v1036 = vpop.f32.mrb[0].mxu0
    %1037 = vmatprep.mubr.bf16.mxu0 0
    %1038 = vmatmul.mubr.bf16.gmra.mrb[0].mxu0 %v716
    %v1039 = vpop.f32.mrb[0].mxu0
    %v1040 = vadd.f32 %v944, %v1039
    %v1041 = vpop.f32.mrb[0].mxu0
    %v1042 = vpop.f32.mrb[0].mxu0
    %v1043 = vadd.f32 %v944, %v1042
    %v1044 = vpop.f32.mrb[0].mxu0
    %1045 = vmatprep.mubr.bf16.mxu0 0
    %1046 = vmatmul.mubr.bf16.gmra.mrb[0].mxu0 %v719
    %v1047 = vpop.f32.mrb[0].mxu0
    %v1048 = vadd.f32 %v944, %v1047
    %v1049 = vpop.f32.mrb[0].mxu0
    %v1050 = vpop.f32.mrb[0].mxu0
    %v1051 = vadd.f32 %v944, %v1050
    %v1052 = vpop.f32.mrb[0].mxu0
    %1053 = vdwg.mxu0
    %v1054 = vld [vmem:[%s0 + $0x80] sm:$0xf]
    %v1055 = vld [vmem:[%s0 + $0x84] sm:$0xf]
    %v1056 = vld [vmem:[%s0 + $0x88] sm:$0xf]
    %v1057 = vld [vmem:[%s0 + $0x8c] sm:$0xf]
    %v1058 = vld [vmem:[%s1 + $0x16] sm:$0x1]
    %v1059 = vlaneseq
    %v1060 = vshrl.u32 %v1059, 7
    %v1061 = vsub.s32 0, %v1060
    %v1062 = vrot.slane %v1058, %v1061
    %v1067 = vunpack.c.l.b16 %v1054
    %v1068 = vunpack.c.l.b16 %v1055
    %v1069 = vunpack.c.l.b16 %v1056
    %v1070 = vunpack.c.l.b16 %v1057
    %v1071 = vpack.c.b16 %v1068, %v1067
    %v1072 = vpack.c.b16 %v1070, %v1069
    %1075 = vmatprep.subr.bf16.mxu0 0
    %1076 = vmatpush1.bf16.msra.mxu0 %v1071
    %1077 = vmatprep.subr.bf16.mxu0 0
    %1078 = vmatpush1.bf16.msra.mxu0 %v1072
    %1079 = vmatprep.subr.bf16.mxu0 0
    %1080 = vmatpush1.bf16.msra.mxu0 0
    %1081 = vmatprep.subr.bf16.mxu0 0
    %1082 = vmatpush1.bf16.msra.mxu0 0
    %1083 = vmatprep.subr.bf16.mxu0 0
    %1084 = vmatpush1.bf16.msra.mxu0 0
    %1085 = vmatprep.subr.bf16.mxu0 0
    %1086 = vmatpush1.bf16.msra.mxu0 0
    %1087 = vmatprep.subr.bf16.mxu0 0
    %1088 = vmatpush1.bf16.msra.mxu0 0
    %1089 = vmatprep.subr.bf16.mxu0 0
    %1090 = vmatpush1.bf16.msra.mxu0 0
    %1091 = vmatprep.subr.bf16.mxu0 0
    %1092 = vmatpush1.bf16.msra.mxu0 0
    %1093 = vmatprep.subr.bf16.mxu0 0
    %1094 = vmatpush1.bf16.msra.mxu0 0
    %1095 = vmatprep.subr.bf16.mxu0 0
    %1096 = vmatpush1.bf16.msra.mxu0 0
    %1097 = vmatprep.subr.bf16.mxu0 0
    %1098 = vmatpush1.bf16.msra.mxu0 0
    %1099 = vmatprep.subr.bf16.mxu0 0
    %1100 = vmatpush1.bf16.msra.mxu0 0
    %1101 = vmatprep.subr.bf16.mxu0 0
    %1102 = vmatpush1.bf16.msra.mxu0 0
    %1103 = vmatprep.subr.bf16.mxu0 0
    %1104 = vmatpush1.bf16.msra.mxu0 0
    %1105 = vmatprep.subr.bf16.mxu0 0
    %1106 = vmatpush1.bf16.msra.mxu0 0
    %1107 = vmatprep.mubr.bf16.mxu0 0
    %1108 = vmatmul.mubr.bf16.gmra.mrb[0].mxu0 %v698
    %v1109 = vpop.f32.mrb[0].mxu0
    %v1110 = vadd.f32 %v1062, %v1109
    %v1111 = vpop.f32.mrb[0].mxu0
    %v1112 = vpop.f32.mrb[0].mxu0
    %v1113 = vadd.f32 %v1062, %v1112
    %v1114 = vpop.f32.mrb[0].mxu0
    %1115 = vmatprep.mubr.bf16.mxu0 0
    %1116 = vmatmul.mubr.bf16.gmra.mrb[0].mxu0 %v701
    %v1117 = vpop.f32.mrb[0].mxu0
    %v1118 = vadd.f32 %v1062, %v1117
    %v1119 = vpop.f32.mrb[0].mxu0
    %v1120 = vpop.f32.mrb[0].mxu0
    %v1121 = vadd.f32 %v1062, %v1120
    %v1122 = vpop.f32.mrb[0].mxu0
    %1123 = vmatprep.mubr.bf16.mxu0 0
    %1124 = vmatmul.mubr.bf16.gmra.mrb[0].mxu0 %v704
    %v1125 = vpop.f32.mrb[0].mxu0
    %v1126 = vadd.f32 %v1062, %v1125
    %v1127 = vpop.f32.mrb[0].mxu0
    %v1128 = vpop.f32.mrb[0].mxu0
    %v1129 = vadd.f32 %v1062, %v1128
    %v1130 = vpop.f32.mrb[0].mxu0
    %1131 = vmatprep.mubr.bf16.mxu0 0
    %1132 = vmatmul.mubr.bf16.gmra.mrb[0].mxu0 %v707
    %v1133 = vpop.f32.mrb[0].mxu0
    %v1134 = vadd.f32 %v1062, %v1133
    %v1135 = vpop.f32.mrb[0].mxu0
    %v1136 = vpop.f32.mrb[0].mxu0
    %v1137 = vadd.f32 %v1062, %v1136
    %v1138 = vpop.f32.mrb[0].mxu0
    %1139 = vmatprep.mubr.bf16.mxu0 0
    %1140 = vmatmul.mubr.bf16.gmra.mrb[0].mxu0 %v710
    %v1141 = vpop.f32.mrb[0].mxu0
    %v1142 = vadd.f32 %v1062, %v1141
    %v1143 = vpop.f32.mrb[0].mxu0
    %v1144 = vpop.f32.mrb[0].mxu0
    %v1145 = vadd.f32 %v1062, %v1144
    %v1146 = vpop.f32.mrb[0].mxu0
    %1147 = vmatprep.mubr.bf16.mxu0 0
    %1148 = vmatmul.mubr.bf16.gmra.mrb[0].mxu0 %v713
    %v1149 = vpop.f32.mrb[0].mxu0
    %v1150 = vadd.f32 %v1062, %v1149
    %v1151 = vpop.f32.mrb[0].mxu0
    %v1152 = vpop.f32.mrb[0].mxu0
    %v1153 = vadd.f32 %v1062, %v1152
    %v1154 = vpop.f32.mrb[0].mxu0
    %1155 = vmatprep.mubr.bf16.mxu0 0
    %1156 = vmatmul.mubr.bf16.gmra.mrb[0].mxu0 %v716
    %v1157 = vpop.f32.mrb[0].mxu0
    %v1158 = vadd.f32 %v1062, %v1157
    %v1159 = vpop.f32.mrb[0].mxu0
    %v1160 = vpop.f32.mrb[0].mxu0
    %v1161 = vadd.f32 %v1062, %v1160
    %v1162 = vpop.f32.mrb[0].mxu0
    %1163 = vmatprep.mubr.bf16.mxu0 0
    %1164 = vmatmul.mubr.bf16.gmra.mrb[0].mxu0 %v719
    %v1165 = vpop.f32.mrb[0].mxu0
    %v1166 = vadd.f32 %v1062, %v1165
    %v1167 = vpop.f32.mrb[0].mxu0
    %v1168 = vpop.f32.mrb[0].mxu0
    %v1169 = vadd.f32 %v1062, %v1168
    %v1170 = vpop.f32.mrb[0].mxu0
    %1171 = vdwg.mxu0
    %v1172 = vld [vmem:[%s0 + $0x60] sm:$0xf]
    %v1173 = vld [vmem:[%s0 + $0x64] sm:$0xf]
    %v1174 = vld [vmem:[%s0 + $0x68] sm:$0xf]
    %v1175 = vld [vmem:[%s0 + $0x6c] sm:$0xf]
    %v1176 = vld [vmem:[%s1 + $0x14] sm:$0x1]
    %v1177 = vlaneseq
    %v1178 = vshrl.u32 %v1177, 7
    %v1179 = vsub.s32 0, %v1178
    %v1180 = vrot.slane %v1176, %v1179
    %v1185 = vunpack.c.l.b16 %v1172
    %v1186 = vunpack.c.l.b16 %v1173
    %v1187 = vunpack.c.l.b16 %v1174
    %v1188 = vunpack.c.l.b16 %v1175
    %v1189 = vpack.c.b16 %v1186, %v1185
    %v1190 = vpack.c.b16 %v1188, %v1187
    %1193 = vmatprep.subr.bf16.mxu0 0
    %1194 = vmatpush1.bf16.msra.mxu0 %v1189
    %1195 = vmatprep.subr.bf16.mxu0 0
    %1196 = vmatpush1.bf16.msra.mxu0 %v1190
    %1197 = vmatprep.subr.bf16.mxu0 0
    %1198 = vmatpush1.bf16.msra.mxu0 0
    %1199 = vmatprep.subr.bf16.mxu0 0
    %1200 = vmatpush1.bf16.msra.mxu0 0
    %1201 = vmatprep.subr.bf16.mxu0 0
    %1202 = vmatpush1.bf16.msra.mxu0 0
    %1203 = vmatprep.subr.bf16.mxu0 0
    %1204 = vmatpush1.bf16.msra.mxu0 0
    %1205 = vmatprep.subr.bf16.mxu0 0
    %1206 = vmatpush1.bf16.msra.mxu0 0
    %1207 = vmatprep.subr.bf16.mxu0 0
    %1208 = vmatpush1.bf16.msra.mxu0 0
    %1209 = vmatprep.subr.bf16.mxu0 0
    %1210 = vmatpush1.bf16.msra.mxu0 0
    %1211 = vmatprep.subr.bf16.mxu0 0
    %1212 = vmatpush1.bf16.msra.mxu0 0
    %1213 = vmatprep.subr.bf16.mxu0 0
    %1214 = vmatpush1.bf16.msra.mxu0 0
    %1215 = vmatprep.subr.bf16.mxu0 0
    %1216 = vmatpush1.bf16.msra.mxu0 0
    %1217 = vmatprep.subr.bf16.mxu0 0
    %1218 = vmatpush1.bf16.msra.mxu0 0
    %1219 = vmatprep.subr.bf16.mxu0 0
    %1220 = vmatpush1.bf16.msra.mxu0 0
    %1221 = vmatprep.subr.bf16.mxu0 0
    %1222 = vmatpush1.bf16.msra.mxu0 0
    %1223 = vmatprep.subr.bf16.mxu0 0
    %1224 = vmatpush1.bf16.msra.mxu0 0
    %1225 = vmatprep.mubr.bf16.mxu0 0
    %1226 = vmatmul.mubr.bf16.gmra.mrb[0].mxu0 %v698
    %v1227 = vpop.f32.mrb[0].mxu0
    %v1228 = vadd.f32 %v1180, %v1227
    %v1229 = vpop.f32.mrb[0].mxu0
    %v1230 = vpop.f32.mrb[0].mxu0
    %v1231 = vadd.f32 %v1180, %v1230
    %v1232 = vpop.f32.mrb[0].mxu0
    %1233 = vmatprep.mubr.bf16.mxu0 0
    %1234 = vmatmul.mubr.bf16.gmra.mrb[0].mxu0 %v701
    %v1235 = vpop.f32.mrb[0].mxu0
    %v1236 = vadd.f32 %v1180, %v1235
    %v1237 = vpop.f32.mrb[0].mxu0
    %v1238 = vpop.f32.mrb[0].mxu0
    %v1239 = vadd.f32 %v1180, %v1238
    %v1240 = vpop.f32.mrb[0].mxu0
    %1241 = vmatprep.mubr.bf16.mxu0 0
    %1242 = vmatmul.mubr.bf16.gmra.mrb[0].mxu0 %v704
    %v1243 = vpop.f32.mrb[0].mxu0
    %v1244 = vadd.f32 %v1180, %v1243
    %v1245 = vpop.f32.mrb[0].mxu0
    %v1246 = vpop.f32.mrb[0].mxu0
    %v1247 = vadd.f32 %v1180, %v1246
    %v1248 = vpop.f32.mrb[0].mxu0
    %1249 = vmatprep.mubr.bf16.mxu0 0
    %1250 = vmatmul.mubr.bf16.gmra.mrb[0].mxu0 %v707
    %v1251 = vpop.f32.mrb[0].mxu0
    %v1252 = vadd.f32 %v1180, %v1251
    %v1253 = vpop.f32.mrb[0].mxu0
    %v1254 = vpop.f32.mrb[0].mxu0
    %v1255 = vadd.f32 %v1180, %v1254
    %v1256 = vpop.f32.mrb[0].mxu0
    %1257 = vmatprep.mubr.bf16.mxu0 0
    %1258 = vmatmul.mubr.bf16.gmra.mrb[0].mxu0 %v710
    %v1259 = vpop.f32.mrb[0].mxu0
    %v1260 = vadd.f32 %v1180, %v1259
    %v1261 = vpop.f32.mrb[0].mxu0
    %v1262 = vpop.f32.mrb[0].mxu0
    %v1263 = vadd.f32 %v1180, %v1262
    %v1264 = vpop.f32.mrb[0].mxu0
    %1265 = vmatprep.mubr.bf16.mxu0 0
    %1266 = vmatmul.mubr.bf16.gmra.mrb[0].mxu0 %v713
    %v1267 = vpop.f32.mrb[0].mxu0
    %v1268 = vadd.f32 %v1180, %v1267
    %v1269 = vpop.f32.mrb[0].mxu0
    %v1270 = vpop.f32.mrb[0].mxu0
    %v1271 = vadd.f32 %v1180, %v1270
    %v1272 = vpop.f32.mrb[0].mxu0
    %1273 = vmatprep.mubr.bf16.mxu0 0
    %1274 = vmatmul.mubr.bf16.gmra.mrb[0].mxu0 %v716
    %v1275 = vpop.f32.mrb[0].mxu0
    %v1276 = vadd.f32 %v1180, %v1275
    %v1277 = vpop.f32.mrb[0].mxu0
    %v1278 = vpop.f32.mrb[0].mxu0
    %v1279 = vadd.f32 %v1180, %v1278
    %v1280 = vpop.f32.mrb[0].mxu0
    %1281 = vmatprep.mubr.bf16.mxu0 0
    %1282 = vmatmul.mubr.bf16.gmra.mrb[0].mxu0 %v719
    %v1283 = vpop.f32.mrb[0].mxu0
    %v1284 = vadd.f32 %v1180, %v1283
    %v1285 = vpop.f32.mrb[0].mxu0
    %v1286 = vpop.f32.mrb[0].mxu0
    %v1287 = vadd.f32 %v1180, %v1286
    %v1288 = vpop.f32.mrb[0].mxu0
    %1289 = vdwg.mxu0
    %v1290 = vld [vmem:[%s0 + $0x90] sm:$0xf]
    %v1291 = vld [vmem:[%s0 + $0x94] sm:$0xf]
    %v1292 = vld [vmem:[%s0 + $0x98] sm:$0xf]
    %v1293 = vld [vmem:[%s0 + $0x9c] sm:$0xf]
    %v1294 = vld [vmem:[%s1 + $0x17] sm:$0x1]
    %v1295 = vlaneseq
    %v1296 = vshrl.u32 %v1295, 7
    %v1297 = vsub.s32 0, %v1296
    %v1298 = vrot.slane %v1294, %v1297
    %v1303 = vunpack.c.l.b16 %v1290
    %v1304 = vunpack.c.l.b16 %v1291
    %v1305 = vunpack.c.l.b16 %v1292
    %v1306 = vunpack.c.l.b16 %v1293
    %v1307 = vpack.c.b16 %v1304, %v1303
    %v1308 = vpack.c.b16 %v1306, %v1305
    %1311 = vmatprep.subr.bf16.mxu0 0
    %1312 = vmatpush1.bf16.msra.mxu0 %v1307
    %1313 = vmatprep.subr.bf16.mxu0 0
    %1314 = vmatpush1.bf16.msra.mxu0 %v1308
    %1315 = vmatprep.subr.bf16.mxu0 0
    %1316 = vmatpush1.bf16.msra.mxu0 0
    %1317 = vmatprep.subr.bf16.mxu0 0
    %1318 = vmatpush1.bf16.msra.mxu0 0
    %1319 = vmatprep.subr.bf16.mxu0 0
    %1320 = vmatpush1.bf16.msra.mxu0 0
    %1321 = vmatprep.subr.bf16.mxu0 0
    %1322 = vmatpush1.bf16.msra.mxu0 0
    %1323 = vmatprep.subr.bf16.mxu0 0
    %1324 = vmatpush1.bf16.msra.mxu0 0
    %1325 = vmatprep.subr.bf16.mxu0 0
    %1326 = vmatpush1.bf16.msra.mxu0 0
    %1327 = vmatprep.subr.bf16.mxu0 0
    %1328 = vmatpush1.bf16.msra.mxu0 0
    %1329 = vmatprep.subr.bf16.mxu0 0
    %1330 = vmatpush1.bf16.msra.mxu0 0
    %1331 = vmatprep.subr.bf16.mxu0 0
    %1332 = vmatpush1.bf16.msra.mxu0 0
    %1333 = vmatprep.subr.bf16.mxu0 0
    %1334 = vmatpush1.bf16.msra.mxu0 0
    %1335 = vmatprep.subr.bf16.mxu0 0
    %1336 = vmatpush1.bf16.msra.mxu0 0
    %1337 = vmatprep.subr.bf16.mxu0 0
    %1338 = vmatpush1.bf16.msra.mxu0 0
    %1339 = vmatprep.subr.bf16.mxu0 0
    %1340 = vmatpush1.bf16.msra.mxu0 0
    %1341 = vmatprep.subr.bf16.mxu0 0
    %1342 = vmatpush1.bf16.msra.mxu0 0
    %1343 = vmatprep.mubr.bf16.mxu0 0
    %1344 = vmatmul.mubr.bf16.gmra.mrb[0].mxu0 %v698
    %v1345 = vpop.f32.mrb[0].mxu0
    %v1346 = vadd.f32 %v1298, %v1345
    %v1347 = vpop.f32.mrb[0].mxu0
    %v1348 = vpop.f32.mrb[0].mxu0
    %v1349 = vadd.f32 %v1298, %v1348
    %v1350 = vpop.f32.mrb[0].mxu0
    %1351 = vmatprep.mubr.bf16.mxu0 0
    %1352 = vmatmul.mubr.bf16.gmra.mrb[0].mxu0 %v701
    %v1353 = vpop.f32.mrb[0].mxu0
    %v1354 = vadd.f32 %v1298, %v1353
    %v1355 = vpop.f32.mrb[0].mxu0
    %v1356 = vpop.f32.mrb[0].mxu0
    %v1357 = vadd.f32 %v1298, %v1356
    %v1358 = vpop.f32.mrb[0].mxu0
    %1359 = vmatprep.mubr.bf16.mxu0 0
    %1360 = vmatmul.mubr.bf16.gmra.mrb[0].mxu0 %v704
    %v1361 = vpop.f32.mrb[0].mxu0
    %v1362 = vadd.f32 %v1298, %v1361
    %v1363 = vpop.f32.mrb[0].mxu0
    %v1364 = vpop.f32.mrb[0].mxu0
    %v1365 = vadd.f32 %v1298, %v1364
    %v1366 = vpop.f32.mrb[0].mxu0
    %1367 = vmatprep.mubr.bf16.mxu0 0
    %1368 = vmatmul.mubr.bf16.gmra.mrb[0].mxu0 %v707
    %v1369 = vpop.f32.mrb[0].mxu0
    %v1370 = vadd.f32 %v1298, %v1369
    %v1371 = vpop.f32.mrb[0].mxu0
    %v1372 = vpop.f32.mrb[0].mxu0
    %v1373 = vadd.f32 %v1298, %v1372
    %v1374 = vpop.f32.mrb[0].mxu0
    %1375 = vmatprep.mubr.bf16.mxu0 0
    %1376 = vmatmul.mubr.bf16.gmra.mrb[0].mxu0 %v710
    %v1377 = vpop.f32.mrb[0].mxu0
    %v1378 = vadd.f32 %v1298, %v1377
    %v1379 = vpop.f32.mrb[0].mxu0
    %v1380 = vpop.f32.mrb[0].mxu0
    %v1381 = vadd.f32 %v1298, %v1380
    %v1382 = vpop.f32.mrb[0].mxu0
    %1383 = vmatprep.mubr.bf16.mxu0 0
    %1384 = vmatmul.mubr.bf16.gmra.mrb[0].mxu0 %v713
    %v1385 = vpop.f32.mrb[0].mxu0
    %v1386 = vadd.f32 %v1298, %v1385
    %v1387 = vpop.f32.mrb[0].mxu0
    %v1388 = vpop.f32.mrb[0].mxu0
    %v1389 = vadd.f32 %v1298, %v1388
    %v1390 = vpop.f32.mrb[0].mxu0
    %1391 = vmatprep.mubr.bf16.mxu0 0
    %1392 = vmatmul.mubr.bf16.gmra.mrb[0].mxu0 %v716
    %v1393 = vpop.f32.mrb[0].mxu0
    %v1394 = vadd.f32 %v1298, %v1393
    %v1395 = vpop.f32.mrb[0].mxu0
    %v1396 = vpop.f32.mrb[0].mxu0
    %v1397 = vadd.f32 %v1298, %v1396
    %v1398 = vpop.f32.mrb[0].mxu0
    %1399 = vmatprep.mubr.bf16.mxu0 0
    %1400 = vmatmul.mubr.bf16.gmra.mrb[0].mxu0 %v719
    %v1401 = vpop.f32.mrb[0].mxu0
    %v1402 = vadd.f32 %v1298, %v1401
    %v1403 = vpop.f32.mrb[0].mxu0
    %v1404 = vpop.f32.mrb[0].mxu0
    %v1405 = vadd.f32 %v1298, %v1404
    %v1406 = vpop.f32.mrb[0].mxu0
    %1407 = vdwg.mxu0
    %v1408 = vpack.c.bf16 %v759, %v756
    %v1409 = vpack.c.bf16 %v767, %v764
    %v1410 = vpack.c.bf16 %v775, %v772
    %v1411 = vpack.c.bf16 %v783, %v780
    %v1412 = vpack.c.bf16 %v791, %v788
    %v1413 = vpack.c.bf16 %v799, %v796
    %v1414 = vpack.c.bf16 %v807, %v804
    %v1415 = vpack.c.bf16 %v815, %v812
    %v1416 = vpack.c.bf16 %v877, %v874
    %v1417 = vpack.c.bf16 %v885, %v882
    %v1418 = vpack.c.bf16 %v893, %v890
    %v1419 = vpack.c.bf16 %v901, %v898
    %v1420 = vpack.c.bf16 %v909, %v906
    %v1421 = vpack.c.bf16 %v917, %v914
    %v1422 = vpack.c.bf16 %v925, %v922
    %v1423 = vpack.c.bf16 %v933, %v930
    %v1424 = vpack.c.bf16 %v995, %v992
    %v1425 = vpack.c.bf16 %v1003, %v1000
    %v1426 = vpack.c.bf16 %v1011, %v1008
    %v1427 = vpack.c.bf16 %v1019, %v1016
    %v1428 = vpack.c.bf16 %v1027, %v1024
    %v1429 = vpack.c.bf16 %v1035, %v1032
    %v1430 = vpack.c.bf16 %v1043, %v1040
    %v1431 = vpack.c.bf16 %v1051, %v1048
    %v1432 = vpack.c.bf16 %v1113, %v1110
    %v1433 = vpack.c.bf16 %v1121, %v1118
    %v1434 = vpack.c.bf16 %v1129, %v1126
    %v1435 = vpack.c.bf16 %v1137, %v1134
    %v1436 = vpack.c.bf16 %v1145, %v1142
    %v1437 = vpack.c.bf16 %v1153, %v1150
    %v1438 = vpack.c.bf16 %v1161, %v1158
    %v1439 = vpack.c.bf16 %v1169, %v1166
    %vm1440 = vcmask 130048
    %v1442 = vsel %vm1440, %v1408, 0
    %v1445 = vsel %vm1440, %v1424, 0
    %1447 = vmatprep.subr.bf16.mxu0 0
    %1448 = vmatpush1.bf16.xpose.msra.mxu0 %v1445
    %1449 = vmatprep.subr.bf16.mxu0 0
    %1450 = vmatpush1.bf16.xpose.msra.mxu0 0
    %1451 = vmatprep.subr.bf16.mxu0 0
    %1452 = vmatpush1.bf16.xpose.msra.mxu0 0
    %1453 = vmatprep.subr.bf16.mxu0 0
    %1454 = vmatpush1.bf16.xpose.msra.mxu0 0
    %1455 = vmatprep.subr.bf16.mxu0 0
    %1456 = vmatpush1.bf16.xpose.msra.mxu0 0
    %1457 = vmatprep.subr.bf16.mxu0 0
    %1458 = vmatpush1.bf16.xpose.msra.mxu0 0
    %1459 = vmatprep.subr.bf16.mxu0 0
    %1460 = vmatpush1.bf16.xpose.msra.mxu0 0
    %1461 = vmatprep.subr.bf16.mxu0 0
    %1462 = vmatpush1.bf16.xpose.msra.mxu0 0
    %1463 = vmatprep.subr.bf16.mxu0 0
    %1464 = vmatpush1.bf16.xpose.msra.mxu0 0
    %1465 = vmatprep.subr.bf16.mxu0 0
    %1466 = vmatpush1.bf16.xpose.msra.mxu0 0
    %1467 = vmatprep.subr.bf16.mxu0 0
    %1468 = vmatpush1.bf16.xpose.msra.mxu0 0
    %1469 = vmatprep.subr.bf16.mxu0 0
    %1470 = vmatpush1.bf16.xpose.msra.mxu0 0
    %1471 = vmatprep.subr.bf16.mxu0 0
    %1472 = vmatpush1.bf16.xpose.msra.mxu0 0
    %1473 = vmatprep.subr.bf16.mxu0 0
    %1474 = vmatpush1.bf16.xpose.msra.mxu0 0
    %1475 = vmatprep.subr.bf16.mxu0 0
    %1476 = vmatpush1.bf16.xpose.msra.mxu0 0
    %1477 = vmatprep.subr.bf16.mxu0 0
    %1478 = vmatpush1.bf16.xpose.msra.mxu0 0
    %1479 = vmatprep.mubr.bf16.mxu0 0
    %1480 = vmatmul.mubr.bf16.gmra.mrb[0].mxu0 %v1442
    %v1481 = vpop.f32.mrb[0].mxu0
    %v1482 = vadd.f32 0.0, %v1481
    %v1483 = vpop.f32.mrb[0].mxu0
    %v1484 = vpop.f32.mrb[0].mxu0
    %v1485 = vadd.f32 0.0, %v1484
    %v1486 = vpop.f32.mrb[0].mxu0
    %1487 = vdwg.mxu0
    %v1489 = vsel %vm1440, %v1409, 0
    %v1492 = vsel %vm1440, %v1425, 0
    %1494 = vmatprep.subr.bf16.mxu0 0
    %1495 = vmatpush1.bf16.xpose.msra.mxu0 %v1492
    %1496 = vmatprep.subr.bf16.mxu0 0
    %1497 = vmatpush1.bf16.xpose.msra.mxu0 0
    %1498 = vmatprep.subr.bf16.mxu0 0
    %1499 = vmatpush1.bf16.xpose.msra.mxu0 0
    %1500 = vmatprep.subr.bf16.mxu0 0
    %1501 = vmatpush1.bf16.xpose.msra.mxu0 0
    %1502 = vmatprep.subr.bf16.mxu0 0
    %1503 = vmatpush1.bf16.xpose.msra.mxu0 0
    %1504 = vmatprep.subr.bf16.mxu0 0
    %1505 = vmatpush1.bf16.xpose.msra.mxu0 0
    %1506 = vmatprep.subr.bf16.mxu0 0
    %1507 = vmatpush1.bf16.xpose.msra.mxu0 0
    %1508 = vmatprep.subr.bf16.mxu0 0
    %1509 = vmatpush1.bf16.xpose.msra.mxu0 0
    %1510 = vmatprep.subr.bf16.mxu0 0
    %1511 = vmatpush1.bf16.xpose.msra.mxu0 0
    %1512 = vmatprep.subr.bf16.mxu0 0
    %1513 = vmatpush1.bf16.xpose.msra.mxu0 0
    %1514 = vmatprep.subr.bf16.mxu0 0
    %1515 = vmatpush1.bf16.xpose.msra.mxu0 0
    %1516 = vmatprep.subr.bf16.mxu0 0
    %1517 = vmatpush1.bf16.xpose.msra.mxu0 0
    %1518 = vmatprep.subr.bf16.mxu0 0
    %1519 = vmatpush1.bf16.xpose.msra.mxu0 0
    %1520 = vmatprep.subr.bf16.mxu0 0
    %1521 = vmatpush1.bf16.xpose.msra.mxu0 0
    %1522 = vmatprep.subr.bf16.mxu0 0
    %1523 = vmatpush1.bf16.xpose.msra.mxu0 0
    %1524 = vmatprep.subr.bf16.mxu0 0
    %1525 = vmatpush1.bf16.xpose.msra.mxu0 0
    %1526 = vmatprep.mubr.bf16.mxu0 0
    %1527 = vmatmul.mubr.bf16.gmra.mrb[0].mxu0 %v1489
    %v1528 = vpop.f32.mrb[0].mxu0
    %v1529 = vadd.f32 0.0, %v1528
    %v1530 = vpop.f32.mrb[0].mxu0
    %v1531 = vpop.f32.mrb[0].mxu0
    %v1532 = vadd.f32 0.0, %v1531
    %v1533 = vpop.f32.mrb[0].mxu0
    %1534 = vdwg.mxu0
    %v1536 = vsel %vm1440, %v1410, 0
    %v1539 = vsel %vm1440, %v1426, 0
    %1541 = vmatprep.subr.bf16.mxu0 0
    %1542 = vmatpush1.bf16.xpose.msra.mxu0 %v1539
    %1543 = vmatprep.subr.bf16.mxu0 0
    %1544 = vmatpush1.bf16.xpose.msra.mxu0 0
    %1545 = vmatprep.subr.bf16.mxu0 0
    %1546 = vmatpush1.bf16.xpose.msra.mxu0 0
    %1547 = vmatprep.subr.bf16.mxu0 0
    %1548 = vmatpush1.bf16.xpose.msra.mxu0 0
    %1549 = vmatprep.subr.bf16.mxu0 0
    %1550 = vmatpush1.bf16.xpose.msra.mxu0 0
    %1551 = vmatprep.subr.bf16.mxu0 0
    %1552 = vmatpush1.bf16.xpose.msra.mxu0 0
    %1553 = vmatprep.subr.bf16.mxu0 0
    %1554 = vmatpush1.bf16.xpose.msra.mxu0 0
    %1555 = vmatprep.subr.bf16.mxu0 0
    %1556 = vmatpush1.bf16.xpose.msra.mxu0 0
    %1557 = vmatprep.subr.bf16.mxu0 0
    %1558 = vmatpush1.bf16.xpose.msra.mxu0 0
    %1559 = vmatprep.subr.bf16.mxu0 0
    %1560 = vmatpush1.bf16.xpose.msra.mxu0 0
    %1561 = vmatprep.subr.bf16.mxu0 0
    %1562 = vmatpush1.bf16.xpose.msra.mxu0 0
    %1563 = vmatprep.subr.bf16.mxu0 0
    %1564 = vmatpush1.bf16.xpose.msra.mxu0 0
    %1565 = vmatprep.subr.bf16.mxu0 0
    %1566 = vmatpush1.bf16.xpose.msra.mxu0 0
    %1567 = vmatprep.subr.bf16.mxu0 0
    %1568 = vmatpush1.bf16.xpose.msra.mxu0 0
    %1569 = vmatprep.subr.bf16.mxu0 0
    %1570 = vmatpush1.bf16.xpose.msra.mxu0 0
    %1571 = vmatprep.subr.bf16.mxu0 0
    %1572 = vmatpush1.bf16.xpose.msra.mxu0 0
    %1573 = vmatprep.mubr.bf16.mxu0 0
    %1574 = vmatmul.mubr.bf16.gmra.mrb[0].mxu0 %v1536
    %v1575 = vpop.f32.mrb[0].mxu0
    %v1576 = vadd.f32 0.0, %v1575
    %v1577 = vpop.f32.mrb[0].mxu0
    %v1578 = vpop.f32.mrb[0].mxu0
    %v1579 = vadd.f32 0.0, %v1578
    %v1580 = vpop.f32.mrb[0].mxu0
    %1581 = vdwg.mxu0
    %v1583 = vsel %vm1440, %v1411, 0
    %v1586 = vsel %vm1440, %v1427, 0
    %1588 = vmatprep.subr.bf16.mxu0 0
    %1589 = vmatpush1.bf16.xpose.msra.mxu0 %v1586
    %1590 = vmatprep.subr.bf16.mxu0 0
    %1591 = vmatpush1.bf16.xpose.msra.mxu0 0
    %1592 = vmatprep.subr.bf16.mxu0 0
    %1593 = vmatpush1.bf16.xpose.msra.mxu0 0
    %1594 = vmatprep.subr.bf16.mxu0 0
    %1595 = vmatpush1.bf16.xpose.msra.mxu0 0
    %1596 = vmatprep.subr.bf16.mxu0 0
    %1597 = vmatpush1.bf16.xpose.msra.mxu0 0
    %1598 = vmatprep.subr.bf16.mxu0 0
    %1599 = vmatpush1.bf16.xpose.msra.mxu0 0
    %1600 = vmatprep.subr.bf16.mxu0 0
    %1601 = vmatpush1.bf16.xpose.msra.mxu0 0
    %1602 = vmatprep.subr.bf16.mxu0 0
    %1603 = vmatpush1.bf16.xpose.msra.mxu0 0
    %1604 = vmatprep.subr.bf16.mxu0 0
    %1605 = vmatpush1.bf16.xpose.msra.mxu0 0
    %1606 = vmatprep.subr.bf16.mxu0 0
    %1607 = vmatpush1.bf16.xpose.msra.mxu0 0
    %1608 = vmatprep.subr.bf16.mxu0 0
    %1609 = vmatpush1.bf16.xpose.msra.mxu0 0
    %1610 = vmatprep.subr.bf16.mxu0 0
    %1611 = vmatpush1.bf16.xpose.msra.mxu0 0
    %1612 = vmatprep.subr.bf16.mxu0 0
    %1613 = vmatpush1.bf16.xpose.msra.mxu0 0
    %1614 = vmatprep.subr.bf16.mxu0 0
    %1615 = vmatpush1.bf16.xpose.msra.mxu0 0
    %1616 = vmatprep.subr.bf16.mxu0 0
    %1617 = vmatpush1.bf16.xpose.msra.mxu0 0
    %1618 = vmatprep.subr.bf16.mxu0 0
    %1619 = vmatpush1.bf16.xpose.msra.mxu0 0
    %1620 = vmatprep.mubr.bf16.mxu0 0
    %1621 = vmatmul.mubr.bf16.gmra.mrb[0].mxu0 %v1583
    %v1622 = vpop.f32.mrb[0].mxu0
    %v1623 = vadd.f32 0.0, %v1622
    %v1624 = vpop.f32.mrb[0].mxu0
    %v1625 = vpop.f32.mrb[0].mxu0
    %v1626 = vadd.f32 0.0, %v1625
    %v1627 = vpop.f32.mrb[0].mxu0
    %1628 = vdwg.mxu0
    %v1630 = vsel %vm1440, %v1412, 0
    %v1633 = vsel %vm1440, %v1428, 0
    %1635 = vmatprep.subr.bf16.mxu0 0
    %1636 = vmatpush1.bf16.xpose.msra.mxu0 %v1633
    %1637 = vmatprep.subr.bf16.mxu0 0
    %1638 = vmatpush1.bf16.xpose.msra.mxu0 0
    %1639 = vmatprep.subr.bf16.mxu0 0
    %1640 = vmatpush1.bf16.xpose.msra.mxu0 0
    %1641 = vmatprep.subr.bf16.mxu0 0
    %1642 = vmatpush1.bf16.xpose.msra.mxu0 0
    %1643 = vmatprep.subr.bf16.mxu0 0
    %1644 = vmatpush1.bf16.xpose.msra.mxu0 0
    %1645 = vmatprep.subr.bf16.mxu0 0
    %1646 = vmatpush1.bf16.xpose.msra.mxu0 0
    %1647 = vmatprep.subr.bf16.mxu0 0
    %1648 = vmatpush1.bf16.xpose.msra.mxu0 0
    %1649 = vmatprep.subr.bf16.mxu0 0
    %1650 = vmatpush1.bf16.xpose.msra.mxu0 0
    %1651 = vmatprep.subr.bf16.mxu0 0
    %1652 = vmatpush1.bf16.xpose.msra.mxu0 0
    %1653 = vmatprep.subr.bf16.mxu0 0
    %1654 = vmatpush1.bf16.xpose.msra.mxu0 0
    %1655 = vmatprep.subr.bf16.mxu0 0
    %1656 = vmatpush1.bf16.xpose.msra.mxu0 0
    %1657 = vmatprep.subr.bf16.mxu0 0
    %1658 = vmatpush1.bf16.xpose.msra.mxu0 0
    %1659 = vmatprep.subr.bf16.mxu0 0
    %1660 = vmatpush1.bf16.xpose.msra.mxu0 0
    %1661 = vmatprep.subr.bf16.mxu0 0
    %1662 = vmatpush1.bf16.xpose.msra.mxu0 0
    %1663 = vmatprep.subr.bf16.mxu0 0
    %1664 = vmatpush1.bf16.xpose.msra.mxu0 0
    %1665 = vmatprep.subr.bf16.mxu0 0
    %1666 = vmatpush1.bf16.xpose.msra.mxu0 0
    %1667 = vmatprep.mubr.bf16.mxu0 0
    %1668 = vmatmul.mubr.bf16.gmra.mrb[0].mxu0 %v1630
    %v1669 = vpop.f32.mrb[0].mxu0
    %v1670 = vadd.f32 0.0, %v1669
    %v1671 = vpop.f32.mrb[0].mxu0
    %v1672 = vpop.f32.mrb[0].mxu0
    %v1673 = vadd.f32 0.0, %v1672
    %v1674 = vpop.f32.mrb[0].mxu0
    %1675 = vdwg.mxu0
    %v1677 = vsel %vm1440, %v1413, 0
    %v1680 = vsel %vm1440, %v1429, 0
    %1682 = vmatprep.subr.bf16.mxu0 0
    %1683 = vmatpush1.bf16.xpose.msra.mxu0 %v1680
    %1684 = vmatprep.subr.bf16.mxu0 0
    %1685 = vmatpush1.bf16.xpose.msra.mxu0 0
    %1686 = vmatprep.subr.bf16.mxu0 0
    %1687 = vmatpush1.bf16.xpose.msra.mxu0 0
    %1688 = vmatprep.subr.bf16.mxu0 0
    %1689 = vmatpush1.bf16.xpose.msra.mxu0 0
    %1690 = vmatprep.subr.bf16.mxu0 0
    %1691 = vmatpush1.bf16.xpose.msra.mxu0 0
    %1692 = vmatprep.subr.bf16.mxu0 0
    %1693 = vmatpush1.bf16.xpose.msra.mxu0 0
    %1694 = vmatprep.subr.bf16.mxu0 0
    %1695 = vmatpush1.bf16.xpose.msra.mxu0 0
    %1696 = vmatprep.subr.bf16.mxu0 0
    %1697 = vmatpush1.bf16.xpose.msra.mxu0 0
    %1698 = vmatprep.subr.bf16.mxu0 0
    %1699 = vmatpush1.bf16.xpose.msra.mxu0 0
    %1700 = vmatprep.subr.bf16.mxu0 0
    %1701 = vmatpush1.bf16.xpose.msra.mxu0 0
    %1702 = vmatprep.subr.bf16.mxu0 0
    %1703 = vmatpush1.bf16.xpose.msra.mxu0 0
    %1704 = vmatprep.subr.bf16.mxu0 0
    %1705 = vmatpush1.bf16.xpose.msra.mxu0 0
    %1706 = vmatprep.subr.bf16.mxu0 0
    %1707 = vmatpush1.bf16.xpose.msra.mxu0 0
    %1708 = vmatprep.subr.bf16.mxu0 0
    %1709 = vmatpush1.bf16.xpose.msra.mxu0 0
    %1710 = vmatprep.subr.bf16.mxu0 0
    %1711 = vmatpush1.bf16.xpose.msra.mxu0 0
    %1712 = vmatprep.subr.bf16.mxu0 0
    %1713 = vmatpush1.bf16.xpose.msra.mxu0 0
    %1714 = vmatprep.mubr.bf16.mxu0 0
    %1715 = vmatmul.mubr.bf16.gmra.mrb[0].mxu0 %v1677
    %v1716 = vpop.f32.mrb[0].mxu0
    %v1717 = vadd.f32 0.0, %v1716
    %v1718 = vpop.f32.mrb[0].mxu0
    %v1719 = vpop.f32.mrb[0].mxu0
    %v1720 = vadd.f32 0.0, %v1719
    %v1721 = vpop.f32.mrb[0].mxu0
    %1722 = vdwg.mxu0
    %v1724 = vsel %vm1440, %v1414, 0
    %v1727 = vsel %vm1440, %v1430, 0
    %1729 = vmatprep.subr.bf16.mxu0 0
    %1730 = vmatpush1.bf16.xpose.msra.mxu0 %v1727
    %1731 = vmatprep.subr.bf16.mxu0 0
    %1732 = vmatpush1.bf16.xpose.msra.mxu0 0
    %1733 = vmatprep.subr.bf16.mxu0 0
    %1734 = vmatpush1.bf16.xpose.msra.mxu0 0
    %1735 = vmatprep.subr.bf16.mxu0 0
    %1736 = vmatpush1.bf16.xpose.msra.mxu0 0
    %1737 = vmatprep.subr.bf16.mxu0 0
    %1738 = vmatpush1.bf16.xpose.msra.mxu0 0
    %1739 = vmatprep.subr.bf16.mxu0 0
    %1740 = vmatpush1.bf16.xpose.msra.mxu0 0
    %1741 = vmatprep.subr.bf16.mxu0 0
    %1742 = vmatpush1.bf16.xpose.msra.mxu0 0
    %1743 = vmatprep.subr.bf16.mxu0 0
    %1744 = vmatpush1.bf16.xpose.msra.mxu0 0
    %1745 = vmatprep.subr.bf16.mxu0 0
    %1746 = vmatpush1.bf16.xpose.msra.mxu0 0
    %1747 = vmatprep.subr.bf16.mxu0 0
    %1748 = vmatpush1.bf16.xpose.msra.mxu0 0
    %1749 = vmatprep.subr.bf16.mxu0 0
    %1750 = vmatpush1.bf16.xpose.msra.mxu0 0
    %1751 = vmatprep.subr.bf16.mxu0 0
    %1752 = vmatpush1.bf16.xpose.msra.mxu0 0
    %1753 = vmatprep.subr.bf16.mxu0 0
    %1754 = vmatpush1.bf16.xpose.msra.mxu0 0
    %1755 = vmatprep.subr.bf16.mxu0 0
    %1756 = vmatpush1.bf16.xpose.msra.mxu0 0
    %1757 = vmatprep.subr.bf16.mxu0 0
    %1758 = vmatpush1.bf16.xpose.msra.mxu0 0
    %1759 = vmatprep.subr.bf16.mxu0 0
    %1760 = vmatpush1.bf16.xpose.msra.mxu0 0
    %1761 = vmatprep.mubr.bf16.mxu0 0
    %1762 = vmatmul.mubr.bf16.gmra.mrb[0].mxu0 %v1724
    %v1763 = vpop.f32.mrb[0].mxu0
    %v1764 = vadd.f32 0.0, %v1763
    %v1765 = vpop.f32.mrb[0].mxu0
    %v1766 = vpop.f32.mrb[0].mxu0
    %v1767 = vadd.f32 0.0, %v1766
    %v1768 = vpop.f32.mrb[0].mxu0
    %1769 = vdwg.mxu0
    %v1771 = vsel %vm1440, %v1415, 0
    %v1774 = vsel %vm1440, %v1431, 0
    %1776 = vmatprep.subr.bf16.mxu0 0
    %1777 = vmatpush1.bf16.xpose.msra.mxu0 %v1774
    %1778 = vmatprep.subr.bf16.mxu0 0
    %1779 = vmatpush1.bf16.xpose.msra.mxu0 0
    %1780 = vmatprep.subr.bf16.mxu0 0
    %1781 = vmatpush1.bf16.xpose.msra.mxu0 0
    %1782 = vmatprep.subr.bf16.mxu0 0
    %1783 = vmatpush1.bf16.xpose.msra.mxu0 0
    %1784 = vmatprep.subr.bf16.mxu0 0
    %1785 = vmatpush1.bf16.xpose.msra.mxu0 0
    %1786 = vmatprep.subr.bf16.mxu0 0
    %1787 = vmatpush1.bf16.xpose.msra.mxu0 0
    %1788 = vmatprep.subr.bf16.mxu0 0
    %1789 = vmatpush1.bf16.xpose.msra.mxu0 0
    %1790 = vmatprep.subr.bf16.mxu0 0
    %1791 = vmatpush1.bf16.xpose.msra.mxu0 0
    %1792 = vmatprep.subr.bf16.mxu0 0
    %1793 = vmatpush1.bf16.xpose.msra.mxu0 0
    %1794 = vmatprep.subr.bf16.mxu0 0
    %1795 = vmatpush1.bf16.xpose.msra.mxu0 0
    %1796 = vmatprep.subr.bf16.mxu0 0
    %1797 = vmatpush1.bf16.xpose.msra.mxu0 0
    %1798 = vmatprep.subr.bf16.mxu0 0
    %1799 = vmatpush1.bf16.xpose.msra.mxu0 0
    %1800 = vmatprep.subr.bf16.mxu0 0
    %1801 = vmatpush1.bf16.xpose.msra.mxu0 0
    %1802 = vmatprep.subr.bf16.mxu0 0
    %1803 = vmatpush1.bf16.xpose.msra.mxu0 0
    %1804 = vmatprep.subr.bf16.mxu0 0
    %1805 = vmatpush1.bf16.xpose.msra.mxu0 0
    %1806 = vmatprep.subr.bf16.mxu0 0
    %1807 = vmatpush1.bf16.xpose.msra.mxu0 0
    %1808 = vmatprep.mubr.bf16.mxu0 0
    %1809 = vmatmul.mubr.bf16.gmra.mrb[0].mxu0 %v1771
    %v1810 = vpop.f32.mrb[0].mxu0
    %v1811 = vadd.f32 0.0, %v1810
    %v1812 = vpop.f32.mrb[0].mxu0
    %v1813 = vpop.f32.mrb[0].mxu0
    %v1814 = vadd.f32 0.0, %v1813
    %v1815 = vpop.f32.mrb[0].mxu0
    %1816 = vdwg.mxu0
    %v1818 = vsel %vm1440, %v1416, 0
    %v1821 = vsel %vm1440, %v1432, 0
    %1823 = vmatprep.subr.bf16.mxu0 0
    %1824 = vmatpush1.bf16.xpose.msra.mxu0 %v1821
    %1825 = vmatprep.subr.bf16.mxu0 0
    %1826 = vmatpush1.bf16.xpose.msra.mxu0 0
    %1827 = vmatprep.subr.bf16.mxu0 0
    %1828 = vmatpush1.bf16.xpose.msra.mxu0 0
    %1829 = vmatprep.subr.bf16.mxu0 0
    %1830 = vmatpush1.bf16.xpose.msra.mxu0 0
    %1831 = vmatprep.subr.bf16.mxu0 0
    %1832 = vmatpush1.bf16.xpose.msra.mxu0 0
    %1833 = vmatprep.subr.bf16.mxu0 0
    %1834 = vmatpush1.bf16.xpose.msra.mxu0 0
    %1835 = vmatprep.subr.bf16.mxu0 0
    %1836 = vmatpush1.bf16.xpose.msra.mxu0 0
    %1837 = vmatprep.subr.bf16.mxu0 0
    %1838 = vmatpush1.bf16.xpose.msra.mxu0 0
    %1839 = vmatprep.subr.bf16.mxu0 0
    %1840 = vmatpush1.bf16.xpose.msra.mxu0 0
    %1841 = vmatprep.subr.bf16.mxu0 0
    %1842 = vmatpush1.bf16.xpose.msra.mxu0 0
    %1843 = vmatprep.subr.bf16.mxu0 0
    %1844 = vmatpush1.bf16.xpose.msra.mxu0 0
    %1845 = vmatprep.subr.bf16.mxu0 0
    %1846 = vmatpush1.bf16.xpose.msra.mxu0 0
    %1847 = vmatprep.subr.bf16.mxu0 0
    %1848 = vmatpush1.bf16.xpose.msra.mxu0 0
    %1849 = vmatprep.subr.bf16.mxu0 0
    %1850 = vmatpush1.bf16.xpose.msra.mxu0 0
    %1851 = vmatprep.subr.bf16.mxu0 0
    %1852 = vmatpush1.bf16.xpose.msra.mxu0 0
    %1853 = vmatprep.subr.bf16.mxu0 0
    %1854 = vmatpush1.bf16.xpose.msra.mxu0 0
    %1855 = vmatprep.mubr.bf16.mxu0 0
    %1856 = vmatmul.mubr.bf16.gmra.mrb[0].mxu0 %v1818
    %v1857 = vpop.f32.mrb[0].mxu0
    %v1858 = vadd.f32 0.0, %v1857
    %v1859 = vpop.f32.mrb[0].mxu0
    %v1860 = vpop.f32.mrb[0].mxu0
    %v1861 = vadd.f32 0.0, %v1860
    %v1862 = vpop.f32.mrb[0].mxu0
    %1863 = vdwg.mxu0
    %v1865 = vsel %vm1440, %v1417, 0
    %v1868 = vsel %vm1440, %v1433, 0
    %1870 = vmatprep.subr.bf16.mxu0 0
    %1871 = vmatpush1.bf16.xpose.msra.mxu0 %v1868
    %1872 = vmatprep.subr.bf16.mxu0 0
    %1873 = vmatpush1.bf16.xpose.msra.mxu0 0
    %1874 = vmatprep.subr.bf16.mxu0 0
    %1875 = vmatpush1.bf16.xpose.msra.mxu0 0
    %1876 = vmatprep.subr.bf16.mxu0 0
    %1877 = vmatpush1.bf16.xpose.msra.mxu0 0
    %1878 = vmatprep.subr.bf16.mxu0 0
    %1879 = vmatpush1.bf16.xpose.msra.mxu0 0
    %1880 = vmatprep.subr.bf16.mxu0 0
    %1881 = vmatpush1.bf16.xpose.msra.mxu0 0
    %1882 = vmatprep.subr.bf16.mxu0 0
    %1883 = vmatpush1.bf16.xpose.msra.mxu0 0
    %1884 = vmatprep.subr.bf16.mxu0 0
    %1885 = vmatpush1.bf16.xpose.msra.mxu0 0
    %1886 = vmatprep.subr.bf16.mxu0 0
    %1887 = vmatpush1.bf16.xpose.msra.mxu0 0
    %1888 = vmatprep.subr.bf16.mxu0 0
    %1889 = vmatpush1.bf16.xpose.msra.mxu0 0
    %1890 = vmatprep.subr.bf16.mxu0 0
    %1891 = vmatpush1.bf16.xpose.msra.mxu0 0
    %1892 = vmatprep.subr.bf16.mxu0 0
    %1893 = vmatpush1.bf16.xpose.msra.mxu0 0
    %1894 = vmatprep.subr.bf16.mxu0 0
    %1895 = vmatpush1.bf16.xpose.msra.mxu0 0
    %1896 = vmatprep.subr.bf16.mxu0 0
    %1897 = vmatpush1.bf16.xpose.msra.mxu0 0
    %1898 = vmatprep.subr.bf16.mxu0 0
    %1899 = vmatpush1.bf16.xpose.msra.mxu0 0
    %1900 = vmatprep.subr.bf16.mxu0 0
    %1901 = vmatpush1.bf16.xpose.msra.mxu0 0
    %1902 = vmatprep.mubr.bf16.mxu0 0
    %1903 = vmatmul.mubr.bf16.gmra.mrb[0].mxu0 %v1865
    %v1904 = vpop.f32.mrb[0].mxu0
    %v1905 = vadd.f32 0.0, %v1904
    %v1906 = vpop.f32.mrb[0].mxu0
    %v1907 = vpop.f32.mrb[0].mxu0
    %v1908 = vadd.f32 0.0, %v1907
    %v1909 = vpop.f32.mrb[0].mxu0
    %1910 = vdwg.mxu0
    %v1912 = vsel %vm1440, %v1418, 0
    %v1915 = vsel %vm1440, %v1434, 0
    %1917 = vmatprep.subr.bf16.mxu0 0
    %1918 = vmatpush1.bf16.xpose.msra.mxu0 %v1915
    %1919 = vmatprep.subr.bf16.mxu0 0
    %1920 = vmatpush1.bf16.xpose.msra.mxu0 0
    %1921 = vmatprep.subr.bf16.mxu0 0
    %1922 = vmatpush1.bf16.xpose.msra.mxu0 0
    %1923 = vmatprep.subr.bf16.mxu0 0
    %1924 = vmatpush1.bf16.xpose.msra.mxu0 0
    %1925 = vmatprep.subr.bf16.mxu0 0
    %1926 = vmatpush1.bf16.xpose.msra.mxu0 0
    %1927 = vmatprep.subr.bf16.mxu0 0
    %1928 = vmatpush1.bf16.xpose.msra.mxu0 0
    %1929 = vmatprep.subr.bf16.mxu0 0
    %1930 = vmatpush1.bf16.xpose.msra.mxu0 0
    %1931 = vmatprep.subr.bf16.mxu0 0
    %1932 = vmatpush1.bf16.xpose.msra.mxu0 0
    %1933 = vmatprep.subr.bf16.mxu0 0
    %1934 = vmatpush1.bf16.xpose.msra.mxu0 0
    %1935 = vmatprep.subr.bf16.mxu0 0
    %1936 = vmatpush1.bf16.xpose.msra.mxu0 0
    %1937 = vmatprep.subr.bf16.mxu0 0
    %1938 = vmatpush1.bf16.xpose.msra.mxu0 0
    %1939 = vmatprep.subr.bf16.mxu0 0
    %1940 = vmatpush1.bf16.xpose.msra.mxu0 0
    %1941 = vmatprep.subr.bf16.mxu0 0
    %1942 = vmatpush1.bf16.xpose.msra.mxu0 0
    %1943 = vmatprep.subr.bf16.mxu0 0
    %1944 = vmatpush1.bf16.xpose.msra.mxu0 0
    %1945 = vmatprep.subr.bf16.mxu0 0
    %1946 = vmatpush1.bf16.xpose.msra.mxu0 0
    %1947 = vmatprep.subr.bf16.mxu0 0
    %1948 = vmatpush1.bf16.xpose.msra.mxu0 0
    %1949 = vmatprep.mubr.bf16.mxu0 0
    %1950 = vmatmul.mubr.bf16.gmra.mrb[0].mxu0 %v1912
    %v1951 = vpop.f32.mrb[0].mxu0
    %v1952 = vadd.f32 0.0, %v1951
    %v1953 = vpop.f32.mrb[0].mxu0
    %v1954 = vpop.f32.mrb[0].mxu0
    %v1955 = vadd.f32 0.0, %v1954
    %v1956 = vpop.f32.mrb[0].mxu0
    %1957 = vdwg.mxu0
    %v1959 = vsel %vm1440, %v1419, 0
    %v1962 = vsel %vm1440, %v1435, 0
    %1964 = vmatprep.subr.bf16.mxu0 0
    %1965 = vmatpush1.bf16.xpose.msra.mxu0 %v1962
    %1966 = vmatprep.subr.bf16.mxu0 0
    %1967 = vmatpush1.bf16.xpose.msra.mxu0 0
    %1968 = vmatprep.subr.bf16.mxu0 0
    %1969 = vmatpush1.bf16.xpose.msra.mxu0 0
    %1970 = vmatprep.subr.bf16.mxu0 0
    %1971 = vmatpush1.bf16.xpose.msra.mxu0 0
    %1972 = vmatprep.subr.bf16.mxu0 0
    %1973 = vmatpush1.bf16.xpose.msra.mxu0 0
    %1974 = vmatprep.subr.bf16.mxu0 0
    %1975 = vmatpush1.bf16.xpose.msra.mxu0 0
    %1976 = vmatprep.subr.bf16.mxu0 0
    %1977 = vmatpush1.bf16.xpose.msra.mxu0 0
    %1978 = vmatprep.subr.bf16.mxu0 0
    %1979 = vmatpush1.bf16.xpose.msra.mxu0 0
    %1980 = vmatprep.subr.bf16.mxu0 0
    %1981 = vmatpush1.bf16.xpose.msra.mxu0 0
    %1982 = vmatprep.subr.bf16.mxu0 0
    %1983 = vmatpush1.bf16.xpose.msra.mxu0 0
    %1984 = vmatprep.subr.bf16.mxu0 0
    %1985 = vmatpush1.bf16.xpose.msra.mxu0 0
    %1986 = vmatprep.subr.bf16.mxu0 0
    %1987 = vmatpush1.bf16.xpose.msra.mxu0 0
    %1988 = vmatprep.subr.bf16.mxu0 0
    %1989 = vmatpush1.bf16.xpose.msra.mxu0 0
    %1990 = vmatprep.subr.bf16.mxu0 0
    %1991 = vmatpush1.bf16.xpose.msra.mxu0 0
    %1992 = vmatprep.subr.bf16.mxu0 0
    %1993 = vmatpush1.bf16.xpose.msra.mxu0 0
    %1994 = vmatprep.subr.bf16.mxu0 0
    %1995 = vmatpush1.bf16.xpose.msra.mxu0 0
    %1996 = vmatprep.mubr.bf16.mxu0 0
    %1997 = vmatmul.mubr.bf16.gmra.mrb[0].mxu0 %v1959
    %v1998 = vpop.f32.mrb[0].mxu0
    %v1999 = vadd.f32 0.0, %v1998
    %v2000 = vpop.f32.mrb[0].mxu0
    %v2001 = vpop.f32.mrb[0].mxu0
    %v2002 = vadd.f32 0.0, %v2001
    %v2003 = vpop.f32.mrb[0].mxu0
    %2004 = vdwg.mxu0
    %v2006 = vsel %vm1440, %v1420, 0
    %v2009 = vsel %vm1440, %v1436, 0
    %2011 = vmatprep.subr.bf16.mxu0 0
    %2012 = vmatpush1.bf16.xpose.msra.mxu0 %v2009
    %2013 = vmatprep.subr.bf16.mxu0 0
    %2014 = vmatpush1.bf16.xpose.msra.mxu0 0
    %2015 = vmatprep.subr.bf16.mxu0 0
    %2016 = vmatpush1.bf16.xpose.msra.mxu0 0
    %2017 = vmatprep.subr.bf16.mxu0 0
    %2018 = vmatpush1.bf16.xpose.msra.mxu0 0
    %2019 = vmatprep.subr.bf16.mxu0 0
    %2020 = vmatpush1.bf16.xpose.msra.mxu0 0
    %2021 = vmatprep.subr.bf16.mxu0 0
    %2022 = vmatpush1.bf16.xpose.msra.mxu0 0
    %2023 = vmatprep.subr.bf16.mxu0 0
    %2024 = vmatpush1.bf16.xpose.msra.mxu0 0
    %2025 = vmatprep.subr.bf16.mxu0 0
    %2026 = vmatpush1.bf16.xpose.msra.mxu0 0
    %2027 = vmatprep.subr.bf16.mxu0 0
    %2028 = vmatpush1.bf16.xpose.msra.mxu0 0
    %2029 = vmatprep.subr.bf16.mxu0 0
    %2030 = vmatpush1.bf16.xpose.msra.mxu0 0
    %2031 = vmatprep.subr.bf16.mxu0 0
    %2032 = vmatpush1.bf16.xpose.msra.mxu0 0
    %2033 = vmatprep.subr.bf16.mxu0 0
    %2034 = vmatpush1.bf16.xpose.msra.mxu0 0
    %2035 = vmatprep.subr.bf16.mxu0 0
    %2036 = vmatpush1.bf16.xpose.msra.mxu0 0
    %2037 = vmatprep.subr.bf16.mxu0 0
    %2038 = vmatpush1.bf16.xpose.msra.mxu0 0
    %2039 = vmatprep.subr.bf16.mxu0 0
    %2040 = vmatpush1.bf16.xpose.msra.mxu0 0
    %2041 = vmatprep.subr.bf16.mxu0 0
    %2042 = vmatpush1.bf16.xpose.msra.mxu0 0
    %2043 = vmatprep.mubr.bf16.mxu0 0
    %2044 = vmatmul.mubr.bf16.gmra.mrb[0].mxu0 %v2006
    %v2045 = vpop.f32.mrb[0].mxu0
    %v2046 = vadd.f32 0.0, %v2045
    %v2047 = vpop.f32.mrb[0].mxu0
    %v2048 = vpop.f32.mrb[0].mxu0
    %v2049 = vadd.f32 0.0, %v2048
    %v2050 = vpop.f32.mrb[0].mxu0
    %2051 = vdwg.mxu0
    %v2053 = vsel %vm1440, %v1421, 0
    %v2056 = vsel %vm1440, %v1437, 0
    %2058 = vmatprep.subr.bf16.mxu0 0
    %2059 = vmatpush1.bf16.xpose.msra.mxu0 %v2056
    %2060 = vmatprep.subr.bf16.mxu0 0
    %2061 = vmatpush1.bf16.xpose.msra.mxu0 0
    %2062 = vmatprep.subr.bf16.mxu0 0
    %2063 = vmatpush1.bf16.xpose.msra.mxu0 0
    %2064 = vmatprep.subr.bf16.mxu0 0
    %2065 = vmatpush1.bf16.xpose.msra.mxu0 0
    %2066 = vmatprep.subr.bf16.mxu0 0
    %2067 = vmatpush1.bf16.xpose.msra.mxu0 0
    %2068 = vmatprep.subr.bf16.mxu0 0
    %2069 = vmatpush1.bf16.xpose.msra.mxu0 0
    %2070 = vmatprep.subr.bf16.mxu0 0
    %2071 = vmatpush1.bf16.xpose.msra.mxu0 0
    %2072 = vmatprep.subr.bf16.mxu0 0
    %2073 = vmatpush1.bf16.xpose.msra.mxu0 0
    %2074 = vmatprep.subr.bf16.mxu0 0
    %2075 = vmatpush1.bf16.xpose.msra.mxu0 0
    %2076 = vmatprep.subr.bf16.mxu0 0
    %2077 = vmatpush1.bf16.xpose.msra.mxu0 0
    %2078 = vmatprep.subr.bf16.mxu0 0
    %2079 = vmatpush1.bf16.xpose.msra.mxu0 0
    %2080 = vmatprep.subr.bf16.mxu0 0
    %2081 = vmatpush1.bf16.xpose.msra.mxu0 0
    %2082 = vmatprep.subr.bf16.mxu0 0
    %2083 = vmatpush1.bf16.xpose.msra.mxu0 0
    %2084 = vmatprep.subr.bf16.mxu0 0
    %2085 = vmatpush1.bf16.xpose.msra.mxu0 0
    %2086 = vmatprep.subr.bf16.mxu0 0
    %2087 = vmatpush1.bf16.xpose.msra.mxu0 0
    %2088 = vmatprep.subr.bf16.mxu0 0
    %2089 = vmatpush1.bf16.xpose.msra.mxu0 0
    %2090 = vmatprep.mubr.bf16.mxu0 0
    %2091 = vmatmul.mubr.bf16.gmra.mrb[0].mxu0 %v2053
    %v2092 = vpop.f32.mrb[0].mxu0
    %v2093 = vadd.f32 0.0, %v2092
    %v2094 = vpop.f32.mrb[0].mxu0
    %v2095 = vpop.f32.mrb[0].mxu0
    %v2096 = vadd.f32 0.0, %v2095
    %v2097 = vpop.f32.mrb[0].mxu0
    %2098 = vdwg.mxu0
    %v2100 = vsel %vm1440, %v1422, 0
    %v2103 = vsel %vm1440, %v1438, 0
    %2105 = vmatprep.subr.bf16.mxu0 0
    %2106 = vmatpush1.bf16.xpose.msra.mxu0 %v2103
    %2107 = vmatprep.subr.bf16.mxu0 0
    %2108 = vmatpush1.bf16.xpose.msra.mxu0 0
    %2109 = vmatprep.subr.bf16.mxu0 0
    %2110 = vmatpush1.bf16.xpose.msra.mxu0 0
    %2111 = vmatprep.subr.bf16.mxu0 0
    %2112 = vmatpush1.bf16.xpose.msra.mxu0 0
    %2113 = vmatprep.subr.bf16.mxu0 0
    %2114 = vmatpush1.bf16.xpose.msra.mxu0 0
    %2115 = vmatprep.subr.bf16.mxu0 0
    %2116 = vmatpush1.bf16.xpose.msra.mxu0 0
    %2117 = vmatprep.subr.bf16.mxu0 0
    %2118 = vmatpush1.bf16.xpose.msra.mxu0 0
    %2119 = vmatprep.subr.bf16.mxu0 0
    %2120 = vmatpush1.bf16.xpose.msra.mxu0 0
    %2121 = vmatprep.subr.bf16.mxu0 0
    %2122 = vmatpush1.bf16.xpose.msra.mxu0 0
    %2123 = vmatprep.subr.bf16.mxu0 0
    %2124 = vmatpush1.bf16.xpose.msra.mxu0 0
    %2125 = vmatprep.subr.bf16.mxu0 0
    %2126 = vmatpush1.bf16.xpose.msra.mxu0 0
    %2127 = vmatprep.subr.bf16.mxu0 0
    %2128 = vmatpush1.bf16.xpose.msra.mxu0 0
    %2129 = vmatprep.subr.bf16.mxu0 0
    %2130 = vmatpush1.bf16.xpose.msra.mxu0 0
    %2131 = vmatprep.subr.bf16.mxu0 0
    %2132 = vmatpush1.bf16.xpose.msra.mxu0 0
    %2133 = vmatprep.subr.bf16.mxu0 0
    %2134 = vmatpush1.bf16.xpose.msra.mxu0 0
    %2135 = vmatprep.subr.bf16.mxu0 0
    %2136 = vmatpush1.bf16.xpose.msra.mxu0 0
    %2137 = vmatprep.mubr.bf16.mxu0 0
    %2138 = vmatmul.mubr.bf16.gmra.mrb[0].mxu0 %v2100
    %v2139 = vpop.f32.mrb[0].mxu0
    %v2140 = vadd.f32 0.0, %v2139
    %v2141 = vpop.f32.mrb[0].mxu0
    %v2142 = vpop.f32.mrb[0].mxu0
    %v2143 = vadd.f32 0.0, %v2142
    %v2144 = vpop.f32.mrb[0].mxu0
    %2145 = vdwg.mxu0
    %v2147 = vsel %vm1440, %v1423, 0
    %v2150 = vsel %vm1440, %v1439, 0
    %2152 = vmatprep.subr.bf16.mxu0 0
    %2153 = vmatpush1.bf16.xpose.msra.mxu0 %v2150
    %2154 = vmatprep.subr.bf16.mxu0 0
    %2155 = vmatpush1.bf16.xpose.msra.mxu0 0
    %2156 = vmatprep.subr.bf16.mxu0 0
    %2157 = vmatpush1.bf16.xpose.msra.mxu0 0
    %2158 = vmatprep.subr.bf16.mxu0 0
    %2159 = vmatpush1.bf16.xpose.msra.mxu0 0
    %2160 = vmatprep.subr.bf16.mxu0 0
    %2161 = vmatpush1.bf16.xpose.msra.mxu0 0
    %2162 = vmatprep.subr.bf16.mxu0 0
    %2163 = vmatpush1.bf16.xpose.msra.mxu0 0
    %2164 = vmatprep.subr.bf16.mxu0 0
    %2165 = vmatpush1.bf16.xpose.msra.mxu0 0
    %2166 = vmatprep.subr.bf16.mxu0 0
    %2167 = vmatpush1.bf16.xpose.msra.mxu0 0
    %2168 = vmatprep.subr.bf16.mxu0 0
    %2169 = vmatpush1.bf16.xpose.msra.mxu0 0
    %2170 = vmatprep.subr.bf16.mxu0 0
    %2171 = vmatpush1.bf16.xpose.msra.mxu0 0
    %2172 = vmatprep.subr.bf16.mxu0 0
    %2173 = vmatpush1.bf16.xpose.msra.mxu0 0
    %2174 = vmatprep.subr.bf16.mxu0 0
    %2175 = vmatpush1.bf16.xpose.msra.mxu0 0
    %2176 = vmatprep.subr.bf16.mxu0 0
    %2177 = vmatpush1.bf16.xpose.msra.mxu0 0
    %2178 = vmatprep.subr.bf16.mxu0 0
    %2179 = vmatpush1.bf16.xpose.msra.mxu0 0
    %2180 = vmatprep.subr.bf16.mxu0 0
    %2181 = vmatpush1.bf16.xpose.msra.mxu0 0
    %2182 = vmatprep.subr.bf16.mxu0 0
    %2183 = vmatpush1.bf16.xpose.msra.mxu0 0
    %2184 = vmatprep.mubr.bf16.mxu0 0
    %2185 = vmatmul.mubr.bf16.gmra.mrb[0].mxu0 %v2147
    %v2186 = vpop.f32.mrb[0].mxu0
    %v2187 = vadd.f32 0.0, %v2186
    %v2188 = vpop.f32.mrb[0].mxu0
    %v2189 = vpop.f32.mrb[0].mxu0
    %v2190 = vadd.f32 0.0, %v2189
    %v2191 = vpop.f32.mrb[0].mxu0
    %2192 = vdwg.mxu0
    %v2193 = vmul.f32 %v1482, 0.25
    %v2194 = vmul.f32 %v1485, 0.25
    %v2195 = vmul.f32 %v1529, 0.25
    %v2196 = vmul.f32 %v1532, 0.25
    %v2197 = vmul.f32 %v1576, 0.25
    %v2198 = vmul.f32 %v1579, 0.25
    %v2199 = vmul.f32 %v1623, 0.25
    %v2200 = vmul.f32 %v1626, 0.25
    %v2201 = vmul.f32 %v1670, 0.25
    %v2202 = vmul.f32 %v1673, 0.25
    %v2203 = vmul.f32 %v1717, 0.25
    %v2204 = vmul.f32 %v1720, 0.25
    %v2205 = vmul.f32 %v1764, 0.25
    %v2206 = vmul.f32 %v1767, 0.25
    %v2207 = vmul.f32 %v1811, 0.25
    %v2208 = vmul.f32 %v1814, 0.25
    %v2209 = vmul.f32 %v1858, 0.25
    %v2210 = vmul.f32 %v1861, 0.25
    %v2211 = vmul.f32 %v1905, 0.25
    %v2212 = vmul.f32 %v1908, 0.25
    %v2213 = vmul.f32 %v1952, 0.25
    %v2214 = vmul.f32 %v1955, 0.25
    %v2215 = vmul.f32 %v1999, 0.25
    %v2216 = vmul.f32 %v2002, 0.25
    %v2217 = vmul.f32 %v2046, 0.25
    %v2218 = vmul.f32 %v2049, 0.25
    %v2219 = vmul.f32 %v2093, 0.25
    %v2220 = vmul.f32 %v2096, 0.25
    %v2221 = vmul.f32 %v2140, 0.25
    %v2222 = vmul.f32 %v2143, 0.25
    %v2223 = vmul.f32 %v2187, 0.25
    %v2224 = vmul.f32 %v2190, 0.25
    %v2225 = vadd.f32 %v2193, %v631
    %v2226 = vadd.f32 %v2194, %v631
    %v2227 = vadd.f32 %v2195, %v635
    %v2228 = vadd.f32 %v2196, %v635
    %v2229 = vadd.f32 %v2197, %v639
    %v2230 = vadd.f32 %v2198, %v639
    %v2231 = vadd.f32 %v2199, %v643
    %v2232 = vadd.f32 %v2200, %v643
    %v2233 = vadd.f32 %v2201, %v647
    %v2234 = vadd.f32 %v2202, %v647
    %v2235 = vadd.f32 %v2203, %v651
    %v2236 = vadd.f32 %v2204, %v651
    %v2237 = vadd.f32 %v2205, %v655
    %v2238 = vadd.f32 %v2206, %v655
    %v2239 = vadd.f32 %v2207, %v659
    %v2240 = vadd.f32 %v2208, %v659
    %v2241 = vadd.f32 %v2209, %v631
    %v2242 = vadd.f32 %v2210, %v631
    %v2243 = vadd.f32 %v2211, %v635
    %v2244 = vadd.f32 %v2212, %v635
    %v2245 = vadd.f32 %v2213, %v639
    %v2246 = vadd.f32 %v2214, %v639
    %v2247 = vadd.f32 %v2215, %v643
    %v2248 = vadd.f32 %v2216, %v643
    %v2249 = vadd.f32 %v2217, %v647
    %v2250 = vadd.f32 %v2218, %v647
    %v2251 = vadd.f32 %v2219, %v651
    %v2252 = vadd.f32 %v2220, %v651
    %v2253 = vadd.f32 %v2221, %v655
    %v2254 = vadd.f32 %v2222, %v655
    %v2255 = vadd.f32 %v2223, %v659
    %v2256 = vadd.f32 %v2224, %v659
    %v2257 = vsel %vm1440, %v2225, -inf
    %2258 = vmax.xlane.f32.xlu0 %v2257
    %v2259 = vpop.xlane.xlu0 %2258
    %v2260 = vsel %vm1440, %v2226, -inf
    %2261 = vmax.xlane.f32.xlu0 %v2260
    %v2262 = vpop.xlane.xlu0 %2261
    %v2263 = vsel %vm1440, %v2227, -inf
    %2264 = vmax.xlane.f32.xlu0 %v2263
    %v2265 = vpop.xlane.xlu0 %2264
    %v2266 = vsel %vm1440, %v2228, -inf
    %2267 = vmax.xlane.f32.xlu0 %v2266
    %v2268 = vpop.xlane.xlu0 %2267
    %v2269 = vsel %vm1440, %v2229, -inf
    %2270 = vmax.xlane.f32.xlu0 %v2269
    %v2271 = vpop.xlane.xlu0 %2270
    %v2272 = vsel %vm1440, %v2230, -inf
    %2273 = vmax.xlane.f32.xlu0 %v2272
    %v2274 = vpop.xlane.xlu0 %2273
    %v2275 = vsel %vm1440, %v2231, -inf
    %2276 = vmax.xlane.f32.xlu0 %v2275
    %v2277 = vpop.xlane.xlu0 %2276
    %v2278 = vsel %vm1440, %v2232, -inf
    %2279 = vmax.xlane.f32.xlu0 %v2278
    %v2280 = vpop.xlane.xlu0 %2279
    %v2281 = vsel %vm1440, %v2233, -inf
    %2282 = vmax.xlane.f32.xlu0 %v2281
    %v2283 = vpop.xlane.xlu0 %2282
    %v2284 = vsel %vm1440, %v2234, -inf
    %2285 = vmax.xlane.f32.xlu0 %v2284
    %v2286 = vpop.xlane.xlu0 %2285
    %v2287 = vsel %vm1440, %v2235, -inf
    %2288 = vmax.xlane.f32.xlu0 %v2287
    %v2289 = vpop.xlane.xlu0 %2288
    %v2290 = vsel %vm1440, %v2236, -inf
    %2291 = vmax.xlane.f32.xlu0 %v2290
    %v2292 = vpop.xlane.xlu0 %2291
    %v2293 = vsel %vm1440, %v2237, -inf
    %2294 = vmax.xlane.f32.xlu0 %v2293
    %v2295 = vpop.xlane.xlu0 %2294
    %v2296 = vsel %vm1440, %v2238, -inf
    %2297 = vmax.xlane.f32.xlu0 %v2296
    %v2298 = vpop.xlane.xlu0 %2297
    %v2299 = vsel %vm1440, %v2239, -inf
    %2300 = vmax.xlane.f32.xlu0 %v2299
    %v2301 = vpop.xlane.xlu0 %2300
    %v2302 = vsel %vm1440, %v2240, -inf
    %2303 = vmax.xlane.f32.xlu0 %v2302
    %v2304 = vpop.xlane.xlu0 %2303
    %v2305 = vsel %vm1440, %v2241, -inf
    %2306 = vmax.xlane.f32.xlu0 %v2305
    %v2307 = vpop.xlane.xlu0 %2306
    %v2308 = vsel %vm1440, %v2242, -inf
    %2309 = vmax.xlane.f32.xlu0 %v2308
    %v2310 = vpop.xlane.xlu0 %2309
    %v2311 = vsel %vm1440, %v2243, -inf
    %2312 = vmax.xlane.f32.xlu0 %v2311
    %v2313 = vpop.xlane.xlu0 %2312
    %v2314 = vsel %vm1440, %v2244, -inf
    %2315 = vmax.xlane.f32.xlu0 %v2314
    %v2316 = vpop.xlane.xlu0 %2315
    %v2317 = vsel %vm1440, %v2245, -inf
    %2318 = vmax.xlane.f32.xlu0 %v2317
    %v2319 = vpop.xlane.xlu0 %2318
    %v2320 = vsel %vm1440, %v2246, -inf
    %2321 = vmax.xlane.f32.xlu0 %v2320
    %v2322 = vpop.xlane.xlu0 %2321
    %v2323 = vsel %vm1440, %v2247, -inf
    %2324 = vmax.xlane.f32.xlu0 %v2323
    %v2325 = vpop.xlane.xlu0 %2324
    %v2326 = vsel %vm1440, %v2248, -inf
    %2327 = vmax.xlane.f32.xlu0 %v2326
    %v2328 = vpop.xlane.xlu0 %2327
    %v2329 = vsel %vm1440, %v2249, -inf
    %2330 = vmax.xlane.f32.xlu0 %v2329
    %v2331 = vpop.xlane.xlu0 %2330
    %v2332 = vsel %vm1440, %v2250, -inf
    %2333 = vmax.xlane.f32.xlu0 %v2332
    %v2334 = vpop.xlane.xlu0 %2333
    %v2335 = vsel %vm1440, %v2251, -inf
    %2336 = vmax.xlane.f32.xlu0 %v2335
    %v2337 = vpop.xlane.xlu0 %2336
    %v2338 = vsel %vm1440, %v2252, -inf
    %2339 = vmax.xlane.f32.xlu0 %v2338
    %v2340 = vpop.xlane.xlu0 %2339
    %v2341 = vsel %vm1440, %v2253, -inf
    %2342 = vmax.xlane.f32.xlu0 %v2341
    %v2343 = vpop.xlane.xlu0 %2342
    %v2344 = vsel %vm1440, %v2254, -inf
    %2345 = vmax.xlane.f32.xlu0 %v2344
    %v2346 = vpop.xlane.xlu0 %2345
    %v2347 = vsel %vm1440, %v2255, -inf
    %2348 = vmax.xlane.f32.xlu0 %v2347
    %v2349 = vpop.xlane.xlu0 %2348
    %v2350 = vsel %vm1440, %v2256, -inf
    %2351 = vmax.xlane.f32.xlu0 %v2350
    %v2352 = vpop.xlane.xlu0 %2351
    %v2353 = vsub.f32 %v2225, %v2259
    %v2354 = vsub.f32 %v2226, %v2262
    %v2355 = vsub.f32 %v2227, %v2265
    %v2356 = vsub.f32 %v2228, %v2268
    %v2357 = vsub.f32 %v2229, %v2271
    %v2358 = vsub.f32 %v2230, %v2274
    %v2359 = vsub.f32 %v2231, %v2277
    %v2360 = vsub.f32 %v2232, %v2280
    %v2361 = vsub.f32 %v2233, %v2283
    %v2362 = vsub.f32 %v2234, %v2286
    %v2363 = vsub.f32 %v2235, %v2289
    %v2364 = vsub.f32 %v2236, %v2292
    %v2365 = vsub.f32 %v2237, %v2295
    %v2366 = vsub.f32 %v2238, %v2298
    %v2367 = vsub.f32 %v2239, %v2301
    %v2368 = vsub.f32 %v2240, %v2304
    %v2369 = vsub.f32 %v2241, %v2307
    %v2370 = vsub.f32 %v2242, %v2310
    %v2371 = vsub.f32 %v2243, %v2313
    %v2372 = vsub.f32 %v2244, %v2316
    %v2373 = vsub.f32 %v2245, %v2319
    %v2374 = vsub.f32 %v2246, %v2322
    %v2375 = vsub.f32 %v2247, %v2325
    %v2376 = vsub.f32 %v2248, %v2328
    %v2377 = vsub.f32 %v2249, %v2331
    %v2378 = vsub.f32 %v2250, %v2334
    %v2379 = vsub.f32 %v2251, %v2337
    %v2380 = vsub.f32 %v2252, %v2340
    %v2381 = vsub.f32 %v2253, %v2343
    %v2382 = vsub.f32 %v2254, %v2346
    %v2383 = vsub.f32 %v2255, %v2349
    %v2384 = vsub.f32 %v2256, %v2352
    %v2385 = vmul.f32 %v2353, 1.442695
    %v2386 = vpow.pop %v2385
    %v2387 = vmul.f32 %v2354, 1.442695
    %v2388 = vpow.pop %v2387
    %v2389 = vmul.f32 %v2355, 1.442695
    %v2390 = vpow.pop %v2389
    %v2391 = vmul.f32 %v2356, 1.442695
    %v2392 = vpow.pop %v2391
    %v2393 = vmul.f32 %v2357, 1.442695
    %v2394 = vpow.pop %v2393
    %v2395 = vmul.f32 %v2358, 1.442695
    %v2396 = vpow.pop %v2395
    %v2397 = vmul.f32 %v2359, 1.442695
    %v2398 = vpow.pop %v2397
    %v2399 = vmul.f32 %v2360, 1.442695
    %v2400 = vpow.pop %v2399
    %v2401 = vmul.f32 %v2361, 1.442695
    %v2402 = vpow.pop %v2401
    %v2403 = vmul.f32 %v2362, 1.442695
    %v2404 = vpow.pop %v2403
    %v2405 = vmul.f32 %v2363, 1.442695
    %v2406 = vpow.pop %v2405
    %v2407 = vmul.f32 %v2364, 1.442695
    %v2408 = vpow.pop %v2407
    %v2409 = vmul.f32 %v2365, 1.442695
    %v2410 = vpow.pop %v2409
    %v2411 = vmul.f32 %v2366, 1.442695
    %v2412 = vpow.pop %v2411
    %v2413 = vmul.f32 %v2367, 1.442695
    %v2414 = vpow.pop %v2413
    %v2415 = vmul.f32 %v2368, 1.442695
    %v2416 = vpow.pop %v2415
    %v2417 = vmul.f32 %v2369, 1.442695
    %v2418 = vpow.pop %v2417
    %v2419 = vmul.f32 %v2370, 1.442695
    %v2420 = vpow.pop %v2419
    %v2421 = vmul.f32 %v2371, 1.442695
    %v2422 = vpow.pop %v2421
    %v2423 = vmul.f32 %v2372, 1.442695
    %v2424 = vpow.pop %v2423
    %v2425 = vmul.f32 %v2373, 1.442695
    %v2426 = vpow.pop %v2425
    %v2427 = vmul.f32 %v2374, 1.442695
    %v2428 = vpow.pop %v2427
    %v2429 = vmul.f32 %v2375, 1.442695
    %v2430 = vpow.pop %v2429
    %v2431 = vmul.f32 %v2376, 1.442695
    %v2432 = vpow.pop %v2431
    %v2433 = vmul.f32 %v2377, 1.442695
    %v2434 = vpow.pop %v2433
    %v2435 = vmul.f32 %v2378, 1.442695
    %v2436 = vpow.pop %v2435
    %v2437 = vmul.f32 %v2379, 1.442695
    %v2438 = vpow.pop %v2437
    %v2439 = vmul.f32 %v2380, 1.442695
    %v2440 = vpow.pop %v2439
    %v2441 = vmul.f32 %v2381, 1.442695
    %v2442 = vpow.pop %v2441
    %v2443 = vmul.f32 %v2382, 1.442695
    %v2444 = vpow.pop %v2443
    %v2445 = vmul.f32 %v2383, 1.442695
    %v2446 = vpow.pop %v2445
    %v2447 = vmul.f32 %v2384, 1.442695
    %v2448 = vpow.pop %v2447
    %v2449 = vsel %vm1440, %v2386, 0.0
    %2450 = vadd.xlane.f32.xlu0 %v2449
    %v2451 = vpop.xlane.xlu0 %2450
    %v2452 = vsel %vm1440, %v2388, 0.0
    %2453 = vadd.xlane.f32.xlu0 %v2452
    %v2454 = vpop.xlane.xlu0 %2453
    %v2455 = vsel %vm1440, %v2390, 0.0
    %2456 = vadd.xlane.f32.xlu0 %v2455
    %v2457 = vpop.xlane.xlu0 %2456
    %v2458 = vsel %vm1440, %v2392, 0.0
    %2459 = vadd.xlane.f32.xlu0 %v2458
    %v2460 = vpop.xlane.xlu0 %2459
    %v2461 = vsel %vm1440, %v2394, 0.0
    %2462 = vadd.xlane.f32.xlu0 %v2461
    %v2463 = vpop.xlane.xlu0 %2462
    %v2464 = vsel %vm1440, %v2396, 0.0
    %2465 = vadd.xlane.f32.xlu0 %v2464
    %v2466 = vpop.xlane.xlu0 %2465
    %v2467 = vsel %vm1440, %v2398, 0.0
    %2468 = vadd.xlane.f32.xlu0 %v2467
    %v2469 = vpop.xlane.xlu0 %2468
    %v2470 = vsel %vm1440, %v2400, 0.0
    %2471 = vadd.xlane.f32.xlu0 %v2470
    %v2472 = vpop.xlane.xlu0 %2471
    %v2473 = vsel %vm1440, %v2402, 0.0
    %2474 = vadd.xlane.f32.xlu0 %v2473
    %v2475 = vpop.xlane.xlu0 %2474
    %v2476 = vsel %vm1440, %v2404, 0.0
    %2477 = vadd.xlane.f32.xlu0 %v2476
    %v2478 = vpop.xlane.xlu0 %2477
    %v2479 = vsel %vm1440, %v2406, 0.0
    %2480 = vadd.xlane.f32.xlu0 %v2479
    %v2481 = vpop.xlane.xlu0 %2480
    %v2482 = vsel %vm1440, %v2408, 0.0
    %2483 = vadd.xlane.f32.xlu0 %v2482
    %v2484 = vpop.xlane.xlu0 %2483
    %v2485 = vsel %vm1440, %v2410, 0.0
    %2486 = vadd.xlane.f32.xlu0 %v2485
    %v2487 = vpop.xlane.xlu0 %2486
    %v2488 = vsel %vm1440, %v2412, 0.0
    %2489 = vadd.xlane.f32.xlu0 %v2488
    %v2490 = vpop.xlane.xlu0 %2489
    %v2491 = vsel %vm1440, %v2414, 0.0
    %2492 = vadd.xlane.f32.xlu0 %v2491
    %v2493 = vpop.xlane.xlu0 %2492
    %v2494 = vsel %vm1440, %v2416, 0.0
    %2495 = vadd.xlane.f32.xlu0 %v2494
    %v2496 = vpop.xlane.xlu0 %2495
    %v2497 = vsel %vm1440, %v2418, 0.0
    %2498 = vadd.xlane.f32.xlu0 %v2497
    %v2499 = vpop.xlane.xlu0 %2498
    %v2500 = vsel %vm1440, %v2420, 0.0
    %2501 = vadd.xlane.f32.xlu0 %v2500
    %v2502 = vpop.xlane.xlu0 %2501
    %v2503 = vsel %vm1440, %v2422, 0.0
    %2504 = vadd.xlane.f32.xlu0 %v2503
    %v2505 = vpop.xlane.xlu0 %2504
    %v2506 = vsel %vm1440, %v2424, 0.0
    %2507 = vadd.xlane.f32.xlu0 %v2506
    %v2508 = vpop.xlane.xlu0 %2507
    %v2509 = vsel %vm1440, %v2426, 0.0
    %2510 = vadd.xlane.f32.xlu0 %v2509
    %v2511 = vpop.xlane.xlu0 %2510
    %v2512 = vsel %vm1440, %v2428, 0.0
    %2513 = vadd.xlane.f32.xlu0 %v2512
    %v2514 = vpop.xlane.xlu0 %2513
    %v2515 = vsel %vm1440, %v2430, 0.0
    %2516 = vadd.xlane.f32.xlu0 %v2515
    %v2517 = vpop.xlane.xlu0 %2516
    %v2518 = vsel %vm1440, %v2432, 0.0
    %2519 = vadd.xlane.f32.xlu0 %v2518
    %v2520 = vpop.xlane.xlu0 %2519
    %v2521 = vsel %vm1440, %v2434, 0.0
    %2522 = vadd.xlane.f32.xlu0 %v2521
    %v2523 = vpop.xlane.xlu0 %2522
    %v2524 = vsel %vm1440, %v2436, 0.0
    %2525 = vadd.xlane.f32.xlu0 %v2524
    %v2526 = vpop.xlane.xlu0 %2525
    %v2527 = vsel %vm1440, %v2438, 0.0
    %2528 = vadd.xlane.f32.xlu0 %v2527
    %v2529 = vpop.xlane.xlu0 %2528
    %v2530 = vsel %vm1440, %v2440, 0.0
    %2531 = vadd.xlane.f32.xlu0 %v2530
    %v2532 = vpop.xlane.xlu0 %2531
    %v2533 = vsel %vm1440, %v2442, 0.0
    %2534 = vadd.xlane.f32.xlu0 %v2533
    %v2535 = vpop.xlane.xlu0 %2534
    %v2536 = vsel %vm1440, %v2444, 0.0
    %2537 = vadd.xlane.f32.xlu0 %v2536
    %v2538 = vpop.xlane.xlu0 %2537
    %v2539 = vsel %vm1440, %v2446, 0.0
    %2540 = vadd.xlane.f32.xlu0 %v2539
    %v2541 = vpop.xlane.xlu0 %2540
    %v2542 = vsel %vm1440, %v2448, 0.0
    %2543 = vadd.xlane.f32.xlu0 %v2542
    %v2544 = vpop.xlane.xlu0 %2543
    %v2545 = vrcp.pop %v2451
    %v2546 = vrcp.pop %v2454
    %v2547 = vrcp.pop %v2457
    %v2548 = vrcp.pop %v2460
    %v2549 = vrcp.pop %v2463
    %v2550 = vrcp.pop %v2466
    %v2551 = vrcp.pop %v2469
    %v2552 = vrcp.pop %v2472
    %v2553 = vrcp.pop %v2475
    %v2554 = vrcp.pop %v2478
    %v2555 = vrcp.pop %v2481
    %v2556 = vrcp.pop %v2484
    %v2557 = vrcp.pop %v2487
    %v2558 = vrcp.pop %v2490
    %v2559 = vrcp.pop %v2493
    %v2560 = vrcp.pop %v2496
    %v2561 = vrcp.pop %v2499
    %v2562 = vrcp.pop %v2502
    %v2563 = vrcp.pop %v2505
    %v2564 = vrcp.pop %v2508
    %v2565 = vrcp.pop %v2511
    %v2566 = vrcp.pop %v2514
    %v2567 = vrcp.pop %v2517
    %v2568 = vrcp.pop %v2520
    %v2569 = vrcp.pop %v2523
    %v2570 = vrcp.pop %v2526
    %v2571 = vrcp.pop %v2529
    %v2572 = vrcp.pop %v2532
    %v2573 = vrcp.pop %v2535
    %v2574 = vrcp.pop %v2538
    %v2575 = vrcp.pop %v2541
    %v2576 = vrcp.pop %v2544
    %v2577 = vmul.f32 %v2386, %v2545
    %v2578 = vmul.f32 %v2388, %v2546
    %v2579 = vmul.f32 %v2390, %v2547
    %v2580 = vmul.f32 %v2392, %v2548
    %v2581 = vmul.f32 %v2394, %v2549
    %v2582 = vmul.f32 %v2396, %v2550
    %v2583 = vmul.f32 %v2398, %v2551
    %v2584 = vmul.f32 %v2400, %v2552
    %v2585 = vmul.f32 %v2402, %v2553
    %v2586 = vmul.f32 %v2404, %v2554
    %v2587 = vmul.f32 %v2406, %v2555
    %v2588 = vmul.f32 %v2408, %v2556
    %v2589 = vmul.f32 %v2410, %v2557
    %v2590 = vmul.f32 %v2412, %v2558
    %v2591 = vmul.f32 %v2414, %v2559
    %v2592 = vmul.f32 %v2416, %v2560
    %v2593 = vmul.f32 %v2418, %v2561
    %v2594 = vmul.f32 %v2420, %v2562
    %v2595 = vmul.f32 %v2422, %v2563
    %v2596 = vmul.f32 %v2424, %v2564
    %v2597 = vmul.f32 %v2426, %v2565
    %v2598 = vmul.f32 %v2428, %v2566
    %v2599 = vmul.f32 %v2430, %v2567
    %v2600 = vmul.f32 %v2432, %v2568
    %v2601 = vmul.f32 %v2434, %v2569
    %v2602 = vmul.f32 %v2436, %v2570
    %v2603 = vmul.f32 %v2438, %v2571
    %v2604 = vmul.f32 %v2440, %v2572
    %v2605 = vmul.f32 %v2442, %v2573
    %v2606 = vmul.f32 %v2444, %v2574
    %v2607 = vmul.f32 %v2446, %v2575
    %v2608 = vmul.f32 %v2448, %v2576
    %v2609 = vpack.c.bf16 %v2578, %v2577
    %v2610 = vpack.c.bf16 %v2580, %v2579
    %v2611 = vpack.c.bf16 %v2582, %v2581
    %v2612 = vpack.c.bf16 %v2584, %v2583
    %v2613 = vpack.c.bf16 %v2586, %v2585
    %v2614 = vpack.c.bf16 %v2588, %v2587
    %v2615 = vpack.c.bf16 %v2590, %v2589
    %v2616 = vpack.c.bf16 %v2592, %v2591
    %v2617 = vpack.c.bf16 %v2594, %v2593
    %v2618 = vpack.c.bf16 %v2596, %v2595
    %v2619 = vpack.c.bf16 %v2598, %v2597
    %v2620 = vpack.c.bf16 %v2600, %v2599
    %v2621 = vpack.c.bf16 %v2602, %v2601
    %v2622 = vpack.c.bf16 %v2604, %v2603
    %v2623 = vpack.c.bf16 %v2606, %v2605
    %v2624 = vpack.c.bf16 %v2608, %v2607
    %v2625 = vpack.c.bf16 %v1231, %v1228
    %v2626 = vpack.c.bf16 %v1239, %v1236
    %v2627 = vpack.c.bf16 %v1247, %v1244
    %v2628 = vpack.c.bf16 %v1255, %v1252
    %v2629 = vpack.c.bf16 %v1263, %v1260
    %v2630 = vpack.c.bf16 %v1271, %v1268
    %v2631 = vpack.c.bf16 %v1279, %v1276
    %v2632 = vpack.c.bf16 %v1287, %v1284
    %v2633 = vpack.c.bf16 %v1349, %v1346
    %v2634 = vpack.c.bf16 %v1357, %v1354
    %v2635 = vpack.c.bf16 %v1365, %v1362
    %v2636 = vpack.c.bf16 %v1373, %v1370
    %v2637 = vpack.c.bf16 %v1381, %v1378
    %v2638 = vpack.c.bf16 %v1389, %v1386
    %v2639 = vpack.c.bf16 %v1397, %v1394
    %v2640 = vpack.c.bf16 %v1405, %v1402
    %v2642 = vsel %vm1440, %v2609, 0
    %2644 = vmatprep.subr.bf16.mxu0 0
    %2645 = vmatpush1.bf16.msra.mxu0 %v2625
    %2646 = vmatprep.subr.bf16.mxu0 0
    %2647 = vmatpush1.bf16.msra.mxu0 0
    %2648 = vmatprep.subr.bf16.mxu0 0
    %2649 = vmatpush1.bf16.msra.mxu0 0
    %2650 = vmatprep.subr.bf16.mxu0 0
    %2651 = vmatpush1.bf16.msra.mxu0 0
    %2652 = vmatprep.subr.bf16.mxu0 0
    %2653 = vmatpush1.bf16.msra.mxu0 0
    %2654 = vmatprep.subr.bf16.mxu0 0
    %2655 = vmatpush1.bf16.msra.mxu0 0
    %2656 = vmatprep.subr.bf16.mxu0 0
    %2657 = vmatpush1.bf16.msra.mxu0 0
    %2658 = vmatprep.subr.bf16.mxu0 0
    %2659 = vmatpush1.bf16.msra.mxu0 0
    %2660 = vmatprep.subr.bf16.mxu0 0
    %2661 = vmatpush1.bf16.msra.mxu0 0
    %2662 = vmatprep.subr.bf16.mxu0 0
    %2663 = vmatpush1.bf16.msra.mxu0 0
    %2664 = vmatprep.subr.bf16.mxu0 0
    %2665 = vmatpush1.bf16.msra.mxu0 0
    %2666 = vmatprep.subr.bf16.mxu0 0
    %2667 = vmatpush1.bf16.msra.mxu0 0
    %2668 = vmatprep.subr.bf16.mxu0 0
    %2669 = vmatpush1.bf16.msra.mxu0 0
    %2670 = vmatprep.subr.bf16.mxu0 0
    %2671 = vmatpush1.bf16.msra.mxu0 0
    %2672 = vmatprep.subr.bf16.mxu0 0
    %2673 = vmatpush1.bf16.msra.mxu0 0
    %2674 = vmatprep.subr.bf16.mxu0 0
    %2675 = vmatpush1.bf16.msra.mxu0 0
    %2676 = vmatprep.mubr.bf16.mxu0 0
    %2677 = vmatmul.mubr.bf16.gmra.mrb[0].mxu0 %v2642
    %v2678 = vpop.f32.mrb[0].mxu0
    %v2679 = vadd.f32 0.0, %v2678
    %v2680 = vpop.f32.mrb[0].mxu0
    %v2681 = vpop.f32.mrb[0].mxu0
    %v2682 = vadd.f32 0.0, %v2681
    %v2683 = vpop.f32.mrb[0].mxu0
    %2684 = vdwg.mxu0
    %v2686 = vsel %vm1440, %v2610, 0
    %2688 = vmatprep.subr.bf16.mxu0 0
    %2689 = vmatpush1.bf16.msra.mxu0 %v2626
    %2690 = vmatprep.subr.bf16.mxu0 0
    %2691 = vmatpush1.bf16.msra.mxu0 0
    %2692 = vmatprep.subr.bf16.mxu0 0
    %2693 = vmatpush1.bf16.msra.mxu0 0
    %2694 = vmatprep.subr.bf16.mxu0 0
    %2695 = vmatpush1.bf16.msra.mxu0 0
    %2696 = vmatprep.subr.bf16.mxu0 0
    %2697 = vmatpush1.bf16.msra.mxu0 0
    %2698 = vmatprep.subr.bf16.mxu0 0
    %2699 = vmatpush1.bf16.msra.mxu0 0
    %2700 = vmatprep.subr.bf16.mxu0 0
    %2701 = vmatpush1.bf16.msra.mxu0 0
    %2702 = vmatprep.subr.bf16.mxu0 0
    %2703 = vmatpush1.bf16.msra.mxu0 0
    %2704 = vmatprep.subr.bf16.mxu0 0
    %2705 = vmatpush1.bf16.msra.mxu0 0
    %2706 = vmatprep.subr.bf16.mxu0 0
    %2707 = vmatpush1.bf16.msra.mxu0 0
    %2708 = vmatprep.subr.bf16.mxu0 0
    %2709 = vmatpush1.bf16.msra.mxu0 0
    %2710 = vmatprep.subr.bf16.mxu0 0
    %2711 = vmatpush1.bf16.msra.mxu0 0
    %2712 = vmatprep.subr.bf16.mxu0 0
    %2713 = vmatpush1.bf16.msra.mxu0 0
    %2714 = vmatprep.subr.bf16.mxu0 0
    %2715 = vmatpush1.bf16.msra.mxu0 0
    %2716 = vmatprep.subr.bf16.mxu0 0
    %2717 = vmatpush1.bf16.msra.mxu0 0
    %2718 = vmatprep.subr.bf16.mxu0 0
    %2719 = vmatpush1.bf16.msra.mxu0 0
    %2720 = vmatprep.mubr.bf16.mxu0 0
    %2721 = vmatmul.mubr.bf16.gmra.mrb[0].mxu0 %v2686
    %v2722 = vpop.f32.mrb[0].mxu0
    %v2723 = vadd.f32 0.0, %v2722
    %v2724 = vpop.f32.mrb[0].mxu0
    %v2725 = vpop.f32.mrb[0].mxu0
    %v2726 = vadd.f32 0.0, %v2725
    %v2727 = vpop.f32.mrb[0].mxu0
    %2728 = vdwg.mxu0
    %v2730 = vsel %vm1440, %v2611, 0
    %2732 = vmatprep.subr.bf16.mxu0 0
    %2733 = vmatpush1.bf16.msra.mxu0 %v2627
    %2734 = vmatprep.subr.bf16.mxu0 0
    %2735 = vmatpush1.bf16.msra.mxu0 0
    %2736 = vmatprep.subr.bf16.mxu0 0
    %2737 = vmatpush1.bf16.msra.mxu0 0
    %2738 = vmatprep.subr.bf16.mxu0 0
    %2739 = vmatpush1.bf16.msra.mxu0 0
    %2740 = vmatprep.subr.bf16.mxu0 0
    %2741 = vmatpush1.bf16.msra.mxu0 0
    %2742 = vmatprep.subr.bf16.mxu0 0
    %2743 = vmatpush1.bf16.msra.mxu0 0
    %2744 = vmatprep.subr.bf16.mxu0 0
    %2745 = vmatpush1.bf16.msra.mxu0 0
    %2746 = vmatprep.subr.bf16.mxu0 0
    %2747 = vmatpush1.bf16.msra.mxu0 0
    %2748 = vmatprep.subr.bf16.mxu0 0
    %2749 = vmatpush1.bf16.msra.mxu0 0
    %2750 = vmatprep.subr.bf16.mxu0 0
    %2751 = vmatpush1.bf16.msra.mxu0 0
    %2752 = vmatprep.subr.bf16.mxu0 0
    %2753 = vmatpush1.bf16.msra.mxu0 0
    %2754 = vmatprep.subr.bf16.mxu0 0
    %2755 = vmatpush1.bf16.msra.mxu0 0
    %2756 = vmatprep.subr.bf16.mxu0 0
    %2757 = vmatpush1.bf16.msra.mxu0 0
    %2758 = vmatprep.subr.bf16.mxu0 0
    %2759 = vmatpush1.bf16.msra.mxu0 0
    %2760 = vmatprep.subr.bf16.mxu0 0
    %2761 = vmatpush1.bf16.msra.mxu0 0
    %2762 = vmatprep.subr.bf16.mxu0 0
    %2763 = vmatpush1.bf16.msra.mxu0 0
    %2764 = vmatprep.mubr.bf16.mxu0 0
    %2765 = vmatmul.mubr.bf16.gmra.mrb[0].mxu0 %v2730
    %v2766 = vpop.f32.mrb[0].mxu0
    %v2767 = vadd.f32 0.0, %v2766
    %v2768 = vpop.f32.mrb[0].mxu0
    %v2769 = vpop.f32.mrb[0].mxu0
    %v2770 = vadd.f32 0.0, %v2769
    %v2771 = vpop.f32.mrb[0].mxu0
    %2772 = vdwg.mxu0
    %v2774 = vsel %vm1440, %v2612, 0
    %2776 = vmatprep.subr.bf16.mxu0 0
    %2777 = vmatpush1.bf16.msra.mxu0 %v2628
    %2778 = vmatprep.subr.bf16.mxu0 0
    %2779 = vmatpush1.bf16.msra.mxu0 0
    %2780 = vmatprep.subr.bf16.mxu0 0
    %2781 = vmatpush1.bf16.msra.mxu0 0
    %2782 = vmatprep.subr.bf16.mxu0 0
    %2783 = vmatpush1.bf16.msra.mxu0 0
    %2784 = vmatprep.subr.bf16.mxu0 0
    %2785 = vmatpush1.bf16.msra.mxu0 0
    %2786 = vmatprep.subr.bf16.mxu0 0
    %2787 = vmatpush1.bf16.msra.mxu0 0
    %2788 = vmatprep.subr.bf16.mxu0 0
    %2789 = vmatpush1.bf16.msra.mxu0 0
    %2790 = vmatprep.subr.bf16.mxu0 0
    %2791 = vmatpush1.bf16.msra.mxu0 0
    %2792 = vmatprep.subr.bf16.mxu0 0
    %2793 = vmatpush1.bf16.msra.mxu0 0
    %2794 = vmatprep.subr.bf16.mxu0 0
    %2795 = vmatpush1.bf16.msra.mxu0 0
    %2796 = vmatprep.subr.bf16.mxu0 0
    %2797 = vmatpush1.bf16.msra.mxu0 0
    %2798 = vmatprep.subr.bf16.mxu0 0
    %2799 = vmatpush1.bf16.msra.mxu0 0
    %2800 = vmatprep.subr.bf16.mxu0 0
    %2801 = vmatpush1.bf16.msra.mxu0 0
    %2802 = vmatprep.subr.bf16.mxu0 0
    %2803 = vmatpush1.bf16.msra.mxu0 0
    %2804 = vmatprep.subr.bf16.mxu0 0
    %2805 = vmatpush1.bf16.msra.mxu0 0
    %2806 = vmatprep.subr.bf16.mxu0 0
    %2807 = vmatpush1.bf16.msra.mxu0 0
    %2808 = vmatprep.mubr.bf16.mxu0 0
    %2809 = vmatmul.mubr.bf16.gmra.mrb[0].mxu0 %v2774
    %v2810 = vpop.f32.mrb[0].mxu0
    %v2811 = vadd.f32 0.0, %v2810
    %v2812 = vpop.f32.mrb[0].mxu0
    %v2813 = vpop.f32.mrb[0].mxu0
    %v2814 = vadd.f32 0.0, %v2813
    %v2815 = vpop.f32.mrb[0].mxu0
    %2816 = vdwg.mxu0
    %v2818 = vsel %vm1440, %v2613, 0
    %2820 = vmatprep.subr.bf16.mxu0 0
    %2821 = vmatpush1.bf16.msra.mxu0 %v2629
    %2822 = vmatprep.subr.bf16.mxu0 0
    %2823 = vmatpush1.bf16.msra.mxu0 0
    %2824 = vmatprep.subr.bf16.mxu0 0
    %2825 = vmatpush1.bf16.msra.mxu0 0
    %2826 = vmatprep.subr.bf16.mxu0 0
    %2827 = vmatpush1.bf16.msra.mxu0 0
    %2828 = vmatprep.subr.bf16.mxu0 0
    %2829 = vmatpush1.bf16.msra.mxu0 0
    %2830 = vmatprep.subr.bf16.mxu0 0
    %2831 = vmatpush1.bf16.msra.mxu0 0
    %2832 = vmatprep.subr.bf16.mxu0 0
    %2833 = vmatpush1.bf16.msra.mxu0 0
    %2834 = vmatprep.subr.bf16.mxu0 0
    %2835 = vmatpush1.bf16.msra.mxu0 0
    %2836 = vmatprep.subr.bf16.mxu0 0
    %2837 = vmatpush1.bf16.msra.mxu0 0
    %2838 = vmatprep.subr.bf16.mxu0 0
    %2839 = vmatpush1.bf16.msra.mxu0 0
    %2840 = vmatprep.subr.bf16.mxu0 0
    %2841 = vmatpush1.bf16.msra.mxu0 0
    %2842 = vmatprep.subr.bf16.mxu0 0
    %2843 = vmatpush1.bf16.msra.mxu0 0
    %2844 = vmatprep.subr.bf16.mxu0 0
    %2845 = vmatpush1.bf16.msra.mxu0 0
    %2846 = vmatprep.subr.bf16.mxu0 0
    %2847 = vmatpush1.bf16.msra.mxu0 0
    %2848 = vmatprep.subr.bf16.mxu0 0
    %2849 = vmatpush1.bf16.msra.mxu0 0
    %2850 = vmatprep.subr.bf16.mxu0 0
    %2851 = vmatpush1.bf16.msra.mxu0 0
    %2852 = vmatprep.mubr.bf16.mxu0 0
    %2853 = vmatmul.mubr.bf16.gmra.mrb[0].mxu0 %v2818
    %v2854 = vpop.f32.mrb[0].mxu0
    %v2855 = vadd.f32 0.0, %v2854
    %v2856 = vpop.f32.mrb[0].mxu0
    %v2857 = vpop.f32.mrb[0].mxu0
    %v2858 = vadd.f32 0.0, %v2857
    %v2859 = vpop.f32.mrb[0].mxu0
    %2860 = vdwg.mxu0
    %v2862 = vsel %vm1440, %v2614, 0
    %2864 = vmatprep.subr.bf16.mxu0 0
    %2865 = vmatpush1.bf16.msra.mxu0 %v2630
    %2866 = vmatprep.subr.bf16.mxu0 0
    %2867 = vmatpush1.bf16.msra.mxu0 0
    %2868 = vmatprep.subr.bf16.mxu0 0
    %2869 = vmatpush1.bf16.msra.mxu0 0
    %2870 = vmatprep.subr.bf16.mxu0 0
    %2871 = vmatpush1.bf16.msra.mxu0 0
    %2872 = vmatprep.subr.bf16.mxu0 0
    %2873 = vmatpush1.bf16.msra.mxu0 0
    %2874 = vmatprep.subr.bf16.mxu0 0
    %2875 = vmatpush1.bf16.msra.mxu0 0
    %2876 = vmatprep.subr.bf16.mxu0 0
    %2877 = vmatpush1.bf16.msra.mxu0 0
    %2878 = vmatprep.subr.bf16.mxu0 0
    %2879 = vmatpush1.bf16.msra.mxu0 0
    %2880 = vmatprep.subr.bf16.mxu0 0
    %2881 = vmatpush1.bf16.msra.mxu0 0
    %2882 = vmatprep.subr.bf16.mxu0 0
    %2883 = vmatpush1.bf16.msra.mxu0 0
    %2884 = vmatprep.subr.bf16.mxu0 0
    %2885 = vmatpush1.bf16.msra.mxu0 0
    %2886 = vmatprep.subr.bf16.mxu0 0
    %2887 = vmatpush1.bf16.msra.mxu0 0
    %2888 = vmatprep.subr.bf16.mxu0 0
    %2889 = vmatpush1.bf16.msra.mxu0 0
    %2890 = vmatprep.subr.bf16.mxu0 0
    %2891 = vmatpush1.bf16.msra.mxu0 0
    %2892 = vmatprep.subr.bf16.mxu0 0
    %2893 = vmatpush1.bf16.msra.mxu0 0
    %2894 = vmatprep.subr.bf16.mxu0 0
    %2895 = vmatpush1.bf16.msra.mxu0 0
    %2896 = vmatprep.mubr.bf16.mxu0 0
    %2897 = vmatmul.mubr.bf16.gmra.mrb[0].mxu0 %v2862
    %v2898 = vpop.f32.mrb[0].mxu0
    %v2899 = vadd.f32 0.0, %v2898
    %v2900 = vpop.f32.mrb[0].mxu0
    %v2901 = vpop.f32.mrb[0].mxu0
    %v2902 = vadd.f32 0.0, %v2901
    %v2903 = vpop.f32.mrb[0].mxu0
    %2904 = vdwg.mxu0
    %v2906 = vsel %vm1440, %v2615, 0
    %2908 = vmatprep.subr.bf16.mxu0 0
    %2909 = vmatpush1.bf16.msra.mxu0 %v2631
    %2910 = vmatprep.subr.bf16.mxu0 0
    %2911 = vmatpush1.bf16.msra.mxu0 0
    %2912 = vmatprep.subr.bf16.mxu0 0
    %2913 = vmatpush1.bf16.msra.mxu0 0
    %2914 = vmatprep.subr.bf16.mxu0 0
    %2915 = vmatpush1.bf16.msra.mxu0 0
    %2916 = vmatprep.subr.bf16.mxu0 0
    %2917 = vmatpush1.bf16.msra.mxu0 0
    %2918 = vmatprep.subr.bf16.mxu0 0
    %2919 = vmatpush1.bf16.msra.mxu0 0
    %2920 = vmatprep.subr.bf16.mxu0 0
    %2921 = vmatpush1.bf16.msra.mxu0 0
    %2922 = vmatprep.subr.bf16.mxu0 0
    %2923 = vmatpush1.bf16.msra.mxu0 0
    %2924 = vmatprep.subr.bf16.mxu0 0
    %2925 = vmatpush1.bf16.msra.mxu0 0
    %2926 = vmatprep.subr.bf16.mxu0 0
    %2927 = vmatpush1.bf16.msra.mxu0 0
    %2928 = vmatprep.subr.bf16.mxu0 0
    %2929 = vmatpush1.bf16.msra.mxu0 0
    %2930 = vmatprep.subr.bf16.mxu0 0
    %2931 = vmatpush1.bf16.msra.mxu0 0
    %2932 = vmatprep.subr.bf16.mxu0 0
    %2933 = vmatpush1.bf16.msra.mxu0 0
    %2934 = vmatprep.subr.bf16.mxu0 0
    %2935 = vmatpush1.bf16.msra.mxu0 0
    %2936 = vmatprep.subr.bf16.mxu0 0
    %2937 = vmatpush1.bf16.msra.mxu0 0
    %2938 = vmatprep.subr.bf16.mxu0 0
    %2939 = vmatpush1.bf16.msra.mxu0 0
    %2940 = vmatprep.mubr.bf16.mxu0 0
    %2941 = vmatmul.mubr.bf16.gmra.mrb[0].mxu0 %v2906
    %v2942 = vpop.f32.mrb[0].mxu0
    %v2943 = vadd.f32 0.0, %v2942
    %v2944 = vpop.f32.mrb[0].mxu0
    %v2945 = vpop.f32.mrb[0].mxu0
    %v2946 = vadd.f32 0.0, %v2945
    %v2947 = vpop.f32.mrb[0].mxu0
    %2948 = vdwg.mxu0
    %v2950 = vsel %vm1440, %v2616, 0
    %2952 = vmatprep.subr.bf16.mxu0 0
    %2953 = vmatpush1.bf16.msra.mxu0 %v2632
    %2954 = vmatprep.subr.bf16.mxu0 0
    %2955 = vmatpush1.bf16.msra.mxu0 0
    %2956 = vmatprep.subr.bf16.mxu0 0
    %2957 = vmatpush1.bf16.msra.mxu0 0
    %2958 = vmatprep.subr.bf16.mxu0 0
    %2959 = vmatpush1.bf16.msra.mxu0 0
    %2960 = vmatprep.subr.bf16.mxu0 0
    %2961 = vmatpush1.bf16.msra.mxu0 0
    %2962 = vmatprep.subr.bf16.mxu0 0
    %2963 = vmatpush1.bf16.msra.mxu0 0
    %2964 = vmatprep.subr.bf16.mxu0 0
    %2965 = vmatpush1.bf16.msra.mxu0 0
    %2966 = vmatprep.subr.bf16.mxu0 0
    %2967 = vmatpush1.bf16.msra.mxu0 0
    %2968 = vmatprep.subr.bf16.mxu0 0
    %2969 = vmatpush1.bf16.msra.mxu0 0
    %2970 = vmatprep.subr.bf16.mxu0 0
    %2971 = vmatpush1.bf16.msra.mxu0 0
    %2972 = vmatprep.subr.bf16.mxu0 0
    %2973 = vmatpush1.bf16.msra.mxu0 0
    %2974 = vmatprep.subr.bf16.mxu0 0
    %2975 = vmatpush1.bf16.msra.mxu0 0
    %2976 = vmatprep.subr.bf16.mxu0 0
    %2977 = vmatpush1.bf16.msra.mxu0 0
    %2978 = vmatprep.subr.bf16.mxu0 0
    %2979 = vmatpush1.bf16.msra.mxu0 0
    %2980 = vmatprep.subr.bf16.mxu0 0
    %2981 = vmatpush1.bf16.msra.mxu0 0
    %2982 = vmatprep.subr.bf16.mxu0 0
    %2983 = vmatpush1.bf16.msra.mxu0 0
    %2984 = vmatprep.mubr.bf16.mxu0 0
    %2985 = vmatmul.mubr.bf16.gmra.mrb[0].mxu0 %v2950
    %v2986 = vpop.f32.mrb[0].mxu0
    %v2987 = vadd.f32 0.0, %v2986
    %v2988 = vpop.f32.mrb[0].mxu0
    %v2989 = vpop.f32.mrb[0].mxu0
    %v2990 = vadd.f32 0.0, %v2989
    %v2991 = vpop.f32.mrb[0].mxu0
    %2992 = vdwg.mxu0
    %v2994 = vsel %vm1440, %v2617, 0
    %2996 = vmatprep.subr.bf16.mxu0 0
    %2997 = vmatpush1.bf16.msra.mxu0 %v2633
    %2998 = vmatprep.subr.bf16.mxu0 0
    %2999 = vmatpush1.bf16.msra.mxu0 0
    %3000 = vmatprep.subr.bf16.mxu0 0
    %3001 = vmatpush1.bf16.msra.mxu0 0
    %3002 = vmatprep.subr.bf16.mxu0 0
    %3003 = vmatpush1.bf16.msra.mxu0 0
    %3004 = vmatprep.subr.bf16.mxu0 0
    %3005 = vmatpush1.bf16.msra.mxu0 0
    %3006 = vmatprep.subr.bf16.mxu0 0
    %3007 = vmatpush1.bf16.msra.mxu0 0
    %3008 = vmatprep.subr.bf16.mxu0 0
    %3009 = vmatpush1.bf16.msra.mxu0 0
    %3010 = vmatprep.subr.bf16.mxu0 0
    %3011 = vmatpush1.bf16.msra.mxu0 0
    %3012 = vmatprep.subr.bf16.mxu0 0
    %3013 = vmatpush1.bf16.msra.mxu0 0
    %3014 = vmatprep.subr.bf16.mxu0 0
    %3015 = vmatpush1.bf16.msra.mxu0 0
    %3016 = vmatprep.subr.bf16.mxu0 0
    %3017 = vmatpush1.bf16.msra.mxu0 0
    %3018 = vmatprep.subr.bf16.mxu0 0
    %3019 = vmatpush1.bf16.msra.mxu0 0
    %3020 = vmatprep.subr.bf16.mxu0 0
    %3021 = vmatpush1.bf16.msra.mxu0 0
    %3022 = vmatprep.subr.bf16.mxu0 0
    %3023 = vmatpush1.bf16.msra.mxu0 0
    %3024 = vmatprep.subr.bf16.mxu0 0
    %3025 = vmatpush1.bf16.msra.mxu0 0
    %3026 = vmatprep.subr.bf16.mxu0 0
    %3027 = vmatpush1.bf16.msra.mxu0 0
    %3028 = vmatprep.mubr.bf16.mxu0 0
    %3029 = vmatmul.mubr.bf16.gmra.mrb[0].mxu0 %v2994
    %v3030 = vpop.f32.mrb[0].mxu0
    %v3031 = vadd.f32 0.0, %v3030
    %v3032 = vpop.f32.mrb[0].mxu0
    %v3033 = vpop.f32.mrb[0].mxu0
    %v3034 = vadd.f32 0.0, %v3033
    %v3035 = vpop.f32.mrb[0].mxu0
    %3036 = vdwg.mxu0
    %v3038 = vsel %vm1440, %v2618, 0
    %3040 = vmatprep.subr.bf16.mxu0 0
    %3041 = vmatpush1.bf16.msra.mxu0 %v2634
    %3042 = vmatprep.subr.bf16.mxu0 0
    %3043 = vmatpush1.bf16.msra.mxu0 0
    %3044 = vmatprep.subr.bf16.mxu0 0
    %3045 = vmatpush1.bf16.msra.mxu0 0
    %3046 = vmatprep.subr.bf16.mxu0 0
    %3047 = vmatpush1.bf16.msra.mxu0 0
    %3048 = vmatprep.subr.bf16.mxu0 0
    %3049 = vmatpush1.bf16.msra.mxu0 0
    %3050 = vmatprep.subr.bf16.mxu0 0
    %3051 = vmatpush1.bf16.msra.mxu0 0
    %3052 = vmatprep.subr.bf16.mxu0 0
    %3053 = vmatpush1.bf16.msra.mxu0 0
    %3054 = vmatprep.subr.bf16.mxu0 0
    %3055 = vmatpush1.bf16.msra.mxu0 0
    %3056 = vmatprep.subr.bf16.mxu0 0
    %3057 = vmatpush1.bf16.msra.mxu0 0
    %3058 = vmatprep.subr.bf16.mxu0 0
    %3059 = vmatpush1.bf16.msra.mxu0 0
    %3060 = vmatprep.subr.bf16.mxu0 0
    %3061 = vmatpush1.bf16.msra.mxu0 0
    %3062 = vmatprep.subr.bf16.mxu0 0
    %3063 = vmatpush1.bf16.msra.mxu0 0
    %3064 = vmatprep.subr.bf16.mxu0 0
    %3065 = vmatpush1.bf16.msra.mxu0 0
    %3066 = vmatprep.subr.bf16.mxu0 0
    %3067 = vmatpush1.bf16.msra.mxu0 0
    %3068 = vmatprep.subr.bf16.mxu0 0
    %3069 = vmatpush1.bf16.msra.mxu0 0
    %3070 = vmatprep.subr.bf16.mxu0 0
    %3071 = vmatpush1.bf16.msra.mxu0 0
    %3072 = vmatprep.mubr.bf16.mxu0 0
    %3073 = vmatmul.mubr.bf16.gmra.mrb[0].mxu0 %v3038
    %v3074 = vpop.f32.mrb[0].mxu0
    %v3075 = vadd.f32 0.0, %v3074
    %v3076 = vpop.f32.mrb[0].mxu0
    %v3077 = vpop.f32.mrb[0].mxu0
    %v3078 = vadd.f32 0.0, %v3077
    %v3079 = vpop.f32.mrb[0].mxu0
    %3080 = vdwg.mxu0
    %v3082 = vsel %vm1440, %v2619, 0
    %3084 = vmatprep.subr.bf16.mxu0 0
    %3085 = vmatpush1.bf16.msra.mxu0 %v2635
    %3086 = vmatprep.subr.bf16.mxu0 0
    %3087 = vmatpush1.bf16.msra.mxu0 0
    %3088 = vmatprep.subr.bf16.mxu0 0
    %3089 = vmatpush1.bf16.msra.mxu0 0
    %3090 = vmatprep.subr.bf16.mxu0 0
    %3091 = vmatpush1.bf16.msra.mxu0 0
    %3092 = vmatprep.subr.bf16.mxu0 0
    %3093 = vmatpush1.bf16.msra.mxu0 0
    %3094 = vmatprep.subr.bf16.mxu0 0
    %3095 = vmatpush1.bf16.msra.mxu0 0
    %3096 = vmatprep.subr.bf16.mxu0 0
    %3097 = vmatpush1.bf16.msra.mxu0 0
    %3098 = vmatprep.subr.bf16.mxu0 0
    %3099 = vmatpush1.bf16.msra.mxu0 0
    %3100 = vmatprep.subr.bf16.mxu0 0
    %3101 = vmatpush1.bf16.msra.mxu0 0
    %3102 = vmatprep.subr.bf16.mxu0 0
    %3103 = vmatpush1.bf16.msra.mxu0 0
    %3104 = vmatprep.subr.bf16.mxu0 0
    %3105 = vmatpush1.bf16.msra.mxu0 0
    %3106 = vmatprep.subr.bf16.mxu0 0
    %3107 = vmatpush1.bf16.msra.mxu0 0
    %3108 = vmatprep.subr.bf16.mxu0 0
    %3109 = vmatpush1.bf16.msra.mxu0 0
    %3110 = vmatprep.subr.bf16.mxu0 0
    %3111 = vmatpush1.bf16.msra.mxu0 0
    %3112 = vmatprep.subr.bf16.mxu0 0
    %3113 = vmatpush1.bf16.msra.mxu0 0
    %3114 = vmatprep.subr.bf16.mxu0 0
    %3115 = vmatpush1.bf16.msra.mxu0 0
    %3116 = vmatprep.mubr.bf16.mxu0 0
    %3117 = vmatmul.mubr.bf16.gmra.mrb[0].mxu0 %v3082
    %v3118 = vpop.f32.mrb[0].mxu0
    %v3119 = vadd.f32 0.0, %v3118
    %v3120 = vpop.f32.mrb[0].mxu0
    %v3121 = vpop.f32.mrb[0].mxu0
    %v3122 = vadd.f32 0.0, %v3121
    %v3123 = vpop.f32.mrb[0].mxu0
    %3124 = vdwg.mxu0
    %v3126 = vsel %vm1440, %v2620, 0
    %3128 = vmatprep.subr.bf16.mxu0 0
    %3129 = vmatpush1.bf16.msra.mxu0 %v2636
    %3130 = vmatprep.subr.bf16.mxu0 0
    %3131 = vmatpush1.bf16.msra.mxu0 0
    %3132 = vmatprep.subr.bf16.mxu0 0
    %3133 = vmatpush1.bf16.msra.mxu0 0
    %3134 = vmatprep.subr.bf16.mxu0 0
    %3135 = vmatpush1.bf16.msra.mxu0 0
    %3136 = vmatprep.subr.bf16.mxu0 0
    %3137 = vmatpush1.bf16.msra.mxu0 0
    %3138 = vmatprep.subr.bf16.mxu0 0
    %3139 = vmatpush1.bf16.msra.mxu0 0
    %3140 = vmatprep.subr.bf16.mxu0 0
    %3141 = vmatpush1.bf16.msra.mxu0 0
    %3142 = vmatprep.subr.bf16.mxu0 0
    %3143 = vmatpush1.bf16.msra.mxu0 0
    %3144 = vmatprep.subr.bf16.mxu0 0
    %3145 = vmatpush1.bf16.msra.mxu0 0
    %3146 = vmatprep.subr.bf16.mxu0 0
    %3147 = vmatpush1.bf16.msra.mxu0 0
    %3148 = vmatprep.subr.bf16.mxu0 0
    %3149 = vmatpush1.bf16.msra.mxu0 0
    %3150 = vmatprep.subr.bf16.mxu0 0
    %3151 = vmatpush1.bf16.msra.mxu0 0
    %3152 = vmatprep.subr.bf16.mxu0 0
    %3153 = vmatpush1.bf16.msra.mxu0 0
    %3154 = vmatprep.subr.bf16.mxu0 0
    %3155 = vmatpush1.bf16.msra.mxu0 0
    %3156 = vmatprep.subr.bf16.mxu0 0
    %3157 = vmatpush1.bf16.msra.mxu0 0
    %3158 = vmatprep.subr.bf16.mxu0 0
    %3159 = vmatpush1.bf16.msra.mxu0 0
    %3160 = vmatprep.mubr.bf16.mxu0 0
    %3161 = vmatmul.mubr.bf16.gmra.mrb[0].mxu0 %v3126
    %v3162 = vpop.f32.mrb[0].mxu0
    %v3163 = vadd.f32 0.0, %v3162
    %v3164 = vpop.f32.mrb[0].mxu0
    %v3165 = vpop.f32.mrb[0].mxu0
    %v3166 = vadd.f32 0.0, %v3165
    %v3167 = vpop.f32.mrb[0].mxu0
    %3168 = vdwg.mxu0
    %v3170 = vsel %vm1440, %v2621, 0
    %3172 = vmatprep.subr.bf16.mxu0 0
    %3173 = vmatpush1.bf16.msra.mxu0 %v2637
    %3174 = vmatprep.subr.bf16.mxu0 0
    %3175 = vmatpush1.bf16.msra.mxu0 0
    %3176 = vmatprep.subr.bf16.mxu0 0
    %3177 = vmatpush1.bf16.msra.mxu0 0
    %3178 = vmatprep.subr.bf16.mxu0 0
    %3179 = vmatpush1.bf16.msra.mxu0 0
    %3180 = vmatprep.subr.bf16.mxu0 0
    %3181 = vmatpush1.bf16.msra.mxu0 0
    %3182 = vmatprep.subr.bf16.mxu0 0
    %3183 = vmatpush1.bf16.msra.mxu0 0
    %3184 = vmatprep.subr.bf16.mxu0 0
    %3185 = vmatpush1.bf16.msra.mxu0 0
    %3186 = vmatprep.subr.bf16.mxu0 0
    %3187 = vmatpush1.bf16.msra.mxu0 0
    %3188 = vmatprep.subr.bf16.mxu0 0
    %3189 = vmatpush1.bf16.msra.mxu0 0
    %3190 = vmatprep.subr.bf16.mxu0 0
    %3191 = vmatpush1.bf16.msra.mxu0 0
    %3192 = vmatprep.subr.bf16.mxu0 0
    %3193 = vmatpush1.bf16.msra.mxu0 0
    %3194 = vmatprep.subr.bf16.mxu0 0
    %3195 = vmatpush1.bf16.msra.mxu0 0
    %3196 = vmatprep.subr.bf16.mxu0 0
    %3197 = vmatpush1.bf16.msra.mxu0 0
    %3198 = vmatprep.subr.bf16.mxu0 0
    %3199 = vmatpush1.bf16.msra.mxu0 0
    %3200 = vmatprep.subr.bf16.mxu0 0
    %3201 = vmatpush1.bf16.msra.mxu0 0
    %3202 = vmatprep.subr.bf16.mxu0 0
    %3203 = vmatpush1.bf16.msra.mxu0 0
    %3204 = vmatprep.mubr.bf16.mxu0 0
    %3205 = vmatmul.mubr.bf16.gmra.mrb[0].mxu0 %v3170
    %v3206 = vpop.f32.mrb[0].mxu0
    %v3207 = vadd.f32 0.0, %v3206
    %v3208 = vpop.f32.mrb[0].mxu0
    %v3209 = vpop.f32.mrb[0].mxu0
    %v3210 = vadd.f32 0.0, %v3209
    %v3211 = vpop.f32.mrb[0].mxu0
    %3212 = vdwg.mxu0
    %v3214 = vsel %vm1440, %v2622, 0
    %3216 = vmatprep.subr.bf16.mxu0 0
    %3217 = vmatpush1.bf16.msra.mxu0 %v2638
    %3218 = vmatprep.subr.bf16.mxu0 0
    %3219 = vmatpush1.bf16.msra.mxu0 0
    %3220 = vmatprep.subr.bf16.mxu0 0
    %3221 = vmatpush1.bf16.msra.mxu0 0
    %3222 = vmatprep.subr.bf16.mxu0 0
    %3223 = vmatpush1.bf16.msra.mxu0 0
    %3224 = vmatprep.subr.bf16.mxu0 0
    %3225 = vmatpush1.bf16.msra.mxu0 0
    %3226 = vmatprep.subr.bf16.mxu0 0
    %3227 = vmatpush1.bf16.msra.mxu0 0
    %3228 = vmatprep.subr.bf16.mxu0 0
    %3229 = vmatpush1.bf16.msra.mxu0 0
    %3230 = vmatprep.subr.bf16.mxu0 0
    %3231 = vmatpush1.bf16.msra.mxu0 0
    %3232 = vmatprep.subr.bf16.mxu0 0
    %3233 = vmatpush1.bf16.msra.mxu0 0
    %3234 = vmatprep.subr.bf16.mxu0 0
    %3235 = vmatpush1.bf16.msra.mxu0 0
    %3236 = vmatprep.subr.bf16.mxu0 0
    %3237 = vmatpush1.bf16.msra.mxu0 0
    %3238 = vmatprep.subr.bf16.mxu0 0
    %3239 = vmatpush1.bf16.msra.mxu0 0
    %3240 = vmatprep.subr.bf16.mxu0 0
    %3241 = vmatpush1.bf16.msra.mxu0 0
    %3242 = vmatprep.subr.bf16.mxu0 0
    %3243 = vmatpush1.bf16.msra.mxu0 0
    %3244 = vmatprep.subr.bf16.mxu0 0
    %3245 = vmatpush1.bf16.msra.mxu0 0
    %3246 = vmatprep.subr.bf16.mxu0 0
    %3247 = vmatpush1.bf16.msra.mxu0 0
    %3248 = vmatprep.mubr.bf16.mxu0 0
    %3249 = vmatmul.mubr.bf16.gmra.mrb[0].mxu0 %v3214
    %v3250 = vpop.f32.mrb[0].mxu0
    %v3251 = vadd.f32 0.0, %v3250
    %v3252 = vpop.f32.mrb[0].mxu0
    %v3253 = vpop.f32.mrb[0].mxu0
    %v3254 = vadd.f32 0.0, %v3253
    %v3255 = vpop.f32.mrb[0].mxu0
    %3256 = vdwg.mxu0
    %v3258 = vsel %vm1440, %v2623, 0
    %3260 = vmatprep.subr.bf16.mxu0 0
    %3261 = vmatpush1.bf16.msra.mxu0 %v2639
    %3262 = vmatprep.subr.bf16.mxu0 0
    %3263 = vmatpush1.bf16.msra.mxu0 0
    %3264 = vmatprep.subr.bf16.mxu0 0
    %3265 = vmatpush1.bf16.msra.mxu0 0
    %3266 = vmatprep.subr.bf16.mxu0 0
    %3267 = vmatpush1.bf16.msra.mxu0 0
    %3268 = vmatprep.subr.bf16.mxu0 0
    %3269 = vmatpush1.bf16.msra.mxu0 0
    %3270 = vmatprep.subr.bf16.mxu0 0
    %3271 = vmatpush1.bf16.msra.mxu0 0
    %3272 = vmatprep.subr.bf16.mxu0 0
    %3273 = vmatpush1.bf16.msra.mxu0 0
    %3274 = vmatprep.subr.bf16.mxu0 0
    %3275 = vmatpush1.bf16.msra.mxu0 0
    %3276 = vmatprep.subr.bf16.mxu0 0
    %3277 = vmatpush1.bf16.msra.mxu0 0
    %3278 = vmatprep.subr.bf16.mxu0 0
    %3279 = vmatpush1.bf16.msra.mxu0 0
    %3280 = vmatprep.subr.bf16.mxu0 0
    %3281 = vmatpush1.bf16.msra.mxu0 0
    %3282 = vmatprep.subr.bf16.mxu0 0
    %3283 = vmatpush1.bf16.msra.mxu0 0
    %3284 = vmatprep.subr.bf16.mxu0 0
    %3285 = vmatpush1.bf16.msra.mxu0 0
    %3286 = vmatprep.subr.bf16.mxu0 0
    %3287 = vmatpush1.bf16.msra.mxu0 0
    %3288 = vmatprep.subr.bf16.mxu0 0
    %3289 = vmatpush1.bf16.msra.mxu0 0
    %3290 = vmatprep.subr.bf16.mxu0 0
    %3291 = vmatpush1.bf16.msra.mxu0 0
    %3292 = vmatprep.mubr.bf16.mxu0 0
    %3293 = vmatmul.mubr.bf16.gmra.mrb[0].mxu0 %v3258
    %v3294 = vpop.f32.mrb[0].mxu0
    %v3295 = vadd.f32 0.0, %v3294
    %v3296 = vpop.f32.mrb[0].mxu0
    %v3297 = vpop.f32.mrb[0].mxu0
    %v3298 = vadd.f32 0.0, %v3297
    %v3299 = vpop.f32.mrb[0].mxu0
    %3300 = vdwg.mxu0
    %v3302 = vsel %vm1440, %v2624, 0
    %3304 = vmatprep.subr.bf16.mxu0 0
    %3305 = vmatpush1.bf16.msra.mxu0 %v2640
    %3306 = vmatprep.subr.bf16.mxu0 0
    %3307 = vmatpush1.bf16.msra.mxu0 0
    %3308 = vmatprep.subr.bf16.mxu0 0
    %3309 = vmatpush1.bf16.msra.mxu0 0
    %3310 = vmatprep.subr.bf16.mxu0 0
    %3311 = vmatpush1.bf16.msra.mxu0 0
    %3312 = vmatprep.subr.bf16.mxu0 0
    %3313 = vmatpush1.bf16.msra.mxu0 0
    %3314 = vmatprep.subr.bf16.mxu0 0
    %3315 = vmatpush1.bf16.msra.mxu0 0
    %3316 = vmatprep.subr.bf16.mxu0 0
    %3317 = vmatpush1.bf16.msra.mxu0 0
    %3318 = vmatprep.subr.bf16.mxu0 0
    %3319 = vmatpush1.bf16.msra.mxu0 0
    %3320 = vmatprep.subr.bf16.mxu0 0
    %3321 = vmatpush1.bf16.msra.mxu0 0
    %3322 = vmatprep.subr.bf16.mxu0 0
    %3323 = vmatpush1.bf16.msra.mxu0 0
    %3324 = vmatprep.subr.bf16.mxu0 0
    %3325 = vmatpush1.bf16.msra.mxu0 0
    %3326 = vmatprep.subr.bf16.mxu0 0
    %3327 = vmatpush1.bf16.msra.mxu0 0
    %3328 = vmatprep.subr.bf16.mxu0 0
    %3329 = vmatpush1.bf16.msra.mxu0 0
    %3330 = vmatprep.subr.bf16.mxu0 0
    %3331 = vmatpush1.bf16.msra.mxu0 0
    %3332 = vmatprep.subr.bf16.mxu0 0
    %3333 = vmatpush1.bf16.msra.mxu0 0
    %3334 = vmatprep.subr.bf16.mxu0 0
    %3335 = vmatpush1.bf16.msra.mxu0 0
    %3336 = vmatprep.mubr.bf16.mxu0 0
    %3337 = vmatmul.mubr.bf16.gmra.mrb[0].mxu0 %v3302
    %v3338 = vpop.f32.mrb[0].mxu0
    %v3339 = vadd.f32 0.0, %v3338
    %v3340 = vpop.f32.mrb[0].mxu0
    %v3341 = vpop.f32.mrb[0].mxu0
    %v3342 = vadd.f32 0.0, %v3341
    %v3343 = vpop.f32.mrb[0].mxu0
    %3344 = vdwg.mxu0
    %v3345 = vld [vmem:[%s1 + $0x18] sm:$0x1]
    %v3346 = vpack.c.bf16 %v2682, %v2679
    %v3347 = vpack.c.bf16 %v2726, %v2723
    %v3348 = vpack.c.bf16 %v2770, %v2767
    %v3349 = vpack.c.bf16 %v2814, %v2811
    %v3350 = vpack.c.bf16 %v2858, %v2855
    %v3351 = vpack.c.bf16 %v2902, %v2899
    %v3352 = vpack.c.bf16 %v2946, %v2943
    %v3353 = vpack.c.bf16 %v2990, %v2987
    %v3354 = vld [vmem:[%s0 + $0xa0] sm:$0xf]
    %v3355 = vld [vmem:[%s0 + $0xa4] sm:$0xf]
    %v3358 = vunpack.c.l.b16 %v3354
    %v3359 = vunpack.c.l.b16 %v3355
    %v3360 = vpack.c.b16 %v3359, %v3358
    %v3363 = vsel %vm1440, %v3346, 0
    %v3366 = vsel %vm1440, %v3347, 0
    %v3369 = vsel %vm1440, %v3348, 0
    %v3372 = vsel %vm1440, %v3349, 0
    %v3375 = vsel %vm1440, %v3350, 0
    %v3378 = vsel %vm1440, %v3351, 0
    %v3381 = vsel %vm1440, %v3352, 0
    %v3384 = vsel %vm1440, %v3353, 0
    %3386 = vmatprep.subr.bf16.mxu0 0
    %3387 = vmatpush1.bf16.msra.mxu0 %v3360
    %3388 = vmatprep.subr.bf16.mxu0 0
    %3389 = vmatpush1.bf16.msra.mxu0 0
    %3390 = vmatprep.subr.bf16.mxu0 0
    %3391 = vmatpush1.bf16.msra.mxu0 0
    %3392 = vmatprep.subr.bf16.mxu0 0
    %3393 = vmatpush1.bf16.msra.mxu0 0
    %3394 = vmatprep.subr.bf16.mxu0 0
    %3395 = vmatpush1.bf16.msra.mxu0 0
    %3396 = vmatprep.subr.bf16.mxu0 0
    %3397 = vmatpush1.bf16.msra.mxu0 0
    %3398 = vmatprep.subr.bf16.mxu0 0
    %3399 = vmatpush1.bf16.msra.mxu0 0
    %3400 = vmatprep.subr.bf16.mxu0 0
    %3401 = vmatpush1.bf16.msra.mxu0 0
    %3402 = vmatprep.subr.bf16.mxu0 0
    %3403 = vmatpush1.bf16.msra.mxu0 0
    %3404 = vmatprep.subr.bf16.mxu0 0
    %3405 = vmatpush1.bf16.msra.mxu0 0
    %3406 = vmatprep.subr.bf16.mxu0 0
    %3407 = vmatpush1.bf16.msra.mxu0 0
    %3408 = vmatprep.subr.bf16.mxu0 0
    %3409 = vmatpush1.bf16.msra.mxu0 0
    %3410 = vmatprep.subr.bf16.mxu0 0
    %3411 = vmatpush1.bf16.msra.mxu0 0
    %3412 = vmatprep.subr.bf16.mxu0 0
    %3413 = vmatpush1.bf16.msra.mxu0 0
    %3414 = vmatprep.subr.bf16.mxu0 0
    %3415 = vmatpush1.bf16.msra.mxu0 0
    %3416 = vmatprep.subr.bf16.mxu0 0
    %3417 = vmatpush1.bf16.msra.mxu0 0
    %3418 = vmatprep.mubr.bf16.mxu0 0
    %3419 = vmatmul.mubr.bf16.gmra.mrb[0].mxu0 %v3363
    %v3420 = vpop.f32.mrb[0].mxu0
    %v3421 = vadd.f32 0.0, %v3420
    %v3422 = vpop.f32.mrb[0].mxu0
    %v3423 = vpop.f32.mrb[0].mxu0
    %v3424 = vadd.f32 0.0, %v3423
    %v3425 = vpop.f32.mrb[0].mxu0
    %3426 = vmatprep.mubr.bf16.mxu0 0
    %3427 = vmatmul.mubr.bf16.gmra.mrb[0].mxu0 %v3366
    %v3428 = vpop.f32.mrb[0].mxu0
    %v3429 = vadd.f32 0.0, %v3428
    %v3430 = vpop.f32.mrb[0].mxu0
    %v3431 = vpop.f32.mrb[0].mxu0
    %v3432 = vadd.f32 0.0, %v3431
    %v3433 = vpop.f32.mrb[0].mxu0
    %3434 = vmatprep.mubr.bf16.mxu0 0
    %3435 = vmatmul.mubr.bf16.gmra.mrb[0].mxu0 %v3369
    %v3436 = vpop.f32.mrb[0].mxu0
    %v3437 = vadd.f32 0.0, %v3436
    %v3438 = vpop.f32.mrb[0].mxu0
    %v3439 = vpop.f32.mrb[0].mxu0
    %v3440 = vadd.f32 0.0, %v3439
    %v3441 = vpop.f32.mrb[0].mxu0
    %3442 = vmatprep.mubr.bf16.mxu0 0
    %3443 = vmatmul.mubr.bf16.gmra.mrb[0].mxu0 %v3372
    %v3444 = vpop.f32.mrb[0].mxu0
    %v3445 = vadd.f32 0.0, %v3444
    %v3446 = vpop.f32.mrb[0].mxu0
    %v3447 = vpop.f32.mrb[0].mxu0
    %v3448 = vadd.f32 0.0, %v3447
    %v3449 = vpop.f32.mrb[0].mxu0
    %3450 = vmatprep.mubr.bf16.mxu0 0
    %3451 = vmatmul.mubr.bf16.gmra.mrb[0].mxu0 %v3375
    %v3452 = vpop.f32.mrb[0].mxu0
    %v3453 = vadd.f32 0.0, %v3452
    %v3454 = vpop.f32.mrb[0].mxu0
    %v3455 = vpop.f32.mrb[0].mxu0
    %v3456 = vadd.f32 0.0, %v3455
    %v3457 = vpop.f32.mrb[0].mxu0
    %3458 = vmatprep.mubr.bf16.mxu0 0
    %3459 = vmatmul.mubr.bf16.gmra.mrb[0].mxu0 %v3378
    %v3460 = vpop.f32.mrb[0].mxu0
    %v3461 = vadd.f32 0.0, %v3460
    %v3462 = vpop.f32.mrb[0].mxu0
    %v3463 = vpop.f32.mrb[0].mxu0
    %v3464 = vadd.f32 0.0, %v3463
    %v3465 = vpop.f32.mrb[0].mxu0
    %3466 = vmatprep.mubr.bf16.mxu0 0
    %3467 = vmatmul.mubr.bf16.gmra.mrb[0].mxu0 %v3381
    %v3468 = vpop.f32.mrb[0].mxu0
    %v3469 = vadd.f32 0.0, %v3468
    %v3470 = vpop.f32.mrb[0].mxu0
    %v3471 = vpop.f32.mrb[0].mxu0
    %v3472 = vadd.f32 0.0, %v3471
    %v3473 = vpop.f32.mrb[0].mxu0
    %3474 = vmatprep.mubr.bf16.mxu0 0
    %3475 = vmatmul.mubr.bf16.gmra.mrb[0].mxu0 %v3384
    %v3476 = vpop.f32.mrb[0].mxu0
    %v3477 = vadd.f32 0.0, %v3476
    %v3478 = vpop.f32.mrb[0].mxu0
    %v3479 = vpop.f32.mrb[0].mxu0
    %v3480 = vadd.f32 0.0, %v3479
    %v3481 = vpop.f32.mrb[0].mxu0
    %3482 = vdwg.mxu0
    %v3483 = vlaneseq
    %v3484 = vshrl.u32 %v3483, 7
    %v3485 = vsub.s32 0, %v3484
    %v3486 = vrot.slane %v3345, %v3485
    %v3487 = vadd.f32 %v3486, %v3421
    %v3488 = vadd.f32 %v3486, %v3424
    %v3489 = vadd.f32 %v3486, %v3429
    %v3490 = vadd.f32 %v3486, %v3432
    %v3491 = vadd.f32 %v3486, %v3437
    %v3492 = vadd.f32 %v3486, %v3440
    %v3493 = vadd.f32 %v3486, %v3445
    %v3494 = vadd.f32 %v3486, %v3448
    %v3495 = vadd.f32 %v3486, %v3453
    %v3496 = vadd.f32 %v3486, %v3456
    %v3497 = vadd.f32 %v3486, %v3461
    %v3498 = vadd.f32 %v3486, %v3464
    %v3499 = vadd.f32 %v3486, %v3469
    %v3500 = vadd.f32 %v3486, %v3472
    %v3501 = vadd.f32 %v3486, %v3477
    %v3502 = vadd.f32 %v3486, %v3480
    %v3503 = vpack.c.bf16 %v3034, %v3031
    %v3504 = vpack.c.bf16 %v3078, %v3075
    %v3505 = vpack.c.bf16 %v3122, %v3119
    %v3506 = vpack.c.bf16 %v3166, %v3163
    %v3507 = vpack.c.bf16 %v3210, %v3207
    %v3508 = vpack.c.bf16 %v3254, %v3251
    %v3509 = vpack.c.bf16 %v3298, %v3295
    %v3510 = vpack.c.bf16 %v3342, %v3339
    %v3511 = vld [vmem:[%s0 + $0xa8] sm:$0xf]
    %v3512 = vld [vmem:[%s0 + $0xac] sm:$0xf]
    %v3515 = vunpack.c.l.b16 %v3511
    %v3516 = vunpack.c.l.b16 %v3512
    %v3517 = vpack.c.b16 %v3516, %v3515
    %v3520 = vsel %vm1440, %v3503, 0
    %v3523 = vsel %vm1440, %v3504, 0
    %v3526 = vsel %vm1440, %v3505, 0
    %v3529 = vsel %vm1440, %v3506, 0
    %v3532 = vsel %vm1440, %v3507, 0
    %v3535 = vsel %vm1440, %v3508, 0
    %v3538 = vsel %vm1440, %v3509, 0
    %v3541 = vsel %vm1440, %v3510, 0
    %3543 = vmatprep.subr.bf16.mxu0 0
    %3544 = vmatpush1.bf16.msra.mxu0 %v3517
    %3545 = vmatprep.subr.bf16.mxu0 0
    %3546 = vmatpush1.bf16.msra.mxu0 0
    %3547 = vmatprep.subr.bf16.mxu0 0
    %3548 = vmatpush1.bf16.msra.mxu0 0
    %3549 = vmatprep.subr.bf16.mxu0 0
    %3550 = vmatpush1.bf16.msra.mxu0 0
    %3551 = vmatprep.subr.bf16.mxu0 0
    %3552 = vmatpush1.bf16.msra.mxu0 0
    %3553 = vmatprep.subr.bf16.mxu0 0
    %3554 = vmatpush1.bf16.msra.mxu0 0
    %3555 = vmatprep.subr.bf16.mxu0 0
    %3556 = vmatpush1.bf16.msra.mxu0 0
    %3557 = vmatprep.subr.bf16.mxu0 0
    %3558 = vmatpush1.bf16.msra.mxu0 0
    %3559 = vmatprep.subr.bf16.mxu0 0
    %3560 = vmatpush1.bf16.msra.mxu0 0
    %3561 = vmatprep.subr.bf16.mxu0 0
    %3562 = vmatpush1.bf16.msra.mxu0 0
    %3563 = vmatprep.subr.bf16.mxu0 0
    %3564 = vmatpush1.bf16.msra.mxu0 0
    %3565 = vmatprep.subr.bf16.mxu0 0
    %3566 = vmatpush1.bf16.msra.mxu0 0
    %3567 = vmatprep.subr.bf16.mxu0 0
    %3568 = vmatpush1.bf16.msra.mxu0 0
    %3569 = vmatprep.subr.bf16.mxu0 0
    %3570 = vmatpush1.bf16.msra.mxu0 0
    %3571 = vmatprep.subr.bf16.mxu0 0
    %3572 = vmatpush1.bf16.msra.mxu0 0
    %3573 = vmatprep.subr.bf16.mxu0 0
    %3574 = vmatpush1.bf16.msra.mxu0 0
    %3575 = vmatprep.mubr.bf16.mxu0 0
    %3576 = vmatmul.mubr.bf16.gmra.mrb[0].mxu0 %v3520
    %v3577 = vpop.f32.mrb[0].mxu0
    %v3578 = vadd.f32 0.0, %v3577
    %v3579 = vpop.f32.mrb[0].mxu0
    %v3580 = vpop.f32.mrb[0].mxu0
    %v3581 = vadd.f32 0.0, %v3580
    %v3582 = vpop.f32.mrb[0].mxu0
    %3583 = vmatprep.mubr.bf16.mxu0 0
    %3584 = vmatmul.mubr.bf16.gmra.mrb[0].mxu0 %v3523
    %v3585 = vpop.f32.mrb[0].mxu0
    %v3586 = vadd.f32 0.0, %v3585
    %v3587 = vpop.f32.mrb[0].mxu0
    %v3588 = vpop.f32.mrb[0].mxu0
    %v3589 = vadd.f32 0.0, %v3588
    %v3590 = vpop.f32.mrb[0].mxu0
    %3591 = vmatprep.mubr.bf16.mxu0 0
    %3592 = vmatmul.mubr.bf16.gmra.mrb[0].mxu0 %v3526
    %v3593 = vpop.f32.mrb[0].mxu0
    %v3594 = vadd.f32 0.0, %v3593
    %v3595 = vpop.f32.mrb[0].mxu0
    %v3596 = vpop.f32.mrb[0].mxu0
    %v3597 = vadd.f32 0.0, %v3596
    %v3598 = vpop.f32.mrb[0].mxu0
    %3599 = vmatprep.mubr.bf16.mxu0 0
    %3600 = vmatmul.mubr.bf16.gmra.mrb[0].mxu0 %v3529
    %v3601 = vpop.f32.mrb[0].mxu0
    %v3602 = vadd.f32 0.0, %v3601
    %v3603 = vpop.f32.mrb[0].mxu0
    %v3604 = vpop.f32.mrb[0].mxu0
    %v3605 = vadd.f32 0.0, %v3604
    %v3606 = vpop.f32.mrb[0].mxu0
    %3607 = vmatprep.mubr.bf16.mxu0 0
    %3608 = vmatmul.mubr.bf16.gmra.mrb[0].mxu0 %v3532
    %v3609 = vpop.f32.mrb[0].mxu0
    %v3610 = vadd.f32 0.0, %v3609
    %v3611 = vpop.f32.mrb[0].mxu0
    %v3612 = vpop.f32.mrb[0].mxu0
    %v3613 = vadd.f32 0.0, %v3612
    %v3614 = vpop.f32.mrb[0].mxu0
    %3615 = vmatprep.mubr.bf16.mxu0 0
    %3616 = vmatmul.mubr.bf16.gmra.mrb[0].mxu0 %v3535
    %v3617 = vpop.f32.mrb[0].mxu0
    %v3618 = vadd.f32 0.0, %v3617
    %v3619 = vpop.f32.mrb[0].mxu0
    %v3620 = vpop.f32.mrb[0].mxu0
    %v3621 = vadd.f32 0.0, %v3620
    %v3622 = vpop.f32.mrb[0].mxu0
    %3623 = vmatprep.mubr.bf16.mxu0 0
    %3624 = vmatmul.mubr.bf16.gmra.mrb[0].mxu0 %v3538
    %v3625 = vpop.f32.mrb[0].mxu0
    %v3626 = vadd.f32 0.0, %v3625
    %v3627 = vpop.f32.mrb[0].mxu0
    %v3628 = vpop.f32.mrb[0].mxu0
    %v3629 = vadd.f32 0.0, %v3628
    %v3630 = vpop.f32.mrb[0].mxu0
    %3631 = vmatprep.mubr.bf16.mxu0 0
    %3632 = vmatmul.mubr.bf16.gmra.mrb[0].mxu0 %v3541
    %v3633 = vpop.f32.mrb[0].mxu0
    %v3634 = vadd.f32 0.0, %v3633
    %v3635 = vpop.f32.mrb[0].mxu0
    %v3636 = vpop.f32.mrb[0].mxu0
    %v3637 = vadd.f32 0.0, %v3636
    %v3638 = vpop.f32.mrb[0].mxu0
    %3639 = vdwg.mxu0
    %v3640 = vadd.f32 %v3487, %v3578
    %v3641 = vadd.f32 %v3488, %v3581
    %v3642 = vadd.f32 %v3489, %v3586
    %v3643 = vadd.f32 %v3490, %v3589
    %v3644 = vadd.f32 %v3491, %v3594
    %v3645 = vadd.f32 %v3492, %v3597
    %v3646 = vadd.f32 %v3493, %v3602
    %v3647 = vadd.f32 %v3494, %v3605
    %v3648 = vadd.f32 %v3495, %v3610
    %v3649 = vadd.f32 %v3496, %v3613
    %v3650 = vadd.f32 %v3497, %v3618
    %v3651 = vadd.f32 %v3498, %v3621
    %v3652 = vadd.f32 %v3499, %v3626
    %v3653 = vadd.f32 %v3500, %v3629
    %v3654 = vadd.f32 %v3501, %v3634
    %v3655 = vadd.f32 %v3502, %v3637
    %v3656 = vadd.f32 %v561, %v3640
    %v3657 = vadd.f32 %v562, %v3641
    %v3658 = vadd.f32 %v563, %v3642
    %v3659 = vadd.f32 %v564, %v3643
    %v3660 = vadd.f32 %v565, %v3644
    %v3661 = vadd.f32 %v566, %v3645
    %v3662 = vadd.f32 %v567, %v3646
    %v3663 = vadd.f32 %v568, %v3647
    %v3664 = vadd.f32 %v569, %v3648
    %v3665 = vadd.f32 %v570, %v3649
    %v3666 = vadd.f32 %v571, %v3650
    %v3667 = vadd.f32 %v572, %v3651
    %v3668 = vadd.f32 %v573, %v3652
    %v3669 = vadd.f32 %v574, %v3653
    %v3670 = vadd.f32 %v575, %v3654
    %v3671 = vadd.f32 %v576, %v3655
    %v3672 = vsel %vm325, %v3656, 0.0
    %3673 = vadd.xlane.f32.xlu0 %v3672
    %v3674 = vpop.xlane.xlu0 %3673
    %v3675 = vsel %vm325, %v3657, 0.0
    %3676 = vadd.xlane.f32.xlu0 %v3675
    %v3677 = vpop.xlane.xlu0 %3676
    %v3678 = vsel %vm325, %v3658, 0.0
    %3679 = vadd.xlane.f32.xlu0 %v3678
    %v3680 = vpop.xlane.xlu0 %3679
    %v3681 = vsel %vm325, %v3659, 0.0
    %3682 = vadd.xlane.f32.xlu0 %v3681
    %v3683 = vpop.xlane.xlu0 %3682
    %v3684 = vsel %vm325, %v3660, 0.0
    %3685 = vadd.xlane.f32.xlu0 %v3684
    %v3686 = vpop.xlane.xlu0 %3685
    %v3687 = vsel %vm325, %v3661, 0.0
    %3688 = vadd.xlane.f32.xlu0 %v3687
    %v3689 = vpop.xlane.xlu0 %3688
    %v3690 = vsel %vm325, %v3662, 0.0
    %3691 = vadd.xlane.f32.xlu0 %v3690
    %v3692 = vpop.xlane.xlu0 %3691
    %v3693 = vsel %vm325, %v3663, 0.0
    %3694 = vadd.xlane.f32.xlu0 %v3693
    %v3695 = vpop.xlane.xlu0 %3694
    %v3696 = vsel %vm325, %v3664, 0.0
    %3697 = vadd.xlane.f32.xlu0 %v3696
    %v3698 = vpop.xlane.xlu0 %3697
    %v3699 = vsel %vm325, %v3665, 0.0
    %3700 = vadd.xlane.f32.xlu0 %v3699
    %v3701 = vpop.xlane.xlu0 %3700
    %v3702 = vsel %vm325, %v3666, 0.0
    %3703 = vadd.xlane.f32.xlu0 %v3702
    %v3704 = vpop.xlane.xlu0 %3703
    %v3705 = vsel %vm325, %v3667, 0.0
    %3706 = vadd.xlane.f32.xlu0 %v3705
    %v3707 = vpop.xlane.xlu0 %3706
    %v3708 = vsel %vm325, %v3668, 0.0
    %3709 = vadd.xlane.f32.xlu0 %v3708
    %v3710 = vpop.xlane.xlu0 %3709
    %v3711 = vsel %vm325, %v3669, 0.0
    %3712 = vadd.xlane.f32.xlu0 %v3711
    %v3713 = vpop.xlane.xlu0 %3712
    %v3714 = vsel %vm325, %v3670, 0.0
    %3715 = vadd.xlane.f32.xlu0 %v3714
    %v3716 = vpop.xlane.xlu0 %3715
    %v3717 = vsel %vm325, %v3671, 0.0
    %3718 = vadd.xlane.f32.xlu0 %v3717
    %v3719 = vpop.xlane.xlu0 %3718
    %v3720 = vmul.f32 %v3674, %v374
    %v3721 = vmul.f32 %v3677, %v374
    %v3722 = vmul.f32 %v3680, %v374
    %v3723 = vmul.f32 %v3683, %v374
    %v3724 = vmul.f32 %v3686, %v374
    %v3725 = vmul.f32 %v3689, %v374
    %v3726 = vmul.f32 %v3692, %v374
    %v3727 = vmul.f32 %v3695, %v374
    %v3728 = vmul.f32 %v3698, %v374
    %v3729 = vmul.f32 %v3701, %v374
    %v3730 = vmul.f32 %v3704, %v374
    %v3731 = vmul.f32 %v3707, %v374
    %v3732 = vmul.f32 %v3710, %v374
    %v3733 = vmul.f32 %v3713, %v374
    %v3734 = vmul.f32 %v3716, %v374
    %v3735 = vmul.f32 %v3719, %v374
    %v3736 = vsub.f32 %v3656, %v3720
    %v3737 = vsub.f32 %v3657, %v3721
    %v3738 = vsub.f32 %v3658, %v3722
    %v3739 = vsub.f32 %v3659, %v3723
    %v3740 = vsub.f32 %v3660, %v3724
    %v3741 = vsub.f32 %v3661, %v3725
    %v3742 = vsub.f32 %v3662, %v3726
    %v3743 = vsub.f32 %v3663, %v3727
    %v3744 = vsub.f32 %v3664, %v3728
    %v3745 = vsub.f32 %v3665, %v3729
    %v3746 = vsub.f32 %v3666, %v3730
    %v3747 = vsub.f32 %v3667, %v3731
    %v3748 = vsub.f32 %v3668, %v3732
    %v3749 = vsub.f32 %v3669, %v3733
    %v3750 = vsub.f32 %v3670, %v3734
    %v3751 = vsub.f32 %v3671, %v3735
    %v3752 = vmul.f32 %v3736, %v3736
    %v3753 = vmul.f32 %v3737, %v3737
    %v3754 = vmul.f32 %v3738, %v3738
    %v3755 = vmul.f32 %v3739, %v3739
    %v3756 = vmul.f32 %v3740, %v3740
    %v3757 = vmul.f32 %v3741, %v3741
    %v3758 = vmul.f32 %v3742, %v3742
    %v3759 = vmul.f32 %v3743, %v3743
    %v3760 = vmul.f32 %v3744, %v3744
    %v3761 = vmul.f32 %v3745, %v3745
    %v3762 = vmul.f32 %v3746, %v3746
    %v3763 = vmul.f32 %v3747, %v3747
    %v3764 = vmul.f32 %v3748, %v3748
    %v3765 = vmul.f32 %v3749, %v3749
    %v3766 = vmul.f32 %v3750, %v3750
    %v3767 = vmul.f32 %v3751, %v3751
    %v3768 = vsel %vm325, %v3752, 0.0
    %3769 = vadd.xlane.f32.xlu0 %v3768
    %v3770 = vpop.xlane.xlu0 %3769
    %v3771 = vsel %vm325, %v3753, 0.0
    %3772 = vadd.xlane.f32.xlu0 %v3771
    %v3773 = vpop.xlane.xlu0 %3772
    %v3774 = vsel %vm325, %v3754, 0.0
    %3775 = vadd.xlane.f32.xlu0 %v3774
    %v3776 = vpop.xlane.xlu0 %3775
    %v3777 = vsel %vm325, %v3755, 0.0
    %3778 = vadd.xlane.f32.xlu0 %v3777
    %v3779 = vpop.xlane.xlu0 %3778
    %v3780 = vsel %vm325, %v3756, 0.0
    %3781 = vadd.xlane.f32.xlu0 %v3780
    %v3782 = vpop.xlane.xlu0 %3781
    %v3783 = vsel %vm325, %v3757, 0.0
    %3784 = vadd.xlane.f32.xlu0 %v3783
    %v3785 = vpop.xlane.xlu0 %3784
    %v3786 = vsel %vm325, %v3758, 0.0
    %3787 = vadd.xlane.f32.xlu0 %v3786
    %v3788 = vpop.xlane.xlu0 %3787
    %v3789 = vsel %vm325, %v3759, 0.0
    %3790 = vadd.xlane.f32.xlu0 %v3789
    %v3791 = vpop.xlane.xlu0 %3790
    %v3792 = vsel %vm325, %v3760, 0.0
    %3793 = vadd.xlane.f32.xlu0 %v3792
    %v3794 = vpop.xlane.xlu0 %3793
    %v3795 = vsel %vm325, %v3761, 0.0
    %3796 = vadd.xlane.f32.xlu0 %v3795
    %v3797 = vpop.xlane.xlu0 %3796
    %v3798 = vsel %vm325, %v3762, 0.0
    %3799 = vadd.xlane.f32.xlu0 %v3798
    %v3800 = vpop.xlane.xlu0 %3799
    %v3801 = vsel %vm325, %v3763, 0.0
    %3802 = vadd.xlane.f32.xlu0 %v3801
    %v3803 = vpop.xlane.xlu0 %3802
    %v3804 = vsel %vm325, %v3764, 0.0
    %3805 = vadd.xlane.f32.xlu0 %v3804
    %v3806 = vpop.xlane.xlu0 %3805
    %v3807 = vsel %vm325, %v3765, 0.0
    %3808 = vadd.xlane.f32.xlu0 %v3807
    %v3809 = vpop.xlane.xlu0 %3808
    %v3810 = vsel %vm325, %v3766, 0.0
    %3811 = vadd.xlane.f32.xlu0 %v3810
    %v3812 = vpop.xlane.xlu0 %3811
    %v3813 = vsel %vm325, %v3767, 0.0
    %3814 = vadd.xlane.f32.xlu0 %v3813
    %v3815 = vpop.xlane.xlu0 %3814
    %v3816 = vmul.f32 %v3770, %v374
    %v3817 = vmul.f32 %v3773, %v374
    %v3818 = vmul.f32 %v3776, %v374
    %v3819 = vmul.f32 %v3779, %v374
    %v3820 = vmul.f32 %v3782, %v374
    %v3821 = vmul.f32 %v3785, %v374
    %v3822 = vmul.f32 %v3788, %v374
    %v3823 = vmul.f32 %v3791, %v374
    %v3824 = vmul.f32 %v3794, %v374
    %v3825 = vmul.f32 %v3797, %v374
    %v3826 = vmul.f32 %v3800, %v374
    %v3827 = vmul.f32 %v3803, %v374
    %v3828 = vmul.f32 %v3806, %v374
    %v3829 = vmul.f32 %v3809, %v374
    %v3830 = vmul.f32 %v3812, %v374
    %v3831 = vmul.f32 %v3815, %v374
    %v3832 = vadd.f32 %v3816, 1e-12
    %v3833 = vadd.f32 %v3817, 1e-12
    %v3834 = vadd.f32 %v3818, 1e-12
    %v3835 = vadd.f32 %v3819, 1e-12
    %v3836 = vadd.f32 %v3820, 1e-12
    %v3837 = vadd.f32 %v3821, 1e-12
    %v3838 = vadd.f32 %v3822, 1e-12
    %v3839 = vadd.f32 %v3823, 1e-12
    %v3840 = vadd.f32 %v3824, 1e-12
    %v3841 = vadd.f32 %v3825, 1e-12
    %v3842 = vadd.f32 %v3826, 1e-12
    %v3843 = vadd.f32 %v3827, 1e-12
    %v3844 = vadd.f32 %v3828, 1e-12
    %v3845 = vadd.f32 %v3829, 1e-12
    %v3846 = vadd.f32 %v3830, 1e-12
    %v3847 = vadd.f32 %v3831, 1e-12
    %v3848 = vrsqrt.pop %v3832
    %v3849 = vrsqrt.pop %v3833
    %v3850 = vrsqrt.pop %v3834
    %v3851 = vrsqrt.pop %v3835
    %v3852 = vrsqrt.pop %v3836
    %v3853 = vrsqrt.pop %v3837
    %v3854 = vrsqrt.pop %v3838
    %v3855 = vrsqrt.pop %v3839
    %v3856 = vrsqrt.pop %v3840
    %v3857 = vrsqrt.pop %v3841
    %v3858 = vrsqrt.pop %v3842
    %v3859 = vrsqrt.pop %v3843
    %v3860 = vrsqrt.pop %v3844
    %v3861 = vrsqrt.pop %v3845
    %v3862 = vrsqrt.pop %v3846
    %v3863 = vrsqrt.pop %v3847
    %v3864 = vmul.f32 %v3736, %v3848
    %v3865 = vmul.f32 %v3737, %v3849
    %v3866 = vmul.f32 %v3738, %v3850
    %v3867 = vmul.f32 %v3739, %v3851
    %v3868 = vmul.f32 %v3740, %v3852
    %v3869 = vmul.f32 %v3741, %v3853
    %v3870 = vmul.f32 %v3742, %v3854
    %v3871 = vmul.f32 %v3743, %v3855
    %v3872 = vmul.f32 %v3744, %v3856
    %v3873 = vmul.f32 %v3745, %v3857
    %v3874 = vmul.f32 %v3746, %v3858
    %v3875 = vmul.f32 %v3747, %v3859
    %v3876 = vmul.f32 %v3748, %v3860
    %v3877 = vmul.f32 %v3749, %v3861
    %v3878 = vmul.f32 %v3750, %v3862
    %v3879 = vmul.f32 %v3751, %v3863
    %v3880 = vld [vmem:[%s1 + $0x19] sm:$0x1]
    %v3881 = vlaneseq
    %v3882 = vshrl.u32 %v3881, 7
    %v3883 = vsub.s32 0, %v3882
    %v3884 = vrot.slane %v3880, %v3883
    %v3885 = vmul.f32 %v3864, %v3884
    %v3886 = vmul.f32 %v3865, %v3884
    %v3887 = vmul.f32 %v3866, %v3884
    %v3888 = vmul.f32 %v3867, %v3884
    %v3889 = vmul.f32 %v3868, %v3884
    %v3890 = vmul.f32 %v3869, %v3884
    %v3891 = vmul.f32 %v3870, %v3884
    %v3892 = vmul.f32 %v3871, %v3884
    %v3893 = vmul.f32 %v3872, %v3884
    %v3894 = vmul.f32 %v3873, %v3884
    %v3895 = vmul.f32 %v3874, %v3884
    %v3896 = vmul.f32 %v3875, %v3884
    %v3897 = vmul.f32 %v3876, %v3884
    %v3898 = vmul.f32 %v3877, %v3884
    %v3899 = vmul.f32 %v3878, %v3884
    %v3900 = vmul.f32 %v3879, %v3884
    %v3901 = vld [vmem:[%s1 + $0x1a] sm:$0x1]
    %v3902 = vlaneseq
    %v3903 = vshrl.u32 %v3902, 7
    %v3904 = vsub.s32 0, %v3903
    %v3905 = vrot.slane %v3901, %v3904
    %v3906 = vadd.f32 %v3885, %v3905
    %v3907 = vadd.f32 %v3886, %v3905
    %v3908 = vadd.f32 %v3887, %v3905
    %v3909 = vadd.f32 %v3888, %v3905
    %v3910 = vadd.f32 %v3889, %v3905
    %v3911 = vadd.f32 %v3890, %v3905
    %v3912 = vadd.f32 %v3891, %v3905
    %v3913 = vadd.f32 %v3892, %v3905
    %v3914 = vadd.f32 %v3893, %v3905
    %v3915 = vadd.f32 %v3894, %v3905
    %v3916 = vadd.f32 %v3895, %v3905
    %v3917 = vadd.f32 %v3896, %v3905
    %v3918 = vadd.f32 %v3897, %v3905
    %v3919 = vadd.f32 %v3898, %v3905
    %v3920 = vadd.f32 %v3899, %v3905
    %v3921 = vadd.f32 %v3900, %v3905
    %v3922 = vpack.c.bf16 %v3907, %v3906
    %v3923 = vpack.c.bf16 %v3909, %v3908
    %v3924 = vpack.c.bf16 %v3911, %v3910
    %v3925 = vpack.c.bf16 %v3913, %v3912
    %v3926 = vpack.c.bf16 %v3915, %v3914
    %v3927 = vpack.c.bf16 %v3917, %v3916
    %v3928 = vpack.c.bf16 %v3919, %v3918
    %v3929 = vpack.c.bf16 %v3921, %v3920
    %v3930 = vld [vmem:[%s0 + $0xb0] sm:$0xf]
    %v3931 = vld [vmem:[%s0 + $0xb4] sm:$0xf]
    %v3932 = vld [vmem:[%s0 + $0xb8] sm:$0xf]
    %v3933 = vld [vmem:[%s0 + $0xbc] sm:$0xf]
    %v3934 = vld [vmem:[%s1 + $0x1b] sm:$0x1]
    %v3935 = vlaneseq
    %v3936 = vshrl.u32 %v3935, 7
    %v3937 = vsub.s32 0, %v3936
    %v3938 = vrot.slane %v3934, %v3937
    %v3943 = vunpack.c.l.b16 %v3930
    %v3944 = vunpack.c.l.b16 %v3931
    %v3945 = vunpack.c.l.b16 %v3932
    %v3946 = vunpack.c.l.b16 %v3933
    %v3947 = vpack.c.b16 %v3944, %v3943
    %v3948 = vpack.c.b16 %v3946, %v3945
    %v3952 = vsel %vm325, %v3922, 0
    %v3955 = vsel %vm325, %v3923, 0
    %v3958 = vsel %vm325, %v3924, 0
    %v3961 = vsel %vm325, %v3925, 0
    %v3964 = vsel %vm325, %v3926, 0
    %v3967 = vsel %vm325, %v3927, 0
    %v3970 = vsel %vm325, %v3928, 0
    %v3973 = vsel %vm325, %v3929, 0
    %3975 = vmatprep.subr.bf16.mxu0 0
    %3976 = vmatpush1.bf16.msra.mxu0 %v3947
    %3977 = vmatprep.subr.bf16.mxu0 0
    %3978 = vmatpush1.bf16.msra.mxu0 %v3948
    %3979 = vmatprep.subr.bf16.mxu0 0
    %3980 = vmatpush1.bf16.msra.mxu0 0
    %3981 = vmatprep.subr.bf16.mxu0 0
    %3982 = vmatpush1.bf16.msra.mxu0 0
    %3983 = vmatprep.subr.bf16.mxu0 0
    %3984 = vmatpush1.bf16.msra.mxu0 0
    %3985 = vmatprep.subr.bf16.mxu0 0
    %3986 = vmatpush1.bf16.msra.mxu0 0
    %3987 = vmatprep.subr.bf16.mxu0 0
    %3988 = vmatpush1.bf16.msra.mxu0 0
    %3989 = vmatprep.subr.bf16.mxu0 0
    %3990 = vmatpush1.bf16.msra.mxu0 0
    %3991 = vmatprep.subr.bf16.mxu0 0
    %3992 = vmatpush1.bf16.msra.mxu0 0
    %3993 = vmatprep.subr.bf16.mxu0 0
    %3994 = vmatpush1.bf16.msra.mxu0 0
    %3995 = vmatprep.subr.bf16.mxu0 0
    %3996 = vmatpush1.bf16.msra.mxu0 0
    %3997 = vmatprep.subr.bf16.mxu0 0
    %3998 = vmatpush1.bf16.msra.mxu0 0
    %3999 = vmatprep.subr.bf16.mxu0 0
    %4000 = vmatpush1.bf16.msra.mxu0 0
    %4001 = vmatprep.subr.bf16.mxu0 0
    %4002 = vmatpush1.bf16.msra.mxu0 0
    %4003 = vmatprep.subr.bf16.mxu0 0
    %4004 = vmatpush1.bf16.msra.mxu0 0
    %4005 = vmatprep.subr.bf16.mxu0 0
    %4006 = vmatpush1.bf16.msra.mxu0 0
    %4007 = vmatprep.mubr.bf16.mxu0 0
    %4008 = vmatmul.mubr.bf16.gmra.mrb[0].mxu0 %v3952
    %v4009 = vpop.f32.mrb[0].mxu0
    %v4010 = vadd.f32 %v3938, %v4009
    %v4011 = vpop.f32.mrb[0].mxu0
    %v4012 = vpop.f32.mrb[0].mxu0
    %v4013 = vadd.f32 %v3938, %v4012
    %v4014 = vpop.f32.mrb[0].mxu0
    %4015 = vmatprep.mubr.bf16.mxu0 0
    %4016 = vmatmul.mubr.bf16.gmra.mrb[0].mxu0 %v3955
    %v4017 = vpop.f32.mrb[0].mxu0
    %v4018 = vadd.f32 %v3938, %v4017
    %v4019 = vpop.f32.mrb[0].mxu0
    %v4020 = vpop.f32.mrb[0].mxu0
    %v4021 = vadd.f32 %v3938, %v4020
    %v4022 = vpop.f32.mrb[0].mxu0
    %4023 = vmatprep.mubr.bf16.mxu0 0
    %4024 = vmatmul.mubr.bf16.gmra.mrb[0].mxu0 %v3958
    %v4025 = vpop.f32.mrb[0].mxu0
    %v4026 = vadd.f32 %v3938, %v4025
    %v4027 = vpop.f32.mrb[0].mxu0
    %v4028 = vpop.f32.mrb[0].mxu0
    %v4029 = vadd.f32 %v3938, %v4028
    %v4030 = vpop.f32.mrb[0].mxu0
    %4031 = vmatprep.mubr.bf16.mxu0 0
    %4032 = vmatmul.mubr.bf16.gmra.mrb[0].mxu0 %v3961
    %v4033 = vpop.f32.mrb[0].mxu0
    %v4034 = vadd.f32 %v3938, %v4033
    %v4035 = vpop.f32.mrb[0].mxu0
    %v4036 = vpop.f32.mrb[0].mxu0
    %v4037 = vadd.f32 %v3938, %v4036
    %v4038 = vpop.f32.mrb[0].mxu0
    %4039 = vmatprep.mubr.bf16.mxu0 0
    %4040 = vmatmul.mubr.bf16.gmra.mrb[0].mxu0 %v3964
    %v4041 = vpop.f32.mrb[0].mxu0
    %v4042 = vadd.f32 %v3938, %v4041
    %v4043 = vpop.f32.mrb[0].mxu0
    %v4044 = vpop.f32.mrb[0].mxu0
    %v4045 = vadd.f32 %v3938, %v4044
    %v4046 = vpop.f32.mrb[0].mxu0
    %4047 = vmatprep.mubr.bf16.mxu0 0
    %4048 = vmatmul.mubr.bf16.gmra.mrb[0].mxu0 %v3967
    %v4049 = vpop.f32.mrb[0].mxu0
    %v4050 = vadd.f32 %v3938, %v4049
    %v4051 = vpop.f32.mrb[0].mxu0
    %v4052 = vpop.f32.mrb[0].mxu0
    %v4053 = vadd.f32 %v3938, %v4052
    %v4054 = vpop.f32.mrb[0].mxu0
    %4055 = vmatprep.mubr.bf16.mxu0 0
    %4056 = vmatmul.mubr.bf16.gmra.mrb[0].mxu0 %v3970
    %v4057 = vpop.f32.mrb[0].mxu0
    %v4058 = vadd.f32 %v3938, %v4057
    %v4059 = vpop.f32.mrb[0].mxu0
    %v4060 = vpop.f32.mrb[0].mxu0
    %v4061 = vadd.f32 %v3938, %v4060
    %v4062 = vpop.f32.mrb[0].mxu0
    %4063 = vmatprep.mubr.bf16.mxu0 0
    %4064 = vmatmul.mubr.bf16.gmra.mrb[0].mxu0 %v3973
    %v4065 = vpop.f32.mrb[0].mxu0
    %v4066 = vadd.f32 %v3938, %v4065
    %v4067 = vpop.f32.mrb[0].mxu0
    %v4068 = vpop.f32.mrb[0].mxu0
    %v4069 = vadd.f32 %v3938, %v4068
    %v4070 = vpop.f32.mrb[0].mxu0
    %4071 = vdwg.mxu0
    %v4072 = vmul.f32 %v4010, 0.5
    %v4073 = vmul.f32 %v4013, 0.5
    %v4074 = vmul.f32 %v4018, 0.5
    %v4075 = vmul.f32 %v4021, 0.5
    %v4076 = vmul.f32 %v4026, 0.5
    %v4077 = vmul.f32 %v4029, 0.5
    %v4078 = vmul.f32 %v4034, 0.5
    %v4079 = vmul.f32 %v4037, 0.5
    %v4080 = vmul.f32 %v4042, 0.5
    %v4081 = vmul.f32 %v4045, 0.5
    %v4082 = vmul.f32 %v4050, 0.5
    %v4083 = vmul.f32 %v4053, 0.5
    %v4084 = vmul.f32 %v4058, 0.5
    %v4085 = vmul.f32 %v4061, 0.5
    %v4086 = vmul.f32 %v4066, 0.5
    %v4087 = vmul.f32 %v4069, 0.5
    %v4088 = vmul.f32 %v4010, 0.044715
    %v4089 = vmul.f32 %v4013, 0.044715
    %v4090 = vmul.f32 %v4018, 0.044715
    %v4091 = vmul.f32 %v4021, 0.044715
    %v4092 = vmul.f32 %v4026, 0.044715
    %v4093 = vmul.f32 %v4029, 0.044715
    %v4094 = vmul.f32 %v4034, 0.044715
    %v4095 = vmul.f32 %v4037, 0.044715
    %v4096 = vmul.f32 %v4042, 0.044715
    %v4097 = vmul.f32 %v4045, 0.044715
    %v4098 = vmul.f32 %v4050, 0.044715
    %v4099 = vmul.f32 %v4053, 0.044715
    %v4100 = vmul.f32 %v4058, 0.044715
    %v4101 = vmul.f32 %v4061, 0.044715
    %v4102 = vmul.f32 %v4066, 0.044715
    %v4103 = vmul.f32 %v4069, 0.044715
    %v4104 = vmul.f32 %v4088, %v4010
    %v4105 = vmul.f32 %v4089, %v4013
    %v4106 = vmul.f32 %v4090, %v4018
    %v4107 = vmul.f32 %v4091, %v4021
    %v4108 = vmul.f32 %v4092, %v4026
    %v4109 = vmul.f32 %v4093, %v4029
    %v4110 = vmul.f32 %v4094, %v4034
    %v4111 = vmul.f32 %v4095, %v4037
    %v4112 = vmul.f32 %v4096, %v4042
    %v4113 = vmul.f32 %v4097, %v4045
    %v4114 = vmul.f32 %v4098, %v4050
    %v4115 = vmul.f32 %v4099, %v4053
    %v4116 = vmul.f32 %v4100, %v4058
    %v4117 = vmul.f32 %v4101, %v4061
    %v4118 = vmul.f32 %v4102, %v4066
    %v4119 = vmul.f32 %v4103, %v4069
    %v4120 = vmul.f32 %v4104, %v4010
    %v4121 = vmul.f32 %v4105, %v4013
    %v4122 = vmul.f32 %v4106, %v4018
    %v4123 = vmul.f32 %v4107, %v4021
    %v4124 = vmul.f32 %v4108, %v4026
    %v4125 = vmul.f32 %v4109, %v4029
    %v4126 = vmul.f32 %v4110, %v4034
    %v4127 = vmul.f32 %v4111, %v4037
    %v4128 = vmul.f32 %v4112, %v4042
    %v4129 = vmul.f32 %v4113, %v4045
    %v4130 = vmul.f32 %v4114, %v4050
    %v4131 = vmul.f32 %v4115, %v4053
    %v4132 = vmul.f32 %v4116, %v4058
    %v4133 = vmul.f32 %v4117, %v4061
    %v4134 = vmul.f32 %v4118, %v4066
    %v4135 = vmul.f32 %v4119, %v4069
    %v4136 = vadd.f32 %v4010, %v4120
    %v4137 = vadd.f32 %v4013, %v4121
    %v4138 = vadd.f32 %v4018, %v4122
    %v4139 = vadd.f32 %v4021, %v4123
    %v4140 = vadd.f32 %v4026, %v4124
    %v4141 = vadd.f32 %v4029, %v4125
    %v4142 = vadd.f32 %v4034, %v4126
    %v4143 = vadd.f32 %v4037, %v4127
    %v4144 = vadd.f32 %v4042, %v4128
    %v4145 = vadd.f32 %v4045, %v4129
    %v4146 = vadd.f32 %v4050, %v4130
    %v4147 = vadd.f32 %v4053, %v4131
    %v4148 = vadd.f32 %v4058, %v4132
    %v4149 = vadd.f32 %v4061, %v4133
    %v4150 = vadd.f32 %v4066, %v4134
    %v4151 = vadd.f32 %v4069, %v4135
    %v4152 = vmul.f32 %v4136, 0.7978846
    %v4153 = vmul.f32 %v4137, 0.7978846
    %v4154 = vmul.f32 %v4138, 0.7978846
    %v4155 = vmul.f32 %v4139, 0.7978846
    %v4156 = vmul.f32 %v4140, 0.7978846
    %v4157 = vmul.f32 %v4141, 0.7978846
    %v4158 = vmul.f32 %v4142, 0.7978846
    %v4159 = vmul.f32 %v4143, 0.7978846
    %v4160 = vmul.f32 %v4144, 0.7978846
    %v4161 = vmul.f32 %v4145, 0.7978846
    %v4162 = vmul.f32 %v4146, 0.7978846
    %v4163 = vmul.f32 %v4147, 0.7978846
    %v4164 = vmul.f32 %v4148, 0.7978846
    %v4165 = vmul.f32 %v4149, 0.7978846
    %v4166 = vmul.f32 %v4150, 0.7978846
    %v4167 = vmul.f32 %v4151, 0.7978846
    %v4168 = vtanh.pop %v4152
    %v4169 = vtanh.pop %v4153
    %v4170 = vtanh.pop %v4154
    %v4171 = vtanh.pop %v4155
    %v4172 = vtanh.pop %v4156
    %v4173 = vtanh.pop %v4157
    %v4174 = vtanh.pop %v4158
    %v4175 = vtanh.pop %v4159
    %v4176 = vtanh.pop %v4160
    %v4177 = vtanh.pop %v4161
    %v4178 = vtanh.pop %v4162
    %v4179 = vtanh.pop %v4163
    %v4180 = vtanh.pop %v4164
    %v4181 = vtanh.pop %v4165
    %v4182 = vtanh.pop %v4166
    %v4183 = vtanh.pop %v4167
    %v4184 = vadd.f32 %v4168, 1.0
    %v4185 = vadd.f32 %v4169, 1.0
    %v4186 = vadd.f32 %v4170, 1.0
    %v4187 = vadd.f32 %v4171, 1.0
    %v4188 = vadd.f32 %v4172, 1.0
    %v4189 = vadd.f32 %v4173, 1.0
    %v4190 = vadd.f32 %v4174, 1.0
    %v4191 = vadd.f32 %v4175, 1.0
    %v4192 = vadd.f32 %v4176, 1.0
    %v4193 = vadd.f32 %v4177, 1.0
    %v4194 = vadd.f32 %v4178, 1.0
    %v4195 = vadd.f32 %v4179, 1.0
    %v4196 = vadd.f32 %v4180, 1.0
    %v4197 = vadd.f32 %v4181, 1.0
    %v4198 = vadd.f32 %v4182, 1.0
    %v4199 = vadd.f32 %v4183, 1.0
    %v4200 = vmul.f32 %v4072, %v4184
    %v4201 = vmul.f32 %v4073, %v4185
    %v4202 = vmul.f32 %v4074, %v4186
    %v4203 = vmul.f32 %v4075, %v4187
    %v4204 = vmul.f32 %v4076, %v4188
    %v4205 = vmul.f32 %v4077, %v4189
    %v4206 = vmul.f32 %v4078, %v4190
    %v4207 = vmul.f32 %v4079, %v4191
    %v4208 = vmul.f32 %v4080, %v4192
    %v4209 = vmul.f32 %v4081, %v4193
    %v4210 = vmul.f32 %v4082, %v4194
    %v4211 = vmul.f32 %v4083, %v4195
    %v4212 = vmul.f32 %v4084, %v4196
    %v4213 = vmul.f32 %v4085, %v4197
    %v4214 = vmul.f32 %v4086, %v4198
    %v4215 = vmul.f32 %v4087, %v4199
    %v4216 = vpack.c.bf16 %v4201, %v4200
    %v4217 = vpack.c.bf16 %v4203, %v4202
    %v4218 = vpack.c.bf16 %v4205, %v4204
    %v4219 = vpack.c.bf16 %v4207, %v4206
    %v4220 = vpack.c.bf16 %v4209, %v4208
    %v4221 = vpack.c.bf16 %v4211, %v4210
    %v4222 = vpack.c.bf16 %v4213, %v4212
    %v4223 = vpack.c.bf16 %v4215, %v4214
    %v4224 = vld [vmem:[%s0 + $0xc0] sm:$0xf]
    %v4225 = vld [vmem:[%s0 + $0xc4] sm:$0xf]
    %v4226 = vld [vmem:[%s0 + $0xc8] sm:$0xf]
    %v4227 = vld [vmem:[%s0 + $0xcc] sm:$0xf]
    %v4228 = vld [vmem:[%s0 + $0xd0] sm:$0xf]
    %v4229 = vld [vmem:[%s0 + $0xd4] sm:$0xf]
    %v4230 = vld [vmem:[%s0 + $0xd8] sm:$0xf]
    %v4231 = vld [vmem:[%s0 + $0xdc] sm:$0xf]
    %v4232 = vld [vmem:[%s1 + $0x1c] sm:$0x1]
    %v4233 = vlaneseq
    %v4234 = vshrl.u32 %v4233, 7
    %v4235 = vsub.s32 0, %v4234
    %v4236 = vrot.slane %v4232, %v4235
    %v4245 = vunpack.c.l.b16 %v4224
    %v4246 = vunpack.c.l.b16 %v4225
    %v4247 = vunpack.c.l.b16 %v4226
    %v4248 = vunpack.c.l.b16 %v4227
    %v4249 = vunpack.c.l.b16 %v4228
    %v4250 = vunpack.c.l.b16 %v4229
    %v4251 = vunpack.c.l.b16 %v4230
    %v4252 = vunpack.c.l.b16 %v4231
    %v4253 = vpack.c.b16 %v4246, %v4245
    %v4254 = vpack.c.b16 %v4248, %v4247
    %v4255 = vpack.c.b16 %v4250, %v4249
    %v4256 = vpack.c.b16 %v4252, %v4251
    %vm4261 = vcmask 523264
    %v4263 = vsel %vm4261, %v4216, 0
    %v4266 = vsel %vm4261, %v4217, 0
    %v4269 = vsel %vm4261, %v4218, 0
    %v4272 = vsel %vm4261, %v4219, 0
    %v4275 = vsel %vm4261, %v4220, 0
    %v4278 = vsel %vm4261, %v4221, 0
    %v4281 = vsel %vm4261, %v4222, 0
    %v4284 = vsel %vm4261, %v4223, 0
    %4286 = vmatprep.subr.bf16.mxu0 0
    %4287 = vmatpush1.bf16.msra.mxu0 %v4253
    %4288 = vmatprep.subr.bf16.mxu0 0
    %4289 = vmatpush1.bf16.msra.mxu0 %v4254
    %4290 = vmatprep.subr.bf16.mxu0 0
    %4291 = vmatpush1.bf16.msra.mxu0 %v4255
    %4292 = vmatprep.subr.bf16.mxu0 0
    %4293 = vmatpush1.bf16.msra.mxu0 %v4256
    %4294 = vmatprep.subr.bf16.mxu0 0
    %4295 = vmatpush1.bf16.msra.mxu0 0
    %4296 = vmatprep.subr.bf16.mxu0 0
    %4297 = vmatpush1.bf16.msra.mxu0 0
    %4298 = vmatprep.subr.bf16.mxu0 0
    %4299 = vmatpush1.bf16.msra.mxu0 0
    %4300 = vmatprep.subr.bf16.mxu0 0
    %4301 = vmatpush1.bf16.msra.mxu0 0
    %4302 = vmatprep.subr.bf16.mxu0 0
    %4303 = vmatpush1.bf16.msra.mxu0 0
    %4304 = vmatprep.subr.bf16.mxu0 0
    %4305 = vmatpush1.bf16.msra.mxu0 0
    %4306 = vmatprep.subr.bf16.mxu0 0
    %4307 = vmatpush1.bf16.msra.mxu0 0
    %4308 = vmatprep.subr.bf16.mxu0 0
    %4309 = vmatpush1.bf16.msra.mxu0 0
    %4310 = vmatprep.subr.bf16.mxu0 0
    %4311 = vmatpush1.bf16.msra.mxu0 0
    %4312 = vmatprep.subr.bf16.mxu0 0
    %4313 = vmatpush1.bf16.msra.mxu0 0
    %4314 = vmatprep.subr.bf16.mxu0 0
    %4315 = vmatpush1.bf16.msra.mxu0 0
    %4316 = vmatprep.subr.bf16.mxu0 0
    %4317 = vmatpush1.bf16.msra.mxu0 0
    %4318 = vmatprep.mubr.bf16.mxu0 0
    %4319 = vmatmul.mubr.bf16.gmra.mrb[0].mxu0 %v4263
    %v4320 = vpop.f32.mrb[0].mxu0
    %v4321 = vadd.f32 %v4236, %v4320
    %v4322 = vpop.f32.mrb[0].mxu0
    %v4323 = vpop.f32.mrb[0].mxu0
    %v4324 = vadd.f32 %v4236, %v4323
    %v4325 = vpop.f32.mrb[0].mxu0
    %4326 = vmatprep.mubr.bf16.mxu0 0
    %4327 = vmatmul.mubr.bf16.gmra.mrb[0].mxu0 %v4266
    %v4328 = vpop.f32.mrb[0].mxu0
    %v4329 = vadd.f32 %v4236, %v4328
    %v4330 = vpop.f32.mrb[0].mxu0
    %v4331 = vpop.f32.mrb[0].mxu0
    %v4332 = vadd.f32 %v4236, %v4331
    %v4333 = vpop.f32.mrb[0].mxu0
    %4334 = vmatprep.mubr.bf16.mxu0 0
    %4335 = vmatmul.mubr.bf16.gmra.mrb[0].mxu0 %v4269
    %v4336 = vpop.f32.mrb[0].mxu0
    %v4337 = vadd.f32 %v4236, %v4336
    %v4338 = vpop.f32.mrb[0].mxu0
    %v4339 = vpop.f32.mrb[0].mxu0
    %v4340 = vadd.f32 %v4236, %v4339
    %v4341 = vpop.f32.mrb[0].mxu0
    %4342 = vmatprep.mubr.bf16.mxu0 0
    %4343 = vmatmul.mubr.bf16.gmra.mrb[0].mxu0 %v4272
    %v4344 = vpop.f32.mrb[0].mxu0
    %v4345 = vadd.f32 %v4236, %v4344
    %v4346 = vpop.f32.mrb[0].mxu0
    %v4347 = vpop.f32.mrb[0].mxu0
    %v4348 = vadd.f32 %v4236, %v4347
    %v4349 = vpop.f32.mrb[0].mxu0
    %4350 = vmatprep.mubr.bf16.mxu0 0
    %4351 = vmatmul.mubr.bf16.gmra.mrb[0].mxu0 %v4275
    %v4352 = vpop.f32.mrb[0].mxu0
    %v4353 = vadd.f32 %v4236, %v4352
    %v4354 = vpop.f32.mrb[0].mxu0
    %v4355 = vpop.f32.mrb[0].mxu0
    %v4356 = vadd.f32 %v4236, %v4355
    %v4357 = vpop.f32.mrb[0].mxu0
    %4358 = vmatprep.mubr.bf16.mxu0 0
    %4359 = vmatmul.mubr.bf16.gmra.mrb[0].mxu0 %v4278
    %v4360 = vpop.f32.mrb[0].mxu0
    %v4361 = vadd.f32 %v4236, %v4360
    %v4362 = vpop.f32.mrb[0].mxu0
    %v4363 = vpop.f32.mrb[0].mxu0
    %v4364 = vadd.f32 %v4236, %v4363
    %v4365 = vpop.f32.mrb[0].mxu0
    %4366 = vmatprep.mubr.bf16.mxu0 0
    %4367 = vmatmul.mubr.bf16.gmra.mrb[0].mxu0 %v4281
    %v4368 = vpop.f32.mrb[0].mxu0
    %v4369 = vadd.f32 %v4236, %v4368
    %v4370 = vpop.f32.mrb[0].mxu0
    %v4371 = vpop.f32.mrb[0].mxu0
    %v4372 = vadd.f32 %v4236, %v4371
    %v4373 = vpop.f32.mrb[0].mxu0
    %4374 = vmatprep.mubr.bf16.mxu0 0
    %4375 = vmatmul.mubr.bf16.gmra.mrb[0].mxu0 %v4284
    %v4376 = vpop.f32.mrb[0].mxu0
    %v4377 = vadd.f32 %v4236, %v4376
    %v4378 = vpop.f32.mrb[0].mxu0
    %v4379 = vpop.f32.mrb[0].mxu0
    %v4380 = vadd.f32 %v4236, %v4379
    %v4381 = vpop.f32.mrb[0].mxu0
    %4382 = vdwg.mxu0
    %v4383 = vadd.f32 %v3906, %v4321
    %v4384 = vadd.f32 %v3907, %v4324
    %v4385 = vadd.f32 %v3908, %v4329
    %v4386 = vadd.f32 %v3909, %v4332
    %v4387 = vadd.f32 %v3910, %v4337
    %v4388 = vadd.f32 %v3911, %v4340
    %v4389 = vadd.f32 %v3912, %v4345
    %v4390 = vadd.f32 %v3913, %v4348
    %v4391 = vadd.f32 %v3914, %v4353
    %v4392 = vadd.f32 %v3915, %v4356
    %v4393 = vadd.f32 %v3916, %v4361
    %v4394 = vadd.f32 %v3917, %v4364
    %v4395 = vadd.f32 %v3918, %v4369
    %v4396 = vadd.f32 %v3919, %v4372
    %v4397 = vadd.f32 %v3920, %v4377
    %v4398 = vadd.f32 %v3921, %v4380
    %v4399 = vsel %vm325, %v4383, 0.0
    %4400 = vadd.xlane.f32.xlu0 %v4399
    %v4401 = vpop.xlane.xlu0 %4400
    %v4402 = vsel %vm325, %v4384, 0.0
    %4403 = vadd.xlane.f32.xlu0 %v4402
    %v4404 = vpop.xlane.xlu0 %4403
    %v4405 = vsel %vm325, %v4385, 0.0
    %4406 = vadd.xlane.f32.xlu0 %v4405
    %v4407 = vpop.xlane.xlu0 %4406
    %v4408 = vsel %vm325, %v4386, 0.0
    %4409 = vadd.xlane.f32.xlu0 %v4408
    %v4410 = vpop.xlane.xlu0 %4409
    %v4411 = vsel %vm325, %v4387, 0.0
    %4412 = vadd.xlane.f32.xlu0 %v4411
    %v4413 = vpop.xlane.xlu0 %4412
    %v4414 = vsel %vm325, %v4388, 0.0
    %4415 = vadd.xlane.f32.xlu0 %v4414
    %v4416 = vpop.xlane.xlu0 %4415
    %v4417 = vsel %vm325, %v4389, 0.0
    %4418 = vadd.xlane.f32.xlu0 %v4417
    %v4419 = vpop.xlane.xlu0 %4418
    %v4420 = vsel %vm325, %v4390, 0.0
    %4421 = vadd.xlane.f32.xlu0 %v4420
    %v4422 = vpop.xlane.xlu0 %4421
    %v4423 = vsel %vm325, %v4391, 0.0
    %4424 = vadd.xlane.f32.xlu0 %v4423
    %v4425 = vpop.xlane.xlu0 %4424
    %v4426 = vsel %vm325, %v4392, 0.0
    %4427 = vadd.xlane.f32.xlu0 %v4426
    %v4428 = vpop.xlane.xlu0 %4427
    %v4429 = vsel %vm325, %v4393, 0.0
    %4430 = vadd.xlane.f32.xlu0 %v4429
    %v4431 = vpop.xlane.xlu0 %4430
    %v4432 = vsel %vm325, %v4394, 0.0
    %4433 = vadd.xlane.f32.xlu0 %v4432
    %v4434 = vpop.xlane.xlu0 %4433
    %v4435 = vsel %vm325, %v4395, 0.0
    %4436 = vadd.xlane.f32.xlu0 %v4435
    %v4437 = vpop.xlane.xlu0 %4436
    %v4438 = vsel %vm325, %v4396, 0.0
    %4439 = vadd.xlane.f32.xlu0 %v4438
    %v4440 = vpop.xlane.xlu0 %4439
    %v4441 = vsel %vm325, %v4397, 0.0
    %4442 = vadd.xlane.f32.xlu0 %v4441
    %v4443 = vpop.xlane.xlu0 %4442
    %v4444 = vsel %vm325, %v4398, 0.0
    %4445 = vadd.xlane.f32.xlu0 %v4444
    %v4446 = vpop.xlane.xlu0 %4445
    %v4447 = vmul.f32 %v4401, %v374
    %v4448 = vmul.f32 %v4404, %v374
    %v4449 = vmul.f32 %v4407, %v374
    %v4450 = vmul.f32 %v4410, %v374
    %v4451 = vmul.f32 %v4413, %v374
    %v4452 = vmul.f32 %v4416, %v374
    %v4453 = vmul.f32 %v4419, %v374
    %v4454 = vmul.f32 %v4422, %v374
    %v4455 = vmul.f32 %v4425, %v374
    %v4456 = vmul.f32 %v4428, %v374
    %v4457 = vmul.f32 %v4431, %v374
    %v4458 = vmul.f32 %v4434, %v374
    %v4459 = vmul.f32 %v4437, %v374
    %v4460 = vmul.f32 %v4440, %v374
    %v4461 = vmul.f32 %v4443, %v374
    %v4462 = vmul.f32 %v4446, %v374
    %v4463 = vsub.f32 %v4383, %v4447
    %v4464 = vsub.f32 %v4384, %v4448
    %v4465 = vsub.f32 %v4385, %v4449
    %v4466 = vsub.f32 %v4386, %v4450
    %v4467 = vsub.f32 %v4387, %v4451
    %v4468 = vsub.f32 %v4388, %v4452
    %v4469 = vsub.f32 %v4389, %v4453
    %v4470 = vsub.f32 %v4390, %v4454
    %v4471 = vsub.f32 %v4391, %v4455
    %v4472 = vsub.f32 %v4392, %v4456
    %v4473 = vsub.f32 %v4393, %v4457
    %v4474 = vsub.f32 %v4394, %v4458
    %v4475 = vsub.f32 %v4395, %v4459
    %v4476 = vsub.f32 %v4396, %v4460
    %v4477 = vsub.f32 %v4397, %v4461
    %v4478 = vsub.f32 %v4398, %v4462
    %v4479 = vmul.f32 %v4463, %v4463
    %v4480 = vmul.f32 %v4464, %v4464
    %v4481 = vmul.f32 %v4465, %v4465
    %v4482 = vmul.f32 %v4466, %v4466
    %v4483 = vmul.f32 %v4467, %v4467
    %v4484 = vmul.f32 %v4468, %v4468
    %v4485 = vmul.f32 %v4469, %v4469
    %v4486 = vmul.f32 %v4470, %v4470
    %v4487 = vmul.f32 %v4471, %v4471
    %v4488 = vmul.f32 %v4472, %v4472
    %v4489 = vmul.f32 %v4473, %v4473
    %v4490 = vmul.f32 %v4474, %v4474
    %v4491 = vmul.f32 %v4475, %v4475
    %v4492 = vmul.f32 %v4476, %v4476
    %v4493 = vmul.f32 %v4477, %v4477
    %v4494 = vmul.f32 %v4478, %v4478
    %v4495 = vsel %vm325, %v4479, 0.0
    %4496 = vadd.xlane.f32.xlu0 %v4495
    %v4497 = vpop.xlane.xlu0 %4496
    %v4498 = vsel %vm325, %v4480, 0.0
    %4499 = vadd.xlane.f32.xlu0 %v4498
    %v4500 = vpop.xlane.xlu0 %4499
    %v4501 = vsel %vm325, %v4481, 0.0
    %4502 = vadd.xlane.f32.xlu0 %v4501
    %v4503 = vpop.xlane.xlu0 %4502
    %v4504 = vsel %vm325, %v4482, 0.0
    %4505 = vadd.xlane.f32.xlu0 %v4504
    %v4506 = vpop.xlane.xlu0 %4505
    %v4507 = vsel %vm325, %v4483, 0.0
    %4508 = vadd.xlane.f32.xlu0 %v4507
    %v4509 = vpop.xlane.xlu0 %4508
    %v4510 = vsel %vm325, %v4484, 0.0
    %4511 = vadd.xlane.f32.xlu0 %v4510
    %v4512 = vpop.xlane.xlu0 %4511
    %v4513 = vsel %vm325, %v4485, 0.0
    %4514 = vadd.xlane.f32.xlu0 %v4513
    %v4515 = vpop.xlane.xlu0 %4514
    %v4516 = vsel %vm325, %v4486, 0.0
    %4517 = vadd.xlane.f32.xlu0 %v4516
    %v4518 = vpop.xlane.xlu0 %4517
    %v4519 = vsel %vm325, %v4487, 0.0
    %4520 = vadd.xlane.f32.xlu0 %v4519
    %v4521 = vpop.xlane.xlu0 %4520
    %v4522 = vsel %vm325, %v4488, 0.0
    %4523 = vadd.xlane.f32.xlu0 %v4522
    %v4524 = vpop.xlane.xlu0 %4523
    %v4525 = vsel %vm325, %v4489, 0.0
    %4526 = vadd.xlane.f32.xlu0 %v4525
    %v4527 = vpop.xlane.xlu0 %4526
    %v4528 = vsel %vm325, %v4490, 0.0
    %4529 = vadd.xlane.f32.xlu0 %v4528
    %v4530 = vpop.xlane.xlu0 %4529
    %v4531 = vsel %vm325, %v4491, 0.0
    %4532 = vadd.xlane.f32.xlu0 %v4531
    %v4533 = vpop.xlane.xlu0 %4532
    %v4534 = vsel %vm325, %v4492, 0.0
    %4535 = vadd.xlane.f32.xlu0 %v4534
    %v4536 = vpop.xlane.xlu0 %4535
    %v4537 = vsel %vm325, %v4493, 0.0
    %4538 = vadd.xlane.f32.xlu0 %v4537
    %v4539 = vpop.xlane.xlu0 %4538
    %v4540 = vsel %vm325, %v4494, 0.0
    %4541 = vadd.xlane.f32.xlu0 %v4540
    %v4542 = vpop.xlane.xlu0 %4541
    %v4543 = vmul.f32 %v4497, %v374
    %v4544 = vmul.f32 %v4500, %v374
    %v4545 = vmul.f32 %v4503, %v374
    %v4546 = vmul.f32 %v4506, %v374
    %v4547 = vmul.f32 %v4509, %v374
    %v4548 = vmul.f32 %v4512, %v374
    %v4549 = vmul.f32 %v4515, %v374
    %v4550 = vmul.f32 %v4518, %v374
    %v4551 = vmul.f32 %v4521, %v374
    %v4552 = vmul.f32 %v4524, %v374
    %v4553 = vmul.f32 %v4527, %v374
    %v4554 = vmul.f32 %v4530, %v374
    %v4555 = vmul.f32 %v4533, %v374
    %v4556 = vmul.f32 %v4536, %v374
    %v4557 = vmul.f32 %v4539, %v374
    %v4558 = vmul.f32 %v4542, %v374
    %v4559 = vadd.f32 %v4543, 1e-12
    %v4560 = vadd.f32 %v4544, 1e-12
    %v4561 = vadd.f32 %v4545, 1e-12
    %v4562 = vadd.f32 %v4546, 1e-12
    %v4563 = vadd.f32 %v4547, 1e-12
    %v4564 = vadd.f32 %v4548, 1e-12
    %v4565 = vadd.f32 %v4549, 1e-12
    %v4566 = vadd.f32 %v4550, 1e-12
    %v4567 = vadd.f32 %v4551, 1e-12
    %v4568 = vadd.f32 %v4552, 1e-12
    %v4569 = vadd.f32 %v4553, 1e-12
    %v4570 = vadd.f32 %v4554, 1e-12
    %v4571 = vadd.f32 %v4555, 1e-12
    %v4572 = vadd.f32 %v4556, 1e-12
    %v4573 = vadd.f32 %v4557, 1e-12
    %v4574 = vadd.f32 %v4558, 1e-12
    %v4575 = vrsqrt.pop %v4559
    %v4576 = vrsqrt.pop %v4560
    %v4577 = vrsqrt.pop %v4561
    %v4578 = vrsqrt.pop %v4562
    %v4579 = vrsqrt.pop %v4563
    %v4580 = vrsqrt.pop %v4564
    %v4581 = vrsqrt.pop %v4565
    %v4582 = vrsqrt.pop %v4566
    %v4583 = vrsqrt.pop %v4567
    %v4584 = vrsqrt.pop %v4568
    %v4585 = vrsqrt.pop %v4569
    %v4586 = vrsqrt.pop %v4570
    %v4587 = vrsqrt.pop %v4571
    %v4588 = vrsqrt.pop %v4572
    %v4589 = vrsqrt.pop %v4573
    %v4590 = vrsqrt.pop %v4574
    %v4591 = vmul.f32 %v4463, %v4575
    %v4592 = vmul.f32 %v4464, %v4576
    %v4593 = vmul.f32 %v4465, %v4577
    %v4594 = vmul.f32 %v4466, %v4578
    %v4595 = vmul.f32 %v4467, %v4579
    %v4596 = vmul.f32 %v4468, %v4580
    %v4597 = vmul.f32 %v4469, %v4581
    %v4598 = vmul.f32 %v4470, %v4582
    %v4599 = vmul.f32 %v4471, %v4583
    %v4600 = vmul.f32 %v4472, %v4584
    %v4601 = vmul.f32 %v4473, %v4585
    %v4602 = vmul.f32 %v4474, %v4586
    %v4603 = vmul.f32 %v4475, %v4587
    %v4604 = vmul.f32 %v4476, %v4588
    %v4605 = vmul.f32 %v4477, %v4589
    %v4606 = vmul.f32 %v4478, %v4590
    %v4607 = vld [vmem:[%s1 + $0x1d] sm:$0x1]
    %v4608 = vlaneseq
    %v4609 = vshrl.u32 %v4608, 7
    %v4610 = vsub.s32 0, %v4609
    %v4611 = vrot.slane %v4607, %v4610
    %v4612 = vmul.f32 %v4591, %v4611
    %v4613 = vmul.f32 %v4592, %v4611
    %v4614 = vmul.f32 %v4593, %v4611
    %v4615 = vmul.f32 %v4594, %v4611
    %v4616 = vmul.f32 %v4595, %v4611
    %v4617 = vmul.f32 %v4596, %v4611
    %v4618 = vmul.f32 %v4597, %v4611
    %v4619 = vmul.f32 %v4598, %v4611
    %v4620 = vmul.f32 %v4599, %v4611
    %v4621 = vmul.f32 %v4600, %v4611
    %v4622 = vmul.f32 %v4601, %v4611
    %v4623 = vmul.f32 %v4602, %v4611
    %v4624 = vmul.f32 %v4603, %v4611
    %v4625 = vmul.f32 %v4604, %v4611
    %v4626 = vmul.f32 %v4605, %v4611
    %v4627 = vmul.f32 %v4606, %v4611
    %v4628 = vld [vmem:[%s1 + $0x1e] sm:$0x1]
    %v4629 = vlaneseq
    %v4630 = vshrl.u32 %v4629, 7
    %v4631 = vsub.s32 0, %v4630
    %v4632 = vrot.slane %v4628, %v4631
    %v4633 = vadd.f32 %v4612, %v4632
    %v4634 = vadd.f32 %v4613, %v4632
    %v4635 = vadd.f32 %v4614, %v4632
    %v4636 = vadd.f32 %v4615, %v4632
    %v4637 = vadd.f32 %v4616, %v4632
    %v4638 = vadd.f32 %v4617, %v4632
    %v4639 = vadd.f32 %v4618, %v4632
    %v4640 = vadd.f32 %v4619, %v4632
    %v4641 = vadd.f32 %v4620, %v4632
    %v4642 = vadd.f32 %v4621, %v4632
    %v4643 = vadd.f32 %v4622, %v4632
    %v4644 = vadd.f32 %v4623, %v4632
    %v4645 = vadd.f32 %v4624, %v4632
    %v4646 = vadd.f32 %v4625, %v4632
    %v4647 = vadd.f32 %v4626, %v4632
    %v4648 = vadd.f32 %v4627, %v4632
    %v4649 = vpack.c.bf16 %v4634, %v4633
    %v4650 = vpack.c.bf16 %v4636, %v4635
    %v4651 = vpack.c.bf16 %v4638, %v4637
    %v4652 = vpack.c.bf16 %v4640, %v4639
    %v4653 = vpack.c.bf16 %v4642, %v4641
    %v4654 = vpack.c.bf16 %v4644, %v4643
    %v4655 = vpack.c.bf16 %v4646, %v4645
    %v4656 = vpack.c.bf16 %v4648, %v4647
    %v4657 = vld [vmem:[%s0 + $0xe0] sm:$0xf]
    %v4658 = vld [vmem:[%s0 + $0xe4] sm:$0xf]
    %v4659 = vld [vmem:[%s0 + $0xe8] sm:$0xf]
    %v4660 = vld [vmem:[%s0 + $0xec] sm:$0xf]
    %v4661 = vld [vmem:[%s1 + $0x1f] sm:$0x1]
    %v4662 = vlaneseq
    %v4663 = vshrl.u32 %v4662, 7
    %v4664 = vsub.s32 0, %v4663
    %v4665 = vrot.slane %v4661, %v4664
    %v4670 = vunpack.c.l.b16 %v4657
    %v4671 = vunpack.c.l.b16 %v4658
    %v4672 = vunpack.c.l.b16 %v4659
    %v4673 = vunpack.c.l.b16 %v4660
    %v4674 = vpack.c.b16 %v4671, %v4670
    %v4675 = vpack.c.b16 %v4673, %v4672
    %v4679 = vsel %vm325, %v4649, 0
    %v4682 = vsel %vm325, %v4650, 0
    %v4685 = vsel %vm325, %v4651, 0
    %v4688 = vsel %vm325, %v4652, 0
    %v4691 = vsel %vm325, %v4653, 0
    %v4694 = vsel %vm325, %v4654, 0
    %v4697 = vsel %vm325, %v4655, 0
    %v4700 = vsel %vm325, %v4656, 0
    %4702 = vmatprep.subr.bf16.mxu0 0
    %4703 = vmatpush1.bf16.msra.mxu0 %v4674
    %4704 = vmatprep.subr.bf16.mxu0 0
    %4705 = vmatpush1.bf16.msra.mxu0 %v4675
    %4706 = vmatprep.subr.bf16.mxu0 0
    %4707 = vmatpush1.bf16.msra.mxu0 0
    %4708 = vmatprep.subr.bf16.mxu0 0
    %4709 = vmatpush1.bf16.msra.mxu0 0
    %4710 = vmatprep.subr.bf16.mxu0 0
    %4711 = vmatpush1.bf16.msra.mxu0 0
    %4712 = vmatprep.subr.bf16.mxu0 0
    %4713 = vmatpush1.bf16.msra.mxu0 0
    %4714 = vmatprep.subr.bf16.mxu0 0
    %4715 = vmatpush1.bf16.msra.mxu0 0
    %4716 = vmatprep.subr.bf16.mxu0 0
    %4717 = vmatpush1.bf16.msra.mxu0 0
    %4718 = vmatprep.subr.bf16.mxu0 0
    %4719 = vmatpush1.bf16.msra.mxu0 0
    %4720 = vmatprep.subr.bf16.mxu0 0
    %4721 = vmatpush1.bf16.msra.mxu0 0
    %4722 = vmatprep.subr.bf16.mxu0 0
    %4723 = vmatpush1.bf16.msra.mxu0 0
    %4724 = vmatprep.subr.bf16.mxu0 0
    %4725 = vmatpush1.bf16.msra.mxu0 0
    %4726 = vmatprep.subr.bf16.mxu0 0
    %4727 = vmatpush1.bf16.msra.mxu0 0
    %4728 = vmatprep.subr.bf16.mxu0 0
    %4729 = vmatpush1.bf16.msra.mxu0 0
    %4730 = vmatprep.subr.bf16.mxu0 0
    %4731 = vmatpush1.bf16.msra.mxu0 0
    %4732 = vmatprep.subr.bf16.mxu0 0
    %4733 = vmatpush1.bf16.msra.mxu0 0
    %4734 = vmatprep.mubr.bf16.mxu0 0
    %4735 = vmatmul.mubr.bf16.gmra.mrb[0].mxu0 %v4679
    %v4736 = vpop.f32.mrb[0].mxu0
    %v4737 = vadd.f32 %v4665, %v4736
    %v4738 = vpop.f32.mrb[0].mxu0
    %v4739 = vpop.f32.mrb[0].mxu0
    %v4740 = vadd.f32 %v4665, %v4739
    %v4741 = vpop.f32.mrb[0].mxu0
    %4742 = vmatprep.mubr.bf16.mxu0 0
    %4743 = vmatmul.mubr.bf16.gmra.mrb[0].mxu0 %v4682
    %v4744 = vpop.f32.mrb[0].mxu0
    %v4745 = vadd.f32 %v4665, %v4744
    %v4746 = vpop.f32.mrb[0].mxu0
    %v4747 = vpop.f32.mrb[0].mxu0
    %v4748 = vadd.f32 %v4665, %v4747
    %v4749 = vpop.f32.mrb[0].mxu0
    %4750 = vmatprep.mubr.bf16.mxu0 0
    %4751 = vmatmul.mubr.bf16.gmra.mrb[0].mxu0 %v4685
    %v4752 = vpop.f32.mrb[0].mxu0
    %v4753 = vadd.f32 %v4665, %v4752
    %v4754 = vpop.f32.mrb[0].mxu0
    %v4755 = vpop.f32.mrb[0].mxu0
    %v4756 = vadd.f32 %v4665, %v4755
    %v4757 = vpop.f32.mrb[0].mxu0
    %4758 = vmatprep.mubr.bf16.mxu0 0
    %4759 = vmatmul.mubr.bf16.gmra.mrb[0].mxu0 %v4688
    %v4760 = vpop.f32.mrb[0].mxu0
    %v4761 = vadd.f32 %v4665, %v4760
    %v4762 = vpop.f32.mrb[0].mxu0
    %v4763 = vpop.f32.mrb[0].mxu0
    %v4764 = vadd.f32 %v4665, %v4763
    %v4765 = vpop.f32.mrb[0].mxu0
    %4766 = vmatprep.mubr.bf16.mxu0 0
    %4767 = vmatmul.mubr.bf16.gmra.mrb[0].mxu0 %v4691
    %v4768 = vpop.f32.mrb[0].mxu0
    %v4769 = vadd.f32 %v4665, %v4768
    %v4770 = vpop.f32.mrb[0].mxu0
    %v4771 = vpop.f32.mrb[0].mxu0
    %v4772 = vadd.f32 %v4665, %v4771
    %v4773 = vpop.f32.mrb[0].mxu0
    %4774 = vmatprep.mubr.bf16.mxu0 0
    %4775 = vmatmul.mubr.bf16.gmra.mrb[0].mxu0 %v4694
    %v4776 = vpop.f32.mrb[0].mxu0
    %v4777 = vadd.f32 %v4665, %v4776
    %v4778 = vpop.f32.mrb[0].mxu0
    %v4779 = vpop.f32.mrb[0].mxu0
    %v4780 = vadd.f32 %v4665, %v4779
    %v4781 = vpop.f32.mrb[0].mxu0
    %4782 = vmatprep.mubr.bf16.mxu0 0
    %4783 = vmatmul.mubr.bf16.gmra.mrb[0].mxu0 %v4697
    %v4784 = vpop.f32.mrb[0].mxu0
    %v4785 = vadd.f32 %v4665, %v4784
    %v4786 = vpop.f32.mrb[0].mxu0
    %v4787 = vpop.f32.mrb[0].mxu0
    %v4788 = vadd.f32 %v4665, %v4787
    %v4789 = vpop.f32.mrb[0].mxu0
    %4790 = vmatprep.mubr.bf16.mxu0 0
    %4791 = vmatmul.mubr.bf16.gmra.mrb[0].mxu0 %v4700
    %v4792 = vpop.f32.mrb[0].mxu0
    %v4793 = vadd.f32 %v4665, %v4792
    %v4794 = vpop.f32.mrb[0].mxu0
    %v4795 = vpop.f32.mrb[0].mxu0
    %v4796 = vadd.f32 %v4665, %v4795
    %v4797 = vpop.f32.mrb[0].mxu0
    %4798 = vdwg.mxu0
    %v4799 = vld [vmem:[%s0 + $0x110] sm:$0xf]
    %v4800 = vld [vmem:[%s0 + $0x114] sm:$0xf]
    %v4801 = vld [vmem:[%s0 + $0x118] sm:$0xf]
    %v4802 = vld [vmem:[%s0 + $0x11c] sm:$0xf]
    %v4803 = vld [vmem:[%s1 + $0x22] sm:$0x1]
    %v4804 = vlaneseq
    %v4805 = vshrl.u32 %v4804, 7
    %v4806 = vsub.s32 0, %v4805
    %v4807 = vrot.slane %v4803, %v4806
    %v4812 = vunpack.c.l.b16 %v4799
    %v4813 = vunpack.c.l.b16 %v4800
    %v4814 = vunpack.c.l.b16 %v4801
    %v4815 = vunpack.c.l.b16 %v4802
    %v4816 = vpack.c.b16 %v4813, %v4812
    %v4817 = vpack.c.b16 %v4815, %v4814
    %4820 = vmatprep.subr.bf16.mxu0 0
    %4821 = vmatpush1.bf16.msra.mxu0 %v4816
    %4822 = vmatprep.subr.bf16.mxu0 0
    %4823 = vmatpush1.bf16.msra.mxu0 %v4817
    %4824 = vmatprep.subr.bf16.mxu0 0
    %4825 = vmatpush1.bf16.msra.mxu0 0
    %4826 = vmatprep.subr.bf16.mxu0 0
    %4827 = vmatpush1.bf16.msra.mxu0 0
    %4828 = vmatprep.subr.bf16.mxu0 0
    %4829 = vmatpush1.bf16.msra.mxu0 0
    %4830 = vmatprep.subr.bf16.mxu0 0
    %4831 = vmatpush1.bf16.msra.mxu0 0
    %4832 = vmatprep.subr.bf16.mxu0 0
    %4833 = vmatpush1.bf16.msra.mxu0 0
    %4834 = vmatprep.subr.bf16.mxu0 0
    %4835 = vmatpush1.bf16.msra.mxu0 0
    %4836 = vmatprep.subr.bf16.mxu0 0
    %4837 = vmatpush1.bf16.msra.mxu0 0
    %4838 = vmatprep.subr.bf16.mxu0 0
    %4839 = vmatpush1.bf16.msra.mxu0 0
    %4840 = vmatprep.subr.bf16.mxu0 0
    %4841 = vmatpush1.bf16.msra.mxu0 0
    %4842 = vmatprep.subr.bf16.mxu0 0
    %4843 = vmatpush1.bf16.msra.mxu0 0
    %4844 = vmatprep.subr.bf16.mxu0 0
    %4845 = vmatpush1.bf16.msra.mxu0 0
    %4846 = vmatprep.subr.bf16.mxu0 0
    %4847 = vmatpush1.bf16.msra.mxu0 0
    %4848 = vmatprep.subr.bf16.mxu0 0
    %4849 = vmatpush1.bf16.msra.mxu0 0
    %4850 = vmatprep.subr.bf16.mxu0 0
    %4851 = vmatpush1.bf16.msra.mxu0 0
    %4852 = vmatprep.mubr.bf16.mxu0 0
    %4853 = vmatmul.mubr.bf16.gmra.mrb[0].mxu0 %v4679
    %v4854 = vpop.f32.mrb[0].mxu0
    %v4855 = vadd.f32 %v4807, %v4854
    %v4856 = vpop.f32.mrb[0].mxu0
    %v4857 = vpop.f32.mrb[0].mxu0
    %v4858 = vadd.f32 %v4807, %v4857
    %v4859 = vpop.f32.mrb[0].mxu0
    %4860 = vmatprep.mubr.bf16.mxu0 0
    %4861 = vmatmul.mubr.bf16.gmra.mrb[0].mxu0 %v4682
    %v4862 = vpop.f32.mrb[0].mxu0
    %v4863 = vadd.f32 %v4807, %v4862
    %v4864 = vpop.f32.mrb[0].mxu0
    %v4865 = vpop.f32.mrb[0].mxu0
    %v4866 = vadd.f32 %v4807, %v4865
    %v4867 = vpop.f32.mrb[0].mxu0
    %4868 = vmatprep.mubr.bf16.mxu0 0
    %4869 = vmatmul.mubr.bf16.gmra.mrb[0].mxu0 %v4685
    %v4870 = vpop.f32.mrb[0].mxu0
    %v4871 = vadd.f32 %v4807, %v4870
    %v4872 = vpop.f32.mrb[0].mxu0
    %v4873 = vpop.f32.mrb[0].mxu0
    %v4874 = vadd.f32 %v4807, %v4873
    %v4875 = vpop.f32.mrb[0].mxu0
    %4876 = vmatprep.mubr.bf16.mxu0 0
    %4877 = vmatmul.mubr.bf16.gmra.mrb[0].mxu0 %v4688
    %v4878 = vpop.f32.mrb[0].mxu0
    %v4879 = vadd.f32 %v4807, %v4878
    %v4880 = vpop.f32.mrb[0].mxu0
    %v4881 = vpop.f32.mrb[0].mxu0
    %v4882 = vadd.f32 %v4807, %v4881
    %v4883 = vpop.f32.mrb[0].mxu0
    %4884 = vmatprep.mubr.bf16.mxu0 0
    %4885 = vmatmul.mubr.bf16.gmra.mrb[0].mxu0 %v4691
    %v4886 = vpop.f32.mrb[0].mxu0
    %v4887 = vadd.f32 %v4807, %v4886
    %v4888 = vpop.f32.mrb[0].mxu0
    %v4889 = vpop.f32.mrb[0].mxu0
    %v4890 = vadd.f32 %v4807, %v4889
    %v4891 = vpop.f32.mrb[0].mxu0
    %4892 = vmatprep.mubr.bf16.mxu0 0
    %4893 = vmatmul.mubr.bf16.gmra.mrb[0].mxu0 %v4694
    %v4894 = vpop.f32.mrb[0].mxu0
    %v4895 = vadd.f32 %v4807, %v4894
    %v4896 = vpop.f32.mrb[0].mxu0
    %v4897 = vpop.f32.mrb[0].mxu0
    %v4898 = vadd.f32 %v4807, %v4897
    %v4899 = vpop.f32.mrb[0].mxu0
    %4900 = vmatprep.mubr.bf16.mxu0 0
    %4901 = vmatmul.mubr.bf16.gmra.mrb[0].mxu0 %v4697
    %v4902 = vpop.f32.mrb[0].mxu0
    %v4903 = vadd.f32 %v4807, %v4902
    %v4904 = vpop.f32.mrb[0].mxu0
    %v4905 = vpop.f32.mrb[0].mxu0
    %v4906 = vadd.f32 %v4807, %v4905
    %v4907 = vpop.f32.mrb[0].mxu0
    %4908 = vmatprep.mubr.bf16.mxu0 0
    %4909 = vmatmul.mubr.bf16.gmra.mrb[0].mxu0 %v4700
    %v4910 = vpop.f32.mrb[0].mxu0
    %v4911 = vadd.f32 %v4807, %v4910
    %v4912 = vpop.f32.mrb[0].mxu0
    %v4913 = vpop.f32.mrb[0].mxu0
    %v4914 = vadd.f32 %v4807, %v4913
    %v4915 = vpop.f32.mrb[0].mxu0
    %4916 = vdwg.mxu0
    %v4917 = vld [vmem:[%s0 + $0xf0] sm:$0xf]
    %v4918 = vld [vmem:[%s0 + $0xf4] sm:$0xf]
    %v4919 = vld [vmem:[%s0 + $0xf8] sm:$0xf]
    %v4920 = vld [vmem:[%s0 + $0xfc] sm:$0xf]
    %v4921 = vld [vmem:[%s1 + $0x20] sm:$0x1]
    %v4922 = vlaneseq
    %v4923 = vshrl.u32 %v4922, 7
    %v4924 = vsub.s32 0, %v4923
    %v4925 = vrot.slane %v4921, %v4924
    %v4930 = vunpack.c.l.b16 %v4917
    %v4931 = vunpack.c.l.b16 %v4918
    %v4932 = vunpack.c.l.b16 %v4919
    %v4933 = vunpack.c.l.b16 %v4920
    %v4934 = vpack.c.b16 %v4931, %v4930
    %v4935 = vpack.c.b16 %v4933, %v4932
    %4938 = vmatprep.subr.bf16.mxu0 0
    %4939 = vmatpush1.bf16.msra.mxu0 %v4934
    %4940 = vmatprep.subr.bf16.mxu0 0
    %4941 = vmatpush1.bf16.msra.mxu0 %v4935
    %4942 = vmatprep.subr.bf16.mxu0 0
    %4943 = vmatpush1.bf16.msra.mxu0 0
    %4944 = vmatprep.subr.bf16.mxu0 0
    %4945 = vmatpush1.bf16.msra.mxu0 0
    %4946 = vmatprep.subr.bf16.mxu0 0
    %4947 = vmatpush1.bf16.msra.mxu0 0
    %4948 = vmatprep.subr.bf16.mxu0 0
    %4949 = vmatpush1.bf16.msra.mxu0 0
    %4950 = vmatprep.subr.bf16.mxu0 0
    %4951 = vmatpush1.bf16.msra.mxu0 0
    %4952 = vmatprep.subr.bf16.mxu0 0
    %4953 = vmatpush1.bf16.msra.mxu0 0
    %4954 = vmatprep.subr.bf16.mxu0 0
    %4955 = vmatpush1.bf16.msra.mxu0 0
    %4956 = vmatprep.subr.bf16.mxu0 0
    %4957 = vmatpush1.bf16.msra.mxu0 0
    %4958 = vmatprep.subr.bf16.mxu0 0
    %4959 = vmatpush1.bf16.msra.mxu0 0
    %4960 = vmatprep.subr.bf16.mxu0 0
    %4961 = vmatpush1.bf16.msra.mxu0 0
    %4962 = vmatprep.subr.bf16.mxu0 0
    %4963 = vmatpush1.bf16.msra.mxu0 0
    %4964 = vmatprep.subr.bf16.mxu0 0
    %4965 = vmatpush1.bf16.msra.mxu0 0
    %4966 = vmatprep.subr.bf16.mxu0 0
    %4967 = vmatpush1.bf16.msra.mxu0 0
    %4968 = vmatprep.subr.bf16.mxu0 0
    %4969 = vmatpush1.bf16.msra.mxu0 0
    %4970 = vmatprep.mubr.bf16.mxu0 0
    %4971 = vmatmul.mubr.bf16.gmra.mrb[0].mxu0 %v4679
    %v4972 = vpop.f32.mrb[0].mxu0
    %v4973 = vadd.f32 %v4925, %v4972
    %v4974 = vpop.f32.mrb[0].mxu0
    %v4975 = vpop.f32.mrb[0].mxu0
    %v4976 = vadd.f32 %v4925, %v4975
    %v4977 = vpop.f32.mrb[0].mxu0
    %4978 = vmatprep.mubr.bf16.mxu0 0
    %4979 = vmatmul.mubr.bf16.gmra.mrb[0].mxu0 %v4682
    %v4980 = vpop.f32.mrb[0].mxu0
    %v4981 = vadd.f32 %v4925, %v4980
    %v4982 = vpop.f32.mrb[0].mxu0
    %v4983 = vpop.f32.mrb[0].mxu0
    %v4984 = vadd.f32 %v4925, %v4983
    %v4985 = vpop.f32.mrb[0].mxu0
    %4986 = vmatprep.mubr.bf16.mxu0 0
    %4987 = vmatmul.mubr.bf16.gmra.mrb[0].mxu0 %v4685
    %v4988 = vpop.f32.mrb[0].mxu0
    %v4989 = vadd.f32 %v4925, %v4988
    %v4990 = vpop.f32.mrb[0].mxu0
    %v4991 = vpop.f32.mrb[0].mxu0
    %v4992 = vadd.f32 %v4925, %v4991
    %v4993 = vpop.f32.mrb[0].mxu0
    %4994 = vmatprep.mubr.bf16.mxu0 0
    %4995 = vmatmul.mubr.bf16.gmra.mrb[0].mxu0 %v4688
    %v4996 = vpop.f32.mrb[0].mxu0
    %v4997 = vadd.f32 %v4925, %v4996
    %v4998 = vpop.f32.mrb[0].mxu0
    %v4999 = vpop.f32.mrb[0].mxu0
    %v5000 = vadd.f32 %v4925, %v4999
    %v5001 = vpop.f32.mrb[0].mxu0
    %5002 = vmatprep.mubr.bf16.mxu0 0
    %5003 = vmatmul.mubr.bf16.gmra.mrb[0].mxu0 %v4691
    %v5004 = vpop.f32.mrb[0].mxu0
    %v5005 = vadd.f32 %v4925, %v5004
    %v5006 = vpop.f32.mrb[0].mxu0
    %v5007 = vpop.f32.mrb[0].mxu0
    %v5008 = vadd.f32 %v4925, %v5007
    %v5009 = vpop.f32.mrb[0].mxu0
    %5010 = vmatprep.mubr.bf16.mxu0 0
    %5011 = vmatmul.mubr.bf16.gmra.mrb[0].mxu0 %v4694
    %v5012 = vpop.f32.mrb[0].mxu0
    %v5013 = vadd.f32 %v4925, %v5012
    %v5014 = vpop.f32.mrb[0].mxu0
    %v5015 = vpop.f32.mrb[0].mxu0
    %v5016 = vadd.f32 %v4925, %v5015
    %v5017 = vpop.f32.mrb[0].mxu0
    %5018 = vmatprep.mubr.bf16.mxu0 0
    %5019 = vmatmul.mubr.bf16.gmra.mrb[0].mxu0 %v4697
    %v5020 = vpop.f32.mrb[0].mxu0
    %v5021 = vadd.f32 %v4925, %v5020
    %v5022 = vpop.f32.mrb[0].mxu0
    %v5023 = vpop.f32.mrb[0].mxu0
    %v5024 = vadd.f32 %v4925, %v5023
    %v5025 = vpop.f32.mrb[0].mxu0
    %5026 = vmatprep.mubr.bf16.mxu0 0
    %5027 = vmatmul.mubr.bf16.gmra.mrb[0].mxu0 %v4700
    %v5028 = vpop.f32.mrb[0].mxu0
    %v5029 = vadd.f32 %v4925, %v5028
    %v5030 = vpop.f32.mrb[0].mxu0
    %v5031 = vpop.f32.mrb[0].mxu0
    %v5032 = vadd.f32 %v4925, %v5031
    %v5033 = vpop.f32.mrb[0].mxu0
    %5034 = vdwg.mxu0
    %v5035 = vld [vmem:[%s0 + $0x120] sm:$0xf]
    %v5036 = vld [vmem:[%s0 + $0x124] sm:$0xf]
    %v5037 = vld [vmem:[%s0 + $0x128] sm:$0xf]
    %v5038 = vld [vmem:[%s0 + $0x12c] sm:$0xf]
    %v5039 = vld [vmem:[%s1 + $0x23] sm:$0x1]
    %v5040 = vlaneseq
    %v5041 = vshrl.u32 %v5040, 7
    %v5042 = vsub.s32 0, %v5041
    %v5043 = vrot.slane %v5039, %v5042
    %v5048 = vunpack.c.l.b16 %v5035
    %v5049 = vunpack.c.l.b16 %v5036
    %v5050 = vunpack.c.l.b16 %v5037
    %v5051 = vunpack.c.l.b16 %v5038
    %v5052 = vpack.c.b16 %v5049, %v5048
    %v5053 = vpack.c.b16 %v5051, %v5050
    %5056 = vmatprep.subr.bf16.mxu0 0
    %5057 = vmatpush1.bf16.msra.mxu0 %v5052
    %5058 = vmatprep.subr.bf16.mxu0 0
    %5059 = vmatpush1.bf16.msra.mxu0 %v5053
    %5060 = vmatprep.subr.bf16.mxu0 0
    %5061 = vmatpush1.bf16.msra.mxu0 0
    %5062 = vmatprep.subr.bf16.mxu0 0
    %5063 = vmatpush1.bf16.msra.mxu0 0
    %5064 = vmatprep.subr.bf16.mxu0 0
    %5065 = vmatpush1.bf16.msra.mxu0 0
    %5066 = vmatprep.subr.bf16.mxu0 0
    %5067 = vmatpush1.bf16.msra.mxu0 0
    %5068 = vmatprep.subr.bf16.mxu0 0
    %5069 = vmatpush1.bf16.msra.mxu0 0
    %5070 = vmatprep.subr.bf16.mxu0 0
    %5071 = vmatpush1.bf16.msra.mxu0 0
    %5072 = vmatprep.subr.bf16.mxu0 0
    %5073 = vmatpush1.bf16.msra.mxu0 0
    %5074 = vmatprep.subr.bf16.mxu0 0
    %5075 = vmatpush1.bf16.msra.mxu0 0
    %5076 = vmatprep.subr.bf16.mxu0 0
    %5077 = vmatpush1.bf16.msra.mxu0 0
    %5078 = vmatprep.subr.bf16.mxu0 0
    %5079 = vmatpush1.bf16.msra.mxu0 0
    %5080 = vmatprep.subr.bf16.mxu0 0
    %5081 = vmatpush1.bf16.msra.mxu0 0
    %5082 = vmatprep.subr.bf16.mxu0 0
    %5083 = vmatpush1.bf16.msra.mxu0 0
    %5084 = vmatprep.subr.bf16.mxu0 0
    %5085 = vmatpush1.bf16.msra.mxu0 0
    %5086 = vmatprep.subr.bf16.mxu0 0
    %5087 = vmatpush1.bf16.msra.mxu0 0
    %5088 = vmatprep.mubr.bf16.mxu0 0
    %5089 = vmatmul.mubr.bf16.gmra.mrb[0].mxu0 %v4679
    %v5090 = vpop.f32.mrb[0].mxu0
    %v5091 = vadd.f32 %v5043, %v5090
    %v5092 = vpop.f32.mrb[0].mxu0
    %v5093 = vpop.f32.mrb[0].mxu0
    %v5094 = vadd.f32 %v5043, %v5093
    %v5095 = vpop.f32.mrb[0].mxu0
    %5096 = vmatprep.mubr.bf16.mxu0 0
    %5097 = vmatmul.mubr.bf16.gmra.mrb[0].mxu0 %v4682
    %v5098 = vpop.f32.mrb[0].mxu0
    %v5099 = vadd.f32 %v5043, %v5098
    %v5100 = vpop.f32.mrb[0].mxu0
    %v5101 = vpop.f32.mrb[0].mxu0
    %v5102 = vadd.f32 %v5043, %v5101
    %v5103 = vpop.f32.mrb[0].mxu0
    %5104 = vmatprep.mubr.bf16.mxu0 0
    %5105 = vmatmul.mubr.bf16.gmra.mrb[0].mxu0 %v4685
    %v5106 = vpop.f32.mrb[0].mxu0
    %v5107 = vadd.f32 %v5043, %v5106
    %v5108 = vpop.f32.mrb[0].mxu0
    %v5109 = vpop.f32.mrb[0].mxu0
    %v5110 = vadd.f32 %v5043, %v5109
    %v5111 = vpop.f32.mrb[0].mxu0
    %5112 = vmatprep.mubr.bf16.mxu0 0
    %5113 = vmatmul.mubr.bf16.gmra.mrb[0].mxu0 %v4688
    %v5114 = vpop.f32.mrb[0].mxu0
    %v5115 = vadd.f32 %v5043, %v5114
    %v5116 = vpop.f32.mrb[0].mxu0
    %v5117 = vpop.f32.mrb[0].mxu0
    %v5118 = vadd.f32 %v5043, %v5117
    %v5119 = vpop.f32.mrb[0].mxu0
    %5120 = vmatprep.mubr.bf16.mxu0 0
    %5121 = vmatmul.mubr.bf16.gmra.mrb[0].mxu0 %v4691
    %v5122 = vpop.f32.mrb[0].mxu0
    %v5123 = vadd.f32 %v5043, %v5122
    %v5124 = vpop.f32.mrb[0].mxu0
    %v5125 = vpop.f32.mrb[0].mxu0
    %v5126 = vadd.f32 %v5043, %v5125
    %v5127 = vpop.f32.mrb[0].mxu0
    %5128 = vmatprep.mubr.bf16.mxu0 0
    %5129 = vmatmul.mubr.bf16.gmra.mrb[0].mxu0 %v4694
    %v5130 = vpop.f32.mrb[0].mxu0
    %v5131 = vadd.f32 %v5043, %v5130
    %v5132 = vpop.f32.mrb[0].mxu0
    %v5133 = vpop.f32.mrb[0].mxu0
    %v5134 = vadd.f32 %v5043, %v5133
    %v5135 = vpop.f32.mrb[0].mxu0
    %5136 = vmatprep.mubr.bf16.mxu0 0
    %5137 = vmatmul.mubr.bf16.gmra.mrb[0].mxu0 %v4697
    %v5138 = vpop.f32.mrb[0].mxu0
    %v5139 = vadd.f32 %v5043, %v5138
    %v5140 = vpop.f32.mrb[0].mxu0
    %v5141 = vpop.f32.mrb[0].mxu0
    %v5142 = vadd.f32 %v5043, %v5141
    %v5143 = vpop.f32.mrb[0].mxu0
    %5144 = vmatprep.mubr.bf16.mxu0 0
    %5145 = vmatmul.mubr.bf16.gmra.mrb[0].mxu0 %v4700
    %v5146 = vpop.f32.mrb[0].mxu0
    %v5147 = vadd.f32 %v5043, %v5146
    %v5148 = vpop.f32.mrb[0].mxu0
    %v5149 = vpop.f32.mrb[0].mxu0
    %v5150 = vadd.f32 %v5043, %v5149
    %v5151 = vpop.f32.mrb[0].mxu0
    %5152 = vdwg.mxu0
    %v5153 = vld [vmem:[%s0 + $0x100] sm:$0xf]
    %v5154 = vld [vmem:[%s0 + $0x104] sm:$0xf]
    %v5155 = vld [vmem:[%s0 + $0x108] sm:$0xf]
    %v5156 = vld [vmem:[%s0 + $0x10c] sm:$0xf]
    %v5157 = vld [vmem:[%s1 + $0x21] sm:$0x1]
    %v5158 = vlaneseq
    %v5159 = vshrl.u32 %v5158, 7
    %v5160 = vsub.s32 0, %v5159
    %v5161 = vrot.slane %v5157, %v5160
    %v5166 = vunpack.c.l.b16 %v5153
    %v5167 = vunpack.c.l.b16 %v5154
    %v5168 = vunpack.c.l.b16 %v5155
    %v5169 = vunpack.c.l.b16 %v5156
    %v5170 = vpack.c.b16 %v5167, %v5166
    %v5171 = vpack.c.b16 %v5169, %v5168
    %5174 = vmatprep.subr.bf16.mxu0 0
    %5175 = vmatpush1.bf16.msra.mxu0 %v5170
    %5176 = vmatprep.subr.bf16.mxu0 0
    %5177 = vmatpush1.bf16.msra.mxu0 %v5171
    %5178 = vmatprep.subr.bf16.mxu0 0
    %5179 = vmatpush1.bf16.msra.mxu0 0
    %5180 = vmatprep.subr.bf16.mxu0 0
    %5181 = vmatpush1.bf16.msra.mxu0 0
    %5182 = vmatprep.subr.bf16.mxu0 0
    %5183 = vmatpush1.bf16.msra.mxu0 0
    %5184 = vmatprep.subr.bf16.mxu0 0
    %5185 = vmatpush1.bf16.msra.mxu0 0
    %5186 = vmatprep.subr.bf16.mxu0 0
    %5187 = vmatpush1.bf16.msra.mxu0 0
    %5188 = vmatprep.subr.bf16.mxu0 0
    %5189 = vmatpush1.bf16.msra.mxu0 0
    %5190 = vmatprep.subr.bf16.mxu0 0
    %5191 = vmatpush1.bf16.msra.mxu0 0
    %5192 = vmatprep.subr.bf16.mxu0 0
    %5193 = vmatpush1.bf16.msra.mxu0 0
    %5194 = vmatprep.subr.bf16.mxu0 0
    %5195 = vmatpush1.bf16.msra.mxu0 0
    %5196 = vmatprep.subr.bf16.mxu0 0
    %5197 = vmatpush1.bf16.msra.mxu0 0
    %5198 = vmatprep.subr.bf16.mxu0 0
    %5199 = vmatpush1.bf16.msra.mxu0 0
    %5200 = vmatprep.subr.bf16.mxu0 0
    %5201 = vmatpush1.bf16.msra.mxu0 0
    %5202 = vmatprep.subr.bf16.mxu0 0
    %5203 = vmatpush1.bf16.msra.mxu0 0
    %5204 = vmatprep.subr.bf16.mxu0 0
    %5205 = vmatpush1.bf16.msra.mxu0 0
    %5206 = vmatprep.mubr.bf16.mxu0 0
    %5207 = vmatmul.mubr.bf16.gmra.mrb[0].mxu0 %v4679
    %v5208 = vpop.f32.mrb[0].mxu0
    %v5209 = vadd.f32 %v5161, %v5208
    %v5210 = vpop.f32.mrb[0].mxu0
    %v5211 = vpop.f32.mrb[0].mxu0
    %v5212 = vadd.f32 %v5161, %v5211
    %v5213 = vpop.f32.mrb[0].mxu0
    %5214 = vmatprep.mubr.bf16.mxu0 0
    %5215 = vmatmul.mubr.bf16.gmra.mrb[0].mxu0 %v4682
    %v5216 = vpop.f32.mrb[0].mxu0
    %v5217 = vadd.f32 %v5161, %v5216
    %v5218 = vpop.f32.mrb[0].mxu0
    %v5219 = vpop.f32.mrb[0].mxu0
    %v5220 = vadd.f32 %v5161, %v5219
    %v5221 = vpop.f32.mrb[0].mxu0
    %5222 = vmatprep.mubr.bf16.mxu0 0
    %5223 = vmatmul.mubr.bf16.gmra.mrb[0].mxu0 %v4685
    %v5224 = vpop.f32.mrb[0].mxu0
    %v5225 = vadd.f32 %v5161, %v5224
    %v5226 = vpop.f32.mrb[0].mxu0
    %v5227 = vpop.f32.mrb[0].mxu0
    %v5228 = vadd.f32 %v5161, %v5227
    %v5229 = vpop.f32.mrb[0].mxu0
    %5230 = vmatprep.mubr.bf16.mxu0 0
    %5231 = vmatmul.mubr.bf16.gmra.mrb[0].mxu0 %v4688
    %v5232 = vpop.f32.mrb[0].mxu0
    %v5233 = vadd.f32 %v5161, %v5232
    %v5234 = vpop.f32.mrb[0].mxu0
    %v5235 = vpop.f32.mrb[0].mxu0
    %v5236 = vadd.f32 %v5161, %v5235
    %v5237 = vpop.f32.mrb[0].mxu0
    %5238 = vmatprep.mubr.bf16.mxu0 0
    %5239 = vmatmul.mubr.bf16.gmra.mrb[0].mxu0 %v4691
    %v5240 = vpop.f32.mrb[0].mxu0
    %v5241 = vadd.f32 %v5161, %v5240
    %v5242 = vpop.f32.mrb[0].mxu0
    %v5243 = vpop.f32.mrb[0].mxu0
    %v5244 = vadd.f32 %v5161, %v5243
    %v5245 = vpop.f32.mrb[0].mxu0
    %5246 = vmatprep.mubr.bf16.mxu0 0
    %5247 = vmatmul.mubr.bf16.gmra.mrb[0].mxu0 %v4694
    %v5248 = vpop.f32.mrb[0].mxu0
    %v5249 = vadd.f32 %v5161, %v5248
    %v5250 = vpop.f32.mrb[0].mxu0
    %v5251 = vpop.f32.mrb[0].mxu0
    %v5252 = vadd.f32 %v5161, %v5251
    %v5253 = vpop.f32.mrb[0].mxu0
    %5254 = vmatprep.mubr.bf16.mxu0 0
    %5255 = vmatmul.mubr.bf16.gmra.mrb[0].mxu0 %v4697
    %v5256 = vpop.f32.mrb[0].mxu0
    %v5257 = vadd.f32 %v5161, %v5256
    %v5258 = vpop.f32.mrb[0].mxu0
    %v5259 = vpop.f32.mrb[0].mxu0
    %v5260 = vadd.f32 %v5161, %v5259
    %v5261 = vpop.f32.mrb[0].mxu0
    %5262 = vmatprep.mubr.bf16.mxu0 0
    %5263 = vmatmul.mubr.bf16.gmra.mrb[0].mxu0 %v4700
    %v5264 = vpop.f32.mrb[0].mxu0
    %v5265 = vadd.f32 %v5161, %v5264
    %v5266 = vpop.f32.mrb[0].mxu0
    %v5267 = vpop.f32.mrb[0].mxu0
    %v5268 = vadd.f32 %v5161, %v5267
    %v5269 = vpop.f32.mrb[0].mxu0
    %5270 = vdwg.mxu0
    %v5271 = vld [vmem:[%s0 + $0x130] sm:$0xf]
    %v5272 = vld [vmem:[%s0 + $0x134] sm:$0xf]
    %v5273 = vld [vmem:[%s0 + $0x138] sm:$0xf]
    %v5274 = vld [vmem:[%s0 + $0x13c] sm:$0xf]
    %v5275 = vld [vmem:[%s1 + $0x24] sm:$0x1]
    %v5276 = vlaneseq
    %v5277 = vshrl.u32 %v5276, 7
    %v5278 = vsub.s32 0, %v5277
    %v5279 = vrot.slane %v5275, %v5278
    %v5284 = vunpack.c.l.b16 %v5271
    %v5285 = vunpack.c.l.b16 %v5272
    %v5286 = vunpack.c.l.b16 %v5273
    %v5287 = vunpack.c.l.b16 %v5274
    %v5288 = vpack.c.b16 %v5285, %v5284
    %v5289 = vpack.c.b16 %v5287, %v5286
    %5292 = vmatprep.subr.bf16.mxu0 0
    %5293 = vmatpush1.bf16.msra.mxu0 %v5288
    %5294 = vmatprep.subr.bf16.mxu0 0
    %5295 = vmatpush1.bf16.msra.mxu0 %v5289
    %5296 = vmatprep.subr.bf16.mxu0 0
    %5297 = vmatpush1.bf16.msra.mxu0 0
    %5298 = vmatprep.subr.bf16.mxu0 0
    %5299 = vmatpush1.bf16.msra.mxu0 0
    %5300 = vmatprep.subr.bf16.mxu0 0
    %5301 = vmatpush1.bf16.msra.mxu0 0
    %5302 = vmatprep.subr.bf16.mxu0 0
    %5303 = vmatpush1.bf16.msra.mxu0 0
    %5304 = vmatprep.subr.bf16.mxu0 0
    %5305 = vmatpush1.bf16.msra.mxu0 0
    %5306 = vmatprep.subr.bf16.mxu0 0
    %5307 = vmatpush1.bf16.msra.mxu0 0
    %5308 = vmatprep.subr.bf16.mxu0 0
    %5309 = vmatpush1.bf16.msra.mxu0 0
    %5310 = vmatprep.subr.bf16.mxu0 0
    %5311 = vmatpush1.bf16.msra.mxu0 0
    %5312 = vmatprep.subr.bf16.mxu0 0
    %5313 = vmatpush1.bf16.msra.mxu0 0
    %5314 = vmatprep.subr.bf16.mxu0 0
    %5315 = vmatpush1.bf16.msra.mxu0 0
    %5316 = vmatprep.subr.bf16.mxu0 0
    %5317 = vmatpush1.bf16.msra.mxu0 0
    %5318 = vmatprep.subr.bf16.mxu0 0
    %5319 = vmatpush1.bf16.msra.mxu0 0
    %5320 = vmatprep.subr.bf16.mxu0 0
    %5321 = vmatpush1.bf16.msra.mxu0 0
    %5322 = vmatprep.subr.bf16.mxu0 0
    %5323 = vmatpush1.bf16.msra.mxu0 0
    %5324 = vmatprep.mubr.bf16.mxu0 0
    %5325 = vmatmul.mubr.bf16.gmra.mrb[0].mxu0 %v4679
    %v5326 = vpop.f32.mrb[0].mxu0
    %v5327 = vadd.f32 %v5279, %v5326
    %v5328 = vpop.f32.mrb[0].mxu0
    %v5329 = vpop.f32.mrb[0].mxu0
    %v5330 = vadd.f32 %v5279, %v5329
    %v5331 = vpop.f32.mrb[0].mxu0
    %5332 = vmatprep.mubr.bf16.mxu0 0
    %5333 = vmatmul.mubr.bf16.gmra.mrb[0].mxu0 %v4682
    %v5334 = vpop.f32.mrb[0].mxu0
    %v5335 = vadd.f32 %v5279, %v5334
    %v5336 = vpop.f32.mrb[0].mxu0
    %v5337 = vpop.f32.mrb[0].mxu0
    %v5338 = vadd.f32 %v5279, %v5337
    %v5339 = vpop.f32.mrb[0].mxu0
    %5340 = vmatprep.mubr.bf16.mxu0 0
    %5341 = vmatmul.mubr.bf16.gmra.mrb[0].mxu0 %v4685
    %v5342 = vpop.f32.mrb[0].mxu0
    %v5343 = vadd.f32 %v5279, %v5342
    %v5344 = vpop.f32.mrb[0].mxu0
    %v5345 = vpop.f32.mrb[0].mxu0
    %v5346 = vadd.f32 %v5279, %v5345
    %v5347 = vpop.f32.mrb[0].mxu0
    %5348 = vmatprep.mubr.bf16.mxu0 0
    %5349 = vmatmul.mubr.bf16.gmra.mrb[0].mxu0 %v4688
    %v5350 = vpop.f32.mrb[0].mxu0
    %v5351 = vadd.f32 %v5279, %v5350
    %v5352 = vpop.f32.mrb[0].mxu0
    %v5353 = vpop.f32.mrb[0].mxu0
    %v5354 = vadd.f32 %v5279, %v5353
    %v5355 = vpop.f32.mrb[0].mxu0
    %5356 = vmatprep.mubr.bf16.mxu0 0
    %5357 = vmatmul.mubr.bf16.gmra.mrb[0].mxu0 %v4691
    %v5358 = vpop.f32.mrb[0].mxu0
    %v5359 = vadd.f32 %v5279, %v5358
    %v5360 = vpop.f32.mrb[0].mxu0
    %v5361 = vpop.f32.mrb[0].mxu0
    %v5362 = vadd.f32 %v5279, %v5361
    %v5363 = vpop.f32.mrb[0].mxu0
    %5364 = vmatprep.mubr.bf16.mxu0 0
    %5365 = vmatmul.mubr.bf16.gmra.mrb[0].mxu0 %v4694
    %v5366 = vpop.f32.mrb[0].mxu0
    %v5367 = vadd.f32 %v5279, %v5366
    %v5368 = vpop.f32.mrb[0].mxu0
    %v5369 = vpop.f32.mrb[0].mxu0
    %v5370 = vadd.f32 %v5279, %v5369
    %v5371 = vpop.f32.mrb[0].mxu0
    %5372 = vmatprep.mubr.bf16.mxu0 0
    %5373 = vmatmul.mubr.bf16.gmra.mrb[0].mxu0 %v4697
    %v5374 = vpop.f32.mrb[0].mxu0
    %v5375 = vadd.f32 %v5279, %v5374
    %v5376 = vpop.f32.mrb[0].mxu0
    %v5377 = vpop.f32.mrb[0].mxu0
    %v5378 = vadd.f32 %v5279, %v5377
    %v5379 = vpop.f32.mrb[0].mxu0
    %5380 = vmatprep.mubr.bf16.mxu0 0
    %5381 = vmatmul.mubr.bf16.gmra.mrb[0].mxu0 %v4700
    %v5382 = vpop.f32.mrb[0].mxu0
    %v5383 = vadd.f32 %v5279, %v5382
    %v5384 = vpop.f32.mrb[0].mxu0
    %v5385 = vpop.f32.mrb[0].mxu0
    %v5386 = vadd.f32 %v5279, %v5385
    %v5387 = vpop.f32.mrb[0].mxu0
    %5388 = vdwg.mxu0
    %v5389 = vpack.c.bf16 %v4740, %v4737
    %v5390 = vpack.c.bf16 %v4748, %v4745
    %v5391 = vpack.c.bf16 %v4756, %v4753
    %v5392 = vpack.c.bf16 %v4764, %v4761
    %v5393 = vpack.c.bf16 %v4772, %v4769
    %v5394 = vpack.c.bf16 %v4780, %v4777
    %v5395 = vpack.c.bf16 %v4788, %v4785
    %v5396 = vpack.c.bf16 %v4796, %v4793
    %v5397 = vpack.c.bf16 %v4858, %v4855
    %v5398 = vpack.c.bf16 %v4866, %v4863
    %v5399 = vpack.c.bf16 %v4874, %v4871
    %v5400 = vpack.c.bf16 %v4882, %v4879
    %v5401 = vpack.c.bf16 %v4890, %v4887
    %v5402 = vpack.c.bf16 %v4898, %v4895
    %v5403 = vpack.c.bf16 %v4906, %v4903
    %v5404 = vpack.c.bf16 %v4914, %v4911
    %v5405 = vpack.c.bf16 %v4976, %v4973
    %v5406 = vpack.c.bf16 %v4984, %v4981
    %v5407 = vpack.c.bf16 %v4992, %v4989
    %v5408 = vpack.c.bf16 %v5000, %v4997
    %v5409 = vpack.c.bf16 %v5008, %v5005
    %v5410 = vpack.c.bf16 %v5016, %v5013
    %v5411 = vpack.c.bf16 %v5024, %v5021
    %v5412 = vpack.c.bf16 %v5032, %v5029
    %v5413 = vpack.c.bf16 %v5094, %v5091
    %v5414 = vpack.c.bf16 %v5102, %v5099
    %v5415 = vpack.c.bf16 %v5110, %v5107
    %v5416 = vpack.c.bf16 %v5118, %v5115
    %v5417 = vpack.c.bf16 %v5126, %v5123
    %v5418 = vpack.c.bf16 %v5134, %v5131
    %v5419 = vpack.c.bf16 %v5142, %v5139
    %v5420 = vpack.c.bf16 %v5150, %v5147
    %v5422 = vsel %vm1440, %v5389, 0
    %v5425 = vsel %vm1440, %v5405, 0
    %5427 = vmatprep.subr.bf16.mxu0 0
    %5428 = vmatpush1.bf16.xpose.msra.mxu0 %v5425
    %5429 = vmatprep.subr.bf16.mxu0 0
    %5430 = vmatpush1.bf16.xpose.msra.mxu0 0
    %5431 = vmatprep.subr.bf16.mxu0 0
    %5432 = vmatpush1.bf16.xpose.msra.mxu0 0
    %5433 = vmatprep.subr.bf16.mxu0 0
    %5434 = vmatpush1.bf16.xpose.msra.mxu0 0
    %5435 = vmatprep.subr.bf16.mxu0 0
    %5436 = vmatpush1.bf16.xpose.msra.mxu0 0
    %5437 = vmatprep.subr.bf16.mxu0 0
    %5438 = vmatpush1.bf16.xpose.msra.mxu0 0
    %5439 = vmatprep.subr.bf16.mxu0 0
    %5440 = vmatpush1.bf16.xpose.msra.mxu0 0
    %5441 = vmatprep.subr.bf16.mxu0 0
    %5442 = vmatpush1.bf16.xpose.msra.mxu0 0
    %5443 = vmatprep.subr.bf16.mxu0 0
    %5444 = vmatpush1.bf16.xpose.msra.mxu0 0
    %5445 = vmatprep.subr.bf16.mxu0 0
    %5446 = vmatpush1.bf16.xpose.msra.mxu0 0
    %5447 = vmatprep.subr.bf16.mxu0 0
    %5448 = vmatpush1.bf16.xpose.msra.mxu0 0
    %5449 = vmatprep.subr.bf16.mxu0 0
    %5450 = vmatpush1.bf16.xpose.msra.mxu0 0
    %5451 = vmatprep.subr.bf16.mxu0 0
    %5452 = vmatpush1.bf16.xpose.msra.mxu0 0
    %5453 = vmatprep.subr.bf16.mxu0 0
    %5454 = vmatpush1.bf16.xpose.msra.mxu0 0
    %5455 = vmatprep.subr.bf16.mxu0 0
    %5456 = vmatpush1.bf16.xpose.msra.mxu0 0
    %5457 = vmatprep.subr.bf16.mxu0 0
    %5458 = vmatpush1.bf16.xpose.msra.mxu0 0
    %5459 = vmatprep.mubr.bf16.mxu0 0
    %5460 = vmatmul.mubr.bf16.gmra.mrb[0].mxu0 %v5422
    %v5461 = vpop.f32.mrb[0].mxu0
    %v5462 = vadd.f32 0.0, %v5461
    %v5463 = vpop.f32.mrb[0].mxu0
    %v5464 = vpop.f32.mrb[0].mxu0
    %v5465 = vadd.f32 0.0, %v5464
    %v5466 = vpop.f32.mrb[0].mxu0
    %5467 = vdwg.mxu0
    %v5469 = vsel %vm1440, %v5390, 0
    %v5472 = vsel %vm1440, %v5406, 0
    %5474 = vmatprep.subr.bf16.mxu0 0
    %5475 = vmatpush1.bf16.xpose.msra.mxu0 %v5472
    %5476 = vmatprep.subr.bf16.mxu0 0
    %5477 = vmatpush1.bf16.xpose.msra.mxu0 0
    %5478 = vmatprep.subr.bf16.mxu0 0
    %5479 = vmatpush1.bf16.xpose.msra.mxu0 0
    %5480 = vmatprep.subr.bf16.mxu0 0
    %5481 = vmatpush1.bf16.xpose.msra.mxu0 0
    %5482 = vmatprep.subr.bf16.mxu0 0
    %5483 = vmatpush1.bf16.xpose.msra.mxu0 0
    %5484 = vmatprep.subr.bf16.mxu0 0
    %5485 = vmatpush1.bf16.xpose.msra.mxu0 0
    %5486 = vmatprep.subr.bf16.mxu0 0
    %5487 = vmatpush1.bf16.xpose.msra.mxu0 0
    %5488 = vmatprep.subr.bf16.mxu0 0
    %5489 = vmatpush1.bf16.xpose.msra.mxu0 0
    %5490 = vmatprep.subr.bf16.mxu0 0
    %5491 = vmatpush1.bf16.xpose.msra.mxu0 0
    %5492 = vmatprep.subr.bf16.mxu0 0
    %5493 = vmatpush1.bf16.xpose.msra.mxu0 0
    %5494 = vmatprep.subr.bf16.mxu0 0
    %5495 = vmatpush1.bf16.xpose.msra.mxu0 0
    %5496 = vmatprep.subr.bf16.mxu0 0
    %5497 = vmatpush1.bf16.xpose.msra.mxu0 0
    %5498 = vmatprep.subr.bf16.mxu0 0
    %5499 = vmatpush1.bf16.xpose.msra.mxu0 0
    %5500 = vmatprep.subr.bf16.mxu0 0
    %5501 = vmatpush1.bf16.xpose.msra.mxu0 0
    %5502 = vmatprep.subr.bf16.mxu0 0
    %5503 = vmatpush1.bf16.xpose.msra.mxu0 0
    %5504 = vmatprep.subr.bf16.mxu0 0
    %5505 = vmatpush1.bf16.xpose.msra.mxu0 0
    %5506 = vmatprep.mubr.bf16.mxu0 0
    %5507 = vmatmul.mubr.bf16.gmra.mrb[0].mxu0 %v5469
    %v5508 = vpop.f32.mrb[0].mxu0
    %v5509 = vadd.f32 0.0, %v5508
    %v5510 = vpop.f32.mrb[0].mxu0
    %v5511 = vpop.f32.mrb[0].mxu0
    %v5512 = vadd.f32 0.0, %v5511
    %v5513 = vpop.f32.mrb[0].mxu0
    %5514 = vdwg.mxu0
    %v5516 = vsel %vm1440, %v5391, 0
    %v5519 = vsel %vm1440, %v5407, 0
    %5521 = vmatprep.subr.bf16.mxu0 0
    %5522 = vmatpush1.bf16.xpose.msra.mxu0 %v5519
    %5523 = vmatprep.subr.bf16.mxu0 0
    %5524 = vmatpush1.bf16.xpose.msra.mxu0 0
    %5525 = vmatprep.subr.bf16.mxu0 0
    %5526 = vmatpush1.bf16.xpose.msra.mxu0 0
    %5527 = vmatprep.subr.bf16.mxu0 0
    %5528 = vmatpush1.bf16.xpose.msra.mxu0 0
    %5529 = vmatprep.subr.bf16.mxu0 0
    %5530 = vmatpush1.bf16.xpose.msra.mxu0 0
    %5531 = vmatprep.subr.bf16.mxu0 0
    %5532 = vmatpush1.bf16.xpose.msra.mxu0 0
    %5533 = vmatprep.subr.bf16.mxu0 0
    %5534 = vmatpush1.bf16.xpose.msra.mxu0 0
    %5535 = vmatprep.subr.bf16.mxu0 0
    %5536 = vmatpush1.bf16.xpose.msra.mxu0 0
    %5537 = vmatprep.subr.bf16.mxu0 0
    %5538 = vmatpush1.bf16.xpose.msra.mxu0 0
    %5539 = vmatprep.subr.bf16.mxu0 0
    %5540 = vmatpush1.bf16.xpose.msra.mxu0 0
    %5541 = vmatprep.subr.bf16.mxu0 0
    %5542 = vmatpush1.bf16.xpose.msra.mxu0 0
    %5543 = vmatprep.subr.bf16.mxu0 0
    %5544 = vmatpush1.bf16.xpose.msra.mxu0 0
    %5545 = vmatprep.subr.bf16.mxu0 0
    %5546 = vmatpush1.bf16.xpose.msra.mxu0 0
    %5547 = vmatprep.subr.bf16.mxu0 0
    %5548 = vmatpush1.bf16.xpose.msra.mxu0 0
    %5549 = vmatprep.subr.bf16.mxu0 0
    %5550 = vmatpush1.bf16.xpose.msra.mxu0 0
    %5551 = vmatprep.subr.bf16.mxu0 0
    %5552 = vmatpush1.bf16.xpose.msra.mxu0 0
    %5553 = vmatprep.mubr.bf16.mxu0 0
    %5554 = vmatmul.mubr.bf16.gmra.mrb[0].mxu0 %v5516
    %v5555 = vpop.f32.mrb[0].mxu0
    %v5556 = vadd.f32 0.0, %v5555
    %v5557 = vpop.f32.mrb[0].mxu0
    %v5558 = vpop.f32.mrb[0].mxu0
    %v5559 = vadd.f32 0.0, %v5558
    %v5560 = vpop.f32.mrb[0].mxu0
    %5561 = vdwg.mxu0
    %v5563 = vsel %vm1440, %v5392, 0
    %v5566 = vsel %vm1440, %v5408, 0
    %5568 = vmatprep.subr.bf16.mxu0 0
    %5569 = vmatpush1.bf16.xpose.msra.mxu0 %v5566
    %5570 = vmatprep.subr.bf16.mxu0 0
    %5571 = vmatpush1.bf16.xpose.msra.mxu0 0
    %5572 = vmatprep.subr.bf16.mxu0 0
    %5573 = vmatpush1.bf16.xpose.msra.mxu0 0
    %5574 = vmatprep.subr.bf16.mxu0 0
    %5575 = vmatpush1.bf16.xpose.msra.mxu0 0
    %5576 = vmatprep.subr.bf16.mxu0 0
    %5577 = vmatpush1.bf16.xpose.msra.mxu0 0
    %5578 = vmatprep.subr.bf16.mxu0 0
    %5579 = vmatpush1.bf16.xpose.msra.mxu0 0
    %5580 = vmatprep.subr.bf16.mxu0 0
    %5581 = vmatpush1.bf16.xpose.msra.mxu0 0
    %5582 = vmatprep.subr.bf16.mxu0 0
    %5583 = vmatpush1.bf16.xpose.msra.mxu0 0
    %5584 = vmatprep.subr.bf16.mxu0 0
    %5585 = vmatpush1.bf16.xpose.msra.mxu0 0
    %5586 = vmatprep.subr.bf16.mxu0 0
    %5587 = vmatpush1.bf16.xpose.msra.mxu0 0
    %5588 = vmatprep.subr.bf16.mxu0 0
    %5589 = vmatpush1.bf16.xpose.msra.mxu0 0
    %5590 = vmatprep.subr.bf16.mxu0 0
    %5591 = vmatpush1.bf16.xpose.msra.mxu0 0
    %5592 = vmatprep.subr.bf16.mxu0 0
    %5593 = vmatpush1.bf16.xpose.msra.mxu0 0
    %5594 = vmatprep.subr.bf16.mxu0 0
    %5595 = vmatpush1.bf16.xpose.msra.mxu0 0
    %5596 = vmatprep.subr.bf16.mxu0 0
    %5597 = vmatpush1.bf16.xpose.msra.mxu0 0
    %5598 = vmatprep.subr.bf16.mxu0 0
    %5599 = vmatpush1.bf16.xpose.msra.mxu0 0
    %5600 = vmatprep.mubr.bf16.mxu0 0
    %5601 = vmatmul.mubr.bf16.gmra.mrb[0].mxu0 %v5563
    %v5602 = vpop.f32.mrb[0].mxu0
    %v5603 = vadd.f32 0.0, %v5602
    %v5604 = vpop.f32.mrb[0].mxu0
    %v5605 = vpop.f32.mrb[0].mxu0
    %v5606 = vadd.f32 0.0, %v5605
    %v5607 = vpop.f32.mrb[0].mxu0
    %5608 = vdwg.mxu0
    %v5610 = vsel %vm1440, %v5393, 0
    %v5613 = vsel %vm1440, %v5409, 0
    %5615 = vmatprep.subr.bf16.mxu0 0
    %5616 = vmatpush1.bf16.xpose.msra.mxu0 %v5613
    %5617 = vmatprep.subr.bf16.mxu0 0
    %5618 = vmatpush1.bf16.xpose.msra.mxu0 0
    %5619 = vmatprep.subr.bf16.mxu0 0
    %5620 = vmatpush1.bf16.xpose.msra.mxu0 0
    %5621 = vmatprep.subr.bf16.mxu0 0
    %5622 = vmatpush1.bf16.xpose.msra.mxu0 0
    %5623 = vmatprep.subr.bf16.mxu0 0
    %5624 = vmatpush1.bf16.xpose.msra.mxu0 0
    %5625 = vmatprep.subr.bf16.mxu0 0
    %5626 = vmatpush1.bf16.xpose.msra.mxu0 0
    %5627 = vmatprep.subr.bf16.mxu0 0
    %5628 = vmatpush1.bf16.xpose.msra.mxu0 0
    %5629 = vmatprep.subr.bf16.mxu0 0
    %5630 = vmatpush1.bf16.xpose.msra.mxu0 0
    %5631 = vmatprep.subr.bf16.mxu0 0
    %5632 = vmatpush1.bf16.xpose.msra.mxu0 0
    %5633 = vmatprep.subr.bf16.mxu0 0
    %5634 = vmatpush1.bf16.xpose.msra.mxu0 0
    %5635 = vmatprep.subr.bf16.mxu0 0
    %5636 = vmatpush1.bf16.xpose.msra.mxu0 0
    %5637 = vmatprep.subr.bf16.mxu0 0
    %5638 = vmatpush1.bf16.xpose.msra.mxu0 0
    %5639 = vmatprep.subr.bf16.mxu0 0
    %5640 = vmatpush1.bf16.xpose.msra.mxu0 0
    %5641 = vmatprep.subr.bf16.mxu0 0
    %5642 = vmatpush1.bf16.xpose.msra.mxu0 0
    %5643 = vmatprep.subr.bf16.mxu0 0
    %5644 = vmatpush1.bf16.xpose.msra.mxu0 0
    %5645 = vmatprep.subr.bf16.mxu0 0
    %5646 = vmatpush1.bf16.xpose.msra.mxu0 0
    %5647 = vmatprep.mubr.bf16.mxu0 0
    %5648 = vmatmul.mubr.bf16.gmra.mrb[0].mxu0 %v5610
    %v5649 = vpop.f32.mrb[0].mxu0
    %v5650 = vadd.f32 0.0, %v5649
    %v5651 = vpop.f32.mrb[0].mxu0
    %v5652 = vpop.f32.mrb[0].mxu0
    %v5653 = vadd.f32 0.0, %v5652
    %v5654 = vpop.f32.mrb[0].mxu0
    %5655 = vdwg.mxu0
    %v5657 = vsel %vm1440, %v5394, 0
    %v5660 = vsel %vm1440, %v5410, 0
    %5662 = vmatprep.subr.bf16.mxu0 0
    %5663 = vmatpush1.bf16.xpose.msra.mxu0 %v5660
    %5664 = vmatprep.subr.bf16.mxu0 0
    %5665 = vmatpush1.bf16.xpose.msra.mxu0 0
    %5666 = vmatprep.subr.bf16.mxu0 0
    %5667 = vmatpush1.bf16.xpose.msra.mxu0 0
    %5668 = vmatprep.subr.bf16.mxu0 0
    %5669 = vmatpush1.bf16.xpose.msra.mxu0 0
    %5670 = vmatprep.subr.bf16.mxu0 0
    %5671 = vmatpush1.bf16.xpose.msra.mxu0 0
    %5672 = vmatprep.subr.bf16.mxu0 0
    %5673 = vmatpush1.bf16.xpose.msra.mxu0 0
    %5674 = vmatprep.subr.bf16.mxu0 0
    %5675 = vmatpush1.bf16.xpose.msra.mxu0 0
    %5676 = vmatprep.subr.bf16.mxu0 0
    %5677 = vmatpush1.bf16.xpose.msra.mxu0 0
    %5678 = vmatprep.subr.bf16.mxu0 0
    %5679 = vmatpush1.bf16.xpose.msra.mxu0 0
    %5680 = vmatprep.subr.bf16.mxu0 0
    %5681 = vmatpush1.bf16.xpose.msra.mxu0 0
    %5682 = vmatprep.subr.bf16.mxu0 0
    %5683 = vmatpush1.bf16.xpose.msra.mxu0 0
    %5684 = vmatprep.subr.bf16.mxu0 0
    %5685 = vmatpush1.bf16.xpose.msra.mxu0 0
    %5686 = vmatprep.subr.bf16.mxu0 0
    %5687 = vmatpush1.bf16.xpose.msra.mxu0 0
    %5688 = vmatprep.subr.bf16.mxu0 0
    %5689 = vmatpush1.bf16.xpose.msra.mxu0 0
    %5690 = vmatprep.subr.bf16.mxu0 0
    %5691 = vmatpush1.bf16.xpose.msra.mxu0 0
    %5692 = vmatprep.subr.bf16.mxu0 0
    %5693 = vmatpush1.bf16.xpose.msra.mxu0 0
    %5694 = vmatprep.mubr.bf16.mxu0 0
    %5695 = vmatmul.mubr.bf16.gmra.mrb[0].mxu0 %v5657
    %v5696 = vpop.f32.mrb[0].mxu0
    %v5697 = vadd.f32 0.0, %v5696
    %v5698 = vpop.f32.mrb[0].mxu0
    %v5699 = vpop.f32.mrb[0].mxu0
    %v5700 = vadd.f32 0.0, %v5699
    %v5701 = vpop.f32.mrb[0].mxu0
    %5702 = vdwg.mxu0
    %v5704 = vsel %vm1440, %v5395, 0
    %v5707 = vsel %vm1440, %v5411, 0
    %5709 = vmatprep.subr.bf16.mxu0 0
    %5710 = vmatpush1.bf16.xpose.msra.mxu0 %v5707
    %5711 = vmatprep.subr.bf16.mxu0 0
    %5712 = vmatpush1.bf16.xpose.msra.mxu0 0
    %5713 = vmatprep.subr.bf16.mxu0 0
    %5714 = vmatpush1.bf16.xpose.msra.mxu0 0
    %5715 = vmatprep.subr.bf16.mxu0 0
    %5716 = vmatpush1.bf16.xpose.msra.mxu0 0
    %5717 = vmatprep.subr.bf16.mxu0 0
    %5718 = vmatpush1.bf16.xpose.msra.mxu0 0
    %5719 = vmatprep.subr.bf16.mxu0 0
    %5720 = vmatpush1.bf16.xpose.msra.mxu0 0
    %5721 = vmatprep.subr.bf16.mxu0 0
    %5722 = vmatpush1.bf16.xpose.msra.mxu0 0
    %5723 = vmatprep.subr.bf16.mxu0 0
    %5724 = vmatpush1.bf16.xpose.msra.mxu0 0
    %5725 = vmatprep.subr.bf16.mxu0 0
    %5726 = vmatpush1.bf16.xpose.msra.mxu0 0
    %5727 = vmatprep.subr.bf16.mxu0 0
    %5728 = vmatpush1.bf16.xpose.msra.mxu0 0
    %5729 = vmatprep.subr.bf16.mxu0 0
    %5730 = vmatpush1.bf16.xpose.msra.mxu0 0
    %5731 = vmatprep.subr.bf16.mxu0 0
    %5732 = vmatpush1.bf16.xpose.msra.mxu0 0
    %5733 = vmatprep.subr.bf16.mxu0 0
    %5734 = vmatpush1.bf16.xpose.msra.mxu0 0
    %5735 = vmatprep.subr.bf16.mxu0 0
    %5736 = vmatpush1.bf16.xpose.msra.mxu0 0
    %5737 = vmatprep.subr.bf16.mxu0 0
    %5738 = vmatpush1.bf16.xpose.msra.mxu0 0
    %5739 = vmatprep.subr.bf16.mxu0 0
    %5740 = vmatpush1.bf16.xpose.msra.mxu0 0
    %5741 = vmatprep.mubr.bf16.mxu0 0
    %5742 = vmatmul.mubr.bf16.gmra.mrb[0].mxu0 %v5704
    %v5743 = vpop.f32.mrb[0].mxu0
    %v5744 = vadd.f32 0.0, %v5743
    %v5745 = vpop.f32.mrb[0].mxu0
    %v5746 = vpop.f32.mrb[0].mxu0
    %v5747 = vadd.f32 0.0, %v5746
    %v5748 = vpop.f32.mrb[0].mxu0
    %5749 = vdwg.mxu0
    %v5751 = vsel %vm1440, %v5396, 0
    %v5754 = vsel %vm1440, %v5412, 0
    %5756 = vmatprep.subr.bf16.mxu0 0
    %5757 = vmatpush1.bf16.xpose.msra.mxu0 %v5754
    %5758 = vmatprep.subr.bf16.mxu0 0
    %5759 = vmatpush1.bf16.xpose.msra.mxu0 0
    %5760 = vmatprep.subr.bf16.mxu0 0
    %5761 = vmatpush1.bf16.xpose.msra.mxu0 0
    %5762 = vmatprep.subr.bf16.mxu0 0
    %5763 = vmatpush1.bf16.xpose.msra.mxu0 0
    %5764 = vmatprep.subr.bf16.mxu0 0
    %5765 = vmatpush1.bf16.xpose.msra.mxu0 0
    %5766 = vmatprep.subr.bf16.mxu0 0
    %5767 = vmatpush1.bf16.xpose.msra.mxu0 0
    %5768 = vmatprep.subr.bf16.mxu0 0
    %5769 = vmatpush1.bf16.xpose.msra.mxu0 0
    %5770 = vmatprep.subr.bf16.mxu0 0
    %5771 = vmatpush1.bf16.xpose.msra.mxu0 0
    %5772 = vmatprep.subr.bf16.mxu0 0
    %5773 = vmatpush1.bf16.xpose.msra.mxu0 0
    %5774 = vmatprep.subr.bf16.mxu0 0
    %5775 = vmatpush1.bf16.xpose.msra.mxu0 0
    %5776 = vmatprep.subr.bf16.mxu0 0
    %5777 = vmatpush1.bf16.xpose.msra.mxu0 0
    %5778 = vmatprep.subr.bf16.mxu0 0
    %5779 = vmatpush1.bf16.xpose.msra.mxu0 0
    %5780 = vmatprep.subr.bf16.mxu0 0
    %5781 = vmatpush1.bf16.xpose.msra.mxu0 0
    %5782 = vmatprep.subr.bf16.mxu0 0
    %5783 = vmatpush1.bf16.xpose.msra.mxu0 0
    %5784 = vmatprep.subr.bf16.mxu0 0
    %5785 = vmatpush1.bf16.xpose.msra.mxu0 0
    %5786 = vmatprep.subr.bf16.mxu0 0
    %5787 = vmatpush1.bf16.xpose.msra.mxu0 0
    %5788 = vmatprep.mubr.bf16.mxu0 0
    %5789 = vmatmul.mubr.bf16.gmra.mrb[0].mxu0 %v5751
    %v5790 = vpop.f32.mrb[0].mxu0
    %v5791 = vadd.f32 0.0, %v5790
    %v5792 = vpop.f32.mrb[0].mxu0
    %v5793 = vpop.f32.mrb[0].mxu0
    %v5794 = vadd.f32 0.0, %v5793
    %v5795 = vpop.f32.mrb[0].mxu0
    %5796 = vdwg.mxu0
    %v5798 = vsel %vm1440, %v5397, 0
    %v5801 = vsel %vm1440, %v5413, 0
    %5803 = vmatprep.subr.bf16.mxu0 0
    %5804 = vmatpush1.bf16.xpose.msra.mxu0 %v5801
    %5805 = vmatprep.subr.bf16.mxu0 0
    %5806 = vmatpush1.bf16.xpose.msra.mxu0 0
    %5807 = vmatprep.subr.bf16.mxu0 0
    %5808 = vmatpush1.bf16.xpose.msra.mxu0 0
    %5809 = vmatprep.subr.bf16.mxu0 0
    %5810 = vmatpush1.bf16.xpose.msra.mxu0 0
    %5811 = vmatprep.subr.bf16.mxu0 0
    %5812 = vmatpush1.bf16.xpose.msra.mxu0 0
    %5813 = vmatprep.subr.bf16.mxu0 0
    %5814 = vmatpush1.bf16.xpose.msra.mxu0 0
    %5815 = vmatprep.subr.bf16.mxu0 0
    %5816 = vmatpush1.bf16.xpose.msra.mxu0 0
    %5817 = vmatprep.subr.bf16.mxu0 0
    %5818 = vmatpush1.bf16.xpose.msra.mxu0 0
    %5819 = vmatprep.subr.bf16.mxu0 0
    %5820 = vmatpush1.bf16.xpose.msra.mxu0 0
    %5821 = vmatprep.subr.bf16.mxu0 0
    %5822 = vmatpush1.bf16.xpose.msra.mxu0 0
    %5823 = vmatprep.subr.bf16.mxu0 0
    %5824 = vmatpush1.bf16.xpose.msra.mxu0 0
    %5825 = vmatprep.subr.bf16.mxu0 0
    %5826 = vmatpush1.bf16.xpose.msra.mxu0 0
    %5827 = vmatprep.subr.bf16.mxu0 0
    %5828 = vmatpush1.bf16.xpose.msra.mxu0 0
    %5829 = vmatprep.subr.bf16.mxu0 0
    %5830 = vmatpush1.bf16.xpose.msra.mxu0 0
    %5831 = vmatprep.subr.bf16.mxu0 0
    %5832 = vmatpush1.bf16.xpose.msra.mxu0 0
    %5833 = vmatprep.subr.bf16.mxu0 0
    %5834 = vmatpush1.bf16.xpose.msra.mxu0 0
    %5835 = vmatprep.mubr.bf16.mxu0 0
    %5836 = vmatmul.mubr.bf16.gmra.mrb[0].mxu0 %v5798
    %v5837 = vpop.f32.mrb[0].mxu0
    %v5838 = vadd.f32 0.0, %v5837
    %v5839 = vpop.f32.mrb[0].mxu0
    %v5840 = vpop.f32.mrb[0].mxu0
    %v5841 = vadd.f32 0.0, %v5840
    %v5842 = vpop.f32.mrb[0].mxu0
    %5843 = vdwg.mxu0
    %v5845 = vsel %vm1440, %v5398, 0
    %v5848 = vsel %vm1440, %v5414, 0
    %5850 = vmatprep.subr.bf16.mxu0 0
    %5851 = vmatpush1.bf16.xpose.msra.mxu0 %v5848
    %5852 = vmatprep.subr.bf16.mxu0 0
    %5853 = vmatpush1.bf16.xpose.msra.mxu0 0
    %5854 = vmatprep.subr.bf16.mxu0 0
    %5855 = vmatpush1.bf16.xpose.msra.mxu0 0
    %5856 = vmatprep.subr.bf16.mxu0 0
    %5857 = vmatpush1.bf16.xpose.msra.mxu0 0
    %5858 = vmatprep.subr.bf16.mxu0 0
    %5859 = vmatpush1.bf16.xpose.msra.mxu0 0
    %5860 = vmatprep.subr.bf16.mxu0 0
    %5861 = vmatpush1.bf16.xpose.msra.mxu0 0
    %5862 = vmatprep.subr.bf16.mxu0 0
    %5863 = vmatpush1.bf16.xpose.msra.mxu0 0
    %5864 = vmatprep.subr.bf16.mxu0 0
    %5865 = vmatpush1.bf16.xpose.msra.mxu0 0
    %5866 = vmatprep.subr.bf16.mxu0 0
    %5867 = vmatpush1.bf16.xpose.msra.mxu0 0
    %5868 = vmatprep.subr.bf16.mxu0 0
    %5869 = vmatpush1.bf16.xpose.msra.mxu0 0
    %5870 = vmatprep.subr.bf16.mxu0 0
    %5871 = vmatpush1.bf16.xpose.msra.mxu0 0
    %5872 = vmatprep.subr.bf16.mxu0 0
    %5873 = vmatpush1.bf16.xpose.msra.mxu0 0
    %5874 = vmatprep.subr.bf16.mxu0 0
    %5875 = vmatpush1.bf16.xpose.msra.mxu0 0
    %5876 = vmatprep.subr.bf16.mxu0 0
    %5877 = vmatpush1.bf16.xpose.msra.mxu0 0
    %5878 = vmatprep.subr.bf16.mxu0 0
    %5879 = vmatpush1.bf16.xpose.msra.mxu0 0
    %5880 = vmatprep.subr.bf16.mxu0 0
    %5881 = vmatpush1.bf16.xpose.msra.mxu0 0
    %5882 = vmatprep.mubr.bf16.mxu0 0
    %5883 = vmatmul.mubr.bf16.gmra.mrb[0].mxu0 %v5845
    %v5884 = vpop.f32.mrb[0].mxu0
    %v5885 = vadd.f32 0.0, %v5884
    %v5886 = vpop.f32.mrb[0].mxu0
    %v5887 = vpop.f32.mrb[0].mxu0
    %v5888 = vadd.f32 0.0, %v5887
    %v5889 = vpop.f32.mrb[0].mxu0
    %5890 = vdwg.mxu0
    %v5892 = vsel %vm1440, %v5399, 0
    %v5895 = vsel %vm1440, %v5415, 0
    %5897 = vmatprep.subr.bf16.mxu0 0
    %5898 = vmatpush1.bf16.xpose.msra.mxu0 %v5895
    %5899 = vmatprep.subr.bf16.mxu0 0
    %5900 = vmatpush1.bf16.xpose.msra.mxu0 0
    %5901 = vmatprep.subr.bf16.mxu0 0
    %5902 = vmatpush1.bf16.xpose.msra.mxu0 0
    %5903 = vmatprep.subr.bf16.mxu0 0
    %5904 = vmatpush1.bf16.xpose.msra.mxu0 0
    %5905 = vmatprep.subr.bf16.mxu0 0
    %5906 = vmatpush1.bf16.xpose.msra.mxu0 0
    %5907 = vmatprep.subr.bf16.mxu0 0
    %5908 = vmatpush1.bf16.xpose.msra.mxu0 0
    %5909 = vmatprep.subr.bf16.mxu0 0
    %5910 = vmatpush1.bf16.xpose.msra.mxu0 0
    %5911 = vmatprep.subr.bf16.mxu0 0
    %5912 = vmatpush1.bf16.xpose.msra.mxu0 0
    %5913 = vmatprep.subr.bf16.mxu0 0
    %5914 = vmatpush1.bf16.xpose.msra.mxu0 0
    %5915 = vmatprep.subr.bf16.mxu0 0
    %5916 = vmatpush1.bf16.xpose.msra.mxu0 0
    %5917 = vmatprep.subr.bf16.mxu0 0
    %5918 = vmatpush1.bf16.xpose.msra.mxu0 0
    %5919 = vmatprep.subr.bf16.mxu0 0
    %5920 = vmatpush1.bf16.xpose.msra.mxu0 0
    %5921 = vmatprep.subr.bf16.mxu0 0
    %5922 = vmatpush1.bf16.xpose.msra.mxu0 0
    %5923 = vmatprep.subr.bf16.mxu0 0
    %5924 = vmatpush1.bf16.xpose.msra.mxu0 0
    %5925 = vmatprep.subr.bf16.mxu0 0
    %5926 = vmatpush1.bf16.xpose.msra.mxu0 0
    %5927 = vmatprep.subr.bf16.mxu0 0
    %5928 = vmatpush1.bf16.xpose.msra.mxu0 0
    %5929 = vmatprep.mubr.bf16.mxu0 0
    %5930 = vmatmul.mubr.bf16.gmra.mrb[0].mxu0 %v5892
    %v5931 = vpop.f32.mrb[0].mxu0
    %v5932 = vadd.f32 0.0, %v5931
    %v5933 = vpop.f32.mrb[0].mxu0
    %v5934 = vpop.f32.mrb[0].mxu0
    %v5935 = vadd.f32 0.0, %v5934
    %v5936 = vpop.f32.mrb[0].mxu0
    %5937 = vdwg.mxu0
    %v5939 = vsel %vm1440, %v5400, 0
    %v5942 = vsel %vm1440, %v5416, 0
    %5944 = vmatprep.subr.bf16.mxu0 0
    %5945 = vmatpush1.bf16.xpose.msra.mxu0 %v5942
    %5946 = vmatprep.subr.bf16.mxu0 0
    %5947 = vmatpush1.bf16.xpose.msra.mxu0 0
    %5948 = vmatprep.subr.bf16.mxu0 0
    %5949 = vmatpush1.bf16.xpose.msra.mxu0 0
    %5950 = vmatprep.subr.bf16.mxu0 0
    %5951 = vmatpush1.bf16.xpose.msra.mxu0 0
    %5952 = vmatprep.subr.bf16.mxu0 0
    %5953 = vmatpush1.bf16.xpose.msra.mxu0 0
    %5954 = vmatprep.subr.bf16.mxu0 0
    %5955 = vmatpush1.bf16.xpose.msra.mxu0 0
    %5956 = vmatprep.subr.bf16.mxu0 0
    %5957 = vmatpush1.bf16.xpose.msra.mxu0 0
    %5958 = vmatprep.subr.bf16.mxu0 0
    %5959 = vmatpush1.bf16.xpose.msra.mxu0 0
    %5960 = vmatprep.subr.bf16.mxu0 0
    %5961 = vmatpush1.bf16.xpose.msra.mxu0 0
    %5962 = vmatprep.subr.bf16.mxu0 0
    %5963 = vmatpush1.bf16.xpose.msra.mxu0 0
    %5964 = vmatprep.subr.bf16.mxu0 0
    %5965 = vmatpush1.bf16.xpose.msra.mxu0 0
    %5966 = vmatprep.subr.bf16.mxu0 0
    %5967 = vmatpush1.bf16.xpose.msra.mxu0 0
    %5968 = vmatprep.subr.bf16.mxu0 0
    %5969 = vmatpush1.bf16.xpose.msra.mxu0 0
    %5970 = vmatprep.subr.bf16.mxu0 0
    %5971 = vmatpush1.bf16.xpose.msra.mxu0 0
    %5972 = vmatprep.subr.bf16.mxu0 0
    %5973 = vmatpush1.bf16.xpose.msra.mxu0 0
    %5974 = vmatprep.subr.bf16.mxu0 0
    %5975 = vmatpush1.bf16.xpose.msra.mxu0 0
    %5976 = vmatprep.mubr.bf16.mxu0 0
    %5977 = vmatmul.mubr.bf16.gmra.mrb[0].mxu0 %v5939
    %v5978 = vpop.f32.mrb[0].mxu0
    %v5979 = vadd.f32 0.0, %v5978
    %v5980 = vpop.f32.mrb[0].mxu0
    %v5981 = vpop.f32.mrb[0].mxu0
    %v5982 = vadd.f32 0.0, %v5981
    %v5983 = vpop.f32.mrb[0].mxu0
    %5984 = vdwg.mxu0
    %v5986 = vsel %vm1440, %v5401, 0
    %v5989 = vsel %vm1440, %v5417, 0
    %5991 = vmatprep.subr.bf16.mxu0 0
    %5992 = vmatpush1.bf16.xpose.msra.mxu0 %v5989
    %5993 = vmatprep.subr.bf16.mxu0 0
    %5994 = vmatpush1.bf16.xpose.msra.mxu0 0
    %5995 = vmatprep.subr.bf16.mxu0 0
    %5996 = vmatpush1.bf16.xpose.msra.mxu0 0
    %5997 = vmatprep.subr.bf16.mxu0 0
    %5998 = vmatpush1.bf16.xpose.msra.mxu0 0
    %5999 = vmatprep.subr.bf16.mxu0 0
    %6000 = vmatpush1.bf16.xpose.msra.mxu0 0
    %6001 = vmatprep.subr.bf16.mxu0 0
    %6002 = vmatpush1.bf16.xpose.msra.mxu0 0
    %6003 = vmatprep.subr.bf16.mxu0 0
    %6004 = vmatpush1.bf16.xpose.msra.mxu0 0
    %6005 = vmatprep.subr.bf16.mxu0 0
    %6006 = vmatpush1.bf16.xpose.msra.mxu0 0
    %6007 = vmatprep.subr.bf16.mxu0 0
    %6008 = vmatpush1.bf16.xpose.msra.mxu0 0
    %6009 = vmatprep.subr.bf16.mxu0 0
    %6010 = vmatpush1.bf16.xpose.msra.mxu0 0
    %6011 = vmatprep.subr.bf16.mxu0 0
    %6012 = vmatpush1.bf16.xpose.msra.mxu0 0
    %6013 = vmatprep.subr.bf16.mxu0 0
    %6014 = vmatpush1.bf16.xpose.msra.mxu0 0
    %6015 = vmatprep.subr.bf16.mxu0 0
    %6016 = vmatpush1.bf16.xpose.msra.mxu0 0
    %6017 = vmatprep.subr.bf16.mxu0 0
    %6018 = vmatpush1.bf16.xpose.msra.mxu0 0
    %6019 = vmatprep.subr.bf16.mxu0 0
    %6020 = vmatpush1.bf16.xpose.msra.mxu0 0
    %6021 = vmatprep.subr.bf16.mxu0 0
    %6022 = vmatpush1.bf16.xpose.msra.mxu0 0
    %6023 = vmatprep.mubr.bf16.mxu0 0
    %6024 = vmatmul.mubr.bf16.gmra.mrb[0].mxu0 %v5986
    %v6025 = vpop.f32.mrb[0].mxu0
    %v6026 = vadd.f32 0.0, %v6025
    %v6027 = vpop.f32.mrb[0].mxu0
    %v6028 = vpop.f32.mrb[0].mxu0
    %v6029 = vadd.f32 0.0, %v6028
    %v6030 = vpop.f32.mrb[0].mxu0
    %6031 = vdwg.mxu0
    %v6033 = vsel %vm1440, %v5402, 0
    %v6036 = vsel %vm1440, %v5418, 0
    %6038 = vmatprep.subr.bf16.mxu0 0
    %6039 = vmatpush1.bf16.xpose.msra.mxu0 %v6036
    %6040 = vmatprep.subr.bf16.mxu0 0
    %6041 = vmatpush1.bf16.xpose.msra.mxu0 0
    %6042 = vmatprep.subr.bf16.mxu0 0
    %6043 = vmatpush1.bf16.xpose.msra.mxu0 0
    %6044 = vmatprep.subr.bf16.mxu0 0
    %6045 = vmatpush1.bf16.xpose.msra.mxu0 0
    %6046 = vmatprep.subr.bf16.mxu0 0
    %6047 = vmatpush1.bf16.xpose.msra.mxu0 0
    %6048 = vmatprep.subr.bf16.mxu0 0
    %6049 = vmatpush1.bf16.xpose.msra.mxu0 0
    %6050 = vmatprep.subr.bf16.mxu0 0
    %6051 = vmatpush1.bf16.xpose.msra.mxu0 0
    %6052 = vmatprep.subr.bf16.mxu0 0
    %6053 = vmatpush1.bf16.xpose.msra.mxu0 0
    %6054 = vmatprep.subr.bf16.mxu0 0
    %6055 = vmatpush1.bf16.xpose.msra.mxu0 0
    %6056 = vmatprep.subr.bf16.mxu0 0
    %6057 = vmatpush1.bf16.xpose.msra.mxu0 0
    %6058 = vmatprep.subr.bf16.mxu0 0
    %6059 = vmatpush1.bf16.xpose.msra.mxu0 0
    %6060 = vmatprep.subr.bf16.mxu0 0
    %6061 = vmatpush1.bf16.xpose.msra.mxu0 0
    %6062 = vmatprep.subr.bf16.mxu0 0
    %6063 = vmatpush1.bf16.xpose.msra.mxu0 0
    %6064 = vmatprep.subr.bf16.mxu0 0
    %6065 = vmatpush1.bf16.xpose.msra.mxu0 0
    %6066 = vmatprep.subr.bf16.mxu0 0
    %6067 = vmatpush1.bf16.xpose.msra.mxu0 0
    %6068 = vmatprep.subr.bf16.mxu0 0
    %6069 = vmatpush1.bf16.xpose.msra.mxu0 0
    %6070 = vmatprep.mubr.bf16.mxu0 0
    %6071 = vmatmul.mubr.bf16.gmra.mrb[0].mxu0 %v6033
    %v6072 = vpop.f32.mrb[0].mxu0
    %v6073 = vadd.f32 0.0, %v6072
    %v6074 = vpop.f32.mrb[0].mxu0
    %v6075 = vpop.f32.mrb[0].mxu0
    %v6076 = vadd.f32 0.0, %v6075
    %v6077 = vpop.f32.mrb[0].mxu0
    %6078 = vdwg.mxu0
    %v6080 = vsel %vm1440, %v5403, 0
    %v6083 = vsel %vm1440, %v5419, 0
    %6085 = vmatprep.subr.bf16.mxu0 0
    %6086 = vmatpush1.bf16.xpose.msra.mxu0 %v6083
    %6087 = vmatprep.subr.bf16.mxu0 0
    %6088 = vmatpush1.bf16.xpose.msra.mxu0 0
    %6089 = vmatprep.subr.bf16.mxu0 0
    %6090 = vmatpush1.bf16.xpose.msra.mxu0 0
    %6091 = vmatprep.subr.bf16.mxu0 0
    %6092 = vmatpush1.bf16.xpose.msra.mxu0 0
    %6093 = vmatprep.subr.bf16.mxu0 0
    %6094 = vmatpush1.bf16.xpose.msra.mxu0 0
    %6095 = vmatprep.subr.bf16.mxu0 0
    %6096 = vmatpush1.bf16.xpose.msra.mxu0 0
    %6097 = vmatprep.subr.bf16.mxu0 0
    %6098 = vmatpush1.bf16.xpose.msra.mxu0 0
    %6099 = vmatprep.subr.bf16.mxu0 0
    %6100 = vmatpush1.bf16.xpose.msra.mxu0 0
    %6101 = vmatprep.subr.bf16.mxu0 0
    %6102 = vmatpush1.bf16.xpose.msra.mxu0 0
    %6103 = vmatprep.subr.bf16.mxu0 0
    %6104 = vmatpush1.bf16.xpose.msra.mxu0 0
    %6105 = vmatprep.subr.bf16.mxu0 0
    %6106 = vmatpush1.bf16.xpose.msra.mxu0 0
    %6107 = vmatprep.subr.bf16.mxu0 0
    %6108 = vmatpush1.bf16.xpose.msra.mxu0 0
    %6109 = vmatprep.subr.bf16.mxu0 0
    %6110 = vmatpush1.bf16.xpose.msra.mxu0 0
    %6111 = vmatprep.subr.bf16.mxu0 0
    %6112 = vmatpush1.bf16.xpose.msra.mxu0 0
    %6113 = vmatprep.subr.bf16.mxu0 0
    %6114 = vmatpush1.bf16.xpose.msra.mxu0 0
    %6115 = vmatprep.subr.bf16.mxu0 0
    %6116 = vmatpush1.bf16.xpose.msra.mxu0 0
    %6117 = vmatprep.mubr.bf16.mxu0 0
    %6118 = vmatmul.mubr.bf16.gmra.mrb[0].mxu0 %v6080
    %v6119 = vpop.f32.mrb[0].mxu0
    %v6120 = vadd.f32 0.0, %v6119
    %v6121 = vpop.f32.mrb[0].mxu0
    %v6122 = vpop.f32.mrb[0].mxu0
    %v6123 = vadd.f32 0.0, %v6122
    %v6124 = vpop.f32.mrb[0].mxu0
    %6125 = vdwg.mxu0
    %v6127 = vsel %vm1440, %v5404, 0
    %v6130 = vsel %vm1440, %v5420, 0
    %6132 = vmatprep.subr.bf16.mxu0 0
    %6133 = vmatpush1.bf16.xpose.msra.mxu0 %v6130
    %6134 = vmatprep.subr.bf16.mxu0 0
    %6135 = vmatpush1.bf16.xpose.msra.mxu0 0
    %6136 = vmatprep.subr.bf16.mxu0 0
    %6137 = vmatpush1.bf16.xpose.msra.mxu0 0
    %6138 = vmatprep.subr.bf16.mxu0 0
    %6139 = vmatpush1.bf16.xpose.msra.mxu0 0
    %6140 = vmatprep.subr.bf16.mxu0 0
    %6141 = vmatpush1.bf16.xpose.msra.mxu0 0
    %6142 = vmatprep.subr.bf16.mxu0 0
    %6143 = vmatpush1.bf16.xpose.msra.mxu0 0
    %6144 = vmatprep.subr.bf16.mxu0 0
    %6145 = vmatpush1.bf16.xpose.msra.mxu0 0
    %6146 = vmatprep.subr.bf16.mxu0 0
    %6147 = vmatpush1.bf16.xpose.msra.mxu0 0
    %6148 = vmatprep.subr.bf16.mxu0 0
    %6149 = vmatpush1.bf16.xpose.msra.mxu0 0
    %6150 = vmatprep.subr.bf16.mxu0 0
    %6151 = vmatpush1.bf16.xpose.msra.mxu0 0
    %6152 = vmatprep.subr.bf16.mxu0 0
    %6153 = vmatpush1.bf16.xpose.msra.mxu0 0
    %6154 = vmatprep.subr.bf16.mxu0 0
    %6155 = vmatpush1.bf16.xpose.msra.mxu0 0
    %6156 = vmatprep.subr.bf16.mxu0 0
    %6157 = vmatpush1.bf16.xpose.msra.mxu0 0
    %6158 = vmatprep.subr.bf16.mxu0 0
    %6159 = vmatpush1.bf16.xpose.msra.mxu0 0
    %6160 = vmatprep.subr.bf16.mxu0 0
    %6161 = vmatpush1.bf16.xpose.msra.mxu0 0
    %6162 = vmatprep.subr.bf16.mxu0 0
    %6163 = vmatpush1.bf16.xpose.msra.mxu0 0
    %6164 = vmatprep.mubr.bf16.mxu0 0
    %6165 = vmatmul.mubr.bf16.gmra.mrb[0].mxu0 %v6127
    %v6166 = vpop.f32.mrb[0].mxu0
    %v6167 = vadd.f32 0.0, %v6166
    %v6168 = vpop.f32.mrb[0].mxu0
    %v6169 = vpop.f32.mrb[0].mxu0
    %v6170 = vadd.f32 0.0, %v6169
    %v6171 = vpop.f32.mrb[0].mxu0
    %6172 = vdwg.mxu0
    %v6173 = vmul.f32 %v5462, 0.25
    %v6174 = vmul.f32 %v5465, 0.25
    %v6175 = vmul.f32 %v5509, 0.25
    %v6176 = vmul.f32 %v5512, 0.25
    %v6177 = vmul.f32 %v5556, 0.25
    %v6178 = vmul.f32 %v5559, 0.25
    %v6179 = vmul.f32 %v5603, 0.25
    %v6180 = vmul.f32 %v5606, 0.25
    %v6181 = vmul.f32 %v5650, 0.25
    %v6182 = vmul.f32 %v5653, 0.25
    %v6183 = vmul.f32 %v5697, 0.25
    %v6184 = vmul.f32 %v5700, 0.25
    %v6185 = vmul.f32 %v5744, 0.25
    %v6186 = vmul.f32 %v5747, 0.25
    %v6187 = vmul.f32 %v5791, 0.25
    %v6188 = vmul.f32 %v5794, 0.25
    %v6189 = vmul.f32 %v5838, 0.25
    %v6190 = vmul.f32 %v5841, 0.25
    %v6191 = vmul.f32 %v5885, 0.25
    %v6192 = vmul.f32 %v5888, 0.25
    %v6193 = vmul.f32 %v5932, 0.25
    %v6194 = vmul.f32 %v5935, 0.25
    %v6195 = vmul.f32 %v5979, 0.25
    %v6196 = vmul.f32 %v5982, 0.25
    %v6197 = vmul.f32 %v6026, 0.25
    %v6198 = vmul.f32 %v6029, 0.25
    %v6199 = vmul.f32 %v6073, 0.25
    %v6200 = vmul.f32 %v6076, 0.25
    %v6201 = vmul.f32 %v6120, 0.25
    %v6202 = vmul.f32 %v6123, 0.25
    %v6203 = vmul.f32 %v6167, 0.25
    %v6204 = vmul.f32 %v6170, 0.25
    %v6205 = vadd.f32 %v6173, %v631
    %v6206 = vadd.f32 %v6174, %v631
    %v6207 = vadd.f32 %v6175, %v635
    %v6208 = vadd.f32 %v6176, %v635
    %v6209 = vadd.f32 %v6177, %v639
    %v6210 = vadd.f32 %v6178, %v639
    %v6211 = vadd.f32 %v6179, %v643
    %v6212 = vadd.f32 %v6180, %v643
    %v6213 = vadd.f32 %v6181, %v647
    %v6214 = vadd.f32 %v6182, %v647
    %v6215 = vadd.f32 %v6183, %v651
    %v6216 = vadd.f32 %v6184, %v651
    %v6217 = vadd.f32 %v6185, %v655
    %v6218 = vadd.f32 %v6186, %v655
    %v6219 = vadd.f32 %v6187, %v659
    %v6220 = vadd.f32 %v6188, %v659
    %v6221 = vadd.f32 %v6189, %v631
    %v6222 = vadd.f32 %v6190, %v631
    %v6223 = vadd.f32 %v6191, %v635
    %v6224 = vadd.f32 %v6192, %v635
    %v6225 = vadd.f32 %v6193, %v639
    %v6226 = vadd.f32 %v6194, %v639
    %v6227 = vadd.f32 %v6195, %v643
    %v6228 = vadd.f32 %v6196, %v643
    %v6229 = vadd.f32 %v6197, %v647
    %v6230 = vadd.f32 %v6198, %v647
    %v6231 = vadd.f32 %v6199, %v651
    %v6232 = vadd.f32 %v6200, %v651
    %v6233 = vadd.f32 %v6201, %v655
    %v6234 = vadd.f32 %v6202, %v655
    %v6235 = vadd.f32 %v6203, %v659
    %v6236 = vadd.f32 %v6204, %v659
    %v6237 = vsel %vm1440, %v6205, -inf
    %6238 = vmax.xlane.f32.xlu0 %v6237
    %v6239 = vpop.xlane.xlu0 %6238
    %v6240 = vsel %vm1440, %v6206, -inf
    %6241 = vmax.xlane.f32.xlu0 %v6240
    %v6242 = vpop.xlane.xlu0 %6241
    %v6243 = vsel %vm1440, %v6207, -inf
    %6244 = vmax.xlane.f32.xlu0 %v6243
    %v6245 = vpop.xlane.xlu0 %6244
    %v6246 = vsel %vm1440, %v6208, -inf
    %6247 = vmax.xlane.f32.xlu0 %v6246
    %v6248 = vpop.xlane.xlu0 %6247
    %v6249 = vsel %vm1440, %v6209, -inf
    %6250 = vmax.xlane.f32.xlu0 %v6249
    %v6251 = vpop.xlane.xlu0 %6250
    %v6252 = vsel %vm1440, %v6210, -inf
    %6253 = vmax.xlane.f32.xlu0 %v6252
    %v6254 = vpop.xlane.xlu0 %6253
    %v6255 = vsel %vm1440, %v6211, -inf
    %6256 = vmax.xlane.f32.xlu0 %v6255
    %v6257 = vpop.xlane.xlu0 %6256
    %v6258 = vsel %vm1440, %v6212, -inf
    %6259 = vmax.xlane.f32.xlu0 %v6258
    %v6260 = vpop.xlane.xlu0 %6259
    %v6261 = vsel %vm1440, %v6213, -inf
    %6262 = vmax.xlane.f32.xlu0 %v6261
    %v6263 = vpop.xlane.xlu0 %6262
    %v6264 = vsel %vm1440, %v6214, -inf
    %6265 = vmax.xlane.f32.xlu0 %v6264
    %v6266 = vpop.xlane.xlu0 %6265
    %v6267 = vsel %vm1440, %v6215, -inf
    %6268 = vmax.xlane.f32.xlu0 %v6267
    %v6269 = vpop.xlane.xlu0 %6268
    %v6270 = vsel %vm1440, %v6216, -inf
    %6271 = vmax.xlane.f32.xlu0 %v6270
    %v6272 = vpop.xlane.xlu0 %6271
    %v6273 = vsel %vm1440, %v6217, -inf
    %6274 = vmax.xlane.f32.xlu0 %v6273
    %v6275 = vpop.xlane.xlu0 %6274
    %v6276 = vsel %vm1440, %v6218, -inf
    %6277 = vmax.xlane.f32.xlu0 %v6276
    %v6278 = vpop.xlane.xlu0 %6277
    %v6279 = vsel %vm1440, %v6219, -inf
    %6280 = vmax.xlane.f32.xlu0 %v6279
    %v6281 = vpop.xlane.xlu0 %6280
    %v6282 = vsel %vm1440, %v6220, -inf
    %6283 = vmax.xlane.f32.xlu0 %v6282
    %v6284 = vpop.xlane.xlu0 %6283
    %v6285 = vsel %vm1440, %v6221, -inf
    %6286 = vmax.xlane.f32.xlu0 %v6285
    %v6287 = vpop.xlane.xlu0 %6286
    %v6288 = vsel %vm1440, %v6222, -inf
    %6289 = vmax.xlane.f32.xlu0 %v6288
    %v6290 = vpop.xlane.xlu0 %6289
    %v6291 = vsel %vm1440, %v6223, -inf
    %6292 = vmax.xlane.f32.xlu0 %v6291
    %v6293 = vpop.xlane.xlu0 %6292
    %v6294 = vsel %vm1440, %v6224, -inf
    %6295 = vmax.xlane.f32.xlu0 %v6294
    %v6296 = vpop.xlane.xlu0 %6295
    %v6297 = vsel %vm1440, %v6225, -inf
    %6298 = vmax.xlane.f32.xlu0 %v6297
    %v6299 = vpop.xlane.xlu0 %6298
    %v6300 = vsel %vm1440, %v6226, -inf
    %6301 = vmax.xlane.f32.xlu0 %v6300
    %v6302 = vpop.xlane.xlu0 %6301
    %v6303 = vsel %vm1440, %v6227, -inf
    %6304 = vmax.xlane.f32.xlu0 %v6303
    %v6305 = vpop.xlane.xlu0 %6304
    %v6306 = vsel %vm1440, %v6228, -inf
    %6307 = vmax.xlane.f32.xlu0 %v6306
    %v6308 = vpop.xlane.xlu0 %6307
    %v6309 = vsel %vm1440, %v6229, -inf
    %6310 = vmax.xlane.f32.xlu0 %v6309
    %v6311 = vpop.xlane.xlu0 %6310
    %v6312 = vsel %vm1440, %v6230, -inf
    %6313 = vmax.xlane.f32.xlu0 %v6312
    %v6314 = vpop.xlane.xlu0 %6313
    %v6315 = vsel %vm1440, %v6231, -inf
    %6316 = vmax.xlane.f32.xlu0 %v6315
    %v6317 = vpop.xlane.xlu0 %6316
    %v6318 = vsel %vm1440, %v6232, -inf
    %6319 = vmax.xlane.f32.xlu0 %v6318
    %v6320 = vpop.xlane.xlu0 %6319
    %v6321 = vsel %vm1440, %v6233, -inf
    %6322 = vmax.xlane.f32.xlu0 %v6321
    %v6323 = vpop.xlane.xlu0 %6322
    %v6324 = vsel %vm1440, %v6234, -inf
    %6325 = vmax.xlane.f32.xlu0 %v6324
    %v6326 = vpop.xlane.xlu0 %6325
    %v6327 = vsel %vm1440, %v6235, -inf
    %6328 = vmax.xlane.f32.xlu0 %v6327
    %v6329 = vpop.xlane.xlu0 %6328
    %v6330 = vsel %vm1440, %v6236, -inf
    %6331 = vmax.xlane.f32.xlu0 %v6330
    %v6332 = vpop.xlane.xlu0 %6331
    %v6333 = vsub.f32 %v6205, %v6239
    %v6334 = vsub.f32 %v6206, %v6242
    %v6335 = vsub.f32 %v6207, %v6245
    %v6336 = vsub.f32 %v6208, %v6248
    %v6337 = vsub.f32 %v6209, %v6251
    %v6338 = vsub.f32 %v6210, %v6254
    %v6339 = vsub.f32 %v6211, %v6257
    %v6340 = vsub.f32 %v6212, %v6260
    %v6341 = vsub.f32 %v6213, %v6263
    %v6342 = vsub.f32 %v6214, %v6266
    %v6343 = vsub.f32 %v6215, %v6269
    %v6344 = vsub.f32 %v6216, %v6272
    %v6345 = vsub.f32 %v6217, %v6275
    %v6346 = vsub.f32 %v6218, %v6278
    %v6347 = vsub.f32 %v6219, %v6281
    %v6348 = vsub.f32 %v6220, %v6284
    %v6349 = vsub.f32 %v6221, %v6287
    %v6350 = vsub.f32 %v6222, %v6290
    %v6351 = vsub.f32 %v6223, %v6293
    %v6352 = vsub.f32 %v6224, %v6296
    %v6353 = vsub.f32 %v6225, %v6299
    %v6354 = vsub.f32 %v6226, %v6302
    %v6355 = vsub.f32 %v6227, %v6305
    %v6356 = vsub.f32 %v6228, %v6308
    %v6357 = vsub.f32 %v6229, %v6311
    %v6358 = vsub.f32 %v6230, %v6314
    %v6359 = vsub.f32 %v6231, %v6317
    %v6360 = vsub.f32 %v6232, %v6320
    %v6361 = vsub.f32 %v6233, %v6323
    %v6362 = vsub.f32 %v6234, %v6326
    %v6363 = vsub.f32 %v6235, %v6329
    %v6364 = vsub.f32 %v6236, %v6332
    %v6365 = vmul.f32 %v6333, 1.442695
    %v6366 = vpow.pop %v6365
    %v6367 = vmul.f32 %v6334, 1.442695
    %v6368 = vpow.pop %v6367
    %v6369 = vmul.f32 %v6335, 1.442695
    %v6370 = vpow.pop %v6369
    %v6371 = vmul.f32 %v6336, 1.442695
    %v6372 = vpow.pop %v6371
    %v6373 = vmul.f32 %v6337, 1.442695
    %v6374 = vpow.pop %v6373
    %v6375 = vmul.f32 %v6338, 1.442695
    %v6376 = vpow.pop %v6375
    %v6377 = vmul.f32 %v6339, 1.442695
    %v6378 = vpow.pop %v6377
    %v6379 = vmul.f32 %v6340, 1.442695
    %v6380 = vpow.pop %v6379
    %v6381 = vmul.f32 %v6341, 1.442695
    %v6382 = vpow.pop %v6381
    %v6383 = vmul.f32 %v6342, 1.442695
    %v6384 = vpow.pop %v6383
    %v6385 = vmul.f32 %v6343, 1.442695
    %v6386 = vpow.pop %v6385
    %v6387 = vmul.f32 %v6344, 1.442695
    %v6388 = vpow.pop %v6387
    %v6389 = vmul.f32 %v6345, 1.442695
    %v6390 = vpow.pop %v6389
    %v6391 = vmul.f32 %v6346, 1.442695
    %v6392 = vpow.pop %v6391
    %v6393 = vmul.f32 %v6347, 1.442695
    %v6394 = vpow.pop %v6393
    %v6395 = vmul.f32 %v6348, 1.442695
    %v6396 = vpow.pop %v6395
    %v6397 = vmul.f32 %v6349, 1.442695
    %v6398 = vpow.pop %v6397
    %v6399 = vmul.f32 %v6350, 1.442695
    %v6400 = vpow.pop %v6399
    %v6401 = vmul.f32 %v6351, 1.442695
    %v6402 = vpow.pop %v6401
    %v6403 = vmul.f32 %v6352, 1.442695
    %v6404 = vpow.pop %v6403
    %v6405 = vmul.f32 %v6353, 1.442695
    %v6406 = vpow.pop %v6405
    %v6407 = vmul.f32 %v6354, 1.442695
    %v6408 = vpow.pop %v6407
    %v6409 = vmul.f32 %v6355, 1.442695
    %v6410 = vpow.pop %v6409
    %v6411 = vmul.f32 %v6356, 1.442695
    %v6412 = vpow.pop %v6411
    %v6413 = vmul.f32 %v6357, 1.442695
    %v6414 = vpow.pop %v6413
    %v6415 = vmul.f32 %v6358, 1.442695
    %v6416 = vpow.pop %v6415
    %v6417 = vmul.f32 %v6359, 1.442695
    %v6418 = vpow.pop %v6417
    %v6419 = vmul.f32 %v6360, 1.442695
    %v6420 = vpow.pop %v6419
    %v6421 = vmul.f32 %v6361, 1.442695
    %v6422 = vpow.pop %v6421
    %v6423 = vmul.f32 %v6362, 1.442695
    %v6424 = vpow.pop %v6423
    %v6425 = vmul.f32 %v6363, 1.442695
    %v6426 = vpow.pop %v6425
    %v6427 = vmul.f32 %v6364, 1.442695
    %v6428 = vpow.pop %v6427
    %v6429 = vsel %vm1440, %v6366, 0.0
    %6430 = vadd.xlane.f32.xlu0 %v6429
    %v6431 = vpop.xlane.xlu0 %6430
    %v6432 = vsel %vm1440, %v6368, 0.0
    %6433 = vadd.xlane.f32.xlu0 %v6432
    %v6434 = vpop.xlane.xlu0 %6433
    %v6435 = vsel %vm1440, %v6370, 0.0
    %6436 = vadd.xlane.f32.xlu0 %v6435
    %v6437 = vpop.xlane.xlu0 %6436
    %v6438 = vsel %vm1440, %v6372, 0.0
    %6439 = vadd.xlane.f32.xlu0 %v6438
    %v6440 = vpop.xlane.xlu0 %6439
    %v6441 = vsel %vm1440, %v6374, 0.0
    %6442 = vadd.xlane.f32.xlu0 %v6441
    %v6443 = vpop.xlane.xlu0 %6442
    %v6444 = vsel %vm1440, %v6376, 0.0
    %6445 = vadd.xlane.f32.xlu0 %v6444
    %v6446 = vpop.xlane.xlu0 %6445
    %v6447 = vsel %vm1440, %v6378, 0.0
    %6448 = vadd.xlane.f32.xlu0 %v6447
    %v6449 = vpop.xlane.xlu0 %6448
    %v6450 = vsel %vm1440, %v6380, 0.0
    %6451 = vadd.xlane.f32.xlu0 %v6450
    %v6452 = vpop.xlane.xlu0 %6451
    %v6453 = vsel %vm1440, %v6382, 0.0
    %6454 = vadd.xlane.f32.xlu0 %v6453
    %v6455 = vpop.xlane.xlu0 %6454
    %v6456 = vsel %vm1440, %v6384, 0.0
    %6457 = vadd.xlane.f32.xlu0 %v6456
    %v6458 = vpop.xlane.xlu0 %6457
    %v6459 = vsel %vm1440, %v6386, 0.0
    %6460 = vadd.xlane.f32.xlu0 %v6459
    %v6461 = vpop.xlane.xlu0 %6460
    %v6462 = vsel %vm1440, %v6388, 0.0
    %6463 = vadd.xlane.f32.xlu0 %v6462
    %v6464 = vpop.xlane.xlu0 %6463
    %v6465 = vsel %vm1440, %v6390, 0.0
    %6466 = vadd.xlane.f32.xlu0 %v6465
    %v6467 = vpop.xlane.xlu0 %6466
    %v6468 = vsel %vm1440, %v6392, 0.0
    %6469 = vadd.xlane.f32.xlu0 %v6468
    %v6470 = vpop.xlane.xlu0 %6469
    %v6471 = vsel %vm1440, %v6394, 0.0
    %6472 = vadd.xlane.f32.xlu0 %v6471
    %v6473 = vpop.xlane.xlu0 %6472
    %v6474 = vsel %vm1440, %v6396, 0.0
    %6475 = vadd.xlane.f32.xlu0 %v6474
    %v6476 = vpop.xlane.xlu0 %6475
    %v6477 = vsel %vm1440, %v6398, 0.0
    %6478 = vadd.xlane.f32.xlu0 %v6477
    %v6479 = vpop.xlane.xlu0 %6478
    %v6480 = vsel %vm1440, %v6400, 0.0
    %6481 = vadd.xlane.f32.xlu0 %v6480
    %v6482 = vpop.xlane.xlu0 %6481
    %v6483 = vsel %vm1440, %v6402, 0.0
    %6484 = vadd.xlane.f32.xlu0 %v6483
    %v6485 = vpop.xlane.xlu0 %6484
    %v6486 = vsel %vm1440, %v6404, 0.0
    %6487 = vadd.xlane.f32.xlu0 %v6486
    %v6488 = vpop.xlane.xlu0 %6487
    %v6489 = vsel %vm1440, %v6406, 0.0
    %6490 = vadd.xlane.f32.xlu0 %v6489
    %v6491 = vpop.xlane.xlu0 %6490
    %v6492 = vsel %vm1440, %v6408, 0.0
    %6493 = vadd.xlane.f32.xlu0 %v6492
    %v6494 = vpop.xlane.xlu0 %6493
    %v6495 = vsel %vm1440, %v6410, 0.0
    %6496 = vadd.xlane.f32.xlu0 %v6495
    %v6497 = vpop.xlane.xlu0 %6496
    %v6498 = vsel %vm1440, %v6412, 0.0
    %6499 = vadd.xlane.f32.xlu0 %v6498
    %v6500 = vpop.xlane.xlu0 %6499
    %v6501 = vsel %vm1440, %v6414, 0.0
    %6502 = vadd.xlane.f32.xlu0 %v6501
    %v6503 = vpop.xlane.xlu0 %6502
    %v6504 = vsel %vm1440, %v6416, 0.0
    %6505 = vadd.xlane.f32.xlu0 %v6504
    %v6506 = vpop.xlane.xlu0 %6505
    %v6507 = vsel %vm1440, %v6418, 0.0
    %6508 = vadd.xlane.f32.xlu0 %v6507
    %v6509 = vpop.xlane.xlu0 %6508
    %v6510 = vsel %vm1440, %v6420, 0.0
    %6511 = vadd.xlane.f32.xlu0 %v6510
    %v6512 = vpop.xlane.xlu0 %6511
    %v6513 = vsel %vm1440, %v6422, 0.0
    %6514 = vadd.xlane.f32.xlu0 %v6513
    %v6515 = vpop.xlane.xlu0 %6514
    %v6516 = vsel %vm1440, %v6424, 0.0
    %6517 = vadd.xlane.f32.xlu0 %v6516
    %v6518 = vpop.xlane.xlu0 %6517
    %v6519 = vsel %vm1440, %v6426, 0.0
    %6520 = vadd.xlane.f32.xlu0 %v6519
    %v6521 = vpop.xlane.xlu0 %6520
    %v6522 = vsel %vm1440, %v6428, 0.0
    %6523 = vadd.xlane.f32.xlu0 %v6522
    %v6524 = vpop.xlane.xlu0 %6523
    %v6525 = vrcp.pop %v6431
    %v6526 = vrcp.pop %v6434
    %v6527 = vrcp.pop %v6437
    %v6528 = vrcp.pop %v6440
    %v6529 = vrcp.pop %v6443
    %v6530 = vrcp.pop %v6446
    %v6531 = vrcp.pop %v6449
    %v6532 = vrcp.pop %v6452
    %v6533 = vrcp.pop %v6455
    %v6534 = vrcp.pop %v6458
    %v6535 = vrcp.pop %v6461
    %v6536 = vrcp.pop %v6464
    %v6537 = vrcp.pop %v6467
    %v6538 = vrcp.pop %v6470
    %v6539 = vrcp.pop %v6473
    %v6540 = vrcp.pop %v6476
    %v6541 = vrcp.pop %v6479
    %v6542 = vrcp.pop %v6482
    %v6543 = vrcp.pop %v6485
    %v6544 = vrcp.pop %v6488
    %v6545 = vrcp.pop %v6491
    %v6546 = vrcp.pop %v6494
    %v6547 = vrcp.pop %v6497
    %v6548 = vrcp.pop %v6500
    %v6549 = vrcp.pop %v6503
    %v6550 = vrcp.pop %v6506
    %v6551 = vrcp.pop %v6509
    %v6552 = vrcp.pop %v6512
    %v6553 = vrcp.pop %v6515
    %v6554 = vrcp.pop %v6518
    %v6555 = vrcp.pop %v6521
    %v6556 = vrcp.pop %v6524
    %v6557 = vmul.f32 %v6366, %v6525
    %v6558 = vmul.f32 %v6368, %v6526
    %v6559 = vmul.f32 %v6370, %v6527
    %v6560 = vmul.f32 %v6372, %v6528
    %v6561 = vmul.f32 %v6374, %v6529
    %v6562 = vmul.f32 %v6376, %v6530
    %v6563 = vmul.f32 %v6378, %v6531
    %v6564 = vmul.f32 %v6380, %v6532
    %v6565 = vmul.f32 %v6382, %v6533
    %v6566 = vmul.f32 %v6384, %v6534
    %v6567 = vmul.f32 %v6386, %v6535
    %v6568 = vmul.f32 %v6388, %v6536
    %v6569 = vmul.f32 %v6390, %v6537
    %v6570 = vmul.f32 %v6392, %v6538
    %v6571 = vmul.f32 %v6394, %v6539
    %v6572 = vmul.f32 %v6396, %v6540
    %v6573 = vmul.f32 %v6398, %v6541
    %v6574 = vmul.f32 %v6400, %v6542
    %v6575 = vmul.f32 %v6402, %v6543
    %v6576 = vmul.f32 %v6404, %v6544
    %v6577 = vmul.f32 %v6406, %v6545
    %v6578 = vmul.f32 %v6408, %v6546
    %v6579 = vmul.f32 %v6410, %v6547
    %v6580 = vmul.f32 %v6412, %v6548
    %v6581 = vmul.f32 %v6414, %v6549
    %v6582 = vmul.f32 %v6416, %v6550
    %v6583 = vmul.f32 %v6418, %v6551
    %v6584 = vmul.f32 %v6420, %v6552
    %v6585 = vmul.f32 %v6422, %v6553
    %v6586 = vmul.f32 %v6424, %v6554
    %v6587 = vmul.f32 %v6426, %v6555
    %v6588 = vmul.f32 %v6428, %v6556
    %v6589 = vpack.c.bf16 %v6558, %v6557
    %v6590 = vpack.c.bf16 %v6560, %v6559
    %v6591 = vpack.c.bf16 %v6562, %v6561
    %v6592 = vpack.c.bf16 %v6564, %v6563
    %v6593 = vpack.c.bf16 %v6566, %v6565
    %v6594 = vpack.c.bf16 %v6568, %v6567
    %v6595 = vpack.c.bf16 %v6570, %v6569
    %v6596 = vpack.c.bf16 %v6572, %v6571
    %v6597 = vpack.c.bf16 %v6574, %v6573
    %v6598 = vpack.c.bf16 %v6576, %v6575
    %v6599 = vpack.c.bf16 %v6578, %v6577
    %v6600 = vpack.c.bf16 %v6580, %v6579
    %v6601 = vpack.c.bf16 %v6582, %v6581
    %v6602 = vpack.c.bf16 %v6584, %v6583
    %v6603 = vpack.c.bf16 %v6586, %v6585
    %v6604 = vpack.c.bf16 %v6588, %v6587
    %v6605 = vpack.c.bf16 %v5212, %v5209
    %v6606 = vpack.c.bf16 %v5220, %v5217
    %v6607 = vpack.c.bf16 %v5228, %v5225
    %v6608 = vpack.c.bf16 %v5236, %v5233
    %v6609 = vpack.c.bf16 %v5244, %v5241
    %v6610 = vpack.c.bf16 %v5252, %v5249
    %v6611 = vpack.c.bf16 %v5260, %v5257
    %v6612 = vpack.c.bf16 %v5268, %v5265
    %v6613 = vpack.c.bf16 %v5330, %v5327
    %v6614 = vpack.c.bf16 %v5338, %v5335
    %v6615 = vpack.c.bf16 %v5346, %v5343
    %v6616 = vpack.c.bf16 %v5354, %v5351
    %v6617 = vpack.c.bf16 %v5362, %v5359
    %v6618 = vpack.c.bf16 %v5370, %v5367
    %v6619 = vpack.c.bf16 %v5378, %v5375
    %v6620 = vpack.c.bf16 %v5386, %v5383
    %v6622 = vsel %vm1440, %v6589, 0
    %6624 = vmatprep.subr.bf16.mxu0 0
    %6625 = vmatpush1.bf16.msra.mxu0 %v6605
    %6626 = vmatprep.subr.bf16.mxu0 0
    %6627 = vmatpush1.bf16.msra.mxu0 0
    %6628 = vmatprep.subr.bf16.mxu0 0
    %6629 = vmatpush1.bf16.msra.mxu0 0
    %6630 = vmatprep.subr.bf16.mxu0 0
    %6631 = vmatpush1.bf16.msra.mxu0 0
    %6632 = vmatprep.subr.bf16.mxu0 0
    %6633 = vmatpush1.bf16.msra.mxu0 0
    %6634 = vmatprep.subr.bf16.mxu0 0
    %6635 = vmatpush1.bf16.msra.mxu0 0
    %6636 = vmatprep.subr.bf16.mxu0 0
    %6637 = vmatpush1.bf16.msra.mxu0 0
    %6638 = vmatprep.subr.bf16.mxu0 0
    %6639 = vmatpush1.bf16.msra.mxu0 0
    %6640 = vmatprep.subr.bf16.mxu0 0
    %6641 = vmatpush1.bf16.msra.mxu0 0
    %6642 = vmatprep.subr.bf16.mxu0 0
    %6643 = vmatpush1.bf16.msra.mxu0 0
    %6644 = vmatprep.subr.bf16.mxu0 0
    %6645 = vmatpush1.bf16.msra.mxu0 0
    %6646 = vmatprep.subr.bf16.mxu0 0
    %6647 = vmatpush1.bf16.msra.mxu0 0
    %6648 = vmatprep.subr.bf16.mxu0 0
    %6649 = vmatpush1.bf16.msra.mxu0 0
    %6650 = vmatprep.subr.bf16.mxu0 0
    %6651 = vmatpush1.bf16.msra.mxu0 0
    %6652 = vmatprep.subr.bf16.mxu0 0
    %6653 = vmatpush1.bf16.msra.mxu0 0
    %6654 = vmatprep.subr.bf16.mxu0 0
    %6655 = vmatpush1.bf16.msra.mxu0 0
    %6656 = vmatprep.mubr.bf16.mxu0 0
    %6657 = vmatmul.mubr.bf16.gmra.mrb[0].mxu0 %v6622
    %v6658 = vpop.f32.mrb[0].mxu0
    %v6659 = vadd.f32 0.0, %v6658
    %v6660 = vpop.f32.mrb[0].mxu0
    %v6661 = vpop.f32.mrb[0].mxu0
    %v6662 = vadd.f32 0.0, %v6661
    %v6663 = vpop.f32.mrb[0].mxu0
    %6664 = vdwg.mxu0
    %v6666 = vsel %vm1440, %v6590, 0
    %6668 = vmatprep.subr.bf16.mxu0 0
    %6669 = vmatpush1.bf16.msra.mxu0 %v6606
    %6670 = vmatprep.subr.bf16.mxu0 0
    %6671 = vmatpush1.bf16.msra.mxu0 0
    %6672 = vmatprep.subr.bf16.mxu0 0
    %6673 = vmatpush1.bf16.msra.mxu0 0
    %6674 = vmatprep.subr.bf16.mxu0 0
    %6675 = vmatpush1.bf16.msra.mxu0 0
    %6676 = vmatprep.subr.bf16.mxu0 0
    %6677 = vmatpush1.bf16.msra.mxu0 0
    %6678 = vmatprep.subr.bf16.mxu0 0
    %6679 = vmatpush1.bf16.msra.mxu0 0
    %6680 = vmatprep.subr.bf16.mxu0 0
    %6681 = vmatpush1.bf16.msra.mxu0 0
    %6682 = vmatprep.subr.bf16.mxu0 0
    %6683 = vmatpush1.bf16.msra.mxu0 0
    %6684 = vmatprep.subr.bf16.mxu0 0
    %6685 = vmatpush1.bf16.msra.mxu0 0
    %6686 = vmatprep.subr.bf16.mxu0 0
    %6687 = vmatpush1.bf16.msra.mxu0 0
    %6688 = vmatprep.subr.bf16.mxu0 0
    %6689 = vmatpush1.bf16.msra.mxu0 0
    %6690 = vmatprep.subr.bf16.mxu0 0
    %6691 = vmatpush1.bf16.msra.mxu0 0
    %6692 = vmatprep.subr.bf16.mxu0 0
    %6693 = vmatpush1.bf16.msra.mxu0 0
    %6694 = vmatprep.subr.bf16.mxu0 0
    %6695 = vmatpush1.bf16.msra.mxu0 0
    %6696 = vmatprep.subr.bf16.mxu0 0
    %6697 = vmatpush1.bf16.msra.mxu0 0
    %6698 = vmatprep.subr.bf16.mxu0 0
    %6699 = vmatpush1.bf16.msra.mxu0 0
    %6700 = vmatprep.mubr.bf16.mxu0 0
    %6701 = vmatmul.mubr.bf16.gmra.mrb[0].mxu0 %v6666
    %v6702 = vpop.f32.mrb[0].mxu0
    %v6703 = vadd.f32 0.0, %v6702
    %v6704 = vpop.f32.mrb[0].mxu0
    %v6705 = vpop.f32.mrb[0].mxu0
    %v6706 = vadd.f32 0.0, %v6705
    %v6707 = vpop.f32.mrb[0].mxu0
    %6708 = vdwg.mxu0
    %v6710 = vsel %vm1440, %v6591, 0
    %6712 = vmatprep.subr.bf16.mxu0 0
    %6713 = vmatpush1.bf16.msra.mxu0 %v6607
    %6714 = vmatprep.subr.bf16.mxu0 0
    %6715 = vmatpush1.bf16.msra.mxu0 0
    %6716 = vmatprep.subr.bf16.mxu0 0
    %6717 = vmatpush1.bf16.msra.mxu0 0
    %6718 = vmatprep.subr.bf16.mxu0 0
    %6719 = vmatpush1.bf16.msra.mxu0 0
    %6720 = vmatprep.subr.bf16.mxu0 0
    %6721 = vmatpush1.bf16.msra.mxu0 0
    %6722 = vmatprep.subr.bf16.mxu0 0
    %6723 = vmatpush1.bf16.msra.mxu0 0
    %6724 = vmatprep.subr.bf16.mxu0 0
    %6725 = vmatpush1.bf16.msra.mxu0 0
    %6726 = vmatprep.subr.bf16.mxu0 0
    %6727 = vmatpush1.bf16.msra.mxu0 0
    %6728 = vmatprep.subr.bf16.mxu0 0
    %6729 = vmatpush1.bf16.msra.mxu0 0
    %6730 = vmatprep.subr.bf16.mxu0 0
    %6731 = vmatpush1.bf16.msra.mxu0 0
    %6732 = vmatprep.subr.bf16.mxu0 0
    %6733 = vmatpush1.bf16.msra.mxu0 0
    %6734 = vmatprep.subr.bf16.mxu0 0
    %6735 = vmatpush1.bf16.msra.mxu0 0
    %6736 = vmatprep.subr.bf16.mxu0 0
    %6737 = vmatpush1.bf16.msra.mxu0 0
    %6738 = vmatprep.subr.bf16.mxu0 0
    %6739 = vmatpush1.bf16.msra.mxu0 0
    %6740 = vmatprep.subr.bf16.mxu0 0
    %6741 = vmatpush1.bf16.msra.mxu0 0
    %6742 = vmatprep.subr.bf16.mxu0 0
    %6743 = vmatpush1.bf16.msra.mxu0 0
    %6744 = vmatprep.mubr.bf16.mxu0 0
    %6745 = vmatmul.mubr.bf16.gmra.mrb[0].mxu0 %v6710
    %v6746 = vpop.f32.mrb[0].mxu0
    %v6747 = vadd.f32 0.0, %v6746
    %v6748 = vpop.f32.mrb[0].mxu0
    %v6749 = vpop.f32.mrb[0].mxu0
    %v6750 = vadd.f32 0.0, %v6749
    %v6751 = vpop.f32.mrb[0].mxu0
    %6752 = vdwg.mxu0
    %v6754 = vsel %vm1440, %v6592, 0
    %6756 = vmatprep.subr.bf16.mxu0 0
    %6757 = vmatpush1.bf16.msra.mxu0 %v6608
    %6758 = vmatprep.subr.bf16.mxu0 0
    %6759 = vmatpush1.bf16.msra.mxu0 0
    %6760 = vmatprep.subr.bf16.mxu0 0
    %6761 = vmatpush1.bf16.msra.mxu0 0
    %6762 = vmatprep.subr.bf16.mxu0 0
    %6763 = vmatpush1.bf16.msra.mxu0 0
    %6764 = vmatprep.subr.bf16.mxu0 0
    %6765 = vmatpush1.bf16.msra.mxu0 0
    %6766 = vmatprep.subr.bf16.mxu0 0
    %6767 = vmatpush1.bf16.msra.mxu0 0
    %6768 = vmatprep.subr.bf16.mxu0 0
    %6769 = vmatpush1.bf16.msra.mxu0 0
    %6770 = vmatprep.subr.bf16.mxu0 0
    %6771 = vmatpush1.bf16.msra.mxu0 0
    %6772 = vmatprep.subr.bf16.mxu0 0
    %6773 = vmatpush1.bf16.msra.mxu0 0
    %6774 = vmatprep.subr.bf16.mxu0 0
    %6775 = vmatpush1.bf16.msra.mxu0 0
    %6776 = vmatprep.subr.bf16.mxu0 0
    %6777 = vmatpush1.bf16.msra.mxu0 0
    %6778 = vmatprep.subr.bf16.mxu0 0
    %6779 = vmatpush1.bf16.msra.mxu0 0
    %6780 = vmatprep.subr.bf16.mxu0 0
    %6781 = vmatpush1.bf16.msra.mxu0 0
    %6782 = vmatprep.subr.bf16.mxu0 0
    %6783 = vmatpush1.bf16.msra.mxu0 0
    %6784 = vmatprep.subr.bf16.mxu0 0
    %6785 = vmatpush1.bf16.msra.mxu0 0
    %6786 = vmatprep.subr.bf16.mxu0 0
    %6787 = vmatpush1.bf16.msra.mxu0 0
    %6788 = vmatprep.mubr.bf16.mxu0 0
    %6789 = vmatmul.mubr.bf16.gmra.mrb[0].mxu0 %v6754
    %v6790 = vpop.f32.mrb[0].mxu0
    %v6791 = vadd.f32 0.0, %v6790
    %v6792 = vpop.f32.mrb[0].mxu0
    %v6793 = vpop.f32.mrb[0].mxu0
    %v6794 = vadd.f32 0.0, %v6793
    %v6795 = vpop.f32.mrb[0].mxu0
    %6796 = vdwg.mxu0
    %v6798 = vsel %vm1440, %v6593, 0
    %6800 = vmatprep.subr.bf16.mxu0 0
    %6801 = vmatpush1.bf16.msra.mxu0 %v6609
    %6802 = vmatprep.subr.bf16.mxu0 0
    %6803 = vmatpush1.bf16.msra.mxu0 0
    %6804 = vmatprep.subr.bf16.mxu0 0
    %6805 = vmatpush1.bf16.msra.mxu0 0
    %6806 = vmatprep.subr.bf16.mxu0 0
    %6807 = vmatpush1.bf16.msra.mxu0 0
    %6808 = vmatprep.subr.bf16.mxu0 0
    %6809 = vmatpush1.bf16.msra.mxu0 0
    %6810 = vmatprep.subr.bf16.mxu0 0
    %6811 = vmatpush1.bf16.msra.mxu0 0
    %6812 = vmatprep.subr.bf16.mxu0 0
    %6813 = vmatpush1.bf16.msra.mxu0 0
    %6814 = vmatprep.subr.bf16.mxu0 0
    %6815 = vmatpush1.bf16.msra.mxu0 0
    %6816 = vmatprep.subr.bf16.mxu0 0
    %6817 = vmatpush1.bf16.msra.mxu0 0
    %6818 = vmatprep.subr.bf16.mxu0 0
    %6819 = vmatpush1.bf16.msra.mxu0 0
    %6820 = vmatprep.subr.bf16.mxu0 0
    %6821 = vmatpush1.bf16.msra.mxu0 0
    %6822 = vmatprep.subr.bf16.mxu0 0
    %6823 = vmatpush1.bf16.msra.mxu0 0
    %6824 = vmatprep.subr.bf16.mxu0 0
    %6825 = vmatpush1.bf16.msra.mxu0 0
    %6826 = vmatprep.subr.bf16.mxu0 0
    %6827 = vmatpush1.bf16.msra.mxu0 0
    %6828 = vmatprep.subr.bf16.mxu0 0
    %6829 = vmatpush1.bf16.msra.mxu0 0
    %6830 = vmatprep.subr.bf16.mxu0 0
    %6831 = vmatpush1.bf16.msra.mxu0 0
    %6832 = vmatprep.mubr.bf16.mxu0 0
    %6833 = vmatmul.mubr.bf16.gmra.mrb[0].mxu0 %v6798
    %v6834 = vpop.f32.mrb[0].mxu0
    %v6835 = vadd.f32 0.0, %v6834
    %v6836 = vpop.f32.mrb[0].mxu0
    %v6837 = vpop.f32.mrb[0].mxu0
    %v6838 = vadd.f32 0.0, %v6837
    %v6839 = vpop.f32.mrb[0].mxu0
    %6840 = vdwg.mxu0
    %v6842 = vsel %vm1440, %v6594, 0
    %6844 = vmatprep.subr.bf16.mxu0 0
    %6845 = vmatpush1.bf16.msra.mxu0 %v6610
    %6846 = vmatprep.subr.bf16.mxu0 0
    %6847 = vmatpush1.bf16.msra.mxu0 0
    %6848 = vmatprep.subr.bf16.mxu0 0
    %6849 = vmatpush1.bf16.msra.mxu0 0
    %6850 = vmatprep.subr.bf16.mxu0 0
    %6851 = vmatpush1.bf16.msra.mxu0 0
    %6852 = vmatprep.subr.bf16.mxu0 0
    %6853 = vmatpush1.bf16.msra.mxu0 0
    %6854 = vmatprep.subr.bf16.mxu0 0
    %6855 = vmatpush1.bf16.msra.mxu0 0
    %6856 = vmatprep.subr.bf16.mxu0 0
    %6857 = vmatpush1.bf16.msra.mxu0 0
    %6858 = vmatprep.subr.bf16.mxu0 0
    %6859 = vmatpush1.bf16.msra.mxu0 0
    %6860 = vmatprep.subr.bf16.mxu0 0
    %6861 = vmatpush1.bf16.msra.mxu0 0
    %6862 = vmatprep.subr.bf16.mxu0 0
    %6863 = vmatpush1.bf16.msra.mxu0 0
    %6864 = vmatprep.subr.bf16.mxu0 0
    %6865 = vmatpush1.bf16.msra.mxu0 0
    %6866 = vmatprep.subr.bf16.mxu0 0
    %6867 = vmatpush1.bf16.msra.mxu0 0
    %6868 = vmatprep.subr.bf16.mxu0 0
    %6869 = vmatpush1.bf16.msra.mxu0 0
    %6870 = vmatprep.subr.bf16.mxu0 0
    %6871 = vmatpush1.bf16.msra.mxu0 0
    %6872 = vmatprep.subr.bf16.mxu0 0
    %6873 = vmatpush1.bf16.msra.mxu0 0
    %6874 = vmatprep.subr.bf16.mxu0 0
    %6875 = vmatpush1.bf16.msra.mxu0 0
    %6876 = vmatprep.mubr.bf16.mxu0 0
    %6877 = vmatmul.mubr.bf16.gmra.mrb[0].mxu0 %v6842
    %v6878 = vpop.f32.mrb[0].mxu0
    %v6879 = vadd.f32 0.0, %v6878
    %v6880 = vpop.f32.mrb[0].mxu0
    %v6881 = vpop.f32.mrb[0].mxu0
    %v6882 = vadd.f32 0.0, %v6881
    %v6883 = vpop.f32.mrb[0].mxu0
    %6884 = vdwg.mxu0
    %v6886 = vsel %vm1440, %v6595, 0
    %6888 = vmatprep.subr.bf16.mxu0 0
    %6889 = vmatpush1.bf16.msra.mxu0 %v6611
    %6890 = vmatprep.subr.bf16.mxu0 0
    %6891 = vmatpush1.bf16.msra.mxu0 0
    %6892 = vmatprep.subr.bf16.mxu0 0
    %6893 = vmatpush1.bf16.msra.mxu0 0
    %6894 = vmatprep.subr.bf16.mxu0 0
    %6895 = vmatpush1.bf16.msra.mxu0 0
    %6896 = vmatprep.subr.bf16.mxu0 0
    %6897 = vmatpush1.bf16.msra.mxu0 0
    %6898 = vmatprep.subr.bf16.mxu0 0
    %6899 = vmatpush1.bf16.msra.mxu0 0
    %6900 = vmatprep.subr.bf16.mxu0 0
    %6901 = vmatpush1.bf16.msra.mxu0 0
    %6902 = vmatprep.subr.bf16.mxu0 0
    %6903 = vmatpush1.bf16.msra.mxu0 0
    %6904 = vmatprep.subr.bf16.mxu0 0
    %6905 = vmatpush1.bf16.msra.mxu0 0
    %6906 = vmatprep.subr.bf16.mxu0 0
    %6907 = vmatpush1.bf16.msra.mxu0 0
    %6908 = vmatprep.subr.bf16.mxu0 0
    %6909 = vmatpush1.bf16.msra.mxu0 0
    %6910 = vmatprep.subr.bf16.mxu0 0
    %6911 = vmatpush1.bf16.msra.mxu0 0
    %6912 = vmatprep.subr.bf16.mxu0 0
    %6913 = vmatpush1.bf16.msra.mxu0 0
    %6914 = vmatprep.subr.bf16.mxu0 0
    %6915 = vmatpush1.bf16.msra.mxu0 0
    %6916 = vmatprep.subr.bf16.mxu0 0
    %6917 = vmatpush1.bf16.msra.mxu0 0
    %6918 = vmatprep.subr.bf16.mxu0 0
    %6919 = vmatpush1.bf16.msra.mxu0 0
    %6920 = vmatprep.mubr.bf16.mxu0 0
    %6921 = vmatmul.mubr.bf16.gmra.mrb[0].mxu0 %v6886
    %v6922 = vpop.f32.mrb[0].mxu0
    %v6923 = vadd.f32 0.0, %v6922
    %v6924 = vpop.f32.mrb[0].mxu0
    %v6925 = vpop.f32.mrb[0].mxu0
    %v6926 = vadd.f32 0.0, %v6925
    %v6927 = vpop.f32.mrb[0].mxu0
    %6928 = vdwg.mxu0
    %v6930 = vsel %vm1440, %v6596, 0
    %6932 = vmatprep.subr.bf16.mxu0 0
    %6933 = vmatpush1.bf16.msra.mxu0 %v6612
    %6934 = vmatprep.subr.bf16.mxu0 0
    %6935 = vmatpush1.bf16.msra.mxu0 0
    %6936 = vmatprep.subr.bf16.mxu0 0
    %6937 = vmatpush1.bf16.msra.mxu0 0
    %6938 = vmatprep.subr.bf16.mxu0 0
    %6939 = vmatpush1.bf16.msra.mxu0 0
    %6940 = vmatprep.subr.bf16.mxu0 0
    %6941 = vmatpush1.bf16.msra.mxu0 0
    %6942 = vmatprep.subr.bf16.mxu0 0
    %6943 = vmatpush1.bf16.msra.mxu0 0
    %6944 = vmatprep.subr.bf16.mxu0 0
    %6945 = vmatpush1.bf16.msra.mxu0 0
    %6946 = vmatprep.subr.bf16.mxu0 0
    %6947 = vmatpush1.bf16.msra.mxu0 0
    %6948 = vmatprep.subr.bf16.mxu0 0
    %6949 = vmatpush1.bf16.msra.mxu0 0
    %6950 = vmatprep.subr.bf16.mxu0 0
    %6951 = vmatpush1.bf16.msra.mxu0 0
    %6952 = vmatprep.subr.bf16.mxu0 0
    %6953 = vmatpush1.bf16.msra.mxu0 0
    %6954 = vmatprep.subr.bf16.mxu0 0
    %6955 = vmatpush1.bf16.msra.mxu0 0
    %6956 = vmatprep.subr.bf16.mxu0 0
    %6957 = vmatpush1.bf16.msra.mxu0 0
    %6958 = vmatprep.subr.bf16.mxu0 0
    %6959 = vmatpush1.bf16.msra.mxu0 0
    %6960 = vmatprep.subr.bf16.mxu0 0
    %6961 = vmatpush1.bf16.msra.mxu0 0
    %6962 = vmatprep.subr.bf16.mxu0 0
    %6963 = vmatpush1.bf16.msra.mxu0 0
    %6964 = vmatprep.mubr.bf16.mxu0 0
    %6965 = vmatmul.mubr.bf16.gmra.mrb[0].mxu0 %v6930
    %v6966 = vpop.f32.mrb[0].mxu0
    %v6967 = vadd.f32 0.0, %v6966
    %v6968 = vpop.f32.mrb[0].mxu0
    %v6969 = vpop.f32.mrb[0].mxu0
    %v6970 = vadd.f32 0.0, %v6969
    %v6971 = vpop.f32.mrb[0].mxu0
    %6972 = vdwg.mxu0
    %v6974 = vsel %vm1440, %v6597, 0
    %6976 = vmatprep.subr.bf16.mxu0 0
    %6977 = vmatpush1.bf16.msra.mxu0 %v6613
    %6978 = vmatprep.subr.bf16.mxu0 0
    %6979 = vmatpush1.bf16.msra.mxu0 0
    %6980 = vmatprep.subr.bf16.mxu0 0
    %6981 = vmatpush1.bf16.msra.mxu0 0
    %6982 = vmatprep.subr.bf16.mxu0 0
    %6983 = vmatpush1.bf16.msra.mxu0 0
    %6984 = vmatprep.subr.bf16.mxu0 0
    %6985 = vmatpush1.bf16.msra.mxu0 0
    %6986 = vmatprep.subr.bf16.mxu0 0
    %6987 = vmatpush1.bf16.msra.mxu0 0
    %6988 = vmatprep.subr.bf16.mxu0 0
    %6989 = vmatpush1.bf16.msra.mxu0 0
    %6990 = vmatprep.subr.bf16.mxu0 0
    %6991 = vmatpush1.bf16.msra.mxu0 0
    %6992 = vmatprep.subr.bf16.mxu0 0
    %6993 = vmatpush1.bf16.msra.mxu0 0
    %6994 = vmatprep.subr.bf16.mxu0 0
    %6995 = vmatpush1.bf16.msra.mxu0 0
    %6996 = vmatprep.subr.bf16.mxu0 0
    %6997 = vmatpush1.bf16.msra.mxu0 0
    %6998 = vmatprep.subr.bf16.mxu0 0
    %6999 = vmatpush1.bf16.msra.mxu0 0
    %7000 = vmatprep.subr.bf16.mxu0 0
    %7001 = vmatpush1.bf16.msra.mxu0 0
    %7002 = vmatprep.subr.bf16.mxu0 0
    %7003 = vmatpush1.bf16.msra.mxu0 0
    %7004 = vmatprep.subr.bf16.mxu0 0
    %7005 = vmatpush1.bf16.msra.mxu0 0
    %7006 = vmatprep.subr.bf16.mxu0 0
    %7007 = vmatpush1.bf16.msra.mxu0 0
    %7008 = vmatprep.mubr.bf16.mxu0 0
    %7009 = vmatmul.mubr.bf16.gmra.mrb[0].mxu0 %v6974
    %v7010 = vpop.f32.mrb[0].mxu0
    %v7011 = vadd.f32 0.0, %v7010
    %v7012 = vpop.f32.mrb[0].mxu0
    %v7013 = vpop.f32.mrb[0].mxu0
    %v7014 = vadd.f32 0.0, %v7013
    %v7015 = vpop.f32.mrb[0].mxu0
    %7016 = vdwg.mxu0
    %v7018 = vsel %vm1440, %v6598, 0
    %7020 = vmatprep.subr.bf16.mxu0 0
    %7021 = vmatpush1.bf16.msra.mxu0 %v6614
    %7022 = vmatprep.subr.bf16.mxu0 0
    %7023 = vmatpush1.bf16.msra.mxu0 0
    %7024 = vmatprep.subr.bf16.mxu0 0
    %7025 = vmatpush1.bf16.msra.mxu0 0
    %7026 = vmatprep.subr.bf16.mxu0 0
    %7027 = vmatpush1.bf16.msra.mxu0 0
    %7028 = vmatprep.subr.bf16.mxu0 0
    %7029 = vmatpush1.bf16.msra.mxu0 0
    %7030 = vmatprep.subr.bf16.mxu0 0
    %7031 = vmatpush1.bf16.msra.mxu0 0
    %7032 = vmatprep.subr.bf16.mxu0 0
    %7033 = vmatpush1.bf16.msra.mxu0 0
    %7034 = vmatprep.subr.bf16.mxu0 0
    %7035 = vmatpush1.bf16.msra.mxu0 0
    %7036 = vmatprep.subr.bf16.mxu0 0
    %7037 = vmatpush1.bf16.msra.mxu0 0
    %7038 = vmatprep.subr.bf16.mxu0 0
    %7039 = vmatpush1.bf16.msra.mxu0 0
    %7040 = vmatprep.subr.bf16.mxu0 0
    %7041 = vmatpush1.bf16.msra.mxu0 0
    %7042 = vmatprep.subr.bf16.mxu0 0
    %7043 = vmatpush1.bf16.msra.mxu0 0
    %7044 = vmatprep.subr.bf16.mxu0 0
    %7045 = vmatpush1.bf16.msra.mxu0 0
    %7046 = vmatprep.subr.bf16.mxu0 0
    %7047 = vmatpush1.bf16.msra.mxu0 0
    %7048 = vmatprep.subr.bf16.mxu0 0
    %7049 = vmatpush1.bf16.msra.mxu0 0
    %7050 = vmatprep.subr.bf16.mxu0 0
    %7051 = vmatpush1.bf16.msra.mxu0 0
    %7052 = vmatprep.mubr.bf16.mxu0 0
    %7053 = vmatmul.mubr.bf16.gmra.mrb[0].mxu0 %v7018
    %v7054 = vpop.f32.mrb[0].mxu0
    %v7055 = vadd.f32 0.0, %v7054
    %v7056 = vpop.f32.mrb[0].mxu0
    %v7057 = vpop.f32.mrb[0].mxu0
    %v7058 = vadd.f32 0.0, %v7057
    %v7059 = vpop.f32.mrb[0].mxu0
    %7060 = vdwg.mxu0
    %v7062 = vsel %vm1440, %v6599, 0
    %7064 = vmatprep.subr.bf16.mxu0 0
    %7065 = vmatpush1.bf16.msra.mxu0 %v6615
    %7066 = vmatprep.subr.bf16.mxu0 0
    %7067 = vmatpush1.bf16.msra.mxu0 0
    %7068 = vmatprep.subr.bf16.mxu0 0
    %7069 = vmatpush1.bf16.msra.mxu0 0
    %7070 = vmatprep.subr.bf16.mxu0 0
    %7071 = vmatpush1.bf16.msra.mxu0 0
    %7072 = vmatprep.subr.bf16.mxu0 0
    %7073 = vmatpush1.bf16.msra.mxu0 0
    %7074 = vmatprep.subr.bf16.mxu0 0
    %7075 = vmatpush1.bf16.msra.mxu0 0
    %7076 = vmatprep.subr.bf16.mxu0 0
    %7077 = vmatpush1.bf16.msra.mxu0 0
    %7078 = vmatprep.subr.bf16.mxu0 0
    %7079 = vmatpush1.bf16.msra.mxu0 0
    %7080 = vmatprep.subr.bf16.mxu0 0
    %7081 = vmatpush1.bf16.msra.mxu0 0
    %7082 = vmatprep.subr.bf16.mxu0 0
    %7083 = vmatpush1.bf16.msra.mxu0 0
    %7084 = vmatprep.subr.bf16.mxu0 0
    %7085 = vmatpush1.bf16.msra.mxu0 0
    %7086 = vmatprep.subr.bf16.mxu0 0
    %7087 = vmatpush1.bf16.msra.mxu0 0
    %7088 = vmatprep.subr.bf16.mxu0 0
    %7089 = vmatpush1.bf16.msra.mxu0 0
    %7090 = vmatprep.subr.bf16.mxu0 0
    %7091 = vmatpush1.bf16.msra.mxu0 0
    %7092 = vmatprep.subr.bf16.mxu0 0
    %7093 = vmatpush1.bf16.msra.mxu0 0
    %7094 = vmatprep.subr.bf16.mxu0 0
    %7095 = vmatpush1.bf16.msra.mxu0 0
    %7096 = vmatprep.mubr.bf16.mxu0 0
    %7097 = vmatmul.mubr.bf16.gmra.mrb[0].mxu0 %v7062
    %v7098 = vpop.f32.mrb[0].mxu0
    %v7099 = vadd.f32 0.0, %v7098
    %v7100 = vpop.f32.mrb[0].mxu0
    %v7101 = vpop.f32.mrb[0].mxu0
    %v7102 = vadd.f32 0.0, %v7101
    %v7103 = vpop.f32.mrb[0].mxu0
    %7104 = vdwg.mxu0
    %v7106 = vsel %vm1440, %v6600, 0
    %7108 = vmatprep.subr.bf16.mxu0 0
    %7109 = vmatpush1.bf16.msra.mxu0 %v6616
    %7110 = vmatprep.subr.bf16.mxu0 0
    %7111 = vmatpush1.bf16.msra.mxu0 0
    %7112 = vmatprep.subr.bf16.mxu0 0
    %7113 = vmatpush1.bf16.msra.mxu0 0
    %7114 = vmatprep.subr.bf16.mxu0 0
    %7115 = vmatpush1.bf16.msra.mxu0 0
    %7116 = vmatprep.subr.bf16.mxu0 0
    %7117 = vmatpush1.bf16.msra.mxu0 0
    %7118 = vmatprep.subr.bf16.mxu0 0
    %7119 = vmatpush1.bf16.msra.mxu0 0
    %7120 = vmatprep.subr.bf16.mxu0 0
    %7121 = vmatpush1.bf16.msra.mxu0 0
    %7122 = vmatprep.subr.bf16.mxu0 0
    %7123 = vmatpush1.bf16.msra.mxu0 0
    %7124 = vmatprep.subr.bf16.mxu0 0
    %7125 = vmatpush1.bf16.msra.mxu0 0
    %7126 = vmatprep.subr.bf16.mxu0 0
    %7127 = vmatpush1.bf16.msra.mxu0 0
    %7128 = vmatprep.subr.bf16.mxu0 0
    %7129 = vmatpush1.bf16.msra.mxu0 0
    %7130 = vmatprep.subr.bf16.mxu0 0
    %7131 = vmatpush1.bf16.msra.mxu0 0
    %7132 = vmatprep.subr.bf16.mxu0 0
    %7133 = vmatpush1.bf16.msra.mxu0 0
    %7134 = vmatprep.subr.bf16.mxu0 0
    %7135 = vmatpush1.bf16.msra.mxu0 0
    %7136 = vmatprep.subr.bf16.mxu0 0
    %7137 = vmatpush1.bf16.msra.mxu0 0
    %7138 = vmatprep.subr.bf16.mxu0 0
    %7139 = vmatpush1.bf16.msra.mxu0 0
    %7140 = vmatprep.mubr.bf16.mxu0 0
    %7141 = vmatmul.mubr.bf16.gmra.mrb[0].mxu0 %v7106
    %v7142 = vpop.f32.mrb[0].mxu0
    %v7143 = vadd.f32 0.0, %v7142
    %v7144 = vpop.f32.mrb[0].mxu0
    %v7145 = vpop.f32.mrb[0].mxu0
    %v7146 = vadd.f32 0.0, %v7145
    %v7147 = vpop.f32.mrb[0].mxu0
    %7148 = vdwg.mxu0
    %v7150 = vsel %vm1440, %v6601, 0
    %7152 = vmatprep.subr.bf16.mxu0 0
    %7153 = vmatpush1.bf16.msra.mxu0 %v6617
    %7154 = vmatprep.subr.bf16.mxu0 0
    %7155 = vmatpush1.bf16.msra.mxu0 0
    %7156 = vmatprep.subr.bf16.mxu0 0
    %7157 = vmatpush1.bf16.msra.mxu0 0
    %7158 = vmatprep.subr.bf16.mxu0 0
    %7159 = vmatpush1.bf16.msra.mxu0 0
    %7160 = vmatprep.subr.bf16.mxu0 0
    %7161 = vmatpush1.bf16.msra.mxu0 0
    %7162 = vmatprep.subr.bf16.mxu0 0
    %7163 = vmatpush1.bf16.msra.mxu0 0
    %7164 = vmatprep.subr.bf16.mxu0 0
    %7165 = vmatpush1.bf16.msra.mxu0 0
    %7166 = vmatprep.subr.bf16.mxu0 0
    %7167 = vmatpush1.bf16.msra.mxu0 0
    %7168 = vmatprep.subr.bf16.mxu0 0
    %7169 = vmatpush1.bf16.msra.mxu0 0
    %7170 = vmatprep.subr.bf16.mxu0 0
    %7171 = vmatpush1.bf16.msra.mxu0 0
    %7172 = vmatprep.subr.bf16.mxu0 0
    %7173 = vmatpush1.bf16.msra.mxu0 0
    %7174 = vmatprep.subr.bf16.mxu0 0
    %7175 = vmatpush1.bf16.msra.mxu0 0
    %7176 = vmatprep.subr.bf16.mxu0 0
    %7177 = vmatpush1.bf16.msra.mxu0 0
    %7178 = vmatprep.subr.bf16.mxu0 0
    %7179 = vmatpush1.bf16.msra.mxu0 0
    %7180 = vmatprep.subr.bf16.mxu0 0
    %7181 = vmatpush1.bf16.msra.mxu0 0
    %7182 = vmatprep.subr.bf16.mxu0 0
    %7183 = vmatpush1.bf16.msra.mxu0 0
    %7184 = vmatprep.mubr.bf16.mxu0 0
    %7185 = vmatmul.mubr.bf16.gmra.mrb[0].mxu0 %v7150
    %v7186 = vpop.f32.mrb[0].mxu0
    %v7187 = vadd.f32 0.0, %v7186
    %v7188 = vpop.f32.mrb[0].mxu0
    %v7189 = vpop.f32.mrb[0].mxu0
    %v7190 = vadd.f32 0.0, %v7189
    %v7191 = vpop.f32.mrb[0].mxu0
    %7192 = vdwg.mxu0
    %v7194 = vsel %vm1440, %v6602, 0
    %7196 = vmatprep.subr.bf16.mxu0 0
    %7197 = vmatpush1.bf16.msra.mxu0 %v6618
    %7198 = vmatprep.subr.bf16.mxu0 0
    %7199 = vmatpush1.bf16.msra.mxu0 0
    %7200 = vmatprep.subr.bf16.mxu0 0
    %7201 = vmatpush1.bf16.msra.mxu0 0
    %7202 = vmatprep.subr.bf16.mxu0 0
    %7203 = vmatpush1.bf16.msra.mxu0 0
    %7204 = vmatprep.subr.bf16.mxu0 0
    %7205 = vmatpush1.bf16.msra.mxu0 0
    %7206 = vmatprep.subr.bf16.mxu0 0
    %7207 = vmatpush1.bf16.msra.mxu0 0
    %7208 = vmatprep.subr.bf16.mxu0 0
    %7209 = vmatpush1.bf16.msra.mxu0 0
    %7210 = vmatprep.subr.bf16.mxu0 0
    %7211 = vmatpush1.bf16.msra.mxu0 0
    %7212 = vmatprep.subr.bf16.mxu0 0
    %7213 = vmatpush1.bf16.msra.mxu0 0
    %7214 = vmatprep.subr.bf16.mxu0 0
    %7215 = vmatpush1.bf16.msra.mxu0 0
    %7216 = vmatprep.subr.bf16.mxu0 0
    %7217 = vmatpush1.bf16.msra.mxu0 0
    %7218 = vmatprep.subr.bf16.mxu0 0
    %7219 = vmatpush1.bf16.msra.mxu0 0
    %7220 = vmatprep.subr.bf16.mxu0 0
    %7221 = vmatpush1.bf16.msra.mxu0 0
    %7222 = vmatprep.subr.bf16.mxu0 0
    %7223 = vmatpush1.bf16.msra.mxu0 0
    %7224 = vmatprep.subr.bf16.mxu0 0
    %7225 = vmatpush1.bf16.msra.mxu0 0
    %7226 = vmatprep.subr.bf16.mxu0 0
    %7227 = vmatpush1.bf16.msra.mxu0 0
    %7228 = vmatprep.mubr.bf16.mxu0 0
    %7229 = vmatmul.mubr.bf16.gmra.mrb[0].mxu0 %v7194
    %v7230 = vpop.f32.mrb[0].mxu0
    %v7231 = vadd.f32 0.0, %v7230
    %v7232 = vpop.f32.mrb[0].mxu0
    %v7233 = vpop.f32.mrb[0].mxu0
    %v7234 = vadd.f32 0.0, %v7233
    %v7235 = vpop.f32.mrb[0].mxu0
    %7236 = vdwg.mxu0
    %v7238 = vsel %vm1440, %v6603, 0
    %7240 = vmatprep.subr.bf16.mxu0 0
    %7241 = vmatpush1.bf16.msra.mxu0 %v6619
    %7242 = vmatprep.subr.bf16.mxu0 0
    %7243 = vmatpush1.bf16.msra.mxu0 0
    %7244 = vmatprep.subr.bf16.mxu0 0
    %7245 = vmatpush1.bf16.msra.mxu0 0
    %7246 = vmatprep.subr.bf16.mxu0 0
    %7247 = vmatpush1.bf16.msra.mxu0 0
    %7248 = vmatprep.subr.bf16.mxu0 0
    %7249 = vmatpush1.bf16.msra.mxu0 0
    %7250 = vmatprep.subr.bf16.mxu0 0
    %7251 = vmatpush1.bf16.msra.mxu0 0
    %7252 = vmatprep.subr.bf16.mxu0 0
    %7253 = vmatpush1.bf16.msra.mxu0 0
    %7254 = vmatprep.subr.bf16.mxu0 0
    %7255 = vmatpush1.bf16.msra.mxu0 0
    %7256 = vmatprep.subr.bf16.mxu0 0
    %7257 = vmatpush1.bf16.msra.mxu0 0
    %7258 = vmatprep.subr.bf16.mxu0 0
    %7259 = vmatpush1.bf16.msra.mxu0 0
    %7260 = vmatprep.subr.bf16.mxu0 0
    %7261 = vmatpush1.bf16.msra.mxu0 0
    %7262 = vmatprep.subr.bf16.mxu0 0
    %7263 = vmatpush1.bf16.msra.mxu0 0
    %7264 = vmatprep.subr.bf16.mxu0 0
    %7265 = vmatpush1.bf16.msra.mxu0 0
    %7266 = vmatprep.subr.bf16.mxu0 0
    %7267 = vmatpush1.bf16.msra.mxu0 0
    %7268 = vmatprep.subr.bf16.mxu0 0
    %7269 = vmatpush1.bf16.msra.mxu0 0
    %7270 = vmatprep.subr.bf16.mxu0 0
    %7271 = vmatpush1.bf16.msra.mxu0 0
    %7272 = vmatprep.mubr.bf16.mxu0 0
    %7273 = vmatmul.mubr.bf16.gmra.mrb[0].mxu0 %v7238
    %v7274 = vpop.f32.mrb[0].mxu0
    %v7275 = vadd.f32 0.0, %v7274
    %v7276 = vpop.f32.mrb[0].mxu0
    %v7277 = vpop.f32.mrb[0].mxu0
    %v7278 = vadd.f32 0.0, %v7277
    %v7279 = vpop.f32.mrb[0].mxu0
    %7280 = vdwg.mxu0
    %v7282 = vsel %vm1440, %v6604, 0
    %7284 = vmatprep.subr.bf16.mxu0 0
    %7285 = vmatpush1.bf16.msra.mxu0 %v6620
    %7286 = vmatprep.subr.bf16.mxu0 0
    %7287 = vmatpush1.bf16.msra.mxu0 0
    %7288 = vmatprep.subr.bf16.mxu0 0
    %7289 = vmatpush1.bf16.msra.mxu0 0
    %7290 = vmatprep.subr.bf16.mxu0 0
    %7291 = vmatpush1.bf16.msra.mxu0 0
    %7292 = vmatprep.subr.bf16.mxu0 0
    %7293 = vmatpush1.bf16.msra.mxu0 0
    %7294 = vmatprep.subr.bf16.mxu0 0
    %7295 = vmatpush1.bf16.msra.mxu0 0
    %7296 = vmatprep.subr.bf16.mxu0 0
    %7297 = vmatpush1.bf16.msra.mxu0 0
    %7298 = vmatprep.subr.bf16.mxu0 0
    %7299 = vmatpush1.bf16.msra.mxu0 0
    %7300 = vmatprep.subr.bf16.mxu0 0
    %7301 = vmatpush1.bf16.msra.mxu0 0
    %7302 = vmatprep.subr.bf16.mxu0 0
    %7303 = vmatpush1.bf16.msra.mxu0 0
    %7304 = vmatprep.subr.bf16.mxu0 0
    %7305 = vmatpush1.bf16.msra.mxu0 0
    %7306 = vmatprep.subr.bf16.mxu0 0
    %7307 = vmatpush1.bf16.msra.mxu0 0
    %7308 = vmatprep.subr.bf16.mxu0 0
    %7309 = vmatpush1.bf16.msra.mxu0 0
    %7310 = vmatprep.subr.bf16.mxu0 0
    %7311 = vmatpush1.bf16.msra.mxu0 0
    %7312 = vmatprep.subr.bf16.mxu0 0
    %7313 = vmatpush1.bf16.msra.mxu0 0
    %7314 = vmatprep.subr.bf16.mxu0 0
    %7315 = vmatpush1.bf16.msra.mxu0 0
    %7316 = vmatprep.mubr.bf16.mxu0 0
    %7317 = vmatmul.mubr.bf16.gmra.mrb[0].mxu0 %v7282
    %v7318 = vpop.f32.mrb[0].mxu0
    %v7319 = vadd.f32 0.0, %v7318
    %v7320 = vpop.f32.mrb[0].mxu0
    %v7321 = vpop.f32.mrb[0].mxu0
    %v7322 = vadd.f32 0.0, %v7321
    %v7323 = vpop.f32.mrb[0].mxu0
    %7324 = vdwg.mxu0
    %v7325 = vld [vmem:[%s1 + $0x25] sm:$0x1]
    %v7326 = vpack.c.bf16 %v6662, %v6659
    %v7327 = vpack.c.bf16 %v6706, %v6703
    %v7328 = vpack.c.bf16 %v6750, %v6747
    %v7329 = vpack.c.bf16 %v6794, %v6791
    %v7330 = vpack.c.bf16 %v6838, %v6835
    %v7331 = vpack.c.bf16 %v6882, %v6879
    %v7332 = vpack.c.bf16 %v6926, %v6923
    %v7333 = vpack.c.bf16 %v6970, %v6967
    %v7334 = vld [vmem:[%s0 + $0x140] sm:$0xf]
    %v7335 = vld [vmem:[%s0 + $0x144] sm:$0xf]
    %v7338 = vunpack.c.l.b16 %v7334
    %v7339 = vunpack.c.l.b16 %v7335
    %v7340 = vpack.c.b16 %v7339, %v7338
    %v7343 = vsel %vm1440, %v7326, 0
    %v7346 = vsel %vm1440, %v7327, 0
    %v7349 = vsel %vm1440, %v7328, 0
    %v7352 = vsel %vm1440, %v7329, 0
    %v7355 = vsel %vm1440, %v7330, 0
    %v7358 = vsel %vm1440, %v7331, 0
    %v7361 = vsel %vm1440, %v7332, 0
    %v7364 = vsel %vm1440, %v7333, 0
    %7366 = vmatprep.subr.bf16.mxu0 0
    %7367 = vmatpush1.bf16.msra.mxu0 %v7340
    %7368 = vmatprep.subr.bf16.mxu0 0
    %7369 = vmatpush1.bf16.msra.mxu0 0
    %7370 = vmatprep.subr.bf16.mxu0 0
    %7371 = vmatpush1.bf16.msra.mxu0 0
    %7372 = vmatprep.subr.bf16.mxu0 0
    %7373 = vmatpush1.bf16.msra.mxu0 0
    %7374 = vmatprep.subr.bf16.mxu0 0
    %7375 = vmatpush1.bf16.msra.mxu0 0
    %7376 = vmatprep.subr.bf16.mxu0 0
    %7377 = vmatpush1.bf16.msra.mxu0 0
    %7378 = vmatprep.subr.bf16.mxu0 0
    %7379 = vmatpush1.bf16.msra.mxu0 0
    %7380 = vmatprep.subr.bf16.mxu0 0
    %7381 = vmatpush1.bf16.msra.mxu0 0
    %7382 = vmatprep.subr.bf16.mxu0 0
    %7383 = vmatpush1.bf16.msra.mxu0 0
    %7384 = vmatprep.subr.bf16.mxu0 0
    %7385 = vmatpush1.bf16.msra.mxu0 0
    %7386 = vmatprep.subr.bf16.mxu0 0
    %7387 = vmatpush1.bf16.msra.mxu0 0
    %7388 = vmatprep.subr.bf16.mxu0 0
    %7389 = vmatpush1.bf16.msra.mxu0 0
    %7390 = vmatprep.subr.bf16.mxu0 0
    %7391 = vmatpush1.bf16.msra.mxu0 0
    %7392 = vmatprep.subr.bf16.mxu0 0
    %7393 = vmatpush1.bf16.msra.mxu0 0
    %7394 = vmatprep.subr.bf16.mxu0 0
    %7395 = vmatpush1.bf16.msra.mxu0 0
    %7396 = vmatprep.subr.bf16.mxu0 0
    %7397 = vmatpush1.bf16.msra.mxu0 0
    %7398 = vmatprep.mubr.bf16.mxu0 0
    %7399 = vmatmul.mubr.bf16.gmra.mrb[0].mxu0 %v7343
    %v7400 = vpop.f32.mrb[0].mxu0
    %v7401 = vadd.f32 0.0, %v7400
    %v7402 = vpop.f32.mrb[0].mxu0
    %v7403 = vpop.f32.mrb[0].mxu0
    %v7404 = vadd.f32 0.0, %v7403
    %v7405 = vpop.f32.mrb[0].mxu0
    %7406 = vmatprep.mubr.bf16.mxu0 0
    %7407 = vmatmul.mubr.bf16.gmra.mrb[0].mxu0 %v7346
    %v7408 = vpop.f32.mrb[0].mxu0
    %v7409 = vadd.f32 0.0, %v7408
    %v7410 = vpop.f32.mrb[0].mxu0
    %v7411 = vpop.f32.mrb[0].mxu0
    %v7412 = vadd.f32 0.0, %v7411
    %v7413 = vpop.f32.mrb[0].mxu0
    %7414 = vmatprep.mubr.bf16.mxu0 0
    %7415 = vmatmul.mubr.bf16.gmra.mrb[0].mxu0 %v7349
    %v7416 = vpop.f32.mrb[0].mxu0
    %v7417 = vadd.f32 0.0, %v7416
    %v7418 = vpop.f32.mrb[0].mxu0
    %v7419 = vpop.f32.mrb[0].mxu0
    %v7420 = vadd.f32 0.0, %v7419
    %v7421 = vpop.f32.mrb[0].mxu0
    %7422 = vmatprep.mubr.bf16.mxu0 0
    %7423 = vmatmul.mubr.bf16.gmra.mrb[0].mxu0 %v7352
    %v7424 = vpop.f32.mrb[0].mxu0
    %v7425 = vadd.f32 0.0, %v7424
    %v7426 = vpop.f32.mrb[0].mxu0
    %v7427 = vpop.f32.mrb[0].mxu0
    %v7428 = vadd.f32 0.0, %v7427
    %v7429 = vpop.f32.mrb[0].mxu0
    %7430 = vmatprep.mubr.bf16.mxu0 0
    %7431 = vmatmul.mubr.bf16.gmra.mrb[0].mxu0 %v7355
    %v7432 = vpop.f32.mrb[0].mxu0
    %v7433 = vadd.f32 0.0, %v7432
    %v7434 = vpop.f32.mrb[0].mxu0
    %v7435 = vpop.f32.mrb[0].mxu0
    %v7436 = vadd.f32 0.0, %v7435
    %v7437 = vpop.f32.mrb[0].mxu0
    %7438 = vmatprep.mubr.bf16.mxu0 0
    %7439 = vmatmul.mubr.bf16.gmra.mrb[0].mxu0 %v7358
    %v7440 = vpop.f32.mrb[0].mxu0
    %v7441 = vadd.f32 0.0, %v7440
    %v7442 = vpop.f32.mrb[0].mxu0
    %v7443 = vpop.f32.mrb[0].mxu0
    %v7444 = vadd.f32 0.0, %v7443
    %v7445 = vpop.f32.mrb[0].mxu0
    %7446 = vmatprep.mubr.bf16.mxu0 0
    %7447 = vmatmul.mubr.bf16.gmra.mrb[0].mxu0 %v7361
    %v7448 = vpop.f32.mrb[0].mxu0
    %v7449 = vadd.f32 0.0, %v7448
    %v7450 = vpop.f32.mrb[0].mxu0
    %v7451 = vpop.f32.mrb[0].mxu0
    %v7452 = vadd.f32 0.0, %v7451
    %v7453 = vpop.f32.mrb[0].mxu0
    %7454 = vmatprep.mubr.bf16.mxu0 0
    %7455 = vmatmul.mubr.bf16.gmra.mrb[0].mxu0 %v7364
    %v7456 = vpop.f32.mrb[0].mxu0
    %v7457 = vadd.f32 0.0, %v7456
    %v7458 = vpop.f32.mrb[0].mxu0
    %v7459 = vpop.f32.mrb[0].mxu0
    %v7460 = vadd.f32 0.0, %v7459
    %v7461 = vpop.f32.mrb[0].mxu0
    %7462 = vdwg.mxu0
    %v7463 = vlaneseq
    %v7464 = vshrl.u32 %v7463, 7
    %v7465 = vsub.s32 0, %v7464
    %v7466 = vrot.slane %v7325, %v7465
    %v7467 = vadd.f32 %v7466, %v7401
    %v7468 = vadd.f32 %v7466, %v7404
    %v7469 = vadd.f32 %v7466, %v7409
    %v7470 = vadd.f32 %v7466, %v7412
    %v7471 = vadd.f32 %v7466, %v7417
    %v7472 = vadd.f32 %v7466, %v7420
    %v7473 = vadd.f32 %v7466, %v7425
    %v7474 = vadd.f32 %v7466, %v7428
    %v7475 = vadd.f32 %v7466, %v7433
    %v7476 = vadd.f32 %v7466, %v7436
    %v7477 = vadd.f32 %v7466, %v7441
    %v7478 = vadd.f32 %v7466, %v7444
    %v7479 = vadd.f32 %v7466, %v7449
    %v7480 = vadd.f32 %v7466, %v7452
    %v7481 = vadd.f32 %v7466, %v7457
    %v7482 = vadd.f32 %v7466, %v7460
    %v7483 = vpack.c.bf16 %v7014, %v7011
    %v7484 = vpack.c.bf16 %v7058, %v7055
    %v7485 = vpack.c.bf16 %v7102, %v7099
    %v7486 = vpack.c.bf16 %v7146, %v7143
    %v7487 = vpack.c.bf16 %v7190, %v7187
    %v7488 = vpack.c.bf16 %v7234, %v7231
    %v7489 = vpack.c.bf16 %v7278, %v7275
    %v7490 = vpack.c.bf16 %v7322, %v7319
    %v7491 = vld [vmem:[%s0 + $0x148] sm:$0xf]
    %v7492 = vld [vmem:[%s0 + $0x14c] sm:$0xf]
    %v7495 = vunpack.c.l.b16 %v7491
    %v7496 = vunpack.c.l.b16 %v7492
    %v7497 = vpack.c.b16 %v7496, %v7495
    %v7500 = vsel %vm1440, %v7483, 0
    %v7503 = vsel %vm1440, %v7484, 0
    %v7506 = vsel %vm1440, %v7485, 0
    %v7509 = vsel %vm1440, %v7486, 0
    %v7512 = vsel %vm1440, %v7487, 0
    %v7515 = vsel %vm1440, %v7488, 0
    %v7518 = vsel %vm1440, %v7489, 0
    %v7521 = vsel %vm1440, %v7490, 0
    %7523 = vmatprep.subr.bf16.mxu0 0
    %7524 = vmatpush1.bf16.msra.mxu0 %v7497
    %7525 = vmatprep.subr.bf16.mxu0 0
    %7526 = vmatpush1.bf16.msra.mxu0 0
    %7527 = vmatprep.subr.bf16.mxu0 0
    %7528 = vmatpush1.bf16.msra.mxu0 0
    %7529 = vmatprep.subr.bf16.mxu0 0
    %7530 = vmatpush1.bf16.msra.mxu0 0
    %7531 = vmatprep.subr.bf16.mxu0 0
    %7532 = vmatpush1.bf16.msra.mxu0 0
    %7533 = vmatprep.subr.bf16.mxu0 0
    %7534 = vmatpush1.bf16.msra.mxu0 0
    %7535 = vmatprep.subr.bf16.mxu0 0
    %7536 = vmatpush1.bf16.msra.mxu0 0
    %7537 = vmatprep.subr.bf16.mxu0 0
    %7538 = vmatpush1.bf16.msra.mxu0 0
    %7539 = vmatprep.subr.bf16.mxu0 0
    %7540 = vmatpush1.bf16.msra.mxu0 0
    %7541 = vmatprep.subr.bf16.mxu0 0
    %7542 = vmatpush1.bf16.msra.mxu0 0
    %7543 = vmatprep.subr.bf16.mxu0 0
    %7544 = vmatpush1.bf16.msra.mxu0 0
    %7545 = vmatprep.subr.bf16.mxu0 0
    %7546 = vmatpush1.bf16.msra.mxu0 0
    %7547 = vmatprep.subr.bf16.mxu0 0
    %7548 = vmatpush1.bf16.msra.mxu0 0
    %7549 = vmatprep.subr.bf16.mxu0 0
    %7550 = vmatpush1.bf16.msra.mxu0 0
    %7551 = vmatprep.subr.bf16.mxu0 0
    %7552 = vmatpush1.bf16.msra.mxu0 0
    %7553 = vmatprep.subr.bf16.mxu0 0
    %7554 = vmatpush1.bf16.msra.mxu0 0
    %7555 = vmatprep.mubr.bf16.mxu0 0
    %7556 = vmatmul.mubr.bf16.gmra.mrb[0].mxu0 %v7500
    %v7557 = vpop.f32.mrb[0].mxu0
    %v7558 = vadd.f32 0.0, %v7557
    %v7559 = vpop.f32.mrb[0].mxu0
    %v7560 = vpop.f32.mrb[0].mxu0
    %v7561 = vadd.f32 0.0, %v7560
    %v7562 = vpop.f32.mrb[0].mxu0
    %7563 = vmatprep.mubr.bf16.mxu0 0
    %7564 = vmatmul.mubr.bf16.gmra.mrb[0].mxu0 %v7503
    %v7565 = vpop.f32.mrb[0].mxu0
    %v7566 = vadd.f32 0.0, %v7565
    %v7567 = vpop.f32.mrb[0].mxu0
    %v7568 = vpop.f32.mrb[0].mxu0
    %v7569 = vadd.f32 0.0, %v7568
    %v7570 = vpop.f32.mrb[0].mxu0
    %7571 = vmatprep.mubr.bf16.mxu0 0
    %7572 = vmatmul.mubr.bf16.gmra.mrb[0].mxu0 %v7506
    %v7573 = vpop.f32.mrb[0].mxu0
    %v7574 = vadd.f32 0.0, %v7573
    %v7575 = vpop.f32.mrb[0].mxu0
    %v7576 = vpop.f32.mrb[0].mxu0
    %v7577 = vadd.f32 0.0, %v7576
    %v7578 = vpop.f32.mrb[0].mxu0
    %7579 = vmatprep.mubr.bf16.mxu0 0
    %7580 = vmatmul.mubr.bf16.gmra.mrb[0].mxu0 %v7509
    %v7581 = vpop.f32.mrb[0].mxu0
    %v7582 = vadd.f32 0.0, %v7581
    %v7583 = vpop.f32.mrb[0].mxu0
    %v7584 = vpop.f32.mrb[0].mxu0
    %v7585 = vadd.f32 0.0, %v7584
    %v7586 = vpop.f32.mrb[0].mxu0
    %7587 = vmatprep.mubr.bf16.mxu0 0
    %7588 = vmatmul.mubr.bf16.gmra.mrb[0].mxu0 %v7512
    %v7589 = vpop.f32.mrb[0].mxu0
    %v7590 = vadd.f32 0.0, %v7589
    %v7591 = vpop.f32.mrb[0].mxu0
    %v7592 = vpop.f32.mrb[0].mxu0
    %v7593 = vadd.f32 0.0, %v7592
    %v7594 = vpop.f32.mrb[0].mxu0
    %7595 = vmatprep.mubr.bf16.mxu0 0
    %7596 = vmatmul.mubr.bf16.gmra.mrb[0].mxu0 %v7515
    %v7597 = vpop.f32.mrb[0].mxu0
    %v7598 = vadd.f32 0.0, %v7597
    %v7599 = vpop.f32.mrb[0].mxu0
    %v7600 = vpop.f32.mrb[0].mxu0
    %v7601 = vadd.f32 0.0, %v7600
    %v7602 = vpop.f32.mrb[0].mxu0
    %7603 = vmatprep.mubr.bf16.mxu0 0
    %7604 = vmatmul.mubr.bf16.gmra.mrb[0].mxu0 %v7518
    %v7605 = vpop.f32.mrb[0].mxu0
    %v7606 = vadd.f32 0.0, %v7605
    %v7607 = vpop.f32.mrb[0].mxu0
    %v7608 = vpop.f32.mrb[0].mxu0
    %v7609 = vadd.f32 0.0, %v7608
    %v7610 = vpop.f32.mrb[0].mxu0
    %7611 = vmatprep.mubr.bf16.mxu0 0
    %7612 = vmatmul.mubr.bf16.gmra.mrb[0].mxu0 %v7521
    %v7613 = vpop.f32.mrb[0].mxu0
    %v7614 = vadd.f32 0.0, %v7613
    %v7615 = vpop.f32.mrb[0].mxu0
    %v7616 = vpop.f32.mrb[0].mxu0
    %v7617 = vadd.f32 0.0, %v7616
    %v7618 = vpop.f32.mrb[0].mxu0
    %7619 = vdwg.mxu0
    %v7620 = vadd.f32 %v7467, %v7558
    %v7621 = vadd.f32 %v7468, %v7561
    %v7622 = vadd.f32 %v7469, %v7566
    %v7623 = vadd.f32 %v7470, %v7569
    %v7624 = vadd.f32 %v7471, %v7574
    %v7625 = vadd.f32 %v7472, %v7577
    %v7626 = vadd.f32 %v7473, %v7582
    %v7627 = vadd.f32 %v7474, %v7585
    %v7628 = vadd.f32 %v7475, %v7590
    %v7629 = vadd.f32 %v7476, %v7593
    %v7630 = vadd.f32 %v7477, %v7598
    %v7631 = vadd.f32 %v7478, %v7601
    %v7632 = vadd.f32 %v7479, %v7606
    %v7633 = vadd.f32 %v7480, %v7609
    %v7634 = vadd.f32 %v7481, %v7614
    %v7635 = vadd.f32 %v7482, %v7617
    %v7636 = vadd.f32 %v4633, %v7620
    %v7637 = vadd.f32 %v4634, %v7621
    %v7638 = vadd.f32 %v4635, %v7622
    %v7639 = vadd.f32 %v4636, %v7623
    %v7640 = vadd.f32 %v4637, %v7624
    %v7641 = vadd.f32 %v4638, %v7625
    %v7642 = vadd.f32 %v4639, %v7626
    %v7643 = vadd.f32 %v4640, %v7627
    %v7644 = vadd.f32 %v4641, %v7628
    %v7645 = vadd.f32 %v4642, %v7629
    %v7646 = vadd.f32 %v4643, %v7630
    %v7647 = vadd.f32 %v4644, %v7631
    %v7648 = vadd.f32 %v4645, %v7632
    %v7649 = vadd.f32 %v4646, %v7633
    %v7650 = vadd.f32 %v4647, %v7634
    %v7651 = vadd.f32 %v4648, %v7635
    %v7652 = vsel %vm325, %v7636, 0.0
    %7653 = vadd.xlane.f32.xlu0 %v7652
    %v7654 = vpop.xlane.xlu0 %7653
    %v7655 = vsel %vm325, %v7637, 0.0
    %7656 = vadd.xlane.f32.xlu0 %v7655
    %v7657 = vpop.xlane.xlu0 %7656
    %v7658 = vsel %vm325, %v7638, 0.0
    %7659 = vadd.xlane.f32.xlu0 %v7658
    %v7660 = vpop.xlane.xlu0 %7659
    %v7661 = vsel %vm325, %v7639, 0.0
    %7662 = vadd.xlane.f32.xlu0 %v7661
    %v7663 = vpop.xlane.xlu0 %7662
    %v7664 = vsel %vm325, %v7640, 0.0
    %7665 = vadd.xlane.f32.xlu0 %v7664
    %v7666 = vpop.xlane.xlu0 %7665
    %v7667 = vsel %vm325, %v7641, 0.0
    %7668 = vadd.xlane.f32.xlu0 %v7667
    %v7669 = vpop.xlane.xlu0 %7668
    %v7670 = vsel %vm325, %v7642, 0.0
    %7671 = vadd.xlane.f32.xlu0 %v7670
    %v7672 = vpop.xlane.xlu0 %7671
    %v7673 = vsel %vm325, %v7643, 0.0
    %7674 = vadd.xlane.f32.xlu0 %v7673
    %v7675 = vpop.xlane.xlu0 %7674
    %v7676 = vsel %vm325, %v7644, 0.0
    %7677 = vadd.xlane.f32.xlu0 %v7676
    %v7678 = vpop.xlane.xlu0 %7677
    %v7679 = vsel %vm325, %v7645, 0.0
    %7680 = vadd.xlane.f32.xlu0 %v7679
    %v7681 = vpop.xlane.xlu0 %7680
    %v7682 = vsel %vm325, %v7646, 0.0
    %7683 = vadd.xlane.f32.xlu0 %v7682
    %v7684 = vpop.xlane.xlu0 %7683
    %v7685 = vsel %vm325, %v7647, 0.0
    %7686 = vadd.xlane.f32.xlu0 %v7685
    %v7687 = vpop.xlane.xlu0 %7686
    %v7688 = vsel %vm325, %v7648, 0.0
    %7689 = vadd.xlane.f32.xlu0 %v7688
    %v7690 = vpop.xlane.xlu0 %7689
    %v7691 = vsel %vm325, %v7649, 0.0
    %7692 = vadd.xlane.f32.xlu0 %v7691
    %v7693 = vpop.xlane.xlu0 %7692
    %v7694 = vsel %vm325, %v7650, 0.0
    %7695 = vadd.xlane.f32.xlu0 %v7694
    %v7696 = vpop.xlane.xlu0 %7695
    %v7697 = vsel %vm325, %v7651, 0.0
    %7698 = vadd.xlane.f32.xlu0 %v7697
    %v7699 = vpop.xlane.xlu0 %7698
    %v7700 = vmul.f32 %v7654, %v374
    %v7701 = vmul.f32 %v7657, %v374
    %v7702 = vmul.f32 %v7660, %v374
    %v7703 = vmul.f32 %v7663, %v374
    %v7704 = vmul.f32 %v7666, %v374
    %v7705 = vmul.f32 %v7669, %v374
    %v7706 = vmul.f32 %v7672, %v374
    %v7707 = vmul.f32 %v7675, %v374
    %v7708 = vmul.f32 %v7678, %v374
    %v7709 = vmul.f32 %v7681, %v374
    %v7710 = vmul.f32 %v7684, %v374
    %v7711 = vmul.f32 %v7687, %v374
    %v7712 = vmul.f32 %v7690, %v374
    %v7713 = vmul.f32 %v7693, %v374
    %v7714 = vmul.f32 %v7696, %v374
    %v7715 = vmul.f32 %v7699, %v374
    %v7716 = vsub.f32 %v7636, %v7700
    %v7717 = vsub.f32 %v7637, %v7701
    %v7718 = vsub.f32 %v7638, %v7702
    %v7719 = vsub.f32 %v7639, %v7703
    %v7720 = vsub.f32 %v7640, %v7704
    %v7721 = vsub.f32 %v7641, %v7705
    %v7722 = vsub.f32 %v7642, %v7706
    %v7723 = vsub.f32 %v7643, %v7707
    %v7724 = vsub.f32 %v7644, %v7708
    %v7725 = vsub.f32 %v7645, %v7709
    %v7726 = vsub.f32 %v7646, %v7710
    %v7727 = vsub.f32 %v7647, %v7711
    %v7728 = vsub.f32 %v7648, %v7712
    %v7729 = vsub.f32 %v7649, %v7713
    %v7730 = vsub.f32 %v7650, %v7714
    %v7731 = vsub.f32 %v7651, %v7715
    %v7732 = vmul.f32 %v7716, %v7716
    %v7733 = vmul.f32 %v7717, %v7717
    %v7734 = vmul.f32 %v7718, %v7718
    %v7735 = vmul.f32 %v7719, %v7719
    %v7736 = vmul.f32 %v7720, %v7720
    %v7737 = vmul.f32 %v7721, %v7721
    %v7738 = vmul.f32 %v7722, %v7722
    %v7739 = vmul.f32 %v7723, %v7723
    %v7740 = vmul.f32 %v7724, %v7724
    %v7741 = vmul.f32 %v7725, %v7725
    %v7742 = vmul.f32 %v7726, %v7726
    %v7743 = vmul.f32 %v7727, %v7727
    %v7744 = vmul.f32 %v7728, %v7728
    %v7745 = vmul.f32 %v7729, %v7729
    %v7746 = vmul.f32 %v7730, %v7730
    %v7747 = vmul.f32 %v7731, %v7731
    %v7748 = vsel %vm325, %v7732, 0.0
    %7749 = vadd.xlane.f32.xlu0 %v7748
    %v7750 = vpop.xlane.xlu0 %7749
    %v7751 = vsel %vm325, %v7733, 0.0
    %7752 = vadd.xlane.f32.xlu0 %v7751
    %v7753 = vpop.xlane.xlu0 %7752
    %v7754 = vsel %vm325, %v7734, 0.0
    %7755 = vadd.xlane.f32.xlu0 %v7754
    %v7756 = vpop.xlane.xlu0 %7755
    %v7757 = vsel %vm325, %v7735, 0.0
    %7758 = vadd.xlane.f32.xlu0 %v7757
    %v7759 = vpop.xlane.xlu0 %7758
    %v7760 = vsel %vm325, %v7736, 0.0
    %7761 = vadd.xlane.f32.xlu0 %v7760
    %v7762 = vpop.xlane.xlu0 %7761
    %v7763 = vsel %vm325, %v7737, 0.0
    %7764 = vadd.xlane.f32.xlu0 %v7763
    %v7765 = vpop.xlane.xlu0 %7764
    %v7766 = vsel %vm325, %v7738, 0.0
    %7767 = vadd.xlane.f32.xlu0 %v7766
    %v7768 = vpop.xlane.xlu0 %7767
    %v7769 = vsel %vm325, %v7739, 0.0
    %7770 = vadd.xlane.f32.xlu0 %v7769
    %v7771 = vpop.xlane.xlu0 %7770
    %v7772 = vsel %vm325, %v7740, 0.0
    %7773 = vadd.xlane.f32.xlu0 %v7772
    %v7774 = vpop.xlane.xlu0 %7773
    %v7775 = vsel %vm325, %v7741, 0.0
    %7776 = vadd.xlane.f32.xlu0 %v7775
    %v7777 = vpop.xlane.xlu0 %7776
    %v7778 = vsel %vm325, %v7742, 0.0
    %7779 = vadd.xlane.f32.xlu0 %v7778
    %v7780 = vpop.xlane.xlu0 %7779
    %v7781 = vsel %vm325, %v7743, 0.0
    %7782 = vadd.xlane.f32.xlu0 %v7781
    %v7783 = vpop.xlane.xlu0 %7782
    %v7784 = vsel %vm325, %v7744, 0.0
    %7785 = vadd.xlane.f32.xlu0 %v7784
    %v7786 = vpop.xlane.xlu0 %7785
    %v7787 = vsel %vm325, %v7745, 0.0
    %7788 = vadd.xlane.f32.xlu0 %v7787
    %v7789 = vpop.xlane.xlu0 %7788
    %v7790 = vsel %vm325, %v7746, 0.0
    %7791 = vadd.xlane.f32.xlu0 %v7790
    %v7792 = vpop.xlane.xlu0 %7791
    %v7793 = vsel %vm325, %v7747, 0.0
    %7794 = vadd.xlane.f32.xlu0 %v7793
    %v7795 = vpop.xlane.xlu0 %7794
    %v7796 = vmul.f32 %v7750, %v374
    %v7797 = vmul.f32 %v7753, %v374
    %v7798 = vmul.f32 %v7756, %v374
    %v7799 = vmul.f32 %v7759, %v374
    %v7800 = vmul.f32 %v7762, %v374
    %v7801 = vmul.f32 %v7765, %v374
    %v7802 = vmul.f32 %v7768, %v374
    %v7803 = vmul.f32 %v7771, %v374
    %v7804 = vmul.f32 %v7774, %v374
    %v7805 = vmul.f32 %v7777, %v374
    %v7806 = vmul.f32 %v7780, %v374
    %v7807 = vmul.f32 %v7783, %v374
    %v7808 = vmul.f32 %v7786, %v374
    %v7809 = vmul.f32 %v7789, %v374
    %v7810 = vmul.f32 %v7792, %v374
    %v7811 = vmul.f32 %v7795, %v374
    %v7812 = vadd.f32 %v7796, 1e-12
    %v7813 = vadd.f32 %v7797, 1e-12
    %v7814 = vadd.f32 %v7798, 1e-12
    %v7815 = vadd.f32 %v7799, 1e-12
    %v7816 = vadd.f32 %v7800, 1e-12
    %v7817 = vadd.f32 %v7801, 1e-12
    %v7818 = vadd.f32 %v7802, 1e-12
    %v7819 = vadd.f32 %v7803, 1e-12
    %v7820 = vadd.f32 %v7804, 1e-12
    %v7821 = vadd.f32 %v7805, 1e-12
    %v7822 = vadd.f32 %v7806, 1e-12
    %v7823 = vadd.f32 %v7807, 1e-12
    %v7824 = vadd.f32 %v7808, 1e-12
    %v7825 = vadd.f32 %v7809, 1e-12
    %v7826 = vadd.f32 %v7810, 1e-12
    %v7827 = vadd.f32 %v7811, 1e-12
    %v7828 = vrsqrt.pop %v7812
    %v7829 = vrsqrt.pop %v7813
    %v7830 = vrsqrt.pop %v7814
    %v7831 = vrsqrt.pop %v7815
    %v7832 = vrsqrt.pop %v7816
    %v7833 = vrsqrt.pop %v7817
    %v7834 = vrsqrt.pop %v7818
    %v7835 = vrsqrt.pop %v7819
    %v7836 = vrsqrt.pop %v7820
    %v7837 = vrsqrt.pop %v7821
    %v7838 = vrsqrt.pop %v7822
    %v7839 = vrsqrt.pop %v7823
    %v7840 = vrsqrt.pop %v7824
    %v7841 = vrsqrt.pop %v7825
    %v7842 = vrsqrt.pop %v7826
    %v7843 = vrsqrt.pop %v7827
    %v7844 = vmul.f32 %v7716, %v7828
    %v7845 = vmul.f32 %v7717, %v7829
    %v7846 = vmul.f32 %v7718, %v7830
    %v7847 = vmul.f32 %v7719, %v7831
    %v7848 = vmul.f32 %v7720, %v7832
    %v7849 = vmul.f32 %v7721, %v7833
    %v7850 = vmul.f32 %v7722, %v7834
    %v7851 = vmul.f32 %v7723, %v7835
    %v7852 = vmul.f32 %v7724, %v7836
    %v7853 = vmul.f32 %v7725, %v7837
    %v7854 = vmul.f32 %v7726, %v7838
    %v7855 = vmul.f32 %v7727, %v7839
    %v7856 = vmul.f32 %v7728, %v7840
    %v7857 = vmul.f32 %v7729, %v7841
    %v7858 = vmul.f32 %v7730, %v7842
    %v7859 = vmul.f32 %v7731, %v7843
    %v7860 = vld [vmem:[%s1 + $0x26] sm:$0x1]
    %v7861 = vlaneseq
    %v7862 = vshrl.u32 %v7861, 7
    %v7863 = vsub.s32 0, %v7862
    %v7864 = vrot.slane %v7860, %v7863
    %v7865 = vmul.f32 %v7844, %v7864
    %v7866 = vmul.f32 %v7845, %v7864
    %v7867 = vmul.f32 %v7846, %v7864
    %v7868 = vmul.f32 %v7847, %v7864
    %v7869 = vmul.f32 %v7848, %v7864
    %v7870 = vmul.f32 %v7849, %v7864
    %v7871 = vmul.f32 %v7850, %v7864
    %v7872 = vmul.f32 %v7851, %v7864
    %v7873 = vmul.f32 %v7852, %v7864
    %v7874 = vmul.f32 %v7853, %v7864
    %v7875 = vmul.f32 %v7854, %v7864
    %v7876 = vmul.f32 %v7855, %v7864
    %v7877 = vmul.f32 %v7856, %v7864
    %v7878 = vmul.f32 %v7857, %v7864
    %v7879 = vmul.f32 %v7858, %v7864
    %v7880 = vmul.f32 %v7859, %v7864
    %v7881 = vld [vmem:[%s1 + $0x27] sm:$0x1]
    %v7882 = vlaneseq
    %v7883 = vshrl.u32 %v7882, 7
    %v7884 = vsub.s32 0, %v7883
    %v7885 = vrot.slane %v7881, %v7884
    %v7886 = vadd.f32 %v7865, %v7885
    %v7887 = vadd.f32 %v7866, %v7885
    %v7888 = vadd.f32 %v7867, %v7885
    %v7889 = vadd.f32 %v7868, %v7885
    %v7890 = vadd.f32 %v7869, %v7885
    %v7891 = vadd.f32 %v7870, %v7885
    %v7892 = vadd.f32 %v7871, %v7885
    %v7893 = vadd.f32 %v7872, %v7885
    %v7894 = vadd.f32 %v7873, %v7885
    %v7895 = vadd.f32 %v7874, %v7885
    %v7896 = vadd.f32 %v7875, %v7885
    %v7897 = vadd.f32 %v7876, %v7885
    %v7898 = vadd.f32 %v7877, %v7885
    %v7899 = vadd.f32 %v7878, %v7885
    %v7900 = vadd.f32 %v7879, %v7885
    %v7901 = vadd.f32 %v7880, %v7885
    %v7902 = vpack.c.bf16 %v7887, %v7886
    %v7903 = vpack.c.bf16 %v7889, %v7888
    %v7904 = vpack.c.bf16 %v7891, %v7890
    %v7905 = vpack.c.bf16 %v7893, %v7892
    %v7906 = vpack.c.bf16 %v7895, %v7894
    %v7907 = vpack.c.bf16 %v7897, %v7896
    %v7908 = vpack.c.bf16 %v7899, %v7898
    %v7909 = vpack.c.bf16 %v7901, %v7900
    %v7910 = vld [vmem:[%s0 + $0x150] sm:$0xf]
    %v7911 = vld [vmem:[%s0 + $0x154] sm:$0xf]
    %v7912 = vld [vmem:[%s0 + $0x158] sm:$0xf]
    %v7913 = vld [vmem:[%s0 + $0x15c] sm:$0xf]
    %v7914 = vld [vmem:[%s1 + $0x28] sm:$0x1]
    %v7915 = vlaneseq
    %v7916 = vshrl.u32 %v7915, 7
    %v7917 = vsub.s32 0, %v7916
    %v7918 = vrot.slane %v7914, %v7917
    %v7923 = vunpack.c.l.b16 %v7910
    %v7924 = vunpack.c.l.b16 %v7911
    %v7925 = vunpack.c.l.b16 %v7912
    %v7926 = vunpack.c.l.b16 %v7913
    %v7927 = vpack.c.b16 %v7924, %v7923
    %v7928 = vpack.c.b16 %v7926, %v7925
    %v7932 = vsel %vm325, %v7902, 0
    %v7935 = vsel %vm325, %v7903, 0
    %v7938 = vsel %vm325, %v7904, 0
    %v7941 = vsel %vm325, %v7905, 0
    %v7944 = vsel %vm325, %v7906, 0
    %v7947 = vsel %vm325, %v7907, 0
    %v7950 = vsel %vm325, %v7908, 0
    %v7953 = vsel %vm325, %v7909, 0
    %7955 = vmatprep.subr.bf16.mxu0 0
    %7956 = vmatpush1.bf16.msra.mxu0 %v7927
    %7957 = vmatprep.subr.bf16.mxu0 0
    %7958 = vmatpush1.bf16.msra.mxu0 %v7928
    %7959 = vmatprep.subr.bf16.mxu0 0
    %7960 = vmatpush1.bf16.msra.mxu0 0
    %7961 = vmatprep.subr.bf16.mxu0 0
    %7962 = vmatpush1.bf16.msra.mxu0 0
    %7963 = vmatprep.subr.bf16.mxu0 0
    %7964 = vmatpush1.bf16.msra.mxu0 0
    %7965 = vmatprep.subr.bf16.mxu0 0
    %7966 = vmatpush1.bf16.msra.mxu0 0
    %7967 = vmatprep.subr.bf16.mxu0 0
    %7968 = vmatpush1.bf16.msra.mxu0 0
    %7969 = vmatprep.subr.bf16.mxu0 0
    %7970 = vmatpush1.bf16.msra.mxu0 0
    %7971 = vmatprep.subr.bf16.mxu0 0
    %7972 = vmatpush1.bf16.msra.mxu0 0
    %7973 = vmatprep.subr.bf16.mxu0 0
    %7974 = vmatpush1.bf16.msra.mxu0 0
    %7975 = vmatprep.subr.bf16.mxu0 0
    %7976 = vmatpush1.bf16.msra.mxu0 0
    %7977 = vmatprep.subr.bf16.mxu0 0
    %7978 = vmatpush1.bf16.msra.mxu0 0
    %7979 = vmatprep.subr.bf16.mxu0 0
    %7980 = vmatpush1.bf16.msra.mxu0 0
    %7981 = vmatprep.subr.bf16.mxu0 0
    %7982 = vmatpush1.bf16.msra.mxu0 0
    %7983 = vmatprep.subr.bf16.mxu0 0
    %7984 = vmatpush1.bf16.msra.mxu0 0
    %7985 = vmatprep.subr.bf16.mxu0 0
    %7986 = vmatpush1.bf16.msra.mxu0 0
    %7987 = vmatprep.mubr.bf16.mxu0 0
    %7988 = vmatmul.mubr.bf16.gmra.mrb[0].mxu0 %v7932
    %v7989 = vpop.f32.mrb[0].mxu0
    %v7990 = vadd.f32 %v7918, %v7989
    %v7991 = vpop.f32.mrb[0].mxu0
    %v7992 = vpop.f32.mrb[0].mxu0
    %v7993 = vadd.f32 %v7918, %v7992
    %v7994 = vpop.f32.mrb[0].mxu0
    %7995 = vmatprep.mubr.bf16.mxu0 0
    %7996 = vmatmul.mubr.bf16.gmra.mrb[0].mxu0 %v7935
    %v7997 = vpop.f32.mrb[0].mxu0
    %v7998 = vadd.f32 %v7918, %v7997
    %v7999 = vpop.f32.mrb[0].mxu0
    %v8000 = vpop.f32.mrb[0].mxu0
    %v8001 = vadd.f32 %v7918, %v8000
    %v8002 = vpop.f32.mrb[0].mxu0
    %8003 = vmatprep.mubr.bf16.mxu0 0
    %8004 = vmatmul.mubr.bf16.gmra.mrb[0].mxu0 %v7938
    %v8005 = vpop.f32.mrb[0].mxu0
    %v8006 = vadd.f32 %v7918, %v8005
    %v8007 = vpop.f32.mrb[0].mxu0
    %v8008 = vpop.f32.mrb[0].mxu0
    %v8009 = vadd.f32 %v7918, %v8008
    %v8010 = vpop.f32.mrb[0].mxu0
    %8011 = vmatprep.mubr.bf16.mxu0 0
    %8012 = vmatmul.mubr.bf16.gmra.mrb[0].mxu0 %v7941
    %v8013 = vpop.f32.mrb[0].mxu0
    %v8014 = vadd.f32 %v7918, %v8013
    %v8015 = vpop.f32.mrb[0].mxu0
    %v8016 = vpop.f32.mrb[0].mxu0
    %v8017 = vadd.f32 %v7918, %v8016
    %v8018 = vpop.f32.mrb[0].mxu0
    %8019 = vmatprep.mubr.bf16.mxu0 0
    %8020 = vmatmul.mubr.bf16.gmra.mrb[0].mxu0 %v7944
    %v8021 = vpop.f32.mrb[0].mxu0
    %v8022 = vadd.f32 %v7918, %v8021
    %v8023 = vpop.f32.mrb[0].mxu0
    %v8024 = vpop.f32.mrb[0].mxu0
    %v8025 = vadd.f32 %v7918, %v8024
    %v8026 = vpop.f32.mrb[0].mxu0
    %8027 = vmatprep.mubr.bf16.mxu0 0
    %8028 = vmatmul.mubr.bf16.gmra.mrb[0].mxu0 %v7947
    %v8029 = vpop.f32.mrb[0].mxu0
    %v8030 = vadd.f32 %v7918, %v8029
    %v8031 = vpop.f32.mrb[0].mxu0
    %v8032 = vpop.f32.mrb[0].mxu0
    %v8033 = vadd.f32 %v7918, %v8032
    %v8034 = vpop.f32.mrb[0].mxu0
    %8035 = vmatprep.mubr.bf16.mxu0 0
    %8036 = vmatmul.mubr.bf16.gmra.mrb[0].mxu0 %v7950
    %v8037 = vpop.f32.mrb[0].mxu0
    %v8038 = vadd.f32 %v7918, %v8037
    %v8039 = vpop.f32.mrb[0].mxu0
    %v8040 = vpop.f32.mrb[0].mxu0
    %v8041 = vadd.f32 %v7918, %v8040
    %v8042 = vpop.f32.mrb[0].mxu0
    %8043 = vmatprep.mubr.bf16.mxu0 0
    %8044 = vmatmul.mubr.bf16.gmra.mrb[0].mxu0 %v7953
    %v8045 = vpop.f32.mrb[0].mxu0
    %v8046 = vadd.f32 %v7918, %v8045
    %v8047 = vpop.f32.mrb[0].mxu0
    %v8048 = vpop.f32.mrb[0].mxu0
    %v8049 = vadd.f32 %v7918, %v8048
    %v8050 = vpop.f32.mrb[0].mxu0
    %8051 = vdwg.mxu0
    %v8052 = vmul.f32 %v7990, 0.5
    %v8053 = vmul.f32 %v7993, 0.5
    %v8054 = vmul.f32 %v7998, 0.5
    %v8055 = vmul.f32 %v8001, 0.5
    %v8056 = vmul.f32 %v8006, 0.5
    %v8057 = vmul.f32 %v8009, 0.5
    %v8058 = vmul.f32 %v8014, 0.5
    %v8059 = vmul.f32 %v8017, 0.5
    %v8060 = vmul.f32 %v8022, 0.5
    %v8061 = vmul.f32 %v8025, 0.5
    %v8062 = vmul.f32 %v8030, 0.5
    %v8063 = vmul.f32 %v8033, 0.5
    %v8064 = vmul.f32 %v8038, 0.5
    %v8065 = vmul.f32 %v8041, 0.5
    %v8066 = vmul.f32 %v8046, 0.5
    %v8067 = vmul.f32 %v8049, 0.5
    %v8068 = vmul.f32 %v7990, 0.044715
    %v8069 = vmul.f32 %v7993, 0.044715
    %v8070 = vmul.f32 %v7998, 0.044715
    %v8071 = vmul.f32 %v8001, 0.044715
    %v8072 = vmul.f32 %v8006, 0.044715
    %v8073 = vmul.f32 %v8009, 0.044715
    %v8074 = vmul.f32 %v8014, 0.044715
    %v8075 = vmul.f32 %v8017, 0.044715
    %v8076 = vmul.f32 %v8022, 0.044715
    %v8077 = vmul.f32 %v8025, 0.044715
    %v8078 = vmul.f32 %v8030, 0.044715
    %v8079 = vmul.f32 %v8033, 0.044715
    %v8080 = vmul.f32 %v8038, 0.044715
    %v8081 = vmul.f32 %v8041, 0.044715
    %v8082 = vmul.f32 %v8046, 0.044715
    %v8083 = vmul.f32 %v8049, 0.044715
    %v8084 = vmul.f32 %v8068, %v7990
    %v8085 = vmul.f32 %v8069, %v7993
    %v8086 = vmul.f32 %v8070, %v7998
    %v8087 = vmul.f32 %v8071, %v8001
    %v8088 = vmul.f32 %v8072, %v8006
    %v8089 = vmul.f32 %v8073, %v8009
    %v8090 = vmul.f32 %v8074, %v8014
    %v8091 = vmul.f32 %v8075, %v8017
    %v8092 = vmul.f32 %v8076, %v8022
    %v8093 = vmul.f32 %v8077, %v8025
    %v8094 = vmul.f32 %v8078, %v8030
    %v8095 = vmul.f32 %v8079, %v8033
    %v8096 = vmul.f32 %v8080, %v8038
    %v8097 = vmul.f32 %v8081, %v8041
    %v8098 = vmul.f32 %v8082, %v8046
    %v8099 = vmul.f32 %v8083, %v8049
    %v8100 = vmul.f32 %v8084, %v7990
    %v8101 = vmul.f32 %v8085, %v7993
    %v8102 = vmul.f32 %v8086, %v7998
    %v8103 = vmul.f32 %v8087, %v8001
    %v8104 = vmul.f32 %v8088, %v8006
    %v8105 = vmul.f32 %v8089, %v8009
    %v8106 = vmul.f32 %v8090, %v8014
    %v8107 = vmul.f32 %v8091, %v8017
    %v8108 = vmul.f32 %v8092, %v8022
    %v8109 = vmul.f32 %v8093, %v8025
    %v8110 = vmul.f32 %v8094, %v8030
    %v8111 = vmul.f32 %v8095, %v8033
    %v8112 = vmul.f32 %v8096, %v8038
    %v8113 = vmul.f32 %v8097, %v8041
    %v8114 = vmul.f32 %v8098, %v8046
    %v8115 = vmul.f32 %v8099, %v8049
    %v8116 = vadd.f32 %v7990, %v8100
    %v8117 = vadd.f32 %v7993, %v8101
    %v8118 = vadd.f32 %v7998, %v8102
    %v8119 = vadd.f32 %v8001, %v8103
    %v8120 = vadd.f32 %v8006, %v8104
    %v8121 = vadd.f32 %v8009, %v8105
    %v8122 = vadd.f32 %v8014, %v8106
    %v8123 = vadd.f32 %v8017, %v8107
    %v8124 = vadd.f32 %v8022, %v8108
    %v8125 = vadd.f32 %v8025, %v8109
    %v8126 = vadd.f32 %v8030, %v8110
    %v8127 = vadd.f32 %v8033, %v8111
    %v8128 = vadd.f32 %v8038, %v8112
    %v8129 = vadd.f32 %v8041, %v8113
    %v8130 = vadd.f32 %v8046, %v8114
    %v8131 = vadd.f32 %v8049, %v8115
    %v8132 = vmul.f32 %v8116, 0.7978846
    %v8133 = vmul.f32 %v8117, 0.7978846
    %v8134 = vmul.f32 %v8118, 0.7978846
    %v8135 = vmul.f32 %v8119, 0.7978846
    %v8136 = vmul.f32 %v8120, 0.7978846
    %v8137 = vmul.f32 %v8121, 0.7978846
    %v8138 = vmul.f32 %v8122, 0.7978846
    %v8139 = vmul.f32 %v8123, 0.7978846
    %v8140 = vmul.f32 %v8124, 0.7978846
    %v8141 = vmul.f32 %v8125, 0.7978846
    %v8142 = vmul.f32 %v8126, 0.7978846
    %v8143 = vmul.f32 %v8127, 0.7978846
    %v8144 = vmul.f32 %v8128, 0.7978846
    %v8145 = vmul.f32 %v8129, 0.7978846
    %v8146 = vmul.f32 %v8130, 0.7978846
    %v8147 = vmul.f32 %v8131, 0.7978846
    %v8148 = vtanh.pop %v8132
    %v8149 = vtanh.pop %v8133
    %v8150 = vtanh.pop %v8134
    %v8151 = vtanh.pop %v8135
    %v8152 = vtanh.pop %v8136
    %v8153 = vtanh.pop %v8137
    %v8154 = vtanh.pop %v8138
    %v8155 = vtanh.pop %v8139
    %v8156 = vtanh.pop %v8140
    %v8157 = vtanh.pop %v8141
    %v8158 = vtanh.pop %v8142
    %v8159 = vtanh.pop %v8143
    %v8160 = vtanh.pop %v8144
    %v8161 = vtanh.pop %v8145
    %v8162 = vtanh.pop %v8146
    %v8163 = vtanh.pop %v8147
    %v8164 = vadd.f32 %v8148, 1.0
    %v8165 = vadd.f32 %v8149, 1.0
    %v8166 = vadd.f32 %v8150, 1.0
    %v8167 = vadd.f32 %v8151, 1.0
    %v8168 = vadd.f32 %v8152, 1.0
    %v8169 = vadd.f32 %v8153, 1.0
    %v8170 = vadd.f32 %v8154, 1.0
    %v8171 = vadd.f32 %v8155, 1.0
    %v8172 = vadd.f32 %v8156, 1.0
    %v8173 = vadd.f32 %v8157, 1.0
    %v8174 = vadd.f32 %v8158, 1.0
    %v8175 = vadd.f32 %v8159, 1.0
    %v8176 = vadd.f32 %v8160, 1.0
    %v8177 = vadd.f32 %v8161, 1.0
    %v8178 = vadd.f32 %v8162, 1.0
    %v8179 = vadd.f32 %v8163, 1.0
    %v8180 = vmul.f32 %v8052, %v8164
    %v8181 = vmul.f32 %v8053, %v8165
    %v8182 = vmul.f32 %v8054, %v8166
    %v8183 = vmul.f32 %v8055, %v8167
    %v8184 = vmul.f32 %v8056, %v8168
    %v8185 = vmul.f32 %v8057, %v8169
    %v8186 = vmul.f32 %v8058, %v8170
    %v8187 = vmul.f32 %v8059, %v8171
    %v8188 = vmul.f32 %v8060, %v8172
    %v8189 = vmul.f32 %v8061, %v8173
    %v8190 = vmul.f32 %v8062, %v8174
    %v8191 = vmul.f32 %v8063, %v8175
    %v8192 = vmul.f32 %v8064, %v8176
    %v8193 = vmul.f32 %v8065, %v8177
    %v8194 = vmul.f32 %v8066, %v8178
    %v8195 = vmul.f32 %v8067, %v8179
    %v8196 = vpack.c.bf16 %v8181, %v8180
    %v8197 = vpack.c.bf16 %v8183, %v8182
    %v8198 = vpack.c.bf16 %v8185, %v8184
    %v8199 = vpack.c.bf16 %v8187, %v8186
    %v8200 = vpack.c.bf16 %v8189, %v8188
    %v8201 = vpack.c.bf16 %v8191, %v8190
    %v8202 = vpack.c.bf16 %v8193, %v8192
    %v8203 = vpack.c.bf16 %v8195, %v8194
    %v8204 = vld [vmem:[%s0 + $0x160] sm:$0xf]
    %v8205 = vld [vmem:[%s0 + $0x164] sm:$0xf]
    %v8206 = vld [vmem:[%s0 + $0x168] sm:$0xf]
    %v8207 = vld [vmem:[%s0 + $0x16c] sm:$0xf]
    %v8208 = vld [vmem:[%s0 + $0x170] sm:$0xf]
    %v8209 = vld [vmem:[%s0 + $0x174] sm:$0xf]
    %v8210 = vld [vmem:[%s0 + $0x178] sm:$0xf]
    %v8211 = vld [vmem:[%s0 + $0x17c] sm:$0xf]
    %v8212 = vld [vmem:[%s1 + $0x29] sm:$0x1]
    %v8213 = vlaneseq
    %v8214 = vshrl.u32 %v8213, 7
    %v8215 = vsub.s32 0, %v8214
    %v8216 = vrot.slane %v8212, %v8215
    %v8225 = vunpack.c.l.b16 %v8204
    %v8226 = vunpack.c.l.b16 %v8205
    %v8227 = vunpack.c.l.b16 %v8206
    %v8228 = vunpack.c.l.b16 %v8207
    %v8229 = vunpack.c.l.b16 %v8208
    %v8230 = vunpack.c.l.b16 %v8209
    %v8231 = vunpack.c.l.b16 %v8210
    %v8232 = vunpack.c.l.b16 %v8211
    %v8233 = vpack.c.b16 %v8226, %v8225
    %v8234 = vpack.c.b16 %v8228, %v8227
    %v8235 = vpack.c.b16 %v8230, %v8229
    %v8236 = vpack.c.b16 %v8232, %v8231
    %v8242 = vsel %vm4261, %v8196, 0
    %v8245 = vsel %vm4261, %v8197, 0
    %v8248 = vsel %vm4261, %v8198, 0
    %v8251 = vsel %vm4261, %v8199, 0
    %v8254 = vsel %vm4261, %v8200, 0
    %v8257 = vsel %vm4261, %v8201, 0
    %v8260 = vsel %vm4261, %v8202, 0
    %v8263 = vsel %vm4261, %v8203, 0
    %8265 = vmatprep.subr.bf16.mxu0 0
    %8266 = vmatpush1.bf16.msra.mxu0 %v8233
    %8267 = vmatprep.subr.bf16.mxu0 0
    %8268 = vmatpush1.bf16.msra.mxu0 %v8234
    %8269 = vmatprep.subr.bf16.mxu0 0
    %8270 = vmatpush1.bf16.msra.mxu0 %v8235
    %8271 = vmatprep.subr.bf16.mxu0 0
    %8272 = vmatpush1.bf16.msra.mxu0 %v8236
    %8273 = vmatprep.subr.bf16.mxu0 0
    %8274 = vmatpush1.bf16.msra.mxu0 0
    %8275 = vmatprep.subr.bf16.mxu0 0
    %8276 = vmatpush1.bf16.msra.mxu0 0
    %8277 = vmatprep.subr.bf16.mxu0 0
    %8278 = vmatpush1.bf16.msra.mxu0 0
    %8279 = vmatprep.subr.bf16.mxu0 0
    %8280 = vmatpush1.bf16.msra.mxu0 0
    %8281 = vmatprep.subr.bf16.mxu0 0
    %8282 = vmatpush1.bf16.msra.mxu0 0
    %8283 = vmatprep.subr.bf16.mxu0 0
    %8284 = vmatpush1.bf16.msra.mxu0 0
    %8285 = vmatprep.subr.bf16.mxu0 0
    %8286 = vmatpush1.bf16.msra.mxu0 0
    %8287 = vmatprep.subr.bf16.mxu0 0
    %8288 = vmatpush1.bf16.msra.mxu0 0
    %8289 = vmatprep.subr.bf16.mxu0 0
    %8290 = vmatpush1.bf16.msra.mxu0 0
    %8291 = vmatprep.subr.bf16.mxu0 0
    %8292 = vmatpush1.bf16.msra.mxu0 0
    %8293 = vmatprep.subr.bf16.mxu0 0
    %8294 = vmatpush1.bf16.msra.mxu0 0
    %8295 = vmatprep.subr.bf16.mxu0 0
    %8296 = vmatpush1.bf16.msra.mxu0 0
    %8297 = vmatprep.mubr.bf16.mxu0 0
    %8298 = vmatmul.mubr.bf16.gmra.mrb[0].mxu0 %v8242
    %v8299 = vpop.f32.mrb[0].mxu0
    %v8300 = vadd.f32 %v8216, %v8299
    %v8301 = vpop.f32.mrb[0].mxu0
    %v8302 = vpop.f32.mrb[0].mxu0
    %v8303 = vadd.f32 %v8216, %v8302
    %v8304 = vpop.f32.mrb[0].mxu0
    %8305 = vmatprep.mubr.bf16.mxu0 0
    %8306 = vmatmul.mubr.bf16.gmra.mrb[0].mxu0 %v8245
    %v8307 = vpop.f32.mrb[0].mxu0
    %v8308 = vadd.f32 %v8216, %v8307
    %v8309 = vpop.f32.mrb[0].mxu0
    %v8310 = vpop.f32.mrb[0].mxu0
    %v8311 = vadd.f32 %v8216, %v8310
    %v8312 = vpop.f32.mrb[0].mxu0
    %8313 = vmatprep.mubr.bf16.mxu0 0
    %8314 = vmatmul.mubr.bf16.gmra.mrb[0].mxu0 %v8248
    %v8315 = vpop.f32.mrb[0].mxu0
    %v8316 = vadd.f32 %v8216, %v8315
    %v8317 = vpop.f32.mrb[0].mxu0
    %v8318 = vpop.f32.mrb[0].mxu0
    %v8319 = vadd.f32 %v8216, %v8318
    %v8320 = vpop.f32.mrb[0].mxu0
    %8321 = vmatprep.mubr.bf16.mxu0 0
    %8322 = vmatmul.mubr.bf16.gmra.mrb[0].mxu0 %v8251
    %v8323 = vpop.f32.mrb[0].mxu0
    %v8324 = vadd.f32 %v8216, %v8323
    %v8325 = vpop.f32.mrb[0].mxu0
    %v8326 = vpop.f32.mrb[0].mxu0
    %v8327 = vadd.f32 %v8216, %v8326
    %v8328 = vpop.f32.mrb[0].mxu0
    %8329 = vmatprep.mubr.bf16.mxu0 0
    %8330 = vmatmul.mubr.bf16.gmra.mrb[0].mxu0 %v8254
    %v8331 = vpop.f32.mrb[0].mxu0
    %v8332 = vadd.f32 %v8216, %v8331
    %v8333 = vpop.f32.mrb[0].mxu0
    %v8334 = vpop.f32.mrb[0].mxu0
    %v8335 = vadd.f32 %v8216, %v8334
    %v8336 = vpop.f32.mrb[0].mxu0
    %8337 = vmatprep.mubr.bf16.mxu0 0
    %8338 = vmatmul.mubr.bf16.gmra.mrb[0].mxu0 %v8257
    %v8339 = vpop.f32.mrb[0].mxu0
    %v8340 = vadd.f32 %v8216, %v8339
    %v8341 = vpop.f32.mrb[0].mxu0
    %v8342 = vpop.f32.mrb[0].mxu0
    %v8343 = vadd.f32 %v8216, %v8342
    %v8344 = vpop.f32.mrb[0].mxu0
    %8345 = vmatprep.mubr.bf16.mxu0 0
    %8346 = vmatmul.mubr.bf16.gmra.mrb[0].mxu0 %v8260
    %v8347 = vpop.f32.mrb[0].mxu0
    %v8348 = vadd.f32 %v8216, %v8347
    %v8349 = vpop.f32.mrb[0].mxu0
    %v8350 = vpop.f32.mrb[0].mxu0
    %v8351 = vadd.f32 %v8216, %v8350
    %v8352 = vpop.f32.mrb[0].mxu0
    %8353 = vmatprep.mubr.bf16.mxu0 0
    %8354 = vmatmul.mubr.bf16.gmra.mrb[0].mxu0 %v8263
    %v8355 = vpop.f32.mrb[0].mxu0
    %v8356 = vadd.f32 %v8216, %v8355
    %v8357 = vpop.f32.mrb[0].mxu0
    %v8358 = vpop.f32.mrb[0].mxu0
    %v8359 = vadd.f32 %v8216, %v8358
    %v8360 = vpop.f32.mrb[0].mxu0
    %8361 = vdwg.mxu0
    %v8362 = vadd.f32 %v7886, %v8300
    %v8363 = vadd.f32 %v7887, %v8303
    %v8364 = vadd.f32 %v7888, %v8308
    %v8365 = vadd.f32 %v7889, %v8311
    %v8366 = vadd.f32 %v7890, %v8316
    %v8367 = vadd.f32 %v7891, %v8319
    %v8368 = vadd.f32 %v7892, %v8324
    %v8369 = vadd.f32 %v7893, %v8327
    %v8370 = vadd.f32 %v7894, %v8332
    %v8371 = vadd.f32 %v7895, %v8335
    %v8372 = vadd.f32 %v7896, %v8340
    %v8373 = vadd.f32 %v7897, %v8343
    %v8374 = vadd.f32 %v7898, %v8348
    %v8375 = vadd.f32 %v7899, %v8351
    %v8376 = vadd.f32 %v7900, %v8356
    %v8377 = vadd.f32 %v7901, %v8359
    %v8378 = vsel %vm325, %v8362, 0.0
    %8379 = vadd.xlane.f32.xlu0 %v8378
    %v8380 = vpop.xlane.xlu0 %8379
    %v8381 = vsel %vm325, %v8363, 0.0
    %8382 = vadd.xlane.f32.xlu0 %v8381
    %v8383 = vpop.xlane.xlu0 %8382
    %v8384 = vsel %vm325, %v8364, 0.0
    %8385 = vadd.xlane.f32.xlu0 %v8384
    %v8386 = vpop.xlane.xlu0 %8385
    %v8387 = vsel %vm325, %v8365, 0.0
    %8388 = vadd.xlane.f32.xlu0 %v8387
    %v8389 = vpop.xlane.xlu0 %8388
    %v8390 = vsel %vm325, %v8366, 0.0
    %8391 = vadd.xlane.f32.xlu0 %v8390
    %v8392 = vpop.xlane.xlu0 %8391
    %v8393 = vsel %vm325, %v8367, 0.0
    %8394 = vadd.xlane.f32.xlu0 %v8393
    %v8395 = vpop.xlane.xlu0 %8394
    %v8396 = vsel %vm325, %v8368, 0.0
    %8397 = vadd.xlane.f32.xlu0 %v8396
    %v8398 = vpop.xlane.xlu0 %8397
    %v8399 = vsel %vm325, %v8369, 0.0
    %8400 = vadd.xlane.f32.xlu0 %v8399
    %v8401 = vpop.xlane.xlu0 %8400
    %v8402 = vsel %vm325, %v8370, 0.0
    %8403 = vadd.xlane.f32.xlu0 %v8402
    %v8404 = vpop.xlane.xlu0 %8403
    %v8405 = vsel %vm325, %v8371, 0.0
    %8406 = vadd.xlane.f32.xlu0 %v8405
    %v8407 = vpop.xlane.xlu0 %8406
    %v8408 = vsel %vm325, %v8372, 0.0
    %8409 = vadd.xlane.f32.xlu0 %v8408
    %v8410 = vpop.xlane.xlu0 %8409
    %v8411 = vsel %vm325, %v8373, 0.0
    %8412 = vadd.xlane.f32.xlu0 %v8411
    %v8413 = vpop.xlane.xlu0 %8412
    %v8414 = vsel %vm325, %v8374, 0.0
    %8415 = vadd.xlane.f32.xlu0 %v8414
    %v8416 = vpop.xlane.xlu0 %8415
    %v8417 = vsel %vm325, %v8375, 0.0
    %8418 = vadd.xlane.f32.xlu0 %v8417
    %v8419 = vpop.xlane.xlu0 %8418
    %v8420 = vsel %vm325, %v8376, 0.0
    %8421 = vadd.xlane.f32.xlu0 %v8420
    %v8422 = vpop.xlane.xlu0 %8421
    %v8423 = vsel %vm325, %v8377, 0.0
    %8424 = vadd.xlane.f32.xlu0 %v8423
    %v8425 = vpop.xlane.xlu0 %8424
    %v8426 = vmul.f32 %v8380, %v374
    %v8427 = vmul.f32 %v8383, %v374
    %v8428 = vmul.f32 %v8386, %v374
    %v8429 = vmul.f32 %v8389, %v374
    %v8430 = vmul.f32 %v8392, %v374
    %v8431 = vmul.f32 %v8395, %v374
    %v8432 = vmul.f32 %v8398, %v374
    %v8433 = vmul.f32 %v8401, %v374
    %v8434 = vmul.f32 %v8404, %v374
    %v8435 = vmul.f32 %v8407, %v374
    %v8436 = vmul.f32 %v8410, %v374
    %v8437 = vmul.f32 %v8413, %v374
    %v8438 = vmul.f32 %v8416, %v374
    %v8439 = vmul.f32 %v8419, %v374
    %v8440 = vmul.f32 %v8422, %v374
    %v8441 = vmul.f32 %v8425, %v374
    %v8442 = vsub.f32 %v8362, %v8426
    %v8443 = vsub.f32 %v8363, %v8427
    %v8444 = vsub.f32 %v8364, %v8428
    %v8445 = vsub.f32 %v8365, %v8429
    %v8446 = vsub.f32 %v8366, %v8430
    %v8447 = vsub.f32 %v8367, %v8431
    %v8448 = vsub.f32 %v8368, %v8432
    %v8449 = vsub.f32 %v8369, %v8433
    %v8450 = vsub.f32 %v8370, %v8434
    %v8451 = vsub.f32 %v8371, %v8435
    %v8452 = vsub.f32 %v8372, %v8436
    %v8453 = vsub.f32 %v8373, %v8437
    %v8454 = vsub.f32 %v8374, %v8438
    %v8455 = vsub.f32 %v8375, %v8439
    %v8456 = vsub.f32 %v8376, %v8440
    %v8457 = vsub.f32 %v8377, %v8441
    %v8458 = vmul.f32 %v8442, %v8442
    %v8459 = vmul.f32 %v8443, %v8443
    %v8460 = vmul.f32 %v8444, %v8444
    %v8461 = vmul.f32 %v8445, %v8445
    %v8462 = vmul.f32 %v8446, %v8446
    %v8463 = vmul.f32 %v8447, %v8447
    %v8464 = vmul.f32 %v8448, %v8448
    %v8465 = vmul.f32 %v8449, %v8449
    %v8466 = vmul.f32 %v8450, %v8450
    %v8467 = vmul.f32 %v8451, %v8451
    %v8468 = vmul.f32 %v8452, %v8452
    %v8469 = vmul.f32 %v8453, %v8453
    %v8470 = vmul.f32 %v8454, %v8454
    %v8471 = vmul.f32 %v8455, %v8455
    %v8472 = vmul.f32 %v8456, %v8456
    %v8473 = vmul.f32 %v8457, %v8457
    %v8474 = vsel %vm325, %v8458, 0.0
    %8475 = vadd.xlane.f32.xlu0 %v8474
    %v8476 = vpop.xlane.xlu0 %8475
    %v8477 = vsel %vm325, %v8459, 0.0
    %8478 = vadd.xlane.f32.xlu0 %v8477
    %v8479 = vpop.xlane.xlu0 %8478
    %v8480 = vsel %vm325, %v8460, 0.0
    %8481 = vadd.xlane.f32.xlu0 %v8480
    %v8482 = vpop.xlane.xlu0 %8481
    %v8483 = vsel %vm325, %v8461, 0.0
    %8484 = vadd.xlane.f32.xlu0 %v8483
    %v8485 = vpop.xlane.xlu0 %8484
    %v8486 = vsel %vm325, %v8462, 0.0
    %8487 = vadd.xlane.f32.xlu0 %v8486
    %v8488 = vpop.xlane.xlu0 %8487
    %v8489 = vsel %vm325, %v8463, 0.0
    %8490 = vadd.xlane.f32.xlu0 %v8489
    %v8491 = vpop.xlane.xlu0 %8490
    %v8492 = vsel %vm325, %v8464, 0.0
    %8493 = vadd.xlane.f32.xlu0 %v8492
    %v8494 = vpop.xlane.xlu0 %8493
    %v8495 = vsel %vm325, %v8465, 0.0
    %8496 = vadd.xlane.f32.xlu0 %v8495
    %v8497 = vpop.xlane.xlu0 %8496
    %v8498 = vsel %vm325, %v8466, 0.0
    %8499 = vadd.xlane.f32.xlu0 %v8498
    %v8500 = vpop.xlane.xlu0 %8499
    %v8501 = vsel %vm325, %v8467, 0.0
    %8502 = vadd.xlane.f32.xlu0 %v8501
    %v8503 = vpop.xlane.xlu0 %8502
    %v8504 = vsel %vm325, %v8468, 0.0
    %8505 = vadd.xlane.f32.xlu0 %v8504
    %v8506 = vpop.xlane.xlu0 %8505
    %v8507 = vsel %vm325, %v8469, 0.0
    %8508 = vadd.xlane.f32.xlu0 %v8507
    %v8509 = vpop.xlane.xlu0 %8508
    %v8510 = vsel %vm325, %v8470, 0.0
    %8511 = vadd.xlane.f32.xlu0 %v8510
    %v8512 = vpop.xlane.xlu0 %8511
    %v8513 = vsel %vm325, %v8471, 0.0
    %8514 = vadd.xlane.f32.xlu0 %v8513
    %v8515 = vpop.xlane.xlu0 %8514
    %v8516 = vsel %vm325, %v8472, 0.0
    %8517 = vadd.xlane.f32.xlu0 %v8516
    %v8518 = vpop.xlane.xlu0 %8517
    %v8519 = vsel %vm325, %v8473, 0.0
    %8520 = vadd.xlane.f32.xlu0 %v8519
    %v8521 = vpop.xlane.xlu0 %8520
    %v8522 = vmul.f32 %v8476, %v374
    %v8523 = vmul.f32 %v8479, %v374
    %v8524 = vmul.f32 %v8482, %v374
    %v8525 = vmul.f32 %v8485, %v374
    %v8526 = vmul.f32 %v8488, %v374
    %v8527 = vmul.f32 %v8491, %v374
    %v8528 = vmul.f32 %v8494, %v374
    %v8529 = vmul.f32 %v8497, %v374
    %v8530 = vmul.f32 %v8500, %v374
    %v8531 = vmul.f32 %v8503, %v374
    %v8532 = vmul.f32 %v8506, %v374
    %v8533 = vmul.f32 %v8509, %v374
    %v8534 = vmul.f32 %v8512, %v374
    %v8535 = vmul.f32 %v8515, %v374
    %v8536 = vmul.f32 %v8518, %v374
    %v8537 = vmul.f32 %v8521, %v374
    %v8538 = vadd.f32 %v8522, 1e-12
    %v8539 = vadd.f32 %v8523, 1e-12
    %v8540 = vadd.f32 %v8524, 1e-12
    %v8541 = vadd.f32 %v8525, 1e-12
    %v8542 = vadd.f32 %v8526, 1e-12
    %v8543 = vadd.f32 %v8527, 1e-12
    %v8544 = vadd.f32 %v8528, 1e-12
    %v8545 = vadd.f32 %v8529, 1e-12
    %v8546 = vadd.f32 %v8530, 1e-12
    %v8547 = vadd.f32 %v8531, 1e-12
    %v8548 = vadd.f32 %v8532, 1e-12
    %v8549 = vadd.f32 %v8533, 1e-12
    %v8550 = vadd.f32 %v8534, 1e-12
    %v8551 = vadd.f32 %v8535, 1e-12
    %v8552 = vadd.f32 %v8536, 1e-12
    %v8553 = vadd.f32 %v8537, 1e-12
    %v8554 = vrsqrt.pop %v8538
    %v8555 = vrsqrt.pop %v8539
    %v8556 = vrsqrt.pop %v8540
    %v8557 = vrsqrt.pop %v8541
    %v8558 = vrsqrt.pop %v8542
    %v8559 = vrsqrt.pop %v8543
    %v8560 = vrsqrt.pop %v8544
    %v8561 = vrsqrt.pop %v8545
    %v8562 = vrsqrt.pop %v8546
    %v8563 = vrsqrt.pop %v8547
    %v8564 = vrsqrt.pop %v8548
    %v8565 = vrsqrt.pop %v8549
    %v8566 = vrsqrt.pop %v8550
    %v8567 = vrsqrt.pop %v8551
    %v8568 = vrsqrt.pop %v8552
    %v8569 = vrsqrt.pop %v8553
    %v8570 = vmul.f32 %v8442, %v8554
    %v8571 = vmul.f32 %v8443, %v8555
    %v8572 = vmul.f32 %v8444, %v8556
    %v8573 = vmul.f32 %v8445, %v8557
    %v8574 = vmul.f32 %v8446, %v8558
    %v8575 = vmul.f32 %v8447, %v8559
    %v8576 = vmul.f32 %v8448, %v8560
    %v8577 = vmul.f32 %v8449, %v8561
    %v8578 = vmul.f32 %v8450, %v8562
    %v8579 = vmul.f32 %v8451, %v8563
    %v8580 = vmul.f32 %v8452, %v8564
    %v8581 = vmul.f32 %v8453, %v8565
    %v8582 = vmul.f32 %v8454, %v8566
    %v8583 = vmul.f32 %v8455, %v8567
    %v8584 = vmul.f32 %v8456, %v8568
    %v8585 = vmul.f32 %v8457, %v8569
    %v8586 = vld [vmem:[%s1 + $0x2a] sm:$0x1]
    %v8587 = vlaneseq
    %v8588 = vshrl.u32 %v8587, 7
    %v8589 = vsub.s32 0, %v8588
    %v8590 = vrot.slane %v8586, %v8589
    %v8591 = vmul.f32 %v8570, %v8590
    %v8592 = vmul.f32 %v8571, %v8590
    %v8593 = vmul.f32 %v8572, %v8590
    %v8594 = vmul.f32 %v8573, %v8590
    %v8595 = vmul.f32 %v8574, %v8590
    %v8596 = vmul.f32 %v8575, %v8590
    %v8597 = vmul.f32 %v8576, %v8590
    %v8598 = vmul.f32 %v8577, %v8590
    %v8599 = vmul.f32 %v8578, %v8590
    %v8600 = vmul.f32 %v8579, %v8590
    %v8601 = vmul.f32 %v8580, %v8590
    %v8602 = vmul.f32 %v8581, %v8590
    %v8603 = vmul.f32 %v8582, %v8590
    %v8604 = vmul.f32 %v8583, %v8590
    %v8605 = vmul.f32 %v8584, %v8590
    %v8606 = vmul.f32 %v8585, %v8590
    %v8607 = vld [vmem:[%s1 + $0x2b] sm:$0x1]
    %v8608 = vlaneseq
    %v8609 = vshrl.u32 %v8608, 7
    %v8610 = vsub.s32 0, %v8609
    %v8611 = vrot.slane %v8607, %v8610
    %v8612 = vadd.f32 %v8591, %v8611
    %v8613 = vadd.f32 %v8592, %v8611
    %v8614 = vadd.f32 %v8593, %v8611
    %v8615 = vadd.f32 %v8594, %v8611
    %v8616 = vadd.f32 %v8595, %v8611
    %v8617 = vadd.f32 %v8596, %v8611
    %v8618 = vadd.f32 %v8597, %v8611
    %v8619 = vadd.f32 %v8598, %v8611
    %v8620 = vadd.f32 %v8599, %v8611
    %v8621 = vadd.f32 %v8600, %v8611
    %v8622 = vadd.f32 %v8601, %v8611
    %v8623 = vadd.f32 %v8602, %v8611
    %v8624 = vadd.f32 %v8603, %v8611
    %v8625 = vadd.f32 %v8604, %v8611
    %v8626 = vadd.f32 %v8605, %v8611
    %v8627 = vadd.f32 %v8606, %v8611
    %v8628 = vpack.c.bf16 %v8613, %v8612
    %v8629 = vpack.c.bf16 %v8615, %v8614
    %v8630 = vpack.c.bf16 %v8617, %v8616
    %v8631 = vpack.c.bf16 %v8619, %v8618
    %v8632 = vpack.c.bf16 %v8621, %v8620
    %v8633 = vpack.c.bf16 %v8623, %v8622
    %v8634 = vpack.c.bf16 %v8625, %v8624
    %v8635 = vpack.c.bf16 %v8627, %v8626
    %v8636 = vld [vmem:[%s0 + $0x180] sm:$0xf]
    %v8637 = vld [vmem:[%s0 + $0x184] sm:$0xf]
    %v8638 = vld [vmem:[%s0 + $0x188] sm:$0xf]
    %v8639 = vld [vmem:[%s0 + $0x18c] sm:$0xf]
    %v8640 = vld [vmem:[%s1 + $0x2c] sm:$0x1]
    %v8641 = vlaneseq
    %v8642 = vshrl.u32 %v8641, 7
    %v8643 = vsub.s32 0, %v8642
    %v8644 = vrot.slane %v8640, %v8643
    %v8649 = vunpack.c.l.b16 %v8636
    %v8650 = vunpack.c.l.b16 %v8637
    %v8651 = vunpack.c.l.b16 %v8638
    %v8652 = vunpack.c.l.b16 %v8639
    %v8653 = vpack.c.b16 %v8650, %v8649
    %v8654 = vpack.c.b16 %v8652, %v8651
    %v8658 = vsel %vm325, %v8628, 0
    %v8661 = vsel %vm325, %v8629, 0
    %v8664 = vsel %vm325, %v8630, 0
    %v8667 = vsel %vm325, %v8631, 0
    %v8670 = vsel %vm325, %v8632, 0
    %v8673 = vsel %vm325, %v8633, 0
    %v8676 = vsel %vm325, %v8634, 0
    %v8679 = vsel %vm325, %v8635, 0
    %8681 = vmatprep.subr.bf16.mxu0 0
    %8682 = vmatpush1.bf16.msra.mxu0 %v8653
    %8683 = vmatprep.subr.bf16.mxu0 0
    %8684 = vmatpush1.bf16.msra.mxu0 %v8654
    %8685 = vmatprep.subr.bf16.mxu0 0
    %8686 = vmatpush1.bf16.msra.mxu0 0
    %8687 = vmatprep.subr.bf16.mxu0 0
    %8688 = vmatpush1.bf16.msra.mxu0 0
    %8689 = vmatprep.subr.bf16.mxu0 0
    %8690 = vmatpush1.bf16.msra.mxu0 0
    %8691 = vmatprep.subr.bf16.mxu0 0
    %8692 = vmatpush1.bf16.msra.mxu0 0
    %8693 = vmatprep.subr.bf16.mxu0 0
    %8694 = vmatpush1.bf16.msra.mxu0 0
    %8695 = vmatprep.subr.bf16.mxu0 0
    %8696 = vmatpush1.bf16.msra.mxu0 0
    %8697 = vmatprep.subr.bf16.mxu0 0
    %8698 = vmatpush1.bf16.msra.mxu0 0
    %8699 = vmatprep.subr.bf16.mxu0 0
    %8700 = vmatpush1.bf16.msra.mxu0 0
    %8701 = vmatprep.subr.bf16.mxu0 0
    %8702 = vmatpush1.bf16.msra.mxu0 0
    %8703 = vmatprep.subr.bf16.mxu0 0
    %8704 = vmatpush1.bf16.msra.mxu0 0
    %8705 = vmatprep.subr.bf16.mxu0 0
    %8706 = vmatpush1.bf16.msra.mxu0 0
    %8707 = vmatprep.subr.bf16.mxu0 0
    %8708 = vmatpush1.bf16.msra.mxu0 0
    %8709 = vmatprep.subr.bf16.mxu0 0
    %8710 = vmatpush1.bf16.msra.mxu0 0
    %8711 = vmatprep.subr.bf16.mxu0 0
    %8712 = vmatpush1.bf16.msra.mxu0 0
    %8713 = vmatprep.mubr.bf16.mxu0 0
    %8714 = vmatmul.mubr.bf16.gmra.mrb[0].mxu0 %v8658
    %v8715 = vpop.f32.mrb[0].mxu0
    %v8716 = vadd.f32 %v8644, %v8715
    %v8717 = vpop.f32.mrb[0].mxu0
    %v8718 = vpop.f32.mrb[0].mxu0
    %v8719 = vadd.f32 %v8644, %v8718
    %v8720 = vpop.f32.mrb[0].mxu0
    %8721 = vmatprep.mubr.bf16.mxu0 0
    %8722 = vmatmul.mubr.bf16.gmra.mrb[0].mxu0 %v8661
    %v8723 = vpop.f32.mrb[0].mxu0
    %v8724 = vadd.f32 %v8644, %v8723
    %v8725 = vpop.f32.mrb[0].mxu0
    %v8726 = vpop.f32.mrb[0].mxu0
    %v8727 = vadd.f32 %v8644, %v8726
    %v8728 = vpop.f32.mrb[0].mxu0
    %8729 = vmatprep.mubr.bf16.mxu0 0
    %8730 = vmatmul.mubr.bf16.gmra.mrb[0].mxu0 %v8664
    %v8731 = vpop.f32.mrb[0].mxu0
    %v8732 = vadd.f32 %v8644, %v8731
    %v8733 = vpop.f32.mrb[0].mxu0
    %v8734 = vpop.f32.mrb[0].mxu0
    %v8735 = vadd.f32 %v8644, %v8734
    %v8736 = vpop.f32.mrb[0].mxu0
    %8737 = vmatprep.mubr.bf16.mxu0 0
    %8738 = vmatmul.mubr.bf16.gmra.mrb[0].mxu0 %v8667
    %v8739 = vpop.f32.mrb[0].mxu0
    %v8740 = vadd.f32 %v8644, %v8739
    %v8741 = vpop.f32.mrb[0].mxu0
    %v8742 = vpop.f32.mrb[0].mxu0
    %v8743 = vadd.f32 %v8644, %v8742
    %v8744 = vpop.f32.mrb[0].mxu0
    %8745 = vmatprep.mubr.bf16.mxu0 0
    %8746 = vmatmul.mubr.bf16.gmra.mrb[0].mxu0 %v8670
    %v8747 = vpop.f32.mrb[0].mxu0
    %v8748 = vadd.f32 %v8644, %v8747
    %v8749 = vpop.f32.mrb[0].mxu0
    %v8750 = vpop.f32.mrb[0].mxu0
    %v8751 = vadd.f32 %v8644, %v8750
    %v8752 = vpop.f32.mrb[0].mxu0
    %8753 = vmatprep.mubr.bf16.mxu0 0
    %8754 = vmatmul.mubr.bf16.gmra.mrb[0].mxu0 %v8673
    %v8755 = vpop.f32.mrb[0].mxu0
    %v8756 = vadd.f32 %v8644, %v8755
    %v8757 = vpop.f32.mrb[0].mxu0
    %v8758 = vpop.f32.mrb[0].mxu0
    %v8759 = vadd.f32 %v8644, %v8758
    %v8760 = vpop.f32.mrb[0].mxu0
    %8761 = vmatprep.mubr.bf16.mxu0 0
    %8762 = vmatmul.mubr.bf16.gmra.mrb[0].mxu0 %v8676
    %v8763 = vpop.f32.mrb[0].mxu0
    %v8764 = vadd.f32 %v8644, %v8763
    %v8765 = vpop.f32.mrb[0].mxu0
    %v8766 = vpop.f32.mrb[0].mxu0
    %v8767 = vadd.f32 %v8644, %v8766
    %v8768 = vpop.f32.mrb[0].mxu0
    %8769 = vmatprep.mubr.bf16.mxu0 0
    %8770 = vmatmul.mubr.bf16.gmra.mrb[0].mxu0 %v8679
    %v8771 = vpop.f32.mrb[0].mxu0
    %v8772 = vadd.f32 %v8644, %v8771
    %v8773 = vpop.f32.mrb[0].mxu0
    %v8774 = vpop.f32.mrb[0].mxu0
    %v8775 = vadd.f32 %v8644, %v8774
    %v8776 = vpop.f32.mrb[0].mxu0
    %8777 = vdwg.mxu0
    %v8778 = vmul.f32 %v8716, 0.5
    %v8779 = vmul.f32 %v8719, 0.5
    %v8780 = vmul.f32 %v8724, 0.5
    %v8781 = vmul.f32 %v8727, 0.5
    %v8782 = vmul.f32 %v8732, 0.5
    %v8783 = vmul.f32 %v8735, 0.5
    %v8784 = vmul.f32 %v8740, 0.5
    %v8785 = vmul.f32 %v8743, 0.5
    %v8786 = vmul.f32 %v8748, 0.5
    %v8787 = vmul.f32 %v8751, 0.5
    %v8788 = vmul.f32 %v8756, 0.5
    %v8789 = vmul.f32 %v8759, 0.5
    %v8790 = vmul.f32 %v8764, 0.5
    %v8791 = vmul.f32 %v8767, 0.5
    %v8792 = vmul.f32 %v8772, 0.5
    %v8793 = vmul.f32 %v8775, 0.5
    %v8794 = vmul.f32 %v8716, 0.044715
    %v8795 = vmul.f32 %v8719, 0.044715
    %v8796 = vmul.f32 %v8724, 0.044715
    %v8797 = vmul.f32 %v8727, 0.044715
    %v8798 = vmul.f32 %v8732, 0.044715
    %v8799 = vmul.f32 %v8735, 0.044715
    %v8800 = vmul.f32 %v8740, 0.044715
    %v8801 = vmul.f32 %v8743, 0.044715
    %v8802 = vmul.f32 %v8748, 0.044715
    %v8803 = vmul.f32 %v8751, 0.044715
    %v8804 = vmul.f32 %v8756, 0.044715
    %v8805 = vmul.f32 %v8759, 0.044715
    %v8806 = vmul.f32 %v8764, 0.044715
    %v8807 = vmul.f32 %v8767, 0.044715
    %v8808 = vmul.f32 %v8772, 0.044715
    %v8809 = vmul.f32 %v8775, 0.044715
    %v8810 = vmul.f32 %v8794, %v8716
    %v8811 = vmul.f32 %v8795, %v8719
    %v8812 = vmul.f32 %v8796, %v8724
    %v8813 = vmul.f32 %v8797, %v8727
    %v8814 = vmul.f32 %v8798, %v8732
    %v8815 = vmul.f32 %v8799, %v8735
    %v8816 = vmul.f32 %v8800, %v8740
    %v8817 = vmul.f32 %v8801, %v8743
    %v8818 = vmul.f32 %v8802, %v8748
    %v8819 = vmul.f32 %v8803, %v8751
    %v8820 = vmul.f32 %v8804, %v8756
    %v8821 = vmul.f32 %v8805, %v8759
    %v8822 = vmul.f32 %v8806, %v8764
    %v8823 = vmul.f32 %v8807, %v8767
    %v8824 = vmul.f32 %v8808, %v8772
    %v8825 = vmul.f32 %v8809, %v8775
    %v8826 = vmul.f32 %v8810, %v8716
    %v8827 = vmul.f32 %v8811, %v8719
    %v8828 = vmul.f32 %v8812, %v8724
    %v8829 = vmul.f32 %v8813, %v8727
    %v8830 = vmul.f32 %v8814, %v8732
    %v8831 = vmul.f32 %v8815, %v8735
    %v8832 = vmul.f32 %v8816, %v8740
    %v8833 = vmul.f32 %v8817, %v8743
    %v8834 = vmul.f32 %v8818, %v8748
    %v8835 = vmul.f32 %v8819, %v8751
    %v8836 = vmul.f32 %v8820, %v8756
    %v8837 = vmul.f32 %v8821, %v8759
    %v8838 = vmul.f32 %v8822, %v8764
    %v8839 = vmul.f32 %v8823, %v8767
    %v8840 = vmul.f32 %v8824, %v8772
    %v8841 = vmul.f32 %v8825, %v8775
    %v8842 = vadd.f32 %v8716, %v8826
    %v8843 = vadd.f32 %v8719, %v8827
    %v8844 = vadd.f32 %v8724, %v8828
    %v8845 = vadd.f32 %v8727, %v8829
    %v8846 = vadd.f32 %v8732, %v8830
    %v8847 = vadd.f32 %v8735, %v8831
    %v8848 = vadd.f32 %v8740, %v8832
    %v8849 = vadd.f32 %v8743, %v8833
    %v8850 = vadd.f32 %v8748, %v8834
    %v8851 = vadd.f32 %v8751, %v8835
    %v8852 = vadd.f32 %v8756, %v8836
    %v8853 = vadd.f32 %v8759, %v8837
    %v8854 = vadd.f32 %v8764, %v8838
    %v8855 = vadd.f32 %v8767, %v8839
    %v8856 = vadd.f32 %v8772, %v8840
    %v8857 = vadd.f32 %v8775, %v8841
    %v8858 = vmul.f32 %v8842, 0.7978846
    %v8859 = vmul.f32 %v8843, 0.7978846
    %v8860 = vmul.f32 %v8844, 0.7978846
    %v8861 = vmul.f32 %v8845, 0.7978846
    %v8862 = vmul.f32 %v8846, 0.7978846
    %v8863 = vmul.f32 %v8847, 0.7978846
    %v8864 = vmul.f32 %v8848, 0.7978846
    %v8865 = vmul.f32 %v8849, 0.7978846
    %v8866 = vmul.f32 %v8850, 0.7978846
    %v8867 = vmul.f32 %v8851, 0.7978846
    %v8868 = vmul.f32 %v8852, 0.7978846
    %v8869 = vmul.f32 %v8853, 0.7978846
    %v8870 = vmul.f32 %v8854, 0.7978846
    %v8871 = vmul.f32 %v8855, 0.7978846
    %v8872 = vmul.f32 %v8856, 0.7978846
    %v8873 = vmul.f32 %v8857, 0.7978846
    %v8874 = vtanh.pop %v8858
    %v8875 = vtanh.pop %v8859
    %v8876 = vtanh.pop %v8860
    %v8877 = vtanh.pop %v8861
    %v8878 = vtanh.pop %v8862
    %v8879 = vtanh.pop %v8863
    %v8880 = vtanh.pop %v8864
    %v8881 = vtanh.pop %v8865
    %v8882 = vtanh.pop %v8866
    %v8883 = vtanh.pop %v8867
    %v8884 = vtanh.pop %v8868
    %v8885 = vtanh.pop %v8869
    %v8886 = vtanh.pop %v8870
    %v8887 = vtanh.pop %v8871
    %v8888 = vtanh.pop %v8872
    %v8889 = vtanh.pop %v8873
    %v8890 = vadd.f32 %v8874, 1.0
    %v8891 = vadd.f32 %v8875, 1.0
    %v8892 = vadd.f32 %v8876, 1.0
    %v8893 = vadd.f32 %v8877, 1.0
    %v8894 = vadd.f32 %v8878, 1.0
    %v8895 = vadd.f32 %v8879, 1.0
    %v8896 = vadd.f32 %v8880, 1.0
    %v8897 = vadd.f32 %v8881, 1.0
    %v8898 = vadd.f32 %v8882, 1.0
    %v8899 = vadd.f32 %v8883, 1.0
    %v8900 = vadd.f32 %v8884, 1.0
    %v8901 = vadd.f32 %v8885, 1.0
    %v8902 = vadd.f32 %v8886, 1.0
    %v8903 = vadd.f32 %v8887, 1.0
    %v8904 = vadd.f32 %v8888, 1.0
    %v8905 = vadd.f32 %v8889, 1.0
    %v8906 = vmul.f32 %v8778, %v8890
    %v8907 = vmul.f32 %v8779, %v8891
    %v8908 = vmul.f32 %v8780, %v8892
    %v8909 = vmul.f32 %v8781, %v8893
    %v8910 = vmul.f32 %v8782, %v8894
    %v8911 = vmul.f32 %v8783, %v8895
    %v8912 = vmul.f32 %v8784, %v8896
    %v8913 = vmul.f32 %v8785, %v8897
    %v8914 = vmul.f32 %v8786, %v8898
    %v8915 = vmul.f32 %v8787, %v8899
    %v8916 = vmul.f32 %v8788, %v8900
    %v8917 = vmul.f32 %v8789, %v8901
    %v8918 = vmul.f32 %v8790, %v8902
    %v8919 = vmul.f32 %v8791, %v8903
    %v8920 = vmul.f32 %v8792, %v8904
    %v8921 = vmul.f32 %v8793, %v8905
    %v8922 = vsel %vm325, %v8906, 0.0
    %8923 = vadd.xlane.f32.xlu0 %v8922
    %v8924 = vpop.xlane.xlu0 %8923
    %v8925 = vsel %vm325, %v8907, 0.0
    %8926 = vadd.xlane.f32.xlu0 %v8925
    %v8927 = vpop.xlane.xlu0 %8926
    %v8928 = vsel %vm325, %v8908, 0.0
    %8929 = vadd.xlane.f32.xlu0 %v8928
    %v8930 = vpop.xlane.xlu0 %8929
    %v8931 = vsel %vm325, %v8909, 0.0
    %8932 = vadd.xlane.f32.xlu0 %v8931
    %v8933 = vpop.xlane.xlu0 %8932
    %v8934 = vsel %vm325, %v8910, 0.0
    %8935 = vadd.xlane.f32.xlu0 %v8934
    %v8936 = vpop.xlane.xlu0 %8935
    %v8937 = vsel %vm325, %v8911, 0.0
    %8938 = vadd.xlane.f32.xlu0 %v8937
    %v8939 = vpop.xlane.xlu0 %8938
    %v8940 = vsel %vm325, %v8912, 0.0
    %8941 = vadd.xlane.f32.xlu0 %v8940
    %v8942 = vpop.xlane.xlu0 %8941
    %v8943 = vsel %vm325, %v8913, 0.0
    %8944 = vadd.xlane.f32.xlu0 %v8943
    %v8945 = vpop.xlane.xlu0 %8944
    %v8946 = vsel %vm325, %v8914, 0.0
    %8947 = vadd.xlane.f32.xlu0 %v8946
    %v8948 = vpop.xlane.xlu0 %8947
    %v8949 = vsel %vm325, %v8915, 0.0
    %8950 = vadd.xlane.f32.xlu0 %v8949
    %v8951 = vpop.xlane.xlu0 %8950
    %v8952 = vsel %vm325, %v8916, 0.0
    %8953 = vadd.xlane.f32.xlu0 %v8952
    %v8954 = vpop.xlane.xlu0 %8953
    %v8955 = vsel %vm325, %v8917, 0.0
    %8956 = vadd.xlane.f32.xlu0 %v8955
    %v8957 = vpop.xlane.xlu0 %8956
    %v8958 = vsel %vm325, %v8918, 0.0
    %8959 = vadd.xlane.f32.xlu0 %v8958
    %v8960 = vpop.xlane.xlu0 %8959
    %v8961 = vsel %vm325, %v8919, 0.0
    %8962 = vadd.xlane.f32.xlu0 %v8961
    %v8963 = vpop.xlane.xlu0 %8962
    %v8964 = vsel %vm325, %v8920, 0.0
    %8965 = vadd.xlane.f32.xlu0 %v8964
    %v8966 = vpop.xlane.xlu0 %8965
    %v8967 = vsel %vm325, %v8921, 0.0
    %8968 = vadd.xlane.f32.xlu0 %v8967
    %v8969 = vpop.xlane.xlu0 %8968
    %v8970 = vmul.f32 %v8924, %v374
    %v8971 = vmul.f32 %v8927, %v374
    %v8972 = vmul.f32 %v8930, %v374
    %v8973 = vmul.f32 %v8933, %v374
    %v8974 = vmul.f32 %v8936, %v374
    %v8975 = vmul.f32 %v8939, %v374
    %v8976 = vmul.f32 %v8942, %v374
    %v8977 = vmul.f32 %v8945, %v374
    %v8978 = vmul.f32 %v8948, %v374
    %v8979 = vmul.f32 %v8951, %v374
    %v8980 = vmul.f32 %v8954, %v374
    %v8981 = vmul.f32 %v8957, %v374
    %v8982 = vmul.f32 %v8960, %v374
    %v8983 = vmul.f32 %v8963, %v374
    %v8984 = vmul.f32 %v8966, %v374
    %v8985 = vmul.f32 %v8969, %v374
    %v8986 = vsub.f32 %v8906, %v8970
    %v8987 = vsub.f32 %v8907, %v8971
    %v8988 = vsub.f32 %v8908, %v8972
    %v8989 = vsub.f32 %v8909, %v8973
    %v8990 = vsub.f32 %v8910, %v8974
    %v8991 = vsub.f32 %v8911, %v8975
    %v8992 = vsub.f32 %v8912, %v8976
    %v8993 = vsub.f32 %v8913, %v8977
    %v8994 = vsub.f32 %v8914, %v8978
    %v8995 = vsub.f32 %v8915, %v8979
    %v8996 = vsub.f32 %v8916, %v8980
    %v8997 = vsub.f32 %v8917, %v8981
    %v8998 = vsub.f32 %v8918, %v8982
    %v8999 = vsub.f32 %v8919, %v8983
    %v9000 = vsub.f32 %v8920, %v8984
    %v9001 = vsub.f32 %v8921, %v8985
    %v9002 = vmul.f32 %v8986, %v8986
    %v9003 = vmul.f32 %v8987, %v8987
    %v9004 = vmul.f32 %v8988, %v8988
    %v9005 = vmul.f32 %v8989, %v8989
    %v9006 = vmul.f32 %v8990, %v8990
    %v9007 = vmul.f32 %v8991, %v8991
    %v9008 = vmul.f32 %v8992, %v8992
    %v9009 = vmul.f32 %v8993, %v8993
    %v9010 = vmul.f32 %v8994, %v8994
    %v9011 = vmul.f32 %v8995, %v8995
    %v9012 = vmul.f32 %v8996, %v8996
    %v9013 = vmul.f32 %v8997, %v8997
    %v9014 = vmul.f32 %v8998, %v8998
    %v9015 = vmul.f32 %v8999, %v8999
    %v9016 = vmul.f32 %v9000, %v9000
    %v9017 = vmul.f32 %v9001, %v9001
    %v9018 = vsel %vm325, %v9002, 0.0
    %9019 = vadd.xlane.f32.xlu0 %v9018
    %v9020 = vpop.xlane.xlu0 %9019
    %v9021 = vsel %vm325, %v9003, 0.0
    %9022 = vadd.xlane.f32.xlu0 %v9021
    %v9023 = vpop.xlane.xlu0 %9022
    %v9024 = vsel %vm325, %v9004, 0.0
    %9025 = vadd.xlane.f32.xlu0 %v9024
    %v9026 = vpop.xlane.xlu0 %9025
    %v9027 = vsel %vm325, %v9005, 0.0
    %9028 = vadd.xlane.f32.xlu0 %v9027
    %v9029 = vpop.xlane.xlu0 %9028
    %v9030 = vsel %vm325, %v9006, 0.0
    %9031 = vadd.xlane.f32.xlu0 %v9030
    %v9032 = vpop.xlane.xlu0 %9031
    %v9033 = vsel %vm325, %v9007, 0.0
    %9034 = vadd.xlane.f32.xlu0 %v9033
    %v9035 = vpop.xlane.xlu0 %9034
    %v9036 = vsel %vm325, %v9008, 0.0
    %9037 = vadd.xlane.f32.xlu0 %v9036
    %v9038 = vpop.xlane.xlu0 %9037
    %v9039 = vsel %vm325, %v9009, 0.0
    %9040 = vadd.xlane.f32.xlu0 %v9039
    %v9041 = vpop.xlane.xlu0 %9040
    %v9042 = vsel %vm325, %v9010, 0.0
    %9043 = vadd.xlane.f32.xlu0 %v9042
    %v9044 = vpop.xlane.xlu0 %9043
    %v9045 = vsel %vm325, %v9011, 0.0
    %9046 = vadd.xlane.f32.xlu0 %v9045
    %v9047 = vpop.xlane.xlu0 %9046
    %v9048 = vsel %vm325, %v9012, 0.0
    %9049 = vadd.xlane.f32.xlu0 %v9048
    %v9050 = vpop.xlane.xlu0 %9049
    %v9051 = vsel %vm325, %v9013, 0.0
    %9052 = vadd.xlane.f32.xlu0 %v9051
    %v9053 = vpop.xlane.xlu0 %9052
    %v9054 = vsel %vm325, %v9014, 0.0
    %9055 = vadd.xlane.f32.xlu0 %v9054
    %v9056 = vpop.xlane.xlu0 %9055
    %v9057 = vsel %vm325, %v9015, 0.0
    %9058 = vadd.xlane.f32.xlu0 %v9057
    %v9059 = vpop.xlane.xlu0 %9058
    %v9060 = vsel %vm325, %v9016, 0.0
    %9061 = vadd.xlane.f32.xlu0 %v9060
    %v9062 = vpop.xlane.xlu0 %9061
    %v9063 = vsel %vm325, %v9017, 0.0
    %9064 = vadd.xlane.f32.xlu0 %v9063
    %v9065 = vpop.xlane.xlu0 %9064
    %v9066 = vmul.f32 %v9020, %v374
    %v9067 = vmul.f32 %v9023, %v374
    %v9068 = vmul.f32 %v9026, %v374
    %v9069 = vmul.f32 %v9029, %v374
    %v9070 = vmul.f32 %v9032, %v374
    %v9071 = vmul.f32 %v9035, %v374
    %v9072 = vmul.f32 %v9038, %v374
    %v9073 = vmul.f32 %v9041, %v374
    %v9074 = vmul.f32 %v9044, %v374
    %v9075 = vmul.f32 %v9047, %v374
    %v9076 = vmul.f32 %v9050, %v374
    %v9077 = vmul.f32 %v9053, %v374
    %v9078 = vmul.f32 %v9056, %v374
    %v9079 = vmul.f32 %v9059, %v374
    %v9080 = vmul.f32 %v9062, %v374
    %v9081 = vmul.f32 %v9065, %v374
    %v9082 = vadd.f32 %v9066, 1e-12
    %v9083 = vadd.f32 %v9067, 1e-12
    %v9084 = vadd.f32 %v9068, 1e-12
    %v9085 = vadd.f32 %v9069, 1e-12
    %v9086 = vadd.f32 %v9070, 1e-12
    %v9087 = vadd.f32 %v9071, 1e-12
    %v9088 = vadd.f32 %v9072, 1e-12
    %v9089 = vadd.f32 %v9073, 1e-12
    %v9090 = vadd.f32 %v9074, 1e-12
    %v9091 = vadd.f32 %v9075, 1e-12
    %v9092 = vadd.f32 %v9076, 1e-12
    %v9093 = vadd.f32 %v9077, 1e-12
    %v9094 = vadd.f32 %v9078, 1e-12
    %v9095 = vadd.f32 %v9079, 1e-12
    %v9096 = vadd.f32 %v9080, 1e-12
    %v9097 = vadd.f32 %v9081, 1e-12
    %v9098 = vrsqrt.pop %v9082
    %v9099 = vrsqrt.pop %v9083
    %v9100 = vrsqrt.pop %v9084
    %v9101 = vrsqrt.pop %v9085
    %v9102 = vrsqrt.pop %v9086
    %v9103 = vrsqrt.pop %v9087
    %v9104 = vrsqrt.pop %v9088
    %v9105 = vrsqrt.pop %v9089
    %v9106 = vrsqrt.pop %v9090
    %v9107 = vrsqrt.pop %v9091
    %v9108 = vrsqrt.pop %v9092
    %v9109 = vrsqrt.pop %v9093
    %v9110 = vrsqrt.pop %v9094
    %v9111 = vrsqrt.pop %v9095
    %v9112 = vrsqrt.pop %v9096
    %v9113 = vrsqrt.pop %v9097
    %v9114 = vmul.f32 %v8986, %v9098
    %v9115 = vmul.f32 %v8987, %v9099
    %v9116 = vmul.f32 %v8988, %v9100
    %v9117 = vmul.f32 %v8989, %v9101
    %v9118 = vmul.f32 %v8990, %v9102
    %v9119 = vmul.f32 %v8991, %v9103
    %v9120 = vmul.f32 %v8992, %v9104
    %v9121 = vmul.f32 %v8993, %v9105
    %v9122 = vmul.f32 %v8994, %v9106
    %v9123 = vmul.f32 %v8995, %v9107
    %v9124 = vmul.f32 %v8996, %v9108
    %v9125 = vmul.f32 %v8997, %v9109
    %v9126 = vmul.f32 %v8998, %v9110
    %v9127 = vmul.f32 %v8999, %v9111
    %v9128 = vmul.f32 %v9000, %v9112
    %v9129 = vmul.f32 %v9001, %v9113
    %v9130 = vld [vmem:[%s1 + $0x2d] sm:$0x1]
    %v9131 = vlaneseq
    %v9132 = vshrl.u32 %v9131, 7
    %v9133 = vsub.s32 0, %v9132
    %v9134 = vrot.slane %v9130, %v9133
    %v9135 = vmul.f32 %v9114, %v9134
    %v9136 = vmul.f32 %v9115, %v9134
    %v9137 = vmul.f32 %v9116, %v9134
    %v9138 = vmul.f32 %v9117, %v9134
    %v9139 = vmul.f32 %v9118, %v9134
    %v9140 = vmul.f32 %v9119, %v9134
    %v9141 = vmul.f32 %v9120, %v9134
    %v9142 = vmul.f32 %v9121, %v9134
    %v9143 = vmul.f32 %v9122, %v9134
    %v9144 = vmul.f32 %v9123, %v9134
    %v9145 = vmul.f32 %v9124, %v9134
    %v9146 = vmul.f32 %v9125, %v9134
    %v9147 = vmul.f32 %v9126, %v9134
    %v9148 = vmul.f32 %v9127, %v9134
    %v9149 = vmul.f32 %v9128, %v9134
    %v9150 = vmul.f32 %v9129, %v9134
    %v9151 = vld [vmem:[%s1 + $0x2e] sm:$0x1]
    %v9152 = vlaneseq
    %v9153 = vshrl.u32 %v9152, 7
    %v9154 = vsub.s32 0, %v9153
    %v9155 = vrot.slane %v9151, %v9154
    %v9156 = vadd.f32 %v9135, %v9155
    %v9157 = vadd.f32 %v9136, %v9155
    %v9158 = vadd.f32 %v9137, %v9155
    %v9159 = vadd.f32 %v9138, %v9155
    %v9160 = vadd.f32 %v9139, %v9155
    %v9161 = vadd.f32 %v9140, %v9155
    %v9162 = vadd.f32 %v9141, %v9155
    %v9163 = vadd.f32 %v9142, %v9155
    %v9164 = vadd.f32 %v9143, %v9155
    %v9165 = vadd.f32 %v9144, %v9155
    %v9166 = vadd.f32 %v9145, %v9155
    %v9167 = vadd.f32 %v9146, %v9155
    %v9168 = vadd.f32 %v9147, %v9155
    %v9169 = vadd.f32 %v9148, %v9155
    %v9170 = vadd.f32 %v9149, %v9155
    %v9171 = vadd.f32 %v9150, %v9155
    %v9172 = vpack.c.bf16 %v9157, %v9156
    %v9173 = vpack.c.bf16 %v9159, %v9158
    %v9174 = vpack.c.bf16 %v9161, %v9160
    %v9175 = vpack.c.bf16 %v9163, %v9162
    %v9176 = vpack.c.bf16 %v9165, %v9164
    %v9177 = vpack.c.bf16 %v9167, %v9166
    %v9178 = vpack.c.bf16 %v9169, %v9168
    %v9179 = vpack.c.bf16 %v9171, %v9170
    %v9180 = vld [vmem:[%s0 + $0x190] sm:$0xf]
    %v9181 = vld [vmem:[%s0 + $0x194] sm:$0xf]
    %v9182 = vld [vmem:[%s0 + $0x198] sm:$0xf]
    %v9183 = vld [vmem:[%s0 + $0x19c] sm:$0xf]
    %v9184 = vld [vmem:[%s1 + $0x2f] sm:$0x1]
    %v9185 = vlaneseq
    %v9186 = vshrl.u32 %v9185, 7
    %v9187 = vsub.s32 0, %v9186
    %v9188 = vrot.slane %v9184, %v9187
    %v9193 = vunpack.c.l.b16 %v9180
    %v9194 = vunpack.c.l.b16 %v9181
    %v9195 = vunpack.c.l.b16 %v9182
    %v9196 = vunpack.c.l.b16 %v9183
    %v9197 = vpack.c.b16 %v9194, %v9193
    %v9198 = vpack.c.b16 %v9196, %v9195
    %v9202 = vsel %vm325, %v9172, 0
    %v9205 = vsel %vm325, %v9173, 0
    %v9208 = vsel %vm325, %v9174, 0
    %v9211 = vsel %vm325, %v9175, 0
    %v9214 = vsel %vm325, %v9176, 0
    %v9217 = vsel %vm325, %v9177, 0
    %v9220 = vsel %vm325, %v9178, 0
    %v9223 = vsel %vm325, %v9179, 0
    %9225 = vmatprep.subr.bf16.mxu0 0
    %9226 = vmatpush1.bf16.msra.mxu0 %v9197
    %9227 = vmatprep.subr.bf16.mxu0 0
    %9228 = vmatpush1.bf16.msra.mxu0 %v9198
    %9229 = vmatprep.subr.bf16.mxu0 0
    %9230 = vmatpush1.bf16.msra.mxu0 0
    %9231 = vmatprep.subr.bf16.mxu0 0
    %9232 = vmatpush1.bf16.msra.mxu0 0
    %9233 = vmatprep.subr.bf16.mxu0 0
    %9234 = vmatpush1.bf16.msra.mxu0 0
    %9235 = vmatprep.subr.bf16.mxu0 0
    %9236 = vmatpush1.bf16.msra.mxu0 0
    %9237 = vmatprep.subr.bf16.mxu0 0
    %9238 = vmatpush1.bf16.msra.mxu0 0
    %9239 = vmatprep.subr.bf16.mxu0 0
    %9240 = vmatpush1.bf16.msra.mxu0 0
    %9241 = vmatprep.subr.bf16.mxu0 0
    %9242 = vmatpush1.bf16.msra.mxu0 0
    %9243 = vmatprep.subr.bf16.mxu0 0
    %9244 = vmatpush1.bf16.msra.mxu0 0
    %9245 = vmatprep.subr.bf16.mxu0 0
    %9246 = vmatpush1.bf16.msra.mxu0 0
    %9247 = vmatprep.subr.bf16.mxu0 0
    %9248 = vmatpush1.bf16.msra.mxu0 0
    %9249 = vmatprep.subr.bf16.mxu0 0
    %9250 = vmatpush1.bf16.msra.mxu0 0
    %9251 = vmatprep.subr.bf16.mxu0 0
    %9252 = vmatpush1.bf16.msra.mxu0 0
    %9253 = vmatprep.subr.bf16.mxu0 0
    %9254 = vmatpush1.bf16.msra.mxu0 0
    %9255 = vmatprep.subr.bf16.mxu0 0
    %9256 = vmatpush1.bf16.msra.mxu0 0
    %9257 = vmatprep.mubr.bf16.mxu0 0
    %9258 = vmatmul.mubr.bf16.gmra.mrb[0].mxu0 %v9202
    %v9259 = vpop.f32.mrb[0].mxu0
    %v9260 = vadd.f32 %v9188, %v9259
    %v9261 = vpop.f32.mrb[0].mxu0
    %v9262 = vpop.f32.mrb[0].mxu0
    %v9263 = vadd.f32 %v9188, %v9262
    %v9264 = vpop.f32.mrb[0].mxu0
    %9265 = vmatprep.mubr.bf16.mxu0 0
    %9266 = vmatmul.mubr.bf16.gmra.mrb[0].mxu0 %v9205
    %v9267 = vpop.f32.mrb[0].mxu0
    %v9268 = vadd.f32 %v9188, %v9267
    %v9269 = vpop.f32.mrb[0].mxu0
    %v9270 = vpop.f32.mrb[0].mxu0
    %v9271 = vadd.f32 %v9188, %v9270
    %v9272 = vpop.f32.mrb[0].mxu0
    %9273 = vmatprep.mubr.bf16.mxu0 0
    %9274 = vmatmul.mubr.bf16.gmra.mrb[0].mxu0 %v9208
    %v9275 = vpop.f32.mrb[0].mxu0
    %v9276 = vadd.f32 %v9188, %v9275
    %v9277 = vpop.f32.mrb[0].mxu0
    %v9278 = vpop.f32.mrb[0].mxu0
    %v9279 = vadd.f32 %v9188, %v9278
    %v9280 = vpop.f32.mrb[0].mxu0
    %9281 = vmatprep.mubr.bf16.mxu0 0
    %9282 = vmatmul.mubr.bf16.gmra.mrb[0].mxu0 %v9211
    %v9283 = vpop.f32.mrb[0].mxu0
    %v9284 = vadd.f32 %v9188, %v9283
    %v9285 = vpop.f32.mrb[0].mxu0
    %v9286 = vpop.f32.mrb[0].mxu0
    %v9287 = vadd.f32 %v9188, %v9286
    %v9288 = vpop.f32.mrb[0].mxu0
    %9289 = vmatprep.mubr.bf16.mxu0 0
    %9290 = vmatmul.mubr.bf16.gmra.mrb[0].mxu0 %v9214
    %v9291 = vpop.f32.mrb[0].mxu0
    %v9292 = vadd.f32 %v9188, %v9291
    %v9293 = vpop.f32.mrb[0].mxu0
    %v9294 = vpop.f32.mrb[0].mxu0
    %v9295 = vadd.f32 %v9188, %v9294
    %v9296 = vpop.f32.mrb[0].mxu0
    %9297 = vmatprep.mubr.bf16.mxu0 0
    %9298 = vmatmul.mubr.bf16.gmra.mrb[0].mxu0 %v9217
    %v9299 = vpop.f32.mrb[0].mxu0
    %v9300 = vadd.f32 %v9188, %v9299
    %v9301 = vpop.f32.mrb[0].mxu0
    %v9302 = vpop.f32.mrb[0].mxu0
    %v9303 = vadd.f32 %v9188, %v9302
    %v9304 = vpop.f32.mrb[0].mxu0
    %9305 = vmatprep.mubr.bf16.mxu0 0
    %9306 = vmatmul.mubr.bf16.gmra.mrb[0].mxu0 %v9220
    %v9307 = vpop.f32.mrb[0].mxu0
    %v9308 = vadd.f32 %v9188, %v9307
    %v9309 = vpop.f32.mrb[0].mxu0
    %v9310 = vpop.f32.mrb[0].mxu0
    %v9311 = vadd.f32 %v9188, %v9310
    %v9312 = vpop.f32.mrb[0].mxu0
    %9313 = vmatprep.mubr.bf16.mxu0 0
    %9314 = vmatmul.mubr.bf16.gmra.mrb[0].mxu0 %v9223
    %v9315 = vpop.f32.mrb[0].mxu0
    %v9316 = vadd.f32 %v9188, %v9315
    %v9317 = vpop.f32.mrb[0].mxu0
    %v9318 = vpop.f32.mrb[0].mxu0
    %v9319 = vadd.f32 %v9188, %v9318
    %v9320 = vpop.f32.mrb[0].mxu0
    %9321 = vdwg.mxu0
    %v9322 = vld [vmem:[%s3] sm:$0xff]
    %v9323 = vld [vmem:[%s3 + $0x8] sm:$0xff]
    %v9324 = vld [vmem:[%s3 + $0x10] sm:$0xff]
    %v9325 = vld [vmem:[%s3 + $0x18] sm:$0xff]
    %v9326 = vld [vmem:[%s3 + $0x20] sm:$0xff]
    %v9327 = vld [vmem:[%s3 + $0x28] sm:$0xff]
    %v9328 = vld [vmem:[%s3 + $0x30] sm:$0xff]
    %v9329 = vld [vmem:[%s3 + $0x38] sm:$0xff]
    %v9330 = vld [vmem:[%s3 + $0x40] sm:$0xff]
    %v9331 = vld [vmem:[%s3 + $0x48] sm:$0xff]
    %v9332 = vld [vmem:[%s3 + $0x50] sm:$0xff]
    %v9333 = vld [vmem:[%s3 + $0x58] sm:$0xff]
    %v9334 = vld [vmem:[%s3 + $0x60] sm:$0xff]
    %v9335 = vld [vmem:[%s3 + $0x68] sm:$0xff]
    %v9336 = vld [vmem:[%s3 + $0x70] sm:$0xff]
    %v9337 = vld [vmem:[%s3 + $0x78] sm:$0xff]
    %9338 = vmax.xlane.f32.xlu0 %v9260
    %v9339 = vpop.xlane.xlu0 %9338
    %9340 = vmax.xlane.f32.xlu0 %v9263
    %v9341 = vpop.xlane.xlu0 %9340
    %9342 = vmax.xlane.f32.xlu0 %v9268
    %v9343 = vpop.xlane.xlu0 %9342
    %9344 = vmax.xlane.f32.xlu0 %v9271
    %v9345 = vpop.xlane.xlu0 %9344
    %9346 = vmax.xlane.f32.xlu0 %v9276
    %v9347 = vpop.xlane.xlu0 %9346
    %9348 = vmax.xlane.f32.xlu0 %v9279
    %v9349 = vpop.xlane.xlu0 %9348
    %9350 = vmax.xlane.f32.xlu0 %v9284
    %v9351 = vpop.xlane.xlu0 %9350
    %9352 = vmax.xlane.f32.xlu0 %v9287
    %v9353 = vpop.xlane.xlu0 %9352
    %9354 = vmax.xlane.f32.xlu0 %v9292
    %v9355 = vpop.xlane.xlu0 %9354
    %9356 = vmax.xlane.f32.xlu0 %v9295
    %v9357 = vpop.xlane.xlu0 %9356
    %9358 = vmax.xlane.f32.xlu0 %v9300
    %v9359 = vpop.xlane.xlu0 %9358
    %9360 = vmax.xlane.f32.xlu0 %v9303
    %v9361 = vpop.xlane.xlu0 %9360
    %9362 = vmax.xlane.f32.xlu0 %v9308
    %v9363 = vpop.xlane.xlu0 %9362
    %9364 = vmax.xlane.f32.xlu0 %v9311
    %v9365 = vpop.xlane.xlu0 %9364
    %9366 = vmax.xlane.f32.xlu0 %v9316
    %v9367 = vpop.xlane.xlu0 %9366
    %9368 = vmax.xlane.f32.xlu0 %v9319
    %v9369 = vpop.xlane.xlu0 %9368
    %v9370 = vsub.f32 %v9260, %v9339
    %v9371 = vsub.f32 %v9263, %v9341
    %v9372 = vsub.f32 %v9268, %v9343
    %v9373 = vsub.f32 %v9271, %v9345
    %v9374 = vsub.f32 %v9276, %v9347
    %v9375 = vsub.f32 %v9279, %v9349
    %v9376 = vsub.f32 %v9284, %v9351
    %v9377 = vsub.f32 %v9287, %v9353
    %v9378 = vsub.f32 %v9292, %v9355
    %v9379 = vsub.f32 %v9295, %v9357
    %v9380 = vsub.f32 %v9300, %v9359
    %v9381 = vsub.f32 %v9303, %v9361
    %v9382 = vsub.f32 %v9308, %v9363
    %v9383 = vsub.f32 %v9311, %v9365
    %v9384 = vsub.f32 %v9316, %v9367
    %v9385 = vsub.f32 %v9319, %v9369
    %v9386 = vmul.f32 %v9370, 1.442695
    %v9387 = vpow.pop %v9386
    %v9388 = vmul.f32 %v9371, 1.442695
    %v9389 = vpow.pop %v9388
    %v9390 = vmul.f32 %v9372, 1.442695
    %v9391 = vpow.pop %v9390
    %v9392 = vmul.f32 %v9373, 1.442695
    %v9393 = vpow.pop %v9392
    %v9394 = vmul.f32 %v9374, 1.442695
    %v9395 = vpow.pop %v9394
    %v9396 = vmul.f32 %v9375, 1.442695
    %v9397 = vpow.pop %v9396
    %v9398 = vmul.f32 %v9376, 1.442695
    %v9399 = vpow.pop %v9398
    %v9400 = vmul.f32 %v9377, 1.442695
    %v9401 = vpow.pop %v9400
    %v9402 = vmul.f32 %v9378, 1.442695
    %v9403 = vpow.pop %v9402
    %v9404 = vmul.f32 %v9379, 1.442695
    %v9405 = vpow.pop %v9404
    %v9406 = vmul.f32 %v9380, 1.442695
    %v9407 = vpow.pop %v9406
    %v9408 = vmul.f32 %v9381, 1.442695
    %v9409 = vpow.pop %v9408
    %v9410 = vmul.f32 %v9382, 1.442695
    %v9411 = vpow.pop %v9410
    %v9412 = vmul.f32 %v9383, 1.442695
    %v9413 = vpow.pop %v9412
    %v9414 = vmul.f32 %v9384, 1.442695
    %v9415 = vpow.pop %v9414
    %v9416 = vmul.f32 %v9385, 1.442695
    %v9417 = vpow.pop %v9416
    %9418 = vadd.xlane.f32.xlu0 %v9387
    %v9419 = vpop.xlane.xlu0 %9418
    %9420 = vadd.xlane.f32.xlu0 %v9389
    %v9421 = vpop.xlane.xlu0 %9420
    %9422 = vadd.xlane.f32.xlu0 %v9391
    %v9423 = vpop.xlane.xlu0 %9422
    %9424 = vadd.xlane.f32.xlu0 %v9393
    %v9425 = vpop.xlane.xlu0 %9424
    %9426 = vadd.xlane.f32.xlu0 %v9395
    %v9427 = vpop.xlane.xlu0 %9426
    %9428 = vadd.xlane.f32.xlu0 %v9397
    %v9429 = vpop.xlane.xlu0 %9428
    %9430 = vadd.xlane.f32.xlu0 %v9399
    %v9431 = vpop.xlane.xlu0 %9430
    %9432 = vadd.xlane.f32.xlu0 %v9401
    %v9433 = vpop.xlane.xlu0 %9432
    %9434 = vadd.xlane.f32.xlu0 %v9403
    %v9435 = vpop.xlane.xlu0 %9434
    %9436 = vadd.xlane.f32.xlu0 %v9405
    %v9437 = vpop.xlane.xlu0 %9436
    %9438 = vadd.xlane.f32.xlu0 %v9407
    %v9439 = vpop.xlane.xlu0 %9438
    %9440 = vadd.xlane.f32.xlu0 %v9409
    %v9441 = vpop.xlane.xlu0 %9440
    %9442 = vadd.xlane.f32.xlu0 %v9411
    %v9443 = vpop.xlane.xlu0 %9442
    %9444 = vadd.xlane.f32.xlu0 %v9413
    %v9445 = vpop.xlane.xlu0 %9444
    %9446 = vadd.xlane.f32.xlu0 %v9415
    %v9447 = vpop.xlane.xlu0 %9446
    %9448 = vadd.xlane.f32.xlu0 %v9417
    %v9449 = vpop.xlane.xlu0 %9448
    %v9450 = vlog2.pop %v9419
    %v9451 = vmul.f32 %v9450, 0.6931472
    %v9452 = vlog2.pop %v9421
    %v9453 = vmul.f32 %v9452, 0.6931472
    %v9454 = vlog2.pop %v9423
    %v9455 = vmul.f32 %v9454, 0.6931472
    %v9456 = vlog2.pop %v9425
    %v9457 = vmul.f32 %v9456, 0.6931472
    %v9458 = vlog2.pop %v9427
    %v9459 = vmul.f32 %v9458, 0.6931472
    %v9460 = vlog2.pop %v9429
    %v9461 = vmul.f32 %v9460, 0.6931472
    %v9462 = vlog2.pop %v9431
    %v9463 = vmul.f32 %v9462, 0.6931472
    %v9464 = vlog2.pop %v9433
    %v9465 = vmul.f32 %v9464, 0.6931472
    %v9466 = vlog2.pop %v9435
    %v9467 = vmul.f32 %v9466, 0.6931472
    %v9468 = vlog2.pop %v9437
    %v9469 = vmul.f32 %v9468, 0.6931472
    %v9470 = vlog2.pop %v9439
    %v9471 = vmul.f32 %v9470, 0.6931472
    %v9472 = vlog2.pop %v9441
    %v9473 = vmul.f32 %v9472, 0.6931472
    %v9474 = vlog2.pop %v9443
    %v9475 = vmul.f32 %v9474, 0.6931472
    %v9476 = vlog2.pop %v9445
    %v9477 = vmul.f32 %v9476, 0.6931472
    %v9478 = vlog2.pop %v9447
    %v9479 = vmul.f32 %v9478, 0.6931472
    %v9480 = vlog2.pop %v9449
    %v9481 = vmul.f32 %v9480, 0.6931472
    %v9482 = vadd.f32 %v9451, %v9339
    %v9483 = vadd.f32 %v9453, %v9341
    %v9484 = vadd.f32 %v9455, %v9343
    %v9485 = vadd.f32 %v9457, %v9345
    %v9486 = vadd.f32 %v9459, %v9347
    %v9487 = vadd.f32 %v9461, %v9349
    %v9488 = vadd.f32 %v9463, %v9351
    %v9489 = vadd.f32 %v9465, %v9353
    %v9490 = vadd.f32 %v9467, %v9355
    %v9491 = vadd.f32 %v9469, %v9357
    %v9492 = vadd.f32 %v9471, %v9359
    %v9493 = vadd.f32 %v9473, %v9361
    %v9494 = vadd.f32 %v9475, %v9363
    %v9495 = vadd.f32 %v9477, %v9365
    %v9496 = vadd.f32 %v9479, %v9367
    %v9497 = vadd.f32 %v9481, %v9369
    %9498 = vset.pattern.permute.xlu0 1
    %9499 = vperm.xlu0 %9498, %v9322
    %v9500 = vpop.permute.xlu0 %9499
    %9501 = vset.pattern.permute.xlu0 1
    %9502 = vperm.xlu0 %9501, %v9323
    %v9503 = vpop.permute.xlu0 %9502
    %9504 = vset.pattern.permute.xlu0 1
    %9505 = vperm.xlu0 %9504, %v9324
    %v9506 = vpop.permute.xlu0 %9505
    %9507 = vset.pattern.permute.xlu0 1
    %9508 = vperm.xlu0 %9507, %v9325
    %v9509 = vpop.permute.xlu0 %9508
    %9510 = vset.pattern.permute.xlu0 1
    %9511 = vperm.xlu0 %9510, %v9326
    %v9512 = vpop.permute.xlu0 %9511
    %9513 = vset.pattern.permute.xlu0 1
    %9514 = vperm.xlu0 %9513, %v9327
    %v9515 = vpop.permute.xlu0 %9514
    %9516 = vset.pattern.permute.xlu0 1
    %9517 = vperm.xlu0 %9516, %v9328
    %v9518 = vpop.permute.xlu0 %9517
    %9519 = vset.pattern.permute.xlu0 1
    %9520 = vperm.xlu0 %9519, %v9329
    %v9521 = vpop.permute.xlu0 %9520
    %9522 = vset.pattern.permute.xlu0 1
    %9523 = vperm.xlu0 %9522, %v9330
    %v9524 = vpop.permute.xlu0 %9523
    %9525 = vset.pattern.permute.xlu0 1
    %9526 = vperm.xlu0 %9525, %v9331
    %v9527 = vpop.permute.xlu0 %9526
    %9528 = vset.pattern.permute.xlu0 1
    %9529 = vperm.xlu0 %9528, %v9332
    %v9530 = vpop.permute.xlu0 %9529
    %9531 = vset.pattern.permute.xlu0 1
    %9532 = vperm.xlu0 %9531, %v9333
    %v9533 = vpop.permute.xlu0 %9532
    %9534 = vset.pattern.permute.xlu0 1
    %9535 = vperm.xlu0 %9534, %v9334
    %v9536 = vpop.permute.xlu0 %9535
    %9537 = vset.pattern.permute.xlu0 1
    %9538 = vperm.xlu0 %9537, %v9335
    %v9539 = vpop.permute.xlu0 %9538
    %9540 = vset.pattern.permute.xlu0 1
    %9541 = vperm.xlu0 %9540, %v9336
    %v9542 = vpop.permute.xlu0 %9541
    %9543 = vset.pattern.permute.xlu0 1
    %9544 = vperm.xlu0 %9543, %v9337
    %v9545 = vpop.permute.xlu0 %9544
    %vm9546 = vcmp.eq.s32.totalorder %v57, %v9500
    %vm9547 = vcmp.eq.s32.totalorder %v57, %v9503
    %vm9548 = vcmp.eq.s32.totalorder %v57, %v9506
    %vm9549 = vcmp.eq.s32.totalorder %v57, %v9509
    %vm9550 = vcmp.eq.s32.totalorder %v57, %v9512
    %vm9551 = vcmp.eq.s32.totalorder %v57, %v9515
    %vm9552 = vcmp.eq.s32.totalorder %v57, %v9518
    %vm9553 = vcmp.eq.s32.totalorder %v57, %v9521
    %vm9554 = vcmp.eq.s32.totalorder %v57, %v9524
    %vm9555 = vcmp.eq.s32.totalorder %v57, %v9527
    %vm9556 = vcmp.eq.s32.totalorder %v57, %v9530
    %vm9557 = vcmp.eq.s32.totalorder %v57, %v9533
    %vm9558 = vcmp.eq.s32.totalorder %v57, %v9536
    %vm9559 = vcmp.eq.s32.totalorder %v57, %v9539
    %vm9560 = vcmp.eq.s32.totalorder %v57, %v9542
    %vm9561 = vcmp.eq.s32.totalorder %v57, %v9545
    %v9562 = vsel %vm9546, %v9260, 0.0
    %v9563 = vsel %vm9547, %v9263, 0.0
    %v9564 = vsel %vm9548, %v9268, 0.0
    %v9565 = vsel %vm9549, %v9271, 0.0
    %v9566 = vsel %vm9550, %v9276, 0.0
    %v9567 = vsel %vm9551, %v9279, 0.0
    %v9568 = vsel %vm9552, %v9284, 0.0
    %v9569 = vsel %vm9553, %v9287, 0.0
    %v9570 = vsel %vm9554, %v9292, 0.0
    %v9571 = vsel %vm9555, %v9295, 0.0
    %v9572 = vsel %vm9556, %v9300, 0.0
    %v9573 = vsel %vm9557, %v9303, 0.0
    %v9574 = vsel %vm9558, %v9308, 0.0
    %v9575 = vsel %vm9559, %v9311, 0.0
    %v9576 = vsel %vm9560, %v9316, 0.0
    %v9577 = vsel %vm9561, %v9319, 0.0
    %9578 = vadd.xlane.f32.xlu0 %v9562
    %v9579 = vpop.xlane.xlu0 %9578
    %9580 = vadd.xlane.f32.xlu0 %v9563
    %v9581 = vpop.xlane.xlu0 %9580
    %9582 = vadd.xlane.f32.xlu0 %v9564
    %v9583 = vpop.xlane.xlu0 %9582
    %9584 = vadd.xlane.f32.xlu0 %v9565
    %v9585 = vpop.xlane.xlu0 %9584
    %9586 = vadd.xlane.f32.xlu0 %v9566
    %v9587 = vpop.xlane.xlu0 %9586
    %9588 = vadd.xlane.f32.xlu0 %v9567
    %v9589 = vpop.xlane.xlu0 %9588
    %9590 = vadd.xlane.f32.xlu0 %v9568
    %v9591 = vpop.xlane.xlu0 %9590
    %9592 = vadd.xlane.f32.xlu0 %v9569
    %v9593 = vpop.xlane.xlu0 %9592
    %9594 = vadd.xlane.f32.xlu0 %v9570
    %v9595 = vpop.xlane.xlu0 %9594
    %9596 = vadd.xlane.f32.xlu0 %v9571
    %v9597 = vpop.xlane.xlu0 %9596
    %9598 = vadd.xlane.f32.xlu0 %v9572
    %v9599 = vpop.xlane.xlu0 %9598
    %9600 = vadd.xlane.f32.xlu0 %v9573
    %v9601 = vpop.xlane.xlu0 %9600
    %9602 = vadd.xlane.f32.xlu0 %v9574
    %v9603 = vpop.xlane.xlu0 %9602
    %9604 = vadd.xlane.f32.xlu0 %v9575
    %v9605 = vpop.xlane.xlu0 %9604
    %9606 = vadd.xlane.f32.xlu0 %v9576
    %v9607 = vpop.xlane.xlu0 %9606
    %9608 = vadd.xlane.f32.xlu0 %v9577
    %v9609 = vpop.xlane.xlu0 %9608
    %vm9610 = vcmp.ne.s32.totalorder %v9322, 4294967196
    %vm9611 = vcmp.ne.s32.totalorder %v9323, 4294967196
    %vm9612 = vcmp.ne.s32.totalorder %v9324, 4294967196
    %vm9613 = vcmp.ne.s32.totalorder %v9325, 4294967196
    %vm9614 = vcmp.ne.s32.totalorder %v9326, 4294967196
    %vm9615 = vcmp.ne.s32.totalorder %v9327, 4294967196
    %vm9616 = vcmp.ne.s32.totalorder %v9328, 4294967196
    %vm9617 = vcmp.ne.s32.totalorder %v9329, 4294967196
    %vm9618 = vcmp.ne.s32.totalorder %v9330, 4294967196
    %vm9619 = vcmp.ne.s32.totalorder %v9331, 4294967196
    %vm9620 = vcmp.ne.s32.totalorder %v9332, 4294967196
    %vm9621 = vcmp.ne.s32.totalorder %v9333, 4294967196
    %vm9622 = vcmp.ne.s32.totalorder %v9334, 4294967196
    %vm9623 = vcmp.ne.s32.totalorder %v9335, 4294967196
    %vm9624 = vcmp.ne.s32.totalorder %v9336, 4294967196
    %vm9625 = vcmp.ne.s32.totalorder %v9337, 4294967196
    %v9626 = vsel %vm9610, 1, 0
    %v9627 = vsel %vm9611, 1, 0
    %v9628 = vsel %vm9612, 1, 0
    %v9629 = vsel %vm9613, 1, 0
    %v9630 = vsel %vm9614, 1, 0
    %v9631 = vsel %vm9615, 1, 0
    %v9632 = vsel %vm9616, 1, 0
    %v9633 = vsel %vm9617, 1, 0
    %v9634 = vsel %vm9618, 1, 0
    %v9635 = vsel %vm9619, 1, 0
    %v9636 = vsel %vm9620, 1, 0
    %v9637 = vsel %vm9621, 1, 0
    %v9638 = vsel %vm9622, 1, 0
    %v9639 = vsel %vm9623, 1, 0
    %v9640 = vsel %vm9624, 1, 0
    %v9641 = vsel %vm9625, 1, 0
    %v9642 = vcvt.s32.f32 %v9626
    %v9643 = vcvt.s32.f32 %v9627
    %v9644 = vcvt.s32.f32 %v9628
    %v9645 = vcvt.s32.f32 %v9629
    %v9646 = vcvt.s32.f32 %v9630
    %v9647 = vcvt.s32.f32 %v9631
    %v9648 = vcvt.s32.f32 %v9632
    %v9649 = vcvt.s32.f32 %v9633
    %v9650 = vcvt.s32.f32 %v9634
    %v9651 = vcvt.s32.f32 %v9635
    %v9652 = vcvt.s32.f32 %v9636
    %v9653 = vcvt.s32.f32 %v9637
    %v9654 = vcvt.s32.f32 %v9638
    %v9655 = vcvt.s32.f32 %v9639
    %v9656 = vcvt.s32.f32 %v9640
    %v9657 = vcvt.s32.f32 %v9641
    %v9658 = vsub.f32 %v9482, %v9579
    %v9659 = vsub.f32 %v9483, %v9581
    %v9660 = vsub.f32 %v9484, %v9583
    %v9661 = vsub.f32 %v9485, %v9585
    %v9662 = vsub.f32 %v9486, %v9587
    %v9663 = vsub.f32 %v9487, %v9589
    %v9664 = vsub.f32 %v9488, %v9591
    %v9665 = vsub.f32 %v9489, %v9593
    %v9666 = vsub.f32 %v9490, %v9595
    %v9667 = vsub.f32 %v9491, %v9597
    %v9668 = vsub.f32 %v9492, %v9599
    %v9669 = vsub.f32 %v9493, %v9601
    %v9670 = vsub.f32 %v9494, %v9603
    %v9671 = vsub.f32 %v9495, %v9605
    %v9672 = vsub.f32 %v9496, %v9607
    %v9673 = vsub.f32 %v9497, %v9609
    %v9674 = vmul.f32 %v9658, %v9642
    %v9675 = vmul.f32 %v9659, %v9643
    %v9676 = vmul.f32 %v9660, %v9644
    %v9677 = vmul.f32 %v9661, %v9645
    %v9678 = vmul.f32 %v9662, %v9646
    %v9679 = vmul.f32 %v9663, %v9647
    %v9680 = vmul.f32 %v9664, %v9648
    %v9681 = vmul.f32 %v9665, %v9649
    %v9682 = vmul.f32 %v9666, %v9650
    %v9683 = vmul.f32 %v9667, %v9651
    %v9684 = vmul.f32 %v9668, %v9652
    %v9685 = vmul.f32 %v9669, %v9653
    %v9686 = vmul.f32 %v9670, %v9654
    %v9687 = vmul.f32 %v9671, %v9655
    %v9688 = vmul.f32 %v9672, %v9656
    %v9689 = vmul.f32 %v9673, %v9657
    %9706 = vrot.lane.b32.xlu0 %v9674, 127
    %v9707 = vpop.permute.xlu0 %9706
    %9708 = vrot.lane.b32.xlu0 %v9675, 127
    %v9709 = vpop.permute.xlu0 %9708
    %9710 = vrot.lane.b32.xlu0 %v9676, 127
    %v9711 = vpop.permute.xlu0 %9710
    %9712 = vrot.lane.b32.xlu0 %v9677, 127
    %v9713 = vpop.permute.xlu0 %9712
    %9714 = vrot.lane.b32.xlu0 %v9678, 127
    %v9715 = vpop.permute.xlu0 %9714
    %9716 = vrot.lane.b32.xlu0 %v9679, 127
    %v9717 = vpop.permute.xlu0 %9716
    %9718 = vrot.lane.b32.xlu0 %v9680, 127
    %v9719 = vpop.permute.xlu0 %9718
    %9720 = vrot.lane.b32.xlu0 %v9681, 127
    %v9721 = vpop.permute.xlu0 %9720
    %9722 = vrot.lane.b32.xlu0 %v9682, 127
    %v9723 = vpop.permute.xlu0 %9722
    %9724 = vrot.lane.b32.xlu0 %v9683, 127
    %v9725 = vpop.permute.xlu0 %9724
    %9726 = vrot.lane.b32.xlu0 %v9684, 127
    %v9727 = vpop.permute.xlu0 %9726
    %9728 = vrot.lane.b32.xlu0 %v9685, 127
    %v9729 = vpop.permute.xlu0 %9728
    %9730 = vrot.lane.b32.xlu0 %v9686, 127
    %v9731 = vpop.permute.xlu0 %9730
    %9732 = vrot.lane.b32.xlu0 %v9687, 127
    %v9733 = vpop.permute.xlu0 %9732
    %9734 = vrot.lane.b32.xlu0 %v9688, 127
    %v9735 = vpop.permute.xlu0 %9734
    %9736 = vrot.lane.b32.xlu0 %v9689, 127
    %v9737 = vpop.permute.xlu0 %9736
    %vm9754 = vcmask 7168
    %v9755 = vsel %vm9754, %v9707, 0.0
    %v9756 = vsel %vm9754, %v9709, 0.0
    %v9757 = vadd.f32 %v9755, %v9756
    %v9758 = vsel %vm9754, %v9711, 0.0
    %v9759 = vadd.f32 %v9757, %v9758
    %v9760 = vsel %vm9754, %v9713, 0.0
    %v9761 = vadd.f32 %v9759, %v9760
    %v9762 = vsel %vm9754, %v9715, 0.0
    %v9763 = vadd.f32 %v9761, %v9762
    %v9764 = vsel %vm9754, %v9717, 0.0
    %v9765 = vadd.f32 %v9763, %v9764
    %v9766 = vsel %vm9754, %v9719, 0.0
    %v9767 = vadd.f32 %v9765, %v9766
    %v9768 = vsel %vm9754, %v9721, 0.0
    %v9769 = vadd.f32 %v9767, %v9768
    %v9770 = vsel %vm9754, %v9723, 0.0
    %v9771 = vadd.f32 %v9769, %v9770
    %v9772 = vsel %vm9754, %v9725, 0.0
    %v9773 = vadd.f32 %v9771, %v9772
    %v9774 = vsel %vm9754, %v9727, 0.0
    %v9775 = vadd.f32 %v9773, %v9774
    %v9776 = vsel %vm9754, %v9729, 0.0
    %v9777 = vadd.f32 %v9775, %v9776
    %v9778 = vsel %vm9754, %v9731, 0.0
    %v9779 = vadd.f32 %v9777, %v9778
    %v9780 = vsel %vm9754, %v9733, 0.0
    %v9781 = vadd.f32 %v9779, %v9780
    %v9782 = vsel %vm9754, %v9735, 0.0
    %v9783 = vadd.f32 %v9781, %v9782
    %v9784 = vsel %vm9754, %v9737, 0.0
    %v9785 = vadd.f32 %v9783, %v9784
    %9786 = vadd.xlane.f32.xlu0 %v9785
    %v9787 = vpop.xlane.xlu0 %9786
    %v9788 = vrot.slane %v9787, 4
    %v9789 = vadd.f32 %v9787, %v9788
    %v9790 = vrot.slane %v9789, 2
    %v9791 = vadd.f32 %v9789, %v9790
    %v9792 = vrot.slane %v9791, 1
    %v9793 = vadd.f32 %v9791, %v9792
    %s9794 = vtos %v9793
    %9811 = vrot.lane.b32.xlu0 %v9642, 127
    %v9812 = vpop.permute.xlu0 %9811
    %9813 = vrot.lane.b32.xlu0 %v9643, 127
    %v9814 = vpop.permute.xlu0 %9813
    %9815 = vrot.lane.b32.xlu0 %v9644, 127
    %v9816 = vpop.permute.xlu0 %9815
    %9817 = vrot.lane.b32.xlu0 %v9645, 127
    %v9818 = vpop.permute.xlu0 %9817
    %9819 = vrot.lane.b32.xlu0 %v9646, 127
    %v9820 = vpop.permute.xlu0 %9819
    %9821 = vrot.lane.b32.xlu0 %v9647, 127
    %v9822 = vpop.permute.xlu0 %9821
    %9823 = vrot.lane.b32.xlu0 %v9648, 127
    %v9824 = vpop.permute.xlu0 %9823
    %9825 = vrot.lane.b32.xlu0 %v9649, 127
    %v9826 = vpop.permute.xlu0 %9825
    %9827 = vrot.lane.b32.xlu0 %v9650, 127
    %v9828 = vpop.permute.xlu0 %9827
    %9829 = vrot.lane.b32.xlu0 %v9651, 127
    %v9830 = vpop.permute.xlu0 %9829
    %9831 = vrot.lane.b32.xlu0 %v9652, 127
    %v9832 = vpop.permute.xlu0 %9831
    %9833 = vrot.lane.b32.xlu0 %v9653, 127
    %v9834 = vpop.permute.xlu0 %9833
    %9835 = vrot.lane.b32.xlu0 %v9654, 127
    %v9836 = vpop.permute.xlu0 %9835
    %9837 = vrot.lane.b32.xlu0 %v9655, 127
    %v9838 = vpop.permute.xlu0 %9837
    %9839 = vrot.lane.b32.xlu0 %v9656, 127
    %v9840 = vpop.permute.xlu0 %9839
    %9841 = vrot.lane.b32.xlu0 %v9657, 127
    %v9842 = vpop.permute.xlu0 %9841
    %v9859 = vsel %vm9754, %v9812, 0.0
    %v9860 = vsel %vm9754, %v9814, 0.0
    %v9861 = vadd.f32 %v9859, %v9860
    %v9862 = vsel %vm9754, %v9816, 0.0
    %v9863 = vadd.f32 %v9861, %v9862
    %v9864 = vsel %vm9754, %v9818, 0.0
    %v9865 = vadd.f32 %v9863, %v9864
    %v9866 = vsel %vm9754, %v9820, 0.0
    %v9867 = vadd.f32 %v9865, %v9866
    %v9868 = vsel %vm9754, %v9822, 0.0
    %v9869 = vadd.f32 %v9867, %v9868
    %v9870 = vsel %vm9754, %v9824, 0.0
    %v9871 = vadd.f32 %v9869, %v9870
    %v9872 = vsel %vm9754, %v9826, 0.0
    %v9873 = vadd.f32 %v9871, %v9872
    %v9874 = vsel %vm9754, %v9828, 0.0
    %v9875 = vadd.f32 %v9873, %v9874
    %v9876 = vsel %vm9754, %v9830, 0.0
    %v9877 = vadd.f32 %v9875, %v9876
    %v9878 = vsel %vm9754, %v9832, 0.0
    %v9879 = vadd.f32 %v9877, %v9878
    %v9880 = vsel %vm9754, %v9834, 0.0
    %v9881 = vadd.f32 %v9879, %v9880
    %v9882 = vsel %vm9754, %v9836, 0.0
    %v9883 = vadd.f32 %v9881, %v9882
    %v9884 = vsel %vm9754, %v9838, 0.0
    %v9885 = vadd.f32 %v9883, %v9884
    %v9886 = vsel %vm9754, %v9840, 0.0
    %v9887 = vadd.f32 %v9885, %v9886
    %v9888 = vsel %vm9754, %v9842, 0.0
    %v9889 = vadd.f32 %v9887, %v9888
    %9890 = vadd.xlane.f32.xlu0 %v9889
    %v9891 = vpop.xlane.xlu0 %9890
    %v9892 = vrot.slane %v9891, 4
    %v9893 = vadd.f32 %v9891, %v9892
    %v9894 = vrot.slane %v9893, 2
    %v9895 = vadd.f32 %v9893, %v9894
    %v9896 = vrot.slane %v9895, 1
    %v9897 = vadd.f32 %v9895, %v9896
    %s9898 = vtos %v9897
    %s9899 = smax.f32 %s9898, 1.0
    %v9900 = vstv %s9899
    %v9901 = vrcp.pop %v9900
    %s9902 = vtos %v9901
    %s9903 = smul.f32 %s9794, %s9902
    %9904 = vst.msk [vmem:[#allocation2] sm:$0xff] %vm325, %v8612
    %9905 = vst.msk [vmem:[#allocation2 + $0x8] sm:$0xff] %vm325, %v8613
    %9906 = vst.msk [vmem:[#allocation2 + $0x10] sm:$0xff] %vm325, %v8614
    %9907 = vst.msk [vmem:[#allocation2 + $0x18] sm:$0xff] %vm325, %v8615
    %9908 = vst.msk [vmem:[#allocation2 + $0x20] sm:$0xff] %vm325, %v8616
    %9909 = vst.msk [vmem:[#allocation2 + $0x28] sm:$0xff] %vm325, %v8617
    %9910 = vst.msk [vmem:[#allocation2 + $0x30] sm:$0xff] %vm325, %v8618
    %9911 = vst.msk [vmem:[#allocation2 + $0x38] sm:$0xff] %vm325, %v8619
    %9912 = vst.msk [vmem:[#allocation2 + $0x40] sm:$0xff] %vm325, %v8620
    %9913 = vst.msk [vmem:[#allocation2 + $0x48] sm:$0xff] %vm325, %v8621
    %9914 = vst.msk [vmem:[#allocation2 + $0x50] sm:$0xff] %vm325, %v8622
    %9915 = vst.msk [vmem:[#allocation2 + $0x58] sm:$0xff] %vm325, %v8623
    %9916 = vst.msk [vmem:[#allocation2 + $0x60] sm:$0xff] %vm325, %v8624
    %9917 = vst.msk [vmem:[#allocation2 + $0x68] sm:$0xff] %vm325, %v8625
    %9918 = vst.msk [vmem:[#allocation2 + $0x70] sm:$0xff] %vm325, %v8626
    %9919 = vst.msk [vmem:[#allocation2 + $0x78] sm:$0xff] %vm325, %v8627
    %s9920 = sld [smem:[#allocation3]]
    %s9921 = scalar_lea.vmem [#allocation2], %s9920
    %v9922 = vld [vmem:[%s9921] sm:$0x1]
    %s9923 = sld [smem:[#allocation3 + $0x1]]
    %s9924 = sadd.s32 %s9923, 16
    %s9925 = scalar_lea.vmem [#allocation2], %s9924
    %v9926 = vld [vmem:[%s9925] sm:$0x1]
    %s9927 = sld [smem:[#allocation3 + $0x2]]
    %s9928 = sadd.s32 %s9927, 32
    %s9929 = scalar_lea.vmem [#allocation2], %s9928
    %v9930 = vld [vmem:[%s9929] sm:$0x1]
    %s9931 = sld [smem:[#allocation3 + $0x3]]
    %s9932 = sadd.s32 %s9931, 48
    %s9933 = scalar_lea.vmem [#allocation2], %s9932
    %v9934 = vld [vmem:[%s9933] sm:$0x1]
    %s9935 = sld [smem:[#allocation3 + $0x4]]
    %s9936 = sadd.s32 %s9935, 64
    %s9937 = scalar_lea.vmem [#allocation2], %s9936
    %v9938 = vld [vmem:[%s9937] sm:$0x1]
    %s9939 = sld [smem:[#allocation3 + $0x5]]
    %s9940 = sadd.s32 %s9939, 80
    %s9941 = scalar_lea.vmem [#allocation2], %s9940
    %v9942 = vld [vmem:[%s9941] sm:$0x1]
    %s9943 = sld [smem:[#allocation3 + $0x6]]
    %s9944 = sadd.s32 %s9943, 96
    %s9945 = scalar_lea.vmem [#allocation2], %s9944
    %v9946 = vld [vmem:[%s9945] sm:$0x1]
    %s9947 = sld [smem:[#allocation3 + $0x7]]
    %s9948 = sadd.s32 %s9947, 112
    %s9949 = scalar_lea.vmem [#allocation2], %s9948
    %v9950 = vld [vmem:[%s9949] sm:$0x1]
    %v9952 = vrot.slane %v9926, 7
    %v9955 = vrot.slane %v9930, 6
    %v9958 = vrot.slane %v9934, 5
    %v9961 = vrot.slane %v9938, 4
    %v9964 = vrot.slane %v9942, 3
    %v9967 = vrot.slane %v9946, 2
    %v9970 = vrot.slane %v9950, 1
    %vm9972 = vcmask 1040384
    %v9973 = vsel %vm9972, %v9922, %v9952
    %vm9974 = vcmask 1041408
    %v9975 = vsel %vm9974, %v9973, %v9955
    %vm9976 = vcmask 1042432
    %v9977 = vsel %vm9976, %v9975, %v9958
    %vm9978 = vcmask 1043456
    %v9979 = vsel %vm9978, %v9977, %v9961
    %vm9980 = vcmask 1044480
    %v9981 = vsel %vm9980, %v9979, %v9964
    %vm9982 = vcmask 1045504
    %v9983 = vsel %vm9982, %v9981, %v9967
    %vm9984 = vcmask 1046528
    %v9985 = vsel %vm9984, %v9983, %v9970
    %s9986 = sld [smem:[#allocation3 + $0x8]]
    %s9987 = scalar_lea.vmem [#allocation2], %s9986
    %v9988 = vld [vmem:[%s9987] sm:$0x1]
    %s9989 = sld [smem:[#allocation3 + $0x9]]
    %s9990 = sadd.s32 %s9989, 16
    %s9991 = scalar_lea.vmem [#allocation2], %s9990
    %v9992 = vld [vmem:[%s9991] sm:$0x1]
    %s9993 = sld [smem:[#allocation3 + $0xa]]
    %s9994 = sadd.s32 %s9993, 32
    %s9995 = scalar_lea.vmem [#allocation2], %s9994
    %v9996 = vld [vmem:[%s9995] sm:$0x1]
    %s9997 = sld [smem:[#allocation3 + $0xb]]
    %s9998 = sadd.s32 %s9997, 48
    %s9999 = scalar_lea.vmem [#allocation2], %s9998
    %v10000 = vld [vmem:[%s9999] sm:$0x1]
    %s10001 = sld [smem:[#allocation3 + $0xc]]
    %s10002 = sadd.s32 %s10001, 64
    %s10003 = scalar_lea.vmem [#allocation2], %s10002
    %v10004 = vld [vmem:[%s10003] sm:$0x1]
    %s10005 = sld [smem:[#allocation3 + $0xd]]
    %s10006 = sadd.s32 %s10005, 80
    %s10007 = scalar_lea.vmem [#allocation2], %s10006
    %v10008 = vld [vmem:[%s10007] sm:$0x1]
    %s10009 = sld [smem:[#allocation3 + $0xe]]
    %s10010 = sadd.s32 %s10009, 96
    %s10011 = scalar_lea.vmem [#allocation2], %s10010
    %v10012 = vld [vmem:[%s10011] sm:$0x1]
    %s10013 = sld [smem:[#allocation3 + $0xf]]
    %s10014 = sadd.s32 %s10013, 112
    %s10015 = scalar_lea.vmem [#allocation2], %s10014
    %v10016 = vld [vmem:[%s10015] sm:$0x1]
    %v10018 = vrot.slane %v9992, 7
    %v10021 = vrot.slane %v9996, 6
    %v10024 = vrot.slane %v10000, 5
    %v10027 = vrot.slane %v10004, 4
    %v10030 = vrot.slane %v10008, 3
    %v10033 = vrot.slane %v10012, 2
    %v10036 = vrot.slane %v10016, 1
    %v10038 = vsel %vm9972, %v9988, %v10018
    %v10039 = vsel %vm9974, %v10038, %v10021
    %v10040 = vsel %vm9976, %v10039, %v10024
    %v10041 = vsel %vm9978, %v10040, %v10027
    %v10042 = vsel %vm9980, %v10041, %v10030
    %v10043 = vsel %vm9982, %v10042, %v10033
    %v10044 = vsel %vm9984, %v10043, %v10036
    %v10045 = vmul.f32 %v9985, %v9985
    %v10046 = vmul.f32 %v10044, %v10044
    %v10047 = vadd.f32 %v10045, %v10046
    %v10048 = vsel %vm325, %v10047, 0.0
    %10049 = vadd.xlane.f32.xlu0 %v10048
    %v10050 = vpop.xlane.xlu0 %10049
    %v10051 = vrsqrt.pop %v10050
    %v10052 = vmul.f32 %v10050, %v10051
    %vm10053 = vcmp.eq.f32.partialorder %v10050, inf
    %v10054 = vsel %vm10053, %v10050, %v10052
    %vm10055 = vcmp.eq.f32.partialorder %v10050, 0.0
    %v10056 = vand.u32 %v10050, 2147483648
    %v10057 = vsel %vm10055, %v10056, %v10054
    %v10058 = vmax.f32 %v10057, 1e-12
    %v10059 = vrcp.pop %v10058
    %v10060 = vmul.f32 1.0, %v10059
    %v10061 = vmul.f32 %v9985, %v10060
    %v10062 = vmul.f32 %v10044, %v10060
    %v10064 = vsel %vm325, %v10062, 0
    %10066 = vmatprep.subr.mxu0 0.0
    %10067 = vmatpush1.xpose.msra.mxu0 %v10064
    %10068 = vmatprep.subr.mxu0 0.0
    %10069 = vmatpush1.xpose.msra.mxu0 0.0
    %10070 = vmatprep.subr.mxu0 0.0
    %10071 = vmatpush1.xpose.msra.mxu0 0.0
    %10072 = vmatprep.subr.mxu0 0.0
    %10073 = vmatpush1.xpose.msra.mxu0 0.0
    %10074 = vmatprep.subr.mxu0 0.0
    %10075 = vmatpush1.xpose.msra.mxu0 0.0
    %10076 = vmatprep.subr.mxu0 0.0
    %10077 = vmatpush1.xpose.msra.mxu0 0.0
    %10078 = vmatprep.subr.mxu0 0.0
    %10079 = vmatpush1.xpose.msra.mxu0 0.0
    %10080 = vmatprep.subr.mxu0 0.0
    %10081 = vmatpush1.xpose.msra.mxu0 0.0
    %10082 = vmatprep.subr.mxu0 0.0
    %10083 = vmatpush1.xpose.msra.mxu0 0.0
    %10084 = vmatprep.subr.mxu0 0.0
    %10085 = vmatpush1.xpose.msra.mxu0 0.0
    %10086 = vmatprep.subr.mxu0 0.0
    %10087 = vmatpush1.xpose.msra.mxu0 0.0
    %10088 = vmatprep.subr.mxu0 0.0
    %10089 = vmatpush1.xpose.msra.mxu0 0.0
    %10090 = vmatprep.subr.mxu0 0.0
    %10091 = vmatpush1.xpose.msra.mxu0 0.0
    %10092 = vmatprep.subr.mxu0 0.0
    %10093 = vmatpush1.xpose.msra.mxu0 0.0
    %10094 = vmatprep.subr.mxu0 0.0
    %10095 = vmatpush1.xpose.msra.mxu0 0.0
    %10096 = vmatprep.subr.mxu0 0.0
    %10097 = vmatpush1.xpose.msra.mxu0 0.0
    %10098 = vmatprep.subr.mxu0 0.0
    %10099 = vmatpush1.xpose.msra.mxu0 0.0
    %10100 = vmatprep.subr.mxu0 0.0
    %10101 = vmatpush1.xpose.msra.mxu0 0.0
    %10102 = vmatprep.subr.mxu0 0.0
    %10103 = vmatpush1.xpose.msra.mxu0 0.0
    %10104 = vmatprep.subr.mxu0 0.0
    %10105 = vmatpush1.xpose.msra.mxu0 0.0
    %10106 = vmatprep.subr.mxu0 0.0
    %10107 = vmatpush1.xpose.msra.mxu0 0.0
    %10108 = vmatprep.subr.mxu0 0.0
    %10109 = vmatpush1.xpose.msra.mxu0 0.0
    %10110 = vmatprep.subr.mxu0 0.0
    %10111 = vmatpush1.xpose.msra.mxu0 0.0
    %10112 = vmatprep.subr.mxu0 0.0
    %10113 = vmatpush1.xpose.msra.mxu0 0.0
    %10114 = vmatprep.subr.mxu0 0.0
    %10115 = vmatpush1.xpose.msra.mxu0 0.0
    %10116 = vmatprep.subr.mxu0 0.0
    %10117 = vmatpush1.xpose.msra.mxu0 0.0
    %10118 = vmatprep.subr.mxu0 0.0
    %10119 = vmatpush1.xpose.msra.mxu0 0.0
    %10120 = vmatprep.subr.mxu0 0.0
    %10121 = vmatpush1.xpose.msra.mxu0 0.0
    %10122 = vmatprep.subr.mxu0 0.0
    %10123 = vmatpush1.xpose.msra.mxu0 0.0
    %10124 = vmatprep.subr.mxu0 0.0
    %10125 = vmatpush1.xpose.msra.mxu0 0.0
    %10126 = vmatprep.subr.mxu0 0.0
    %10127 = vmatpush1.xpose.msra.mxu0 0.0
    %10128 = vmatprep.subr.mxu0 0.0
    %10129 = vmatpush1.xpose.msra.mxu0 0.0
    %10130 = vmatprep.mubr.f32.mxu0 0.0
    %10131 = vmatmul.mubr.f32.gmra.mrb[0].mxu0 %v10064
    %v10132 = vpop.f32.mrb[0].mxu0
    %v10133 = vadd.f32 0.0, %v10132
    %v10134 = vpop.f32.mrb[0].mxu0
    %10135 = vdwg.mxu0
    %v10137 = vsel %vm325, %v10061, 0
    %10139 = vmatprep.subr.mxu0 0.0
    %10140 = vmatpush1.xpose.msra.mxu0 %v10137
    %10141 = vmatprep.subr.mxu0 0.0
    %10142 = vmatpush1.xpose.msra.mxu0 0.0
    %10143 = vmatprep.subr.mxu0 0.0
    %10144 = vmatpush1.xpose.msra.mxu0 0.0
    %10145 = vmatprep.subr.mxu0 0.0
    %10146 = vmatpush1.xpose.msra.mxu0 0.0
    %10147 = vmatprep.subr.mxu0 0.0
    %10148 = vmatpush1.xpose.msra.mxu0 0.0
    %10149 = vmatprep.subr.mxu0 0.0
    %10150 = vmatpush1.xpose.msra.mxu0 0.0
    %10151 = vmatprep.subr.mxu0 0.0
    %10152 = vmatpush1.xpose.msra.mxu0 0.0
    %10153 = vmatprep.subr.mxu0 0.0
    %10154 = vmatpush1.xpose.msra.mxu0 0.0
    %10155 = vmatprep.subr.mxu0 0.0
    %10156 = vmatpush1.xpose.msra.mxu0 0.0
    %10157 = vmatprep.subr.mxu0 0.0
    %10158 = vmatpush1.xpose.msra.mxu0 0.0
    %10159 = vmatprep.subr.mxu0 0.0
    %10160 = vmatpush1.xpose.msra.mxu0 0.0
    %10161 = vmatprep.subr.mxu0 0.0
    %10162 = vmatpush1.xpose.msra.mxu0 0.0
    %10163 = vmatprep.subr.mxu0 0.0
    %10164 = vmatpush1.xpose.msra.mxu0 0.0
    %10165 = vmatprep.subr.mxu0 0.0
    %10166 = vmatpush1.xpose.msra.mxu0 0.0
    %10167 = vmatprep.subr.mxu0 0.0
    %10168 = vmatpush1.xpose.msra.mxu0 0.0
    %10169 = vmatprep.subr.mxu0 0.0
    %10170 = vmatpush1.xpose.msra.mxu0 0.0
    %10171 = vmatprep.subr.mxu0 0.0
    %10172 = vmatpush1.xpose.msra.mxu0 0.0
    %10173 = vmatprep.subr.mxu0 0.0
    %10174 = vmatpush1.xpose.msra.mxu0 0.0
    %10175 = vmatprep.subr.mxu0 0.0
    %10176 = vmatpush1.xpose.msra.mxu0 0.0
    %10177 = vmatprep.subr.mxu0 0.0
    %10178 = vmatpush1.xpose.msra.mxu0 0.0
    %10179 = vmatprep.subr.mxu0 0.0
    %10180 = vmatpush1.xpose.msra.mxu0 0.0
    %10181 = vmatprep.subr.mxu0 0.0
    %10182 = vmatpush1.xpose.msra.mxu0 0.0
    %10183 = vmatprep.subr.mxu0 0.0
    %10184 = vmatpush1.xpose.msra.mxu0 0.0
    %10185 = vmatprep.subr.mxu0 0.0
    %10186 = vmatpush1.xpose.msra.mxu0 0.0
    %10187 = vmatprep.subr.mxu0 0.0
    %10188 = vmatpush1.xpose.msra.mxu0 0.0
    %10189 = vmatprep.subr.mxu0 0.0
    %10190 = vmatpush1.xpose.msra.mxu0 0.0
    %10191 = vmatprep.subr.mxu0 0.0
    %10192 = vmatpush1.xpose.msra.mxu0 0.0
    %10193 = vmatprep.subr.mxu0 0.0
    %10194 = vmatpush1.xpose.msra.mxu0 0.0
    %10195 = vmatprep.subr.mxu0 0.0
    %10196 = vmatpush1.xpose.msra.mxu0 0.0
    %10197 = vmatprep.subr.mxu0 0.0
    %10198 = vmatpush1.xpose.msra.mxu0 0.0
    %10199 = vmatprep.subr.mxu0 0.0
    %10200 = vmatpush1.xpose.msra.mxu0 0.0
    %10201 = vmatprep.subr.mxu0 0.0
    %10202 = vmatpush1.xpose.msra.mxu0 0.0
    %10203 = vmatprep.mubr.f32.mxu0 0.0
    %10204 = vmatmul.mubr.f32.gmra.mrb[0].mxu0 %v10137
    %v10205 = vpop.f32.mrb[0].mxu0
    %v10206 = vadd.f32 %v10133, %v10205
    %v10207 = vpop.f32.mrb[0].mxu0
    %10208 = vdwg.mxu0
    %v10209 = vrcp.pop 0.05
    %v10210 = vmul.f32 %v10206, %v10209
    %v10211 = vld [vmem:[%s4] sm:$0xff]
    %v10212 = vld [vmem:[%s5] sm:$0x1]
    %10213 = vset.pattern.permute.xlu0 0
    %10214 = vperm.xlu0 %10213, %v10211
    %v10215 = vpop.permute.xlu0 %10214
    %v10216 = vlaneseq
    %v10217 = vshrl.u32 %v10216, 7
    %v10218 = vsub.s32 0, %v10217
    %v10219 = vrot.slane %v10212, %v10218
    %vm10220 = vcmp.eq.s32.totalorder %v10215, %v10219
    %v10221 = vlaneseq
    %v10222 = vshrl.u32 %v10221, 7
    %vm10223 = vcmp.eq.s32.totalorder %v10222, %v57
    %vm10224 = vmxor %vm10223, 1
    %vm10225 = vmand %vm10220, %vm10224
    %v10226 = vsel %vm10225, 1, 0
    %v10227 = vcvt.s32.f32 %v10226
    %vm10228 = vmxor %vm10220, 1
    %v10229 = vsel %vm10228, 1, 0
    %v10230 = vcvt.s32.f32 %v10229
    %vm10231 = vcmp.gt.f32.partialorder %v10230, 0.0
    %v10232 = vsel %vm10231, %v10210, -1e+30
    %vm10233 = vcmask 64512
    %v10234 = vsel %vm10233, %v10232, -inf
    %10235 = vmax.xlane.f32.xlu0 %v10234
    %v10236 = vpop.xlane.xlu0 %10235
    %v10237 = vsub.f32 %v10232, %v10236
    %v10238 = vmul.f32 %v10237, 1.442695
    %v10239 = vpow.pop %v10238
    %v10240 = vsel %vm10231, %v10239, 0.0
    %v10241 = vsel %vm10233, %v10240, 0.0
    %10242 = vadd.xlane.f32.xlu0 %v10241
    %v10243 = vpop.xlane.xlu0 %10242
    %v10244 = vmax.f32 %v10210, %v10236
    %v10245 = vsub.f32 %v10210, %v10244
    %v10246 = vmul.f32 %v10245, 1.442695
    %v10247 = vpow.pop %v10246
    %v10248 = vsub.f32 %v10236, %v10244
    %v10249 = vmul.f32 %v10248, 1.442695
    %v10250 = vpow.pop %v10249
    %v10251 = vmul.f32 %v10250, %v10243
    %v10252 = vadd.f32 %v10251, %v10247
    %v10253 = vrcp.pop %v10252
    %v10254 = vmul.f32 %v10247, %v10253
    %v10255 = vadd.f32 %v10254, 1e-20
    %v10256 = vlog2.pop %v10255
    %v10257 = vmul.f32 %v10256, 0.6931472
    %v10258 = vsel %vm10233, %v10227, 0.0
    %10259 = vadd.xlane.f32.xlu0 %v10258
    %v10260 = vpop.xlane.xlu0 %10259
    %v10261 = vrot.slane %v10260, 4
    %v10262 = vadd.f32 %v10260, %v10261
    %v10263 = vrot.slane %v10262, 2
    %v10264 = vadd.f32 %v10262, %v10263
    %v10265 = vrot.slane %v10264, 1
    %v10266 = vadd.f32 %v10264, %v10265
    %s10267 = vtos %v10266
    %v10268 = vsub.f32 0.0, %v10257
    %v10269 = vmul.f32 %v10268, %v10227
    %v10270 = vsel %vm10233, %v10269, 0.0
    %10271 = vadd.xlane.f32.xlu0 %v10270
    %v10272 = vpop.xlane.xlu0 %10271
    %v10273 = vrot.slane %v10272, 4
    %v10274 = vadd.f32 %v10272, %v10273
    %v10275 = vrot.slane %v10274, 2
    %v10276 = vadd.f32 %v10274, %v10275
    %v10277 = vrot.slane %v10276, 1
    %v10278 = vadd.f32 %v10276, %v10277
    %s10279 = vtos %v10278
    %s10280 = smax.f32 %s10267, 1.0
    %v10281 = vstv %s10280
    %v10282 = vrcp.pop %v10281
    %s10283 = vtos %v10282
    %s10284 = smul.f32 %s10279, %s10283
    %v10285 = vstv %s9903
    %v10286 = vstv %s10284
    %v10287 = vsel %vm9754, %v10285, %v10286
    %vm10288 = vcmask 8192
    %10289 = vst.msk [vmem:[%s7] sm:$0x1] %vm10288, %v10287
    // Predicated region
    $region34: #{cp_forward.1} parent=1 // pred_check
      _
    $region35: #{cp_forward.1} parent=1 // pred_check_branch
      %10291 = sbr.rel (0) target = $region37
    $region36: #{cp_forward.1} parent=1 // pred_region
      _
    $region37: #{cp_forward.1} parent=1 // pred_fallthru
      _
    // Predicated region
    $region38: #{cp_forward.1} parent=1 // pred_check
      _
    $region39: #{cp_forward.1} parent=1 // pred_check_branch
      %10293 = sbr.rel (0) target = $region41
    $region40: #{cp_forward.1} parent=1 // pred_region
      _
    $region41: #{cp_forward.1} parent=1 // pred_fallthru
      _
    %10294 = vsyncpa [#allocation4], 1

</llo_original>
